<compile_context>
chip_gen: v7x
topology: tpu7x:2x2x1
jax: 0.10.0
libtpu: 0.0.40
codegen_flags: <defaults>
</compile_context>

<pallas_src>
import jax
import jax.numpy as jnp
from jax import lax
from jax.experimental import pallas as pl
from jax.experimental.pallas import tpu as pltpu


DP = 128            # per-tap channel padding of embedding_dim (64 -> 128 lanes)
NL = 128            # packed output lane width: 4 phases x 32 channel slots
NK = NL // 4        # per-phase channel slot (holds up_kernel_size**2 = 25)


# ----------------------------------------------------------------------------
# Fused SemiShift kernel: one batch element per grid step, whole image in VMEM.
# ----------------------------------------------------------------------------
def _make_fused_kernel(sH, sW, H, W, dp, nl):
    HW = H * W
    bf16 = jnp.bfloat16
    f32 = jnp.float32

    def kernel(en_ref, de_ref, w1e_ref, b1e_ref, w1d_ref, wbig_ref, b2p_ref,
               o_ref, pad_en, pad_de, col_ref):
        # ---- 1x1 compress convs (bf16 operands -> single MXU pass, f32 acc).
        comp_en = jnp.dot(en_ref[0].astype(bf16), w1e_ref[...],
                          preferred_element_type=f32) + b1e_ref[...]   # (sH*sW, dp)
        comp_de = jnp.dot(de_ref[0].astype(bf16), w1d_ref[...],
                          preferred_element_type=f32)                   # (H*W, dp)

        # ---- zero ONLY the 1-pixel border of the padded scratch; the interior
        #      is fully overwritten every grid step.  (Do not guard this with
        #      program_id == 0: scratch is per-TensorCore under "parallel".)
        zrow_en = jnp.zeros((1, sW + 2, dp), f32)
        zcol_en = jnp.zeros((sH + 2, 1, dp), f32)
        pad_en[0:1, :, :] = zrow_en
        pad_en[sH + 1:sH + 2, :, :] = zrow_en
        pad_en[:, 0:1, :] = zcol_en
        pad_en[:, sW + 1:sW + 2, :] = zcol_en
        zrow_de = jnp.zeros((1, W + 2, dp), f32)
        zcol_de = jnp.zeros((H + 2, 1, dp), f32)
        pad_de[0:1, :, :] = zrow_de
        pad_de[H + 1:H + 2, :, :] = zrow_de
        pad_de[:, 0:1, :] = zcol_de
        pad_de[:, W + 1:W + 2, :] = zcol_de

        pad_en[1:sH + 1, 1:sW + 1, :] = comp_en.reshape(sH, sW, dp)
        pad_de[1:H + 1, 1:W + 1, :] = comp_de.reshape(H, W, dp)

        # ---- im2col at DECODER resolution, phase-major on the contraction
        #      axis: K-segments [ph*9 + t] hold the encoder taps of up-sample
        #      phase ph (stride-2 windows of pad_en), segments [36 + t] hold
        #      the decoder taps.  dp = 128, so every tap store is a full,
        #      128-lane-aligned, unmasked store.
        for ph in range(4):
            py, px = divmod(ph, 2)
            for t in range(9):
                i, j = divmod(t, 3)
                ks = slice((ph * 9 + t) * dp, (ph * 9 + t + 1) * dp)
                tap = pad_en[pl.ds(py + i, H, 2), pl.ds(px + j, W, 2), :]
                col_ref[:, ks] = tap.reshape(HW, dp).astype(bf16)
        for t in range(9):
            i, j = divmod(t, 3)
            ks = slice((36 + t) * dp, (36 + t + 1) * dp)
            tap = pad_de[i:i + H, j:j + W, :]
            col_ref[:, ks] = tap.reshape(HW, dp).astype(bf16)

        # ---- ONE MXU matmul: the block-diagonal / replicated structure of
        #      wbig makes this single dot compute the stride-2 3x3 conv of the
        #      encoder map for all four phases, the stride-1 3x3 conv of the
        #      decoder map, the nearest-2x upsample-add, and the phase packing
        #      onto lanes [32*ph, 32*ph + 25).
        res = jnp.dot(col_ref[...], wbig_ref[...],
                      preferred_element_type=f32)                       # (H*W, nl)

        # Each of the two F.conv2d calls adds conv2_bias once -> double bias.
        # Single lane-dense, full-width output store.
        o_ref[0, :, :, :] = (res + 2.0 * b2p_ref[...]).reshape(H, W, nl)

    return kernel


# ----------------------------------------------------------------------------
# SemiShift parameters (deterministic synthetic init; shapes match __init__).
# ----------------------------------------------------------------------------
def init_semishift_params(key, c_en, c_de, embedding_dim=64, up_kernel_size=5):
    D, K2 = embedding_dim, up_kernel_size ** 2
    k1, k2, k3, k4, k5 = jax.random.split(key, 5)
    w1_en = jax.random.normal(k1, (D, c_en, 1, 1), jnp.float32) * (2.0 / (c_en + D)) ** 0.5
    b1_en = jax.random.normal(k2, (D,), jnp.float32) * 0.05
    w1_de = jax.random.normal(k3, (D, c_de, 1, 1), jnp.float32) * (2.0 / (c_de + D)) ** 0.5
    w2 = jax.random.normal(k4, (K2, D, 3, 3), jnp.float32) * (2.0 / (9 * D + 9 * K2)) ** 0.5
    # nn.init.constant_(0) in the module; small nonzero values exercise the
    # double-bias semantics of the two F.conv2d calls.
    b2 = jax.random.normal(k5, (K2,), jnp.float32) * 0.05
    return dict(w1_en=w1_en, b1_en=b1_en, w1_de=w1_de, w2=w2, b2=b2)


# ----------------------------------------------------------------------------
# One-time weight preparation (hoisted out of the per-call forward).
# ----------------------------------------------------------------------------
def prepare_semishift_weights(params):
    D = params["w1_en"].shape[0]
    K2 = params["w2"].shape[0]
    assert D <= DP and K2 <= NK

    w1e = jnp.pad(params["w1_en"][:, :, 0, 0].T, ((0, 0), (0, DP - D))).astype(jnp.bfloat16)
    b1e = jnp.pad(params["b1_en"], (0, DP - D)).reshape(1, DP).astype(jnp.float32)
    w1d = jnp.pad(params["w1_de"][:, :, 0, 0].T, ((0, 0), (0, DP - D))).astype(jnp.bfloat16)

    # 3x3 weights as an im2col matrix with 128-lane tap slots: rows (3i+j)*DP+d.
    w3 = jnp.transpose(params["w2"], (2, 3, 1, 0))                # (3,3,D,K2): [i,j,d,k]
    w3 = jnp.pad(w3, ((0, 0), (0, 0), (0, DP - D), (0, 0)))       # pad d -> DP
    w3 = w3.reshape(9 * DP, K2)
    w3 = jnp.pad(w3, ((0, 0), (0, NK - K2)))                      # (9*DP, NK)

    # Encoder phase segments: block-diagonal (phase ph -> lane group ph).
    # Decoder segment: replicated across all four lane groups (adds the
    # half-resolution conv to every phase, i.e. the nearest-2x upsample-add).
    zero = jnp.zeros_like(w3)
    enc = [jnp.concatenate([w3 if g == ph else zero for g in range(4)], axis=1)
           for ph in range(4)]                                     # 4 x (9*DP, NL)
    dec = jnp.concatenate([w3] * 4, axis=1)                        # (9*DP, NL)
    wbig = jnp.concatenate(enc + [dec], axis=0).astype(jnp.bfloat16)   # (45*DP, NL)

    b2p = jnp.tile(jnp.pad(params["b2"], (0, NK - K2)), 4).reshape(1, NL).astype(jnp.float32)
    return dict(w1e=w1e, b1e=b1e, w1d=w1d, wbig=wbig, b2p=b2p)


# ----------------------------------------------------------------------------
# SemiShift forward (fused Pallas path).
# ----------------------------------------------------------------------------
def semishift_forward(prep, en_nchw, de_nchw, scale=2, up_kernel_size=5):
    assert scale == 2, "kernel is specialized to scale=2 (module default)"
    B, C_de, H, W = de_nchw.shape
    _, C_en, sH, sW = en_nchw.shape
    assert (sH, sW) == (scale * H, scale * W)
    K2 = up_kernel_size ** 2
    assert K2 <= NK

    # NCHW -> channels-last, spatial flattened (pure layout glue).
    en = jnp.transpose(en_nchw, (0, 2, 3, 1)).reshape(B, sH * sW, C_en)
    de = jnp.transpose(de_nchw, (0, 2, 3, 1)).reshape(B, H * W, C_de)

    kernel = _make_fused_kernel(sH, sW, H, W, DP, NL)
    out = pl.pallas_call(
        kernel,
        out_shape=jax.ShapeDtypeStruct((B, H, W, NL), jnp.float32),
        grid=(B,),
        in_specs=[
            pl.BlockSpec((1, sH * sW, C_en), lambda b: (b, 0, 0)),
            pl.BlockSpec((1, H * W, C_de), lambda b: (b, 0, 0)),
            pl.BlockSpec((C_en, DP), lambda b: (0, 0)),
            pl.BlockSpec((1, DP), lambda b: (0, 0)),
            pl.BlockSpec((C_de, DP), lambda b: (0, 0)),
            pl.BlockSpec((45 * DP, NL), lambda b: (0, 0)),
            pl.BlockSpec((1, NL), lambda b: (0, 0)),
        ],
        out_specs=pl.BlockSpec((1, H, W, NL), lambda b: (b, 0, 0, 0)),
        scratch_shapes=[
            pltpu.VMEM((sH + 2, sW + 2, DP), jnp.float32),   # padded compressed_en
            pltpu.VMEM((H + 2, W + 2, DP), jnp.float32),     # padded compressed_de
            pltpu.VMEM((H * W, 45 * DP), jnp.bfloat16),      # phase-major im2col
        ],
        compiler_params=pltpu.CompilerParams(
            dimension_semantics=("parallel",),   # batch axis -> both TCs on v7x
            # Safe on every generation (v7x physical VMEM is 64 MiB/TC); raise
            # toward ~96 MiB on v5e/v6e if larger (row-tiled) blocks are used.
            vmem_limit_bytes=48 * 1024 * 1024,
        ),
    )(en, de, prep["w1e"], prep["b1e"], prep["w1d"], prep["wbig"], prep["b2p"])

    # Phase-packed (B, y, x, 32*ph + k) -> full-res NCHW (XLA layout glue only).
    out = out.reshape(B, H, W, 4, NK)[..., :K2]          # drop padded channels
    out = out.reshape(B, H, W, 2, 2, K2).transpose(0, 1, 3, 2, 4, 5)
    out = out.reshape(B, sH, sW, K2)
    return jnp.transpose(out, (0, 3, 1, 2))              # (B, K2, sH, sW)


# ----------------------------------------------------------------------------
# Literal plain-JAX reference of the PyTorch graph (verification only, f32).
# ----------------------------------------------------------------------------
def semishift_reference(params, en, de, scale=2, up_kernel_size=5):
    dn = ("NCHW", "OIHW", "NCHW")
    B, _, H, W = de.shape
    K2 = up_kernel_size ** 2
    ce = lax.conv_general_dilated(en, params["w1_en"], (1, 1), "VALID",
                                  dimension_numbers=dn)
    ce = ce + params["b1_en"][None, :, None, None]
    cd = lax.conv_general_dilated(de, params["w1_de"], (1, 1), "VALID",
                                  dimension_numbers=dn)
    # F.pad order [l, r, t, b]  ->  (H-pad, W-pad) pairs:
    pad_hw = [((1, 0), (1, 0)), ((1, 0), (0, 1)), ((0, 1), (1, 0)), ((0, 1), (0, 1))]
    convs = []
    for ph, pw in pad_hw:
        p = jnp.pad(ce, ((0, 0), (0, 0), ph, pw))
        c = lax.conv_general_dilated(p, params["w2"], (2, 2), "VALID",
                                     dimension_numbers=dn)
        convs.append(c + params["b2"][None, :, None, None])
    conv_d = lax.conv_general_dilated(cd, params["w2"], (1, 1), ((1, 1), (1, 1)),
                                      dimension_numbers=dn)
    conv_d = conv_d + params["b2"][None, :, None, None]
    kernels = jnp.stack(convs, axis=1) + conv_d[:, None]        # (B,4,K2,H,W)
    x = kernels.reshape(B, scale ** 2 * K2, H, W)
    x = (x.transpose(0, 2, 3, 1)
          .reshape(B, H, W, scale, scale, K2)
          .transpose(0, 1, 3, 2, 4, 5)
          .reshape(B, scale * H, scale * W, K2)
          .transpose(0, 3, 1, 2))
    return x


if __name__ == "__main__":
    key = jax.random.PRNGKey(0)
    kp, ke, kd = jax.random.split(key, 3)

    B, C_en, C_de = 2, 6, 4
    H = W = 8                     # decoder spatial; encoder is 2x -> 16x16
    scale, embedding_dim, up_k = 2, 64, 5

    params = init_semishift_params(kp, C_en, C_de, embedding_dim, up_k)
    en = jax.random.normal(ke, (B, C_en, scale * H, scale * W), jnp.float32)
    de = jax.random.normal(kd, (B, C_de, H, W), jnp.float32)

    prep = prepare_semishift_weights(params)     # one-time weight preparation
    fwd = jax.jit(semishift_forward)             # whole forward under one jit

    out = jax.block_until_ready(fwd(prep, en, de))
    assert out.shape == (B, up_k ** 2, scale * H, scale * W), out.shape

    ref = jax.block_until_ready(
        semishift_reference(params, en, de, scale=scale, up_kernel_size=up_k))
    max_err = float(jnp.max(jnp.abs(out - ref)))
    # Tolerance accounts for bf16 MXU operands in the kernel (f32 accumulation,
    # f32 output); expected max abs error ~1e-2 on outputs of O(1) magnitude.
    assert jnp.allclose(out, ref, rtol=3e-2, atol=3e-2), f"max_err={max_err}"

    print("KERNEL_OK")
</pallas_src>

<mosaic_0001>
module attributes {stable_mosaic.version = 11 : i64} {
  func.func @kernel(%arg0: i32, %arg1: memref<1x256x6xf32, #tpu.memory_space<vmem>>, %arg2: memref<1x64x4xf32, #tpu.memory_space<vmem>>, %arg3: memref<6x128xbf16, #tpu.memory_space<vmem>>, %arg4: memref<1x128xf32, #tpu.memory_space<vmem>>, %arg5: memref<4x128xbf16, #tpu.memory_space<vmem>>, %arg6: memref<5760x128xbf16, #tpu.memory_space<vmem>>, %arg7: memref<1x128xf32, #tpu.memory_space<vmem>>, %arg8: memref<1x8x8x128xf32, #tpu.memory_space<vmem>>, %arg9: memref<18x18x128xf32, #tpu.memory_space<vmem>>, %arg10: memref<10x10x128xf32, #tpu.memory_space<vmem>>, %arg11: memref<64x5760xbf16, #tpu.memory_space<vmem>>) attributes {dimension_semantics = [#tpu.dimension_semantics<parallel>], iteration_bounds = array<i64: 2>, scalar_prefetch = 0 : i64, scratch_operands = 3 : i64, tpu.core_type = #tpu.core_type<tc>, window_params = [{transform_indices = @transform_0, window_bounds = array<i64: 1, 256, 6>}, {transform_indices = @transform_1, window_bounds = array<i64: 1, 64, 4>}, {pipeline_mode = #tpu.pipeline_mode<synchronous>, transform_indices = @transform_2, window_bounds = array<i64: 6, 128>}, {pipeline_mode = #tpu.pipeline_mode<synchronous>, transform_indices = @transform_3, window_bounds = array<i64: 1, 128>}, {pipeline_mode = #tpu.pipeline_mode<synchronous>, transform_indices = @transform_4, window_bounds = array<i64: 4, 128>}, {pipeline_mode = #tpu.pipeline_mode<synchronous>, transform_indices = @transform_5, window_bounds = array<i64: 5760, 128>}, {pipeline_mode = #tpu.pipeline_mode<synchronous>, transform_indices = @transform_6, window_bounds = array<i64: 1, 128>}, {transform_indices = @transform_7, window_bounds = array<i64: 1, 8, 8, 128>}]} {
    %c0 = arith.constant 0 : index
    %c0_0 = arith.constant 0 : index
    %c0_1 = arith.constant 0 : index
    %0 = vector.load %arg1[%c0, %c0_0, %c0_1] : memref<1x256x6xf32, #tpu.memory_space<vmem>>, vector<1x256x6xf32>
    %1 = vector.shape_cast %0 : vector<1x256x6xf32> to vector<256x6xf32>
    %2 = arith.truncf %1 : vector<256x6xf32> to vector<256x6xbf16>
    %c0_2 = arith.constant 0 : index
    %c0_3 = arith.constant 0 : index
    %3 = vector.load %arg3[%c0_2, %c0_3] : memref<6x128xbf16, #tpu.memory_space<vmem>>, vector<6x128xbf16>
    %cst = arith.constant dense<0.000000e+00> : vector<256x128xf32>
    %4 = tpu.matmul %2, %3, %cst {dimension_numbers = #tpu.dot_dimension_numbers<[1], [0], [0], [1], [0, 0, 1, 1], [], []>} : vector<256x6xbf16>, vector<6x128xbf16>, vector<256x128xf32> -> vector<256x128xf32>
    %c0_4 = arith.constant 0 : index
    %c0_5 = arith.constant 0 : index
    %5 = vector.load %arg4[%c0_4, %c0_5] : memref<1x128xf32, #tpu.memory_space<vmem>>, vector<1x128xf32>
    %6 = vector.broadcast %5 : vector<1x128xf32> to vector<256x128xf32>
    %7 = arith.addf %4, %6 : vector<256x128xf32>
    %c0_6 = arith.constant 0 : index
    %c0_7 = arith.constant 0 : index
    %c0_8 = arith.constant 0 : index
    %8 = vector.load %arg2[%c0_6, %c0_7, %c0_8] : memref<1x64x4xf32, #tpu.memory_space<vmem>>, vector<1x64x4xf32>
    %9 = vector.shape_cast %8 : vector<1x64x4xf32> to vector<64x4xf32>
    %10 = arith.truncf %9 : vector<64x4xf32> to vector<64x4xbf16>
    %c0_9 = arith.constant 0 : index
    %c0_10 = arith.constant 0 : index
    %11 = vector.load %arg5[%c0_9, %c0_10] : memref<4x128xbf16, #tpu.memory_space<vmem>>, vector<4x128xbf16>
    %cst_11 = arith.constant dense<0.000000e+00> : vector<64x128xf32>
    %12 = tpu.matmul %10, %11, %cst_11 {dimension_numbers = #tpu.dot_dimension_numbers<[1], [0], [0], [1], [0, 0, 1, 1], [], []>} : vector<64x4xbf16>, vector<4x128xbf16>, vector<64x128xf32> -> vector<64x128xf32>
    %cst_12 = arith.constant 0.000000e+00 : f32
    %13 = vector.broadcast %cst_12 : f32 to vector<1x18x128xf32>
    %cst_13 = arith.constant 0.000000e+00 : f32
    %14 = vector.broadcast %cst_13 : f32 to vector<18x1x128xf32>
    %c0_14 = arith.constant 0 : index
    %c0_15 = arith.constant 0 : index
    %c0_16 = arith.constant 0 : index
    %15 = vector.load %arg9[%c0_14, %c0_15, %c0_16] : memref<18x18x128xf32, #tpu.memory_space<vmem>>, vector<1x18x128xf32>
    tpu.vector_store %arg9[%c0_14, %c0_15, %c0_16], %13 {strides = array<i32>} : memref<18x18x128xf32, #tpu.memory_space<vmem>>, vector<1x18x128xf32>,
    %c17 = arith.constant 17 : index
    %c0_17 = arith.constant 0 : index
    %c0_18 = arith.constant 0 : index
    %16 = vector.load %arg9[%c17, %c0_17, %c0_18] : memref<18x18x128xf32, #tpu.memory_space<vmem>>, vector<1x18x128xf32>
    tpu.vector_store %arg9[%c17, %c0_17, %c0_18], %13 {strides = array<i32>} : memref<18x18x128xf32, #tpu.memory_space<vmem>>, vector<1x18x128xf32>,
    %c0_19 = arith.constant 0 : index
    %c0_20 = arith.constant 0 : index
    %c0_21 = arith.constant 0 : index
    %17 = vector.load %arg9[%c0_19, %c0_20, %c0_21] : memref<18x18x128xf32, #tpu.memory_space<vmem>>, vector<18x1x128xf32>
    tpu.vector_store %arg9[%c0_19, %c0_20, %c0_21], %14 {strides = array<i32>} : memref<18x18x128xf32, #tpu.memory_space<vmem>>, vector<18x1x128xf32>,
    %c0_22 = arith.constant 0 : index
    %c17_23 = arith.constant 17 : index
    %c0_24 = arith.constant 0 : index
    %18 = vector.load %arg9[%c0_22, %c17_23, %c0_24] : memref<18x18x128xf32, #tpu.memory_space<vmem>>, vector<18x1x128xf32>
    tpu.vector_store %arg9[%c0_22, %c17_23, %c0_24], %14 {strides = array<i32>} : memref<18x18x128xf32, #tpu.memory_space<vmem>>, vector<18x1x128xf32>,
    %cst_25 = arith.constant 0.000000e+00 : f32
    %19 = vector.broadcast %cst_25 : f32 to vector<1x10x128xf32>
    %cst_26 = arith.constant 0.000000e+00 : f32
    %20 = vector.broadcast %cst_26 : f32 to vector<10x1x128xf32>
    %c0_27 = arith.constant 0 : index
    %c0_28 = arith.constant 0 : index
    %c0_29 = arith.constant 0 : index
    %21 = vector.load %arg10[%c0_27, %c0_28, %c0_29] : memref<10x10x128xf32, #tpu.memory_space<vmem>>, vector<1x10x128xf32>
    tpu.vector_store %arg10[%c0_27, %c0_28, %c0_29], %19 {strides = array<i32>} : memref<10x10x128xf32, #tpu.memory_space<vmem>>, vector<1x10x128xf32>,
    %c9 = arith.constant 9 : index
    %c0_30 = arith.constant 0 : index
    %c0_31 = arith.constant 0 : index
    %22 = vector.load %arg10[%c9, %c0_30, %c0_31] : memref<10x10x128xf32, #tpu.memory_space<vmem>>, vector<1x10x128xf32>
    tpu.vector_store %arg10[%c9, %c0_30, %c0_31], %19 {strides = array<i32>} : memref<10x10x128xf32, #tpu.memory_space<vmem>>, vector<1x10x128xf32>,
    %c0_32 = arith.constant 0 : index
    %c0_33 = arith.constant 0 : index
    %c0_34 = arith.constant 0 : index
    %23 = vector.load %arg10[%c0_32, %c0_33, %c0_34] : memref<10x10x128xf32, #tpu.memory_space<vmem>>, vector<10x1x128xf32>
    tpu.vector_store %arg10[%c0_32, %c0_33, %c0_34], %20 {strides = array<i32>} : memref<10x10x128xf32, #tpu.memory_space<vmem>>, vector<10x1x128xf32>,
    %c0_35 = arith.constant 0 : index
    %c9_36 = arith.constant 9 : index
    %c0_37 = arith.constant 0 : index
    %24 = vector.load %arg10[%c0_35, %c9_36, %c0_37] : memref<10x10x128xf32, #tpu.memory_space<vmem>>, vector<10x1x128xf32>
    tpu.vector_store %arg10[%c0_35, %c9_36, %c0_37], %20 {strides = array<i32>} : memref<10x10x128xf32, #tpu.memory_space<vmem>>, vector<10x1x128xf32>,
    %25 = vector.shape_cast %7 : vector<256x128xf32> to vector<16x16x128xf32>
    %c1 = arith.constant 1 : index
    %c1_38 = arith.constant 1 : index
    %c0_39 = arith.constant 0 : index
    %26 = vector.load %arg9[%c1, %c1_38, %c0_39] : memref<18x18x128xf32, #tpu.memory_space<vmem>>, vector<16x16x128xf32>
    tpu.vector_store %arg9[%c1, %c1_38, %c0_39], %25 {strides = array<i32>} : memref<18x18x128xf32, #tpu.memory_space<vmem>>, vector<16x16x128xf32>,
    %27 = vector.shape_cast %12 : vector<64x128xf32> to vector<8x8x128xf32>
    %c1_40 = arith.constant 1 : index
    %c1_41 = arith.constant 1 : index
    %c0_42 = arith.constant 0 : index
    %28 = vector.load %arg10[%c1_40, %c1_41, %c0_42] : memref<10x10x128xf32, #tpu.memory_space<vmem>>, vector<8x8x128xf32>
    tpu.vector_store %arg10[%c1_40, %c1_41, %c0_42], %27 {strides = array<i32>} : memref<10x10x128xf32, #tpu.memory_space<vmem>>, vector<8x8x128xf32>,
    %c0_43 = arith.constant 0 : index
    %c0_44 = arith.constant 0 : index
    %c0_45 = arith.constant 0 : index
    %29 = tpu.strided_load %arg9[%c0_43, %c0_44, %c0_45] {strides = array<i32: 2, 2, 1>} : memref<18x18x128xf32, #tpu.memory_space<vmem>>, vector<8x8x128xf32>
    %30 = vector.shape_cast %29 : vector<8x8x128xf32> to vector<64x128xf32>
    %31 = arith.truncf %30 : vector<64x128xf32> to vector<64x128xbf16>
    %c0_46 = arith.constant 0 : index
    %c0_47 = arith.constant 0 : index
    %32 = vector.load %arg11[%c0_46, %c0_47] : memref<64x5760xbf16, #tpu.memory_space<vmem>>, vector<64x128xbf16>
    tpu.vector_store %arg11[%c0_46, %c0_47], %31 {strides = array<i32>} : memref<64x5760xbf16, #tpu.memory_space<vmem>>, vector<64x128xbf16>,
    %c0_48 = arith.constant 0 : index
    %c1_49 = arith.constant 1 : index
    %c0_50 = arith.constant 0 : index
    %33 = tpu.strided_load %arg9[%c0_48, %c1_49, %c0_50] {strides = array<i32: 2, 2, 1>} : memref<18x18x128xf32, #tpu.memory_space<vmem>>, vector<8x8x128xf32>
    %34 = vector.shape_cast %33 : vector<8x8x128xf32> to vector<64x128xf32>
    %35 = arith.truncf %34 : vector<64x128xf32> to vector<64x128xbf16>
    %c0_51 = arith.constant 0 : index
    %c128 = arith.constant 128 : index
    %36 = vector.load %arg11[%c0_51, %c128] : memref<64x5760xbf16, #tpu.memory_space<vmem>>, vector<64x128xbf16>
    tpu.vector_store %arg11[%c0_51, %c128], %35 {strides = array<i32>} : memref<64x5760xbf16, #tpu.memory_space<vmem>>, vector<64x128xbf16>,
    %c0_52 = arith.constant 0 : index
    %c2 = arith.constant 2 : index
    %c0_53 = arith.constant 0 : index
    %37 = tpu.strided_load %arg9[%c0_52, %c2, %c0_53] {strides = array<i32: 2, 2, 1>} : memref<18x18x128xf32, #tpu.memory_space<vmem>>, vector<8x8x128xf32>
    %38 = vector.shape_cast %37 : vector<8x8x128xf32> to vector<64x128xf32>
    %39 = arith.truncf %38 : vector<64x128xf32> to vector<64x128xbf16>
    %c0_54 = arith.constant 0 : index
    %c256 = arith.constant 256 : index
    %40 = vector.load %arg11[%c0_54, %c256] : memref<64x5760xbf16, #tpu.memory_space<vmem>>, vector<64x128xbf16>
    tpu.vector_store %arg11[%c0_54, %c256], %39 {strides = array<i32>} : memref<64x5760xbf16, #tpu.memory_space<vmem>>, vector<64x128xbf16>,
    %c1_55 = arith.constant 1 : index
    %c0_56 = arith.constant 0 : index
    %c0_57 = arith.constant 0 : index
    %41 = tpu.strided_load %arg9[%c1_55, %c0_56, %c0_57] {strides = array<i32: 2, 2, 1>} : memref<18x18x128xf32, #tpu.memory_space<vmem>>, vector<8x8x128xf32>
    %42 = vector.shape_cast %41 : vector<8x8x128xf32> to vector<64x128xf32>
    %43 = arith.truncf %42 : vector<64x128xf32> to vector<64x128xbf16>
    %c0_58 = arith.constant 0 : index
    %c384 = arith.constant 384 : index
    %44 = vector.load %arg11[%c0_58, %c384] : memref<64x5760xbf16, #tpu.memory_space<vmem>>, vector<64x128xbf16>
    tpu.vector_store %arg11[%c0_58, %c384], %43 {strides = array<i32>} : memref<64x5760xbf16, #tpu.memory_space<vmem>>, vector<64x128xbf16>,
    %c1_59 = arith.constant 1 : index
    %c1_60 = arith.constant 1 : index
    %c0_61 = arith.constant 0 : index
    %45 = tpu.strided_load %arg9[%c1_59, %c1_60, %c0_61] {strides = array<i32: 2, 2, 1>} : memref<18x18x128xf32, #tpu.memory_space<vmem>>, vector<8x8x128xf32>
    %46 = vector.shape_cast %45 : vector<8x8x128xf32> to vector<64x128xf32>
    %47 = arith.truncf %46 : vector<64x128xf32> to vector<64x128xbf16>
    %c0_62 = arith.constant 0 : index
    %c512 = arith.constant 512 : index
    %48 = vector.load %arg11[%c0_62, %c512] : memref<64x5760xbf16, #tpu.memory_space<vmem>>, vector<64x128xbf16>
    tpu.vector_store %arg11[%c0_62, %c512], %47 {strides = array<i32>} : memref<64x5760xbf16, #tpu.memory_space<vmem>>, vector<64x128xbf16>,
    %c1_63 = arith.constant 1 : index
    %c2_64 = arith.constant 2 : index
    %c0_65 = arith.constant 0 : index
    %49 = tpu.strided_load %arg9[%c1_63, %c2_64, %c0_65] {strides = array<i32: 2, 2, 1>} : memref<18x18x128xf32, #tpu.memory_space<vmem>>, vector<8x8x128xf32>
    %50 = vector.shape_cast %49 : vector<8x8x128xf32> to vector<64x128xf32>
    %51 = arith.truncf %50 : vector<64x128xf32> to vector<64x128xbf16>
    %c0_66 = arith.constant 0 : index
    %c640 = arith.constant 640 : index
    %52 = vector.load %arg11[%c0_66, %c640] : memref<64x5760xbf16, #tpu.memory_space<vmem>>, vector<64x128xbf16>
    tpu.vector_store %arg11[%c0_66, %c640], %51 {strides = array<i32>} : memref<64x5760xbf16, #tpu.memory_space<vmem>>, vector<64x128xbf16>,
    %c2_67 = arith.constant 2 : index
    %c0_68 = arith.constant 0 : index
    %c0_69 = arith.constant 0 : index
    %53 = tpu.strided_load %arg9[%c2_67, %c0_68, %c0_69] {strides = array<i32: 2, 2, 1>} : memref<18x18x128xf32, #tpu.memory_space<vmem>>, vector<8x8x128xf32>
    %54 = vector.shape_cast %53 : vector<8x8x128xf32> to vector<64x128xf32>
    %55 = arith.truncf %54 : vector<64x128xf32> to vector<64x128xbf16>
    %c0_70 = arith.constant 0 : index
    %c768 = arith.constant 768 : index
    %56 = vector.load %arg11[%c0_70, %c768] : memref<64x5760xbf16, #tpu.memory_space<vmem>>, vector<64x128xbf16>
    tpu.vector_store %arg11[%c0_70, %c768], %55 {strides = array<i32>} : memref<64x5760xbf16, #tpu.memory_space<vmem>>, vector<64x128xbf16>,
    %c2_71 = arith.constant 2 : index
    %c1_72 = arith.constant 1 : index
    %c0_73 = arith.constant 0 : index
    %57 = tpu.strided_load %arg9[%c2_71, %c1_72, %c0_73] {strides = array<i32: 2, 2, 1>} : memref<18x18x128xf32, #tpu.memory_space<vmem>>, vector<8x8x128xf32>
    %58 = vector.shape_cast %57 : vector<8x8x128xf32> to vector<64x128xf32>
    %59 = arith.truncf %58 : vector<64x128xf32> to vector<64x128xbf16>
    %c0_74 = arith.constant 0 : index
    %c896 = arith.constant 896 : index
    %60 = vector.load %arg11[%c0_74, %c896] : memref<64x5760xbf16, #tpu.memory_space<vmem>>, vector<64x128xbf16>
    tpu.vector_store %arg11[%c0_74, %c896], %59 {strides = array<i32>} : memref<64x5760xbf16, #tpu.memory_space<vmem>>, vector<64x128xbf16>,
    %c2_75 = arith.constant 2 : index
    %c2_76 = arith.constant 2 : index
    %c0_77 = arith.constant 0 : index
    %61 = tpu.strided_load %arg9[%c2_75, %c2_76, %c0_77] {strides = array<i32: 2, 2, 1>} : memref<18x18x128xf32, #tpu.memory_space<vmem>>, vector<8x8x128xf32>
    %62 = vector.shape_cast %61 : vector<8x8x128xf32> to vector<64x128xf32>
    %63 = arith.truncf %62 : vector<64x128xf32> to vector<64x128xbf16>
    %c0_78 = arith.constant 0 : index
    %c1024 = arith.constant 1024 : index
    %64 = vector.load %arg11[%c0_78, %c1024] : memref<64x5760xbf16, #tpu.memory_space<vmem>>, vector<64x128xbf16>
    tpu.vector_store %arg11[%c0_78, %c1024], %63 {strides = array<i32>} : memref<64x5760xbf16, #tpu.memory_space<vmem>>, vector<64x128xbf16>,
    %c0_79 = arith.constant 0 : index
    %c1_80 = arith.constant 1 : index
    %c0_81 = arith.constant 0 : index
    %65 = tpu.strided_load %arg9[%c0_79, %c1_80, %c0_81] {strides = array<i32: 2, 2, 1>} : memref<18x18x128xf32, #tpu.memory_space<vmem>>, vector<8x8x128xf32>
    %66 = vector.shape_cast %65 : vector<8x8x128xf32> to vector<64x128xf32>
    %67 = arith.truncf %66 : vector<64x128xf32> to vector<64x128xbf16>
    %c0_82 = arith.constant 0 : index
    %c1152 = arith.constant 1152 : index
    %68 = vector.load %arg11[%c0_82, %c1152] : memref<64x5760xbf16, #tpu.memory_space<vmem>>, vector<64x128xbf16>
    tpu.vector_store %arg11[%c0_82, %c1152], %67 {strides = array<i32>} : memref<64x5760xbf16, #tpu.memory_space<vmem>>, vector<64x128xbf16>,
    %c0_83 = arith.constant 0 : index
    %c2_84 = arith.constant 2 : index
    %c0_85 = arith.constant 0 : index
    %69 = tpu.strided_load %arg9[%c0_83, %c2_84, %c0_85] {strides = array<i32: 2, 2, 1>} : memref<18x18x128xf32, #tpu.memory_space<vmem>>, vector<8x8x128xf32>
    %70 = vector.shape_cast %69 : vector<8x8x128xf32> to vector<64x128xf32>
    %71 = arith.truncf %70 : vector<64x128xf32> to vector<64x128xbf16>
    %c0_86 = arith.constant 0 : index
    %c1280 = arith.constant 1280 : index
    %72 = vector.load %arg11[%c0_86, %c1280] : memref<64x5760xbf16, #tpu.memory_space<vmem>>, vector<64x128xbf16>
    tpu.vector_store %arg11[%c0_86, %c1280], %71 {strides = array<i32>} : memref<64x5760xbf16, #tpu.memory_space<vmem>>, vector<64x128xbf16>,
    %c0_87 = arith.constant 0 : index
    %c3 = arith.constant 3 : index
    %c0_88 = arith.constant 0 : index
    %73 = tpu.strided_load %arg9[%c0_87, %c3, %c0_88] {strides = array<i32: 2, 2, 1>} : memref<18x18x128xf32, #tpu.memory_space<vmem>>, vector<8x8x128xf32>
    %74 = vector.shape_cast %73 : vector<8x8x128xf32> to vector<64x128xf32>
    %75 = arith.truncf %74 : vector<64x128xf32> to vector<64x128xbf16>
    %c0_89 = arith.constant 0 : index
    %c1408 = arith.constant 1408 : index
    %76 = vector.load %arg11[%c0_89, %c1408] : memref<64x5760xbf16, #tpu.memory_space<vmem>>, vector<64x128xbf16>
    tpu.vector_store %arg11[%c0_89, %c1408], %75 {strides = array<i32>} : memref<64x5760xbf16, #tpu.memory_space<vmem>>, vector<64x128xbf16>,
    %c1_90 = arith.constant 1 : index
    %c1_91 = arith.constant 1 : index
    %c0_92 = arith.constant 0 : index
    %77 = tpu.strided_load %arg9[%c1_90, %c1_91, %c0_92] {strides = array<i32: 2, 2, 1>} : memref<18x18x128xf32, #tpu.memory_space<vmem>>, vector<8x8x128xf32>
    %78 = vector.shape_cast %77 : vector<8x8x128xf32> to vector<64x128xf32>
    %79 = arith.truncf %78 : vector<64x128xf32> to vector<64x128xbf16>
    %c0_93 = arith.constant 0 : index
    %c1536 = arith.constant 1536 : index
    %80 = vector.load %arg11[%c0_93, %c1536] : memref<64x5760xbf16, #tpu.memory_space<vmem>>, vector<64x128xbf16>
    tpu.vector_store %arg11[%c0_93, %c1536], %79 {strides = array<i32>} : memref<64x5760xbf16, #tpu.memory_space<vmem>>, vector<64x128xbf16>,
    %c1_94 = arith.constant 1 : index
    %c2_95 = arith.constant 2 : index
    %c0_96 = arith.constant 0 : index
    %81 = tpu.strided_load %arg9[%c1_94, %c2_95, %c0_96] {strides = array<i32: 2, 2, 1>} : memref<18x18x128xf32, #tpu.memory_space<vmem>>, vector<8x8x128xf32>
    %82 = vector.shape_cast %81 : vector<8x8x128xf32> to vector<64x128xf32>
    %83 = arith.truncf %82 : vector<64x128xf32> to vector<64x128xbf16>
    %c0_97 = arith.constant 0 : index
    %c1664 = arith.constant 1664 : index
    %84 = vector.load %arg11[%c0_97, %c1664] : memref<64x5760xbf16, #tpu.memory_space<vmem>>, vector<64x128xbf16>
    tpu.vector_store %arg11[%c0_97, %c1664], %83 {strides = array<i32>} : memref<64x5760xbf16, #tpu.memory_space<vmem>>, vector<64x128xbf16>,
    %c1_98 = arith.constant 1 : index
    %c3_99 = arith.constant 3 : index
    %c0_100 = arith.constant 0 : index
    %85 = tpu.strided_load %arg9[%c1_98, %c3_99, %c0_100] {strides = array<i32: 2, 2, 1>} : memref<18x18x128xf32, #tpu.memory_space<vmem>>, vector<8x8x128xf32>
    %86 = vector.shape_cast %85 : vector<8x8x128xf32> to vector<64x128xf32>
    %87 = arith.truncf %86 : vector<64x128xf32> to vector<64x128xbf16>
    %c0_101 = arith.constant 0 : index
    %c1792 = arith.constant 1792 : index
    %88 = vector.load %arg11[%c0_101, %c1792] : memref<64x5760xbf16, #tpu.memory_space<vmem>>, vector<64x128xbf16>
    tpu.vector_store %arg11[%c0_101, %c1792], %87 {strides = array<i32>} : memref<64x5760xbf16, #tpu.memory_space<vmem>>, vector<64x128xbf16>,
    %c2_102 = arith.constant 2 : index
    %c1_103 = arith.constant 1 : index
    %c0_104 = arith.constant 0 : index
    %89 = tpu.strided_load %arg9[%c2_102, %c1_103, %c0_104] {strides = array<i32: 2, 2, 1>} : memref<18x18x128xf32, #tpu.memory_space<vmem>>, vector<8x8x128xf32>
    %90 = vector.shape_cast %89 : vector<8x8x128xf32> to vector<64x128xf32>
    %91 = arith.truncf %90 : vector<64x128xf32> to vector<64x128xbf16>
    %c0_105 = arith.constant 0 : index
    %c1920 = arith.constant 1920 : index
    %92 = vector.load %arg11[%c0_105, %c1920] : memref<64x5760xbf16, #tpu.memory_space<vmem>>, vector<64x128xbf16>
    tpu.vector_store %arg11[%c0_105, %c1920], %91 {strides = array<i32>} : memref<64x5760xbf16, #tpu.memory_space<vmem>>, vector<64x128xbf16>,
    %c2_106 = arith.constant 2 : index
    %c2_107 = arith.constant 2 : index
    %c0_108 = arith.constant 0 : index
    %93 = tpu.strided_load %arg9[%c2_106, %c2_107, %c0_108] {strides = array<i32: 2, 2, 1>} : memref<18x18x128xf32, #tpu.memory_space<vmem>>, vector<8x8x128xf32>
    %94 = vector.shape_cast %93 : vector<8x8x128xf32> to vector<64x128xf32>
    %95 = arith.truncf %94 : vector<64x128xf32> to vector<64x128xbf16>
    %c0_109 = arith.constant 0 : index
    %c2048 = arith.constant 2048 : index
    %96 = vector.load %arg11[%c0_109, %c2048] : memref<64x5760xbf16, #tpu.memory_space<vmem>>, vector<64x128xbf16>
    tpu.vector_store %arg11[%c0_109, %c2048], %95 {strides = array<i32>} : memref<64x5760xbf16, #tpu.memory_space<vmem>>, vector<64x128xbf16>,
    %c2_110 = arith.constant 2 : index
    %c3_111 = arith.constant 3 : index
    %c0_112 = arith.constant 0 : index
    %97 = tpu.strided_load %arg9[%c2_110, %c3_111, %c0_112] {strides = array<i32: 2, 2, 1>} : memref<18x18x128xf32, #tpu.memory_space<vmem>>, vector<8x8x128xf32>
    %98 = vector.shape_cast %97 : vector<8x8x128xf32> to vector<64x128xf32>
    %99 = arith.truncf %98 : vector<64x128xf32> to vector<64x128xbf16>
    %c0_113 = arith.constant 0 : index
    %c2176 = arith.constant 2176 : index
    %100 = vector.load %arg11[%c0_113, %c2176] : memref<64x5760xbf16, #tpu.memory_space<vmem>>, vector<64x128xbf16>
    tpu.vector_store %arg11[%c0_113, %c2176], %99 {strides = array<i32>} : memref<64x5760xbf16, #tpu.memory_space<vmem>>, vector<64x128xbf16>,
    %c1_114 = arith.constant 1 : index
    %c0_115 = arith.constant 0 : index
    %c0_116 = arith.constant 0 : index
    %101 = tpu.strided_load %arg9[%c1_114, %c0_115, %c0_116] {strides = array<i32: 2, 2, 1>} : memref<18x18x128xf32, #tpu.memory_space<vmem>>, vector<8x8x128xf32>
    %102 = vector.shape_cast %101 : vector<8x8x128xf32> to vector<64x128xf32>
    %103 = arith.truncf %102 : vector<64x128xf32> to vector<64x128xbf16>
    %c0_117 = arith.constant 0 : index
    %c2304 = arith.constant 2304 : index
    %104 = vector.load %arg11[%c0_117, %c2304] : memref<64x5760xbf16, #tpu.memory_space<vmem>>, vector<64x128xbf16>
    tpu.vector_store %arg11[%c0_117, %c2304], %103 {strides = array<i32>} : memref<64x5760xbf16, #tpu.memory_space<vmem>>, vector<64x128xbf16>,
    %c1_118 = arith.constant 1 : index
    %c1_119 = arith.constant 1 : index
    %c0_120 = arith.constant 0 : index
    %105 = tpu.strided_load %arg9[%c1_118, %c1_119, %c0_120] {strides = array<i32: 2, 2, 1>} : memref<18x18x128xf32, #tpu.memory_space<vmem>>, vector<8x8x128xf32>
    %106 = vector.shape_cast %105 : vector<8x8x128xf32> to vector<64x128xf32>
    %107 = arith.truncf %106 : vector<64x128xf32> to vector<64x128xbf16>
    %c0_121 = arith.constant 0 : index
    %c2432 = arith.constant 2432 : index
    %108 = vector.load %arg11[%c0_121, %c2432] : memref<64x5760xbf16, #tpu.memory_space<vmem>>, vector<64x128xbf16>
    tpu.vector_store %arg11[%c0_121, %c2432], %107 {strides = array<i32>} : memref<64x5760xbf16, #tpu.memory_space<vmem>>, vector<64x128xbf16>,
    %c1_122 = arith.constant 1 : index
    %c2_123 = arith.constant 2 : index
    %c0_124 = arith.constant 0 : index
    %109 = tpu.strided_load %arg9[%c1_122, %c2_123, %c0_124] {strides = array<i32: 2, 2, 1>} : memref<18x18x128xf32, #tpu.memory_space<vmem>>, vector<8x8x128xf32>
    %110 = vector.shape_cast %109 : vector<8x8x128xf32> to vector<64x128xf32>
    %111 = arith.truncf %110 : vector<64x128xf32> to vector<64x128xbf16>
    %c0_125 = arith.constant 0 : index
    %c2560 = arith.constant 2560 : index
    %112 = vector.load %arg11[%c0_125, %c2560] : memref<64x5760xbf16, #tpu.memory_space<vmem>>, vector<64x128xbf16>
    tpu.vector_store %arg11[%c0_125, %c2560], %111 {strides = array<i32>} : memref<64x5760xbf16, #tpu.memory_space<vmem>>, vector<64x128xbf16>,
    %c2_126 = arith.constant 2 : index
    %c0_127 = arith.constant 0 : index
    %c0_128 = arith.constant 0 : index
    %113 = tpu.strided_load %arg9[%c2_126, %c0_127, %c0_128] {strides = array<i32: 2, 2, 1>} : memref<18x18x128xf32, #tpu.memory_space<vmem>>, vector<8x8x128xf32>
    %114 = vector.shape_cast %113 : vector<8x8x128xf32> to vector<64x128xf32>
    %115 = arith.truncf %114 : vector<64x128xf32> to vector<64x128xbf16>
    %c0_129 = arith.constant 0 : index
    %c2688 = arith.constant 2688 : index
    %116 = vector.load %arg11[%c0_129, %c2688] : memref<64x5760xbf16, #tpu.memory_space<vmem>>, vector<64x128xbf16>
    tpu.vector_store %arg11[%c0_129, %c2688], %115 {strides = array<i32>} : memref<64x5760xbf16, #tpu.memory_space<vmem>>, vector<64x128xbf16>,
    %c2_130 = arith.constant 2 : index
    %c1_131 = arith.constant 1 : index
    %c0_132 = arith.constant 0 : index
    %117 = tpu.strided_load %arg9[%c2_130, %c1_131, %c0_132] {strides = array<i32: 2, 2, 1>} : memref<18x18x128xf32, #tpu.memory_space<vmem>>, vector<8x8x128xf32>
    %118 = vector.shape_cast %117 : vector<8x8x128xf32> to vector<64x128xf32>
    %119 = arith.truncf %118 : vector<64x128xf32> to vector<64x128xbf16>
    %c0_133 = arith.constant 0 : index
    %c2816 = arith.constant 2816 : index
    %120 = vector.load %arg11[%c0_133, %c2816] : memref<64x5760xbf16, #tpu.memory_space<vmem>>, vector<64x128xbf16>
    tpu.vector_store %arg11[%c0_133, %c2816], %119 {strides = array<i32>} : memref<64x5760xbf16, #tpu.memory_space<vmem>>, vector<64x128xbf16>,
    %c2_134 = arith.constant 2 : index
    %c2_135 = arith.constant 2 : index
    %c0_136 = arith.constant 0 : index
    %121 = tpu.strided_load %arg9[%c2_134, %c2_135, %c0_136] {strides = array<i32: 2, 2, 1>} : memref<18x18x128xf32, #tpu.memory_space<vmem>>, vector<8x8x128xf32>
    %122 = vector.shape_cast %121 : vector<8x8x128xf32> to vector<64x128xf32>
    %123 = arith.truncf %122 : vector<64x128xf32> to vector<64x128xbf16>
    %c0_137 = arith.constant 0 : index
    %c2944 = arith.constant 2944 : index
    %124 = vector.load %arg11[%c0_137, %c2944] : memref<64x5760xbf16, #tpu.memory_space<vmem>>, vector<64x128xbf16>
    tpu.vector_store %arg11[%c0_137, %c2944], %123 {strides = array<i32>} : memref<64x5760xbf16, #tpu.memory_space<vmem>>, vector<64x128xbf16>,
    %c3_138 = arith.constant 3 : index
    %c0_139 = arith.constant 0 : index
    %c0_140 = arith.constant 0 : index
    %125 = tpu.strided_load %arg9[%c3_138, %c0_139, %c0_140] {strides = array<i32: 2, 2, 1>} : memref<18x18x128xf32, #tpu.memory_space<vmem>>, vector<8x8x128xf32>
    %126 = vector.shape_cast %125 : vector<8x8x128xf32> to vector<64x128xf32>
    %127 = arith.truncf %126 : vector<64x128xf32> to vector<64x128xbf16>
    %c0_141 = arith.constant 0 : index
    %c3072 = arith.constant 3072 : index
    %128 = vector.load %arg11[%c0_141, %c3072] : memref<64x5760xbf16, #tpu.memory_space<vmem>>, vector<64x128xbf16>
    tpu.vector_store %arg11[%c0_141, %c3072], %127 {strides = array<i32>} : memref<64x5760xbf16, #tpu.memory_space<vmem>>, vector<64x128xbf16>,
    %c3_142 = arith.constant 3 : index
    %c1_143 = arith.constant 1 : index
    %c0_144 = arith.constant 0 : index
    %129 = tpu.strided_load %arg9[%c3_142, %c1_143, %c0_144] {strides = array<i32: 2, 2, 1>} : memref<18x18x128xf32, #tpu.memory_space<vmem>>, vector<8x8x128xf32>
    %130 = vector.shape_cast %129 : vector<8x8x128xf32> to vector<64x128xf32>
    %131 = arith.truncf %130 : vector<64x128xf32> to vector<64x128xbf16>
    %c0_145 = arith.constant 0 : index
    %c3200 = arith.constant 3200 : index
    %132 = vector.load %arg11[%c0_145, %c3200] : memref<64x5760xbf16, #tpu.memory_space<vmem>>, vector<64x128xbf16>
    tpu.vector_store %arg11[%c0_145, %c3200], %131 {strides = array<i32>} : memref<64x5760xbf16, #tpu.memory_space<vmem>>, vector<64x128xbf16>,
    %c3_146 = arith.constant 3 : index
    %c2_147 = arith.constant 2 : index
    %c0_148 = arith.constant 0 : index
    %133 = tpu.strided_load %arg9[%c3_146, %c2_147, %c0_148] {strides = array<i32: 2, 2, 1>} : memref<18x18x128xf32, #tpu.memory_space<vmem>>, vector<8x8x128xf32>
    %134 = vector.shape_cast %133 : vector<8x8x128xf32> to vector<64x128xf32>
    %135 = arith.truncf %134 : vector<64x128xf32> to vector<64x128xbf16>
    %c0_149 = arith.constant 0 : index
    %c3328 = arith.constant 3328 : index
    %136 = vector.load %arg11[%c0_149, %c3328] : memref<64x5760xbf16, #tpu.memory_space<vmem>>, vector<64x128xbf16>
    tpu.vector_store %arg11[%c0_149, %c3328], %135 {strides = array<i32>} : memref<64x5760xbf16, #tpu.memory_space<vmem>>, vector<64x128xbf16>,
    %c1_150 = arith.constant 1 : index
    %c1_151 = arith.constant 1 : index
    %c0_152 = arith.constant 0 : index
    %137 = tpu.strided_load %arg9[%c1_150, %c1_151, %c0_152] {strides = array<i32: 2, 2, 1>} : memref<18x18x128xf32, #tpu.memory_space<vmem>>, vector<8x8x128xf32>
    %138 = vector.shape_cast %137 : vector<8x8x128xf32> to vector<64x128xf32>
    %139 = arith.truncf %138 : vector<64x128xf32> to vector<64x128xbf16>
    %c0_153 = arith.constant 0 : index
    %c3456 = arith.constant 3456 : index
    %140 = vector.load %arg11[%c0_153, %c3456] : memref<64x5760xbf16, #tpu.memory_space<vmem>>, vector<64x128xbf16>
    tpu.vector_store %arg11[%c0_153, %c3456], %139 {strides = array<i32>} : memref<64x5760xbf16, #tpu.memory_space<vmem>>, vector<64x128xbf16>,
    %c1_154 = arith.constant 1 : index
    %c2_155 = arith.constant 2 : index
    %c0_156 = arith.constant 0 : index
    %141 = tpu.strided_load %arg9[%c1_154, %c2_155, %c0_156] {strides = array<i32: 2, 2, 1>} : memref<18x18x128xf32, #tpu.memory_space<vmem>>, vector<8x8x128xf32>
    %142 = vector.shape_cast %141 : vector<8x8x128xf32> to vector<64x128xf32>
    %143 = arith.truncf %142 : vector<64x128xf32> to vector<64x128xbf16>
    %c0_157 = arith.constant 0 : index
    %c3584 = arith.constant 3584 : index
    %144 = vector.load %arg11[%c0_157, %c3584] : memref<64x5760xbf16, #tpu.memory_space<vmem>>, vector<64x128xbf16>
    tpu.vector_store %arg11[%c0_157, %c3584], %143 {strides = array<i32>} : memref<64x5760xbf16, #tpu.memory_space<vmem>>, vector<64x128xbf16>,
    %c1_158 = arith.constant 1 : index
    %c3_159 = arith.constant 3 : index
    %c0_160 = arith.constant 0 : index
    %145 = tpu.strided_load %arg9[%c1_158, %c3_159, %c0_160] {strides = array<i32: 2, 2, 1>} : memref<18x18x128xf32, #tpu.memory_space<vmem>>, vector<8x8x128xf32>
    %146 = vector.shape_cast %145 : vector<8x8x128xf32> to vector<64x128xf32>
    %147 = arith.truncf %146 : vector<64x128xf32> to vector<64x128xbf16>
    %c0_161 = arith.constant 0 : index
    %c3712 = arith.constant 3712 : index
    %148 = vector.load %arg11[%c0_161, %c3712] : memref<64x5760xbf16, #tpu.memory_space<vmem>>, vector<64x128xbf16>
    tpu.vector_store %arg11[%c0_161, %c3712], %147 {strides = array<i32>} : memref<64x5760xbf16, #tpu.memory_space<vmem>>, vector<64x128xbf16>,
    %c2_162 = arith.constant 2 : index
    %c1_163 = arith.constant 1 : index
    %c0_164 = arith.constant 0 : index
    %149 = tpu.strided_load %arg9[%c2_162, %c1_163, %c0_164] {strides = array<i32: 2, 2, 1>} : memref<18x18x128xf32, #tpu.memory_space<vmem>>, vector<8x8x128xf32>
    %150 = vector.shape_cast %149 : vector<8x8x128xf32> to vector<64x128xf32>
    %151 = arith.truncf %150 : vector<64x128xf32> to vector<64x128xbf16>
    %c0_165 = arith.constant 0 : index
    %c3840 = arith.constant 3840 : index
    %152 = vector.load %arg11[%c0_165, %c3840] : memref<64x5760xbf16, #tpu.memory_space<vmem>>, vector<64x128xbf16>
    tpu.vector_store %arg11[%c0_165, %c3840], %151 {strides = array<i32>} : memref<64x5760xbf16, #tpu.memory_space<vmem>>, vector<64x128xbf16>,
    %c2_166 = arith.constant 2 : index
    %c2_167 = arith.constant 2 : index
    %c0_168 = arith.constant 0 : index
    %153 = tpu.strided_load %arg9[%c2_166, %c2_167, %c0_168] {strides = array<i32: 2, 2, 1>} : memref<18x18x128xf32, #tpu.memory_space<vmem>>, vector<8x8x128xf32>
    %154 = vector.shape_cast %153 : vector<8x8x128xf32> to vector<64x128xf32>
    %155 = arith.truncf %154 : vector<64x128xf32> to vector<64x128xbf16>
    %c0_169 = arith.constant 0 : index
    %c3968 = arith.constant 3968 : index
    %156 = vector.load %arg11[%c0_169, %c3968] : memref<64x5760xbf16, #tpu.memory_space<vmem>>, vector<64x128xbf16>
    tpu.vector_store %arg11[%c0_169, %c3968], %155 {strides = array<i32>} : memref<64x5760xbf16, #tpu.memory_space<vmem>>, vector<64x128xbf16>,
    %c2_170 = arith.constant 2 : index
    %c3_171 = arith.constant 3 : index
    %c0_172 = arith.constant 0 : index
    %157 = tpu.strided_load %arg9[%c2_170, %c3_171, %c0_172] {strides = array<i32: 2, 2, 1>} : memref<18x18x128xf32, #tpu.memory_space<vmem>>, vector<8x8x128xf32>
    %158 = vector.shape_cast %157 : vector<8x8x128xf32> to vector<64x128xf32>
    %159 = arith.truncf %158 : vector<64x128xf32> to vector<64x128xbf16>
    %c0_173 = arith.constant 0 : index
    %c4096 = arith.constant 4096 : index
    %160 = vector.load %arg11[%c0_173, %c4096] : memref<64x5760xbf16, #tpu.memory_space<vmem>>, vector<64x128xbf16>
    tpu.vector_store %arg11[%c0_173, %c4096], %159 {strides = array<i32>} : memref<64x5760xbf16, #tpu.memory_space<vmem>>, vector<64x128xbf16>,
    %c3_174 = arith.constant 3 : index
    %c1_175 = arith.constant 1 : index
    %c0_176 = arith.constant 0 : index
    %161 = tpu.strided_load %arg9[%c3_174, %c1_175, %c0_176] {strides = array<i32: 2, 2, 1>} : memref<18x18x128xf32, #tpu.memory_space<vmem>>, vector<8x8x128xf32>
    %162 = vector.shape_cast %161 : vector<8x8x128xf32> to vector<64x128xf32>
    %163 = arith.truncf %162 : vector<64x128xf32> to vector<64x128xbf16>
    %c0_177 = arith.constant 0 : index
    %c4224 = arith.constant 4224 : index
    %164 = vector.load %arg11[%c0_177, %c4224] : memref<64x5760xbf16, #tpu.memory_space<vmem>>, vector<64x128xbf16>
    tpu.vector_store %arg11[%c0_177, %c4224], %163 {strides = array<i32>} : memref<64x5760xbf16, #tpu.memory_space<vmem>>, vector<64x128xbf16>,
    %c3_178 = arith.constant 3 : index
    %c2_179 = arith.constant 2 : index
    %c0_180 = arith.constant 0 : index
    %165 = tpu.strided_load %arg9[%c3_178, %c2_179, %c0_180] {strides = array<i32: 2, 2, 1>} : memref<18x18x128xf32, #tpu.memory_space<vmem>>, vector<8x8x128xf32>
    %166 = vector.shape_cast %165 : vector<8x8x128xf32> to vector<64x128xf32>
    %167 = arith.truncf %166 : vector<64x128xf32> to vector<64x128xbf16>
    %c0_181 = arith.constant 0 : index
    %c4352 = arith.constant 4352 : index
    %168 = vector.load %arg11[%c0_181, %c4352] : memref<64x5760xbf16, #tpu.memory_space<vmem>>, vector<64x128xbf16>
    tpu.vector_store %arg11[%c0_181, %c4352], %167 {strides = array<i32>} : memref<64x5760xbf16, #tpu.memory_space<vmem>>, vector<64x128xbf16>,
    %c3_182 = arith.constant 3 : index
    %c3_183 = arith.constant 3 : index
    %c0_184 = arith.constant 0 : index
    %169 = tpu.strided_load %arg9[%c3_182, %c3_183, %c0_184] {strides = array<i32: 2, 2, 1>} : memref<18x18x128xf32, #tpu.memory_space<vmem>>, vector<8x8x128xf32>
    %170 = vector.shape_cast %169 : vector<8x8x128xf32> to vector<64x128xf32>
    %171 = arith.truncf %170 : vector<64x128xf32> to vector<64x128xbf16>
    %c0_185 = arith.constant 0 : index
    %c4480 = arith.constant 4480 : index
    %172 = vector.load %arg11[%c0_185, %c4480] : memref<64x5760xbf16, #tpu.memory_space<vmem>>, vector<64x128xbf16>
    tpu.vector_store %arg11[%c0_185, %c4480], %171 {strides = array<i32>} : memref<64x5760xbf16, #tpu.memory_space<vmem>>, vector<64x128xbf16>,
    %c0_186 = arith.constant 0 : index
    %c0_187 = arith.constant 0 : index
    %c0_188 = arith.constant 0 : index
    %173 = vector.load %arg10[%c0_186, %c0_187, %c0_188] : memref<10x10x128xf32, #tpu.memory_space<vmem>>, vector<8x8x128xf32>
    %174 = vector.shape_cast %173 : vector<8x8x128xf32> to vector<64x128xf32>
    %175 = arith.truncf %174 : vector<64x128xf32> to vector<64x128xbf16>
    %c0_189 = arith.constant 0 : index
    %c4608 = arith.constant 4608 : index
    %176 = vector.load %arg11[%c0_189, %c4608] : memref<64x5760xbf16, #tpu.memory_space<vmem>>, vector<64x128xbf16>
    tpu.vector_store %arg11[%c0_189, %c4608], %175 {strides = array<i32>} : memref<64x5760xbf16, #tpu.memory_space<vmem>>, vector<64x128xbf16>,
    %c0_190 = arith.constant 0 : index
    %c1_191 = arith.constant 1 : index
    %c0_192 = arith.constant 0 : index
    %177 = vector.load %arg10[%c0_190, %c1_191, %c0_192] : memref<10x10x128xf32, #tpu.memory_space<vmem>>, vector<8x8x128xf32>
    %178 = vector.shape_cast %177 : vector<8x8x128xf32> to vector<64x128xf32>
    %179 = arith.truncf %178 : vector<64x128xf32> to vector<64x128xbf16>
    %c0_193 = arith.constant 0 : index
    %c4736 = arith.constant 4736 : index
    %180 = vector.load %arg11[%c0_193, %c4736] : memref<64x5760xbf16, #tpu.memory_space<vmem>>, vector<64x128xbf16>
    tpu.vector_store %arg11[%c0_193, %c4736], %179 {strides = array<i32>} : memref<64x5760xbf16, #tpu.memory_space<vmem>>, vector<64x128xbf16>,
    %c0_194 = arith.constant 0 : index
    %c2_195 = arith.constant 2 : index
    %c0_196 = arith.constant 0 : index
    %181 = vector.load %arg10[%c0_194, %c2_195, %c0_196] : memref<10x10x128xf32, #tpu.memory_space<vmem>>, vector<8x8x128xf32>
    %182 = vector.shape_cast %181 : vector<8x8x128xf32> to vector<64x128xf32>
    %183 = arith.truncf %182 : vector<64x128xf32> to vector<64x128xbf16>
    %c0_197 = arith.constant 0 : index
    %c4864 = arith.constant 4864 : index
    %184 = vector.load %arg11[%c0_197, %c4864] : memref<64x5760xbf16, #tpu.memory_space<vmem>>, vector<64x128xbf16>
    tpu.vector_store %arg11[%c0_197, %c4864], %183 {strides = array<i32>} : memref<64x5760xbf16, #tpu.memory_space<vmem>>, vector<64x128xbf16>,
    %c1_198 = arith.constant 1 : index
    %c0_199 = arith.constant 0 : index
    %c0_200 = arith.constant 0 : index
    %185 = vector.load %arg10[%c1_198, %c0_199, %c0_200] : memref<10x10x128xf32, #tpu.memory_space<vmem>>, vector<8x8x128xf32>
    %186 = vector.shape_cast %185 : vector<8x8x128xf32> to vector<64x128xf32>
    %187 = arith.truncf %186 : vector<64x128xf32> to vector<64x128xbf16>
    %c0_201 = arith.constant 0 : index
    %c4992 = arith.constant 4992 : index
    %188 = vector.load %arg11[%c0_201, %c4992] : memref<64x5760xbf16, #tpu.memory_space<vmem>>, vector<64x128xbf16>
    tpu.vector_store %arg11[%c0_201, %c4992], %187 {strides = array<i32>} : memref<64x5760xbf16, #tpu.memory_space<vmem>>, vector<64x128xbf16>,
    %c1_202 = arith.constant 1 : index
    %c1_203 = arith.constant 1 : index
    %c0_204 = arith.constant 0 : index
    %189 = vector.load %arg10[%c1_202, %c1_203, %c0_204] : memref<10x10x128xf32, #tpu.memory_space<vmem>>, vector<8x8x128xf32>
    %190 = vector.shape_cast %189 : vector<8x8x128xf32> to vector<64x128xf32>
    %191 = arith.truncf %190 : vector<64x128xf32> to vector<64x128xbf16>
    %c0_205 = arith.constant 0 : index
    %c5120 = arith.constant 5120 : index
    %192 = vector.load %arg11[%c0_205, %c5120] : memref<64x5760xbf16, #tpu.memory_space<vmem>>, vector<64x128xbf16>
    tpu.vector_store %arg11[%c0_205, %c5120], %191 {strides = array<i32>} : memref<64x5760xbf16, #tpu.memory_space<vmem>>, vector<64x128xbf16>,
    %c1_206 = arith.constant 1 : index
    %c2_207 = arith.constant 2 : index
    %c0_208 = arith.constant 0 : index
    %193 = vector.load %arg10[%c1_206, %c2_207, %c0_208] : memref<10x10x128xf32, #tpu.memory_space<vmem>>, vector<8x8x128xf32>
    %194 = vector.shape_cast %193 : vector<8x8x128xf32> to vector<64x128xf32>
    %195 = arith.truncf %194 : vector<64x128xf32> to vector<64x128xbf16>
    %c0_209 = arith.constant 0 : index
    %c5248 = arith.constant 5248 : index
    %196 = vector.load %arg11[%c0_209, %c5248] : memref<64x5760xbf16, #tpu.memory_space<vmem>>, vector<64x128xbf16>
    tpu.vector_store %arg11[%c0_209, %c5248], %195 {strides = array<i32>} : memref<64x5760xbf16, #tpu.memory_space<vmem>>, vector<64x128xbf16>,
    %c2_210 = arith.constant 2 : index
    %c0_211 = arith.constant 0 : index
    %c0_212 = arith.constant 0 : index
    %197 = vector.load %arg10[%c2_210, %c0_211, %c0_212] : memref<10x10x128xf32, #tpu.memory_space<vmem>>, vector<8x8x128xf32>
    %198 = vector.shape_cast %197 : vector<8x8x128xf32> to vector<64x128xf32>
    %199 = arith.truncf %198 : vector<64x128xf32> to vector<64x128xbf16>
    %c0_213 = arith.constant 0 : index
    %c5376 = arith.constant 5376 : index
    %200 = vector.load %arg11[%c0_213, %c5376] : memref<64x5760xbf16, #tpu.memory_space<vmem>>, vector<64x128xbf16>
    tpu.vector_store %arg11[%c0_213, %c5376], %199 {strides = array<i32>} : memref<64x5760xbf16, #tpu.memory_space<vmem>>, vector<64x128xbf16>,
    %c2_214 = arith.constant 2 : index
    %c1_215 = arith.constant 1 : index
    %c0_216 = arith.constant 0 : index
    %201 = vector.load %arg10[%c2_214, %c1_215, %c0_216] : memref<10x10x128xf32, #tpu.memory_space<vmem>>, vector<8x8x128xf32>
    %202 = vector.shape_cast %201 : vector<8x8x128xf32> to vector<64x128xf32>
    %203 = arith.truncf %202 : vector<64x128xf32> to vector<64x128xbf16>
    %c0_217 = arith.constant 0 : index
    %c5504 = arith.constant 5504 : index
    %204 = vector.load %arg11[%c0_217, %c5504] : memref<64x5760xbf16, #tpu.memory_space<vmem>>, vector<64x128xbf16>
    tpu.vector_store %arg11[%c0_217, %c5504], %203 {strides = array<i32>} : memref<64x5760xbf16, #tpu.memory_space<vmem>>, vector<64x128xbf16>,
    %c2_218 = arith.constant 2 : index
    %c2_219 = arith.constant 2 : index
    %c0_220 = arith.constant 0 : index
    %205 = vector.load %arg10[%c2_218, %c2_219, %c0_220] : memref<10x10x128xf32, #tpu.memory_space<vmem>>, vector<8x8x128xf32>
    %206 = vector.shape_cast %205 : vector<8x8x128xf32> to vector<64x128xf32>
    %207 = arith.truncf %206 : vector<64x128xf32> to vector<64x128xbf16>
    %c0_221 = arith.constant 0 : index
    %c5632 = arith.constant 5632 : index
    %208 = vector.load %arg11[%c0_221, %c5632] : memref<64x5760xbf16, #tpu.memory_space<vmem>>, vector<64x128xbf16>
    tpu.vector_store %arg11[%c0_221, %c5632], %207 {strides = array<i32>} : memref<64x5760xbf16, #tpu.memory_space<vmem>>, vector<64x128xbf16>,
    %c0_222 = arith.constant 0 : index
    %c0_223 = arith.constant 0 : index
    %209 = vector.load %arg11[%c0_222, %c0_223] : memref<64x5760xbf16, #tpu.memory_space<vmem>>, vector<64x5760xbf16>
    %c0_224 = arith.constant 0 : index
    %c0_225 = arith.constant 0 : index
    %210 = vector.load %arg6[%c0_224, %c0_225] : memref<5760x128xbf16, #tpu.memory_space<vmem>>, vector<5760x128xbf16>
    %cst_226 = arith.constant dense<0.000000e+00> : vector<64x128xf32>
    %211 = tpu.matmul %209, %210, %cst_226 {dimension_numbers = #tpu.dot_dimension_numbers<[1], [0], [0], [1], [0, 0, 1, 1], [], []>} : vector<64x5760xbf16>, vector<5760x128xbf16>, vector<64x128xf32> -> vector<64x128xf32>
    %c0_227 = arith.constant 0 : index
    %c0_228 = arith.constant 0 : index
    %212 = vector.load %arg7[%c0_227, %c0_228] : memref<1x128xf32, #tpu.memory_space<vmem>>, vector<1x128xf32>
    %cst_229 = arith.constant 2.000000e+00 : f32
    %213 = vector.broadcast %cst_229 : f32 to vector<1x128xf32>
    %214 = arith.mulf %213, %212 : vector<1x128xf32>
    %215 = vector.broadcast %214 : vector<1x128xf32> to vector<64x128xf32>
    %216 = arith.addf %211, %215 : vector<64x128xf32>
    %217 = vector.shape_cast %216 : vector<64x128xf32> to vector<8x8x128xf32>
    %c0_230 = arith.constant 0 : index
    %c0_231 = arith.constant 0 : index
    %c0_232 = arith.constant 0 : index
    %c0_233 = arith.constant 0 : index
    %218 = vector.load %arg8[%c0_230, %c0_231, %c0_232, %c0_233] : memref<1x8x8x128xf32, #tpu.memory_space<vmem>>, vector<1x8x8x128xf32>
    %219 = vector.shape_cast %218 : vector<1x8x8x128xf32> to vector<8x8x128xf32>
    %220 = vector.shape_cast %217 : vector<8x8x128xf32> to vector<1x8x8x128xf32>
    tpu.vector_store %arg8[%c0_230, %c0_231, %c0_232, %c0_233], %220 {strides = array<i32>} : memref<1x8x8x128xf32, #tpu.memory_space<vmem>>, vector<1x8x8x128xf32>,
    return
  }
  func.func @transform_0(%arg0: i32) -> (i32, i32, i32) {
    %c0_i32 = arith.constant 0 : i32
    %c0_i32_0 = arith.constant 0 : i32
    %c0_i32_1 = arith.constant 0 : i32
    return %arg0, %c0_i32, %c0_i32_0 : i32, i32, i32
  }
  func.func @transform_1(%arg0: i32) -> (i32, i32, i32) {
    %c0_i32 = arith.constant 0 : i32
    %c0_i32_0 = arith.constant 0 : i32
    %c0_i32_1 = arith.constant 0 : i32
    return %arg0, %c0_i32, %c0_i32_0 : i32, i32, i32
  }
  func.func @transform_2(%arg0: i32) -> (i32, i32) {
    %c0_i32 = arith.constant 0 : i32
    %c0_i32_0 = arith.constant 0 : i32
    %c0_i32_1 = arith.constant 0 : i32
    return %c0_i32, %c0_i32_0 : i32, i32
  }
  func.func @transform_3(%arg0: i32) -> (i32, i32) {
    %c0_i32 = arith.constant 0 : i32
    %c0_i32_0 = arith.constant 0 : i32
    %c0_i32_1 = arith.constant 0 : i32
    return %c0_i32, %c0_i32_0 : i32, i32
  }
  func.func @transform_4(%arg0: i32) -> (i32, i32) {
    %c0_i32 = arith.constant 0 : i32
    %c0_i32_0 = arith.constant 0 : i32
    %c0_i32_1 = arith.constant 0 : i32
    return %c0_i32, %c0_i32_0 : i32, i32
  }
  func.func @transform_5(%arg0: i32) -> (i32, i32) {
    %c0_i32 = arith.constant 0 : i32
    %c0_i32_0 = arith.constant 0 : i32
    %c0_i32_1 = arith.constant 0 : i32
    return %c0_i32, %c0_i32_0 : i32, i32
  }
  func.func @transform_6(%arg0: i32) -> (i32, i32) {
    %c0_i32 = arith.constant 0 : i32
    %c0_i32_0 = arith.constant 0 : i32
    %c0_i32_1 = arith.constant 0 : i32
    return %c0_i32, %c0_i32_0 : i32, i32
  }
  func.func @transform_7(%arg0: i32) -> (i32, i32, i32, i32) {
    %c0_i32 = arith.constant 0 : i32
    %c0_i32_0 = arith.constant 0 : i32
    %c0_i32_1 = arith.constant 0 : i32
    %c0_i32_2 = arith.constant 0 : i32
    return %arg0, %c0_i32, %c0_i32_0, %c0_i32_1 : i32, i32, i32, i32
  }
}

</mosaic_0001>

<llo_original>
// kernel: semishift_forward.1
$region0: #{semishift_forward.1}
  #allocation0 [shape = 'u32[]', space=smem, size = 0x4, offset = 0x4, fixed_abs, tag = 'smem constant byte address 0x4 - core index']
  #allocation1 [shape = 'u32[144,128]{1,0:T(1,128)}', space=vmem, size = 0x12000, scoped, tag = 'internal scratch']
  #allocation2 [shape = 'f32[18,18,128]{2,1,0:T(8,128)}', space=vmem, size = 0x36000, scoped, tag = 'scratch operand']
  #allocation3 [shape = 'f32[10,10,128]{2,1,0:T(8,128)}', space=vmem, size = 0x14000, scoped, tag = 'scratch operand']
  #allocation4 [shape = 'bf16[64,5760]{1,0:T(16,128)(2,1)}', space=vmem, size = 0xb4000, scoped, tag = 'scratch operand']
  %s0 = inlined_call_operand.vmem [shape: f32[2,256,6], index: 0, kind: input, shape index: {}]
  %s1 = inlined_call_operand.vmem [shape: f32[2,64,4], index: 1, kind: input, shape index: {}]
  %s2 = inlined_call_operand.hbm [shape: bf16[6,128], index: 2, kind: input, shape index: {}]
  %s3 = inlined_call_operand.hbm [shape: f32[1,128], index: 3, kind: input, shape index: {}]
  %s4 = inlined_call_operand.hbm [shape: bf16[4,128], index: 4, kind: input, shape index: {}]
  %s5 = inlined_call_operand.hbm [shape: bf16[5760,128], index: 5, kind: input, shape index: {}]
  %s6 = inlined_call_operand.hbm [shape: f32[1,128], index: 6, kind: input, shape index: {}]
  %s7 = inlined_call_operand.vmem [shape: f32[2,8,8,128], index: 7, kind: output, shape index: {}]
  %s8 = sld [smem:[#allocation0]]
  $region81: #{semishift_forward.1} parent=0
    _
  %s10 = ssub.s32 1, %s8
  %s11 = scalar_select 0, %s10, %s8
  $region1: #{semishift_forward.1} parent=0
    #allocation5 [shape = 'u8[2048]{0}', space=vmem, size = 0x800, scoped, tag = 'input window, operand 2, single buffered']
    #allocation6 [shape = 's32[2]{0}', space=sflag, size = 0x8, scoped, tag = 'scoped memory for semishift_forward.1']
    #allocation7 [shape = 'u8[512]{0}', space=vmem, size = 0x400, scoped, tag = 'input window, operand 3, single buffered']
    #allocation8 [shape = 's32[1]{0}', space=sflag, size = 0x4, scoped, tag = 'scoped memory for semishift_forward.1']
    #allocation9 [shape = 'u8[1024]{0}', space=vmem, size = 0x400, scoped, tag = 'input window, operand 4, single buffered']
    #allocation10 [shape = 'u8[1474560]{0}', space=vmem, size = 0x168000, scoped, tag = 'input window, operand 5, single buffered']
    #allocation11 [shape = 's32[1]{0}', space=sflag, size = 0x4, scoped, tag = 'scoped memory for semishift_forward.1']
    #allocation12 [shape = 'u8[512]{0}', space=vmem, size = 0x400, scoped, tag = 'input window, operand 6, single buffered']
    %12 = vsyncpa [#allocation6], 0
    %13 = vsyncpa [#allocation8], 0
    %14 = vsyncpa [#allocation11], 0
    loop: start=0, step=1, limit=4
    $region2: #{semishift_forward.1} parent=1 // loop_pre_header
      _
    $region3: #{semishift_forward.1} parent=1 // loop_header
      %s16 = sphi 0, %s20
      %p17 = scmp.ge.s32.totalorder %s16, 4
      %s26 = sphi 0, %s28
      %s29 = sphi 0, %s26
      %s30 = sphi 0, %s29
      %s46 = sphi 0, %s30
      %s52 = sphi 0, %s54
      %s55 = sphi 0, %s52
      %s56 = sphi 0, %s55
      %s72 = sphi 0, %s56
      %s76 = sphi 0, %s76
      %s78 = sphi 0, %s76
      %s79 = sphi 0, %s78
      %s93 = sphi 0, %s79
      %s97 = sphi 0, %s97
      %s99 = sphi 0, %s97
      %s100 = sphi 0, %s99
      %s114 = sphi 0, %s100
      %s118 = sphi 0, %s118
      %s120 = sphi 0, %s118
      %s121 = sphi 0, %s120
      %s135 = sphi 0, %s121
      %s139 = sphi 0, %s139
      %s141 = sphi 0, %s139
      %s142 = sphi 0, %s141
      %s156 = sphi 0, %s142
      %s160 = sphi 0, %s160
      %s162 = sphi 0, %s160
      %s163 = sphi 0, %s162
      %s177 = sphi 0, %s163
      %s183 = sphi 0, %s185
      %s186 = sphi 0, %s183
      %s187 = sphi 0, %s186
      %s203 = sphi 0, %s187
    $region4: #{semishift_forward.1} parent=1 // loop_header_branch
      %19 = sbr.rel (%p17) target = $region8
    $region5: #{semishift_forward.1} parent=1 // loop_body
      %s21 = ssub.s32 %s16, 1
      %s22 = ssub.s32 %s16, 2
      %s23 = sadd.s32 %s16, 1
      %s24 = ssub.s32 %s16, %s23
      %p25 = scmp.eq.s32.totalorder %s24, 0
      %s27 = sadd.s32 %s26, 1
      %s28 = scalar_select %p25, %s26, %s27
      %p31 = pneg %p25
      %p32 = scmp.eq.s32.totalorder %s16, 1
      %p33 = por %p31, %p32
      %p34 = scmp.ne.s32.totalorder %s26, %s29
      %p35 = scmp.eq.s32.totalorder %s16, 0
      %p36 = por %p34, %p35
      %p37 = scmp.ne.s32.totalorder %s26, %s29
      %p38 = scmp.eq.s32.totalorder %s21, 1
      %p39 = por %p37, %p38
      %p40 = scmp.ne.s32.totalorder %s29, %s30
      %p41 = scmp.eq.s32.totalorder %s21, 0
      %p42 = por %p40, %p41
      %p43 = scmp.ne.s32.totalorder %s29, %s30
      %p44 = scmp.eq.s32.totalorder %s22, 1
      %p45 = por %p43, %p44
      %p47 = scmp.ne.s32.totalorder %s30, %s46
      %p48 = scmp.eq.s32.totalorder %s22, 0
      %p49 = por %p47, %p48
      %s50 = ssub.s32 %s16, %s23
      %p51 = scmp.eq.s32.totalorder %s50, 0
      %s53 = sadd.s32 %s52, 1
      %s54 = scalar_select %p51, %s52, %s53
      %p57 = pneg %p51
      %p58 = scmp.eq.s32.totalorder %s16, 1
      %p59 = por %p57, %p58
      %p60 = scmp.ne.s32.totalorder %s52, %s55
      %p61 = scmp.eq.s32.totalorder %s16, 0
      %p62 = por %p60, %p61
      %p63 = scmp.ne.s32.totalorder %s52, %s55
      %p64 = scmp.eq.s32.totalorder %s21, 1
      %p65 = por %p63, %p64
      %p66 = scmp.ne.s32.totalorder %s55, %s56
      %p67 = scmp.eq.s32.totalorder %s21, 0
      %p68 = por %p66, %p67
      %p69 = scmp.ne.s32.totalorder %s55, %s56
      %p70 = scmp.eq.s32.totalorder %s22, 1
      %p71 = por %p69, %p70
      %p73 = scmp.ne.s32.totalorder %s56, %s72
      %p74 = scmp.eq.s32.totalorder %s22, 0
      %p75 = por %p73, %p74
      %s77 = sadd.s32 %s76, 1
      %p80 = scmp.eq.s32.totalorder %s16, 1
      %p81 = scmp.ne.s32.totalorder %s76, %s78
      %p82 = scmp.eq.s32.totalorder %s16, 0
      %p83 = por %p81, %p82
      %p84 = scmp.ne.s32.totalorder %s76, %s78
      %p85 = scmp.eq.s32.totalorder %s21, 1
      %p86 = por %p84, %p85
      %p87 = scmp.ne.s32.totalorder %s78, %s79
      %p88 = scmp.eq.s32.totalorder %s21, 0
      %p89 = por %p87, %p88
      %p90 = scmp.ne.s32.totalorder %s78, %s79
      %p91 = scmp.eq.s32.totalorder %s22, 1
      %p92 = por %p90, %p91
      %p94 = scmp.ne.s32.totalorder %s79, %s93
      %p95 = scmp.eq.s32.totalorder %s22, 0
      %p96 = por %p94, %p95
      %s98 = sadd.s32 %s97, 1
      %p101 = scmp.eq.s32.totalorder %s16, 1
      %p102 = scmp.ne.s32.totalorder %s97, %s99
      %p103 = scmp.eq.s32.totalorder %s16, 0
      %p104 = por %p102, %p103
      %p105 = scmp.ne.s32.totalorder %s97, %s99
      %p106 = scmp.eq.s32.totalorder %s21, 1
      %p107 = por %p105, %p106
      %p108 = scmp.ne.s32.totalorder %s99, %s100
      %p109 = scmp.eq.s32.totalorder %s21, 0
      %p110 = por %p108, %p109
      %p111 = scmp.ne.s32.totalorder %s99, %s100
      %p112 = scmp.eq.s32.totalorder %s22, 1
      %p113 = por %p111, %p112
      %p115 = scmp.ne.s32.totalorder %s100, %s114
      %p116 = scmp.eq.s32.totalorder %s22, 0
      %p117 = por %p115, %p116
      %s119 = sadd.s32 %s118, 1
      %p122 = scmp.eq.s32.totalorder %s16, 1
      %p123 = scmp.ne.s32.totalorder %s118, %s120
      %p124 = scmp.eq.s32.totalorder %s16, 0
      %p125 = por %p123, %p124
      %p126 = scmp.ne.s32.totalorder %s118, %s120
      %p127 = scmp.eq.s32.totalorder %s21, 1
      %p128 = por %p126, %p127
      %p129 = scmp.ne.s32.totalorder %s120, %s121
      %p130 = scmp.eq.s32.totalorder %s21, 0
      %p131 = por %p129, %p130
      %p132 = scmp.ne.s32.totalorder %s120, %s121
      %p133 = scmp.eq.s32.totalorder %s22, 1
      %p134 = por %p132, %p133
      %p136 = scmp.ne.s32.totalorder %s121, %s135
      %p137 = scmp.eq.s32.totalorder %s22, 0
      %p138 = por %p136, %p137
      %s140 = sadd.s32 %s139, 1
      %p143 = scmp.eq.s32.totalorder %s16, 1
      %p144 = scmp.ne.s32.totalorder %s139, %s141
      %p145 = scmp.eq.s32.totalorder %s16, 0
      %p146 = por %p144, %p145
      %p147 = scmp.ne.s32.totalorder %s139, %s141
      %p148 = scmp.eq.s32.totalorder %s21, 1
      %p149 = por %p147, %p148
      %p150 = scmp.ne.s32.totalorder %s141, %s142
      %p151 = scmp.eq.s32.totalorder %s21, 0
      %p152 = por %p150, %p151
      %p153 = scmp.ne.s32.totalorder %s141, %s142
      %p154 = scmp.eq.s32.totalorder %s22, 1
      %p155 = por %p153, %p154
      %p157 = scmp.ne.s32.totalorder %s142, %s156
      %p158 = scmp.eq.s32.totalorder %s22, 0
      %p159 = por %p157, %p158
      %s161 = sadd.s32 %s160, 1
      %p164 = scmp.eq.s32.totalorder %s16, 1
      %p165 = scmp.ne.s32.totalorder %s160, %s162
      %p166 = scmp.eq.s32.totalorder %s16, 0
      %p167 = por %p165, %p166
      %p168 = scmp.ne.s32.totalorder %s160, %s162
      %p169 = scmp.eq.s32.totalorder %s21, 1
      %p170 = por %p168, %p169
      %p171 = scmp.ne.s32.totalorder %s162, %s163
      %p172 = scmp.eq.s32.totalorder %s21, 0
      %p173 = por %p171, %p172
      %p174 = scmp.ne.s32.totalorder %s162, %s163
      %p175 = scmp.eq.s32.totalorder %s22, 1
      %p176 = por %p174, %p175
      %p178 = scmp.ne.s32.totalorder %s163, %s177
      %p179 = scmp.eq.s32.totalorder %s22, 0
      %p180 = por %p178, %p179
      %s181 = ssub.s32 %s16, %s23
      %p182 = scmp.eq.s32.totalorder %s181, 0
      %s184 = sadd.s32 %s183, 1
      %s185 = scalar_select %p182, %s183, %s184
      %p188 = pneg %p182
      %p189 = scmp.eq.s32.totalorder %s16, 1
      %p190 = por %p188, %p189
      %p191 = scmp.ne.s32.totalorder %s183, %s186
      %p192 = scmp.eq.s32.totalorder %s16, 0
      %p193 = por %p191, %p192
      %p194 = scmp.ne.s32.totalorder %s183, %s186
      %p195 = scmp.eq.s32.totalorder %s21, 1
      %p196 = por %p194, %p195
      %p197 = scmp.ne.s32.totalorder %s186, %s187
      %p198 = scmp.eq.s32.totalorder %s21, 0
      %p199 = por %p197, %p198
      %p200 = scmp.ne.s32.totalorder %s186, %s187
      %p201 = scmp.eq.s32.totalorder %s22, 1
      %p202 = por %p200, %p201
      %p204 = scmp.ne.s32.totalorder %s187, %s203
      %p205 = scmp.eq.s32.totalorder %s22, 0
      %p206 = por %p204, %p205
      %p207 = scmp.le.s32.totalorder 1, %s16
      %p208 = scmp.lt.s32.totalorder %s16, 3
      %p209 = pnand %p207, %p208
      %p210 = pneg %p209
      // Predicated region
      $region9: #{semishift_forward.1} parent=5 // pred_check
        _
      $region10: #{semishift_forward.1} parent=5 // pred_check_branch
        %212 = sbr.rel (%p209) target = $region12
      $region11: #{semishift_forward.1} parent=5 // pred_region
        %s213 = ssub.s32 %s16, 1
        // Predicated region
        $region13: #{semishift_forward.1} parent=11 // pred_check
          %p214 = pneg %p89
        $region14: #{semishift_forward.1} parent=11 // pred_check_branch
          %216 = sbr.rel (%p214) target = $region16
        $region15: #{semishift_forward.1} parent=11 // pred_region
          %s218 = ssub.s32 64, 64
          %219 = vsyncadd [#allocation6], %s218
          %s221 = sshll.u32 [#allocation5], 4
          %s222 = int_to_ptr.vmem [resolvable:$true] %s221
          %224 = dma.hbm_to_vmem [thread:$0]  %s2, 64, %s222, [#allocation6]
        $region16: #{semishift_forward.1} parent=11 // pred_fallthru
          _
        // Predicated region
        $region17: #{semishift_forward.1} parent=11 // pred_check
          %p225 = pneg %p110
        $region18: #{semishift_forward.1} parent=11 // pred_check_branch
          %227 = sbr.rel (%p225) target = $region20
        $region19: #{semishift_forward.1} parent=11 // pred_region
          %s229 = ssub.s32 16, 16
          %230 = vsyncadd [#allocation8], %s229
          %s232 = sshll.u32 [#allocation7], 4
          %s233 = int_to_ptr.vmem [resolvable:$true] %s232
          %235 = dma.hbm_to_vmem [thread:$0]  %s3, 16, %s233, [#allocation8]
        $region20: #{semishift_forward.1} parent=11 // pred_fallthru
          _
        // Predicated region
        $region21: #{semishift_forward.1} parent=11 // pred_check
          %p236 = pneg %p131
        $region22: #{semishift_forward.1} parent=11 // pred_check_branch
          %238 = sbr.rel (%p236) target = $region24
        $region23: #{semishift_forward.1} parent=11 // pred_region
          %s240 = ssub.s32 32, 32
          %241 = vsyncadd [#allocation8], %s240
          %s243 = sshll.u32 [#allocation9], 4
          %s244 = int_to_ptr.vmem [resolvable:$true] %s243
          %246 = dma.hbm_to_vmem [thread:$0]  %s4, 32, %s244, [#allocation8]
        $region24: #{semishift_forward.1} parent=11 // pred_fallthru
          _
        // Predicated region
        $region25: #{semishift_forward.1} parent=11 // pred_check
          %p247 = pneg %p152
        $region26: #{semishift_forward.1} parent=11 // pred_check_branch
          %249 = sbr.rel (%p247) target = $region28
        $region27: #{semishift_forward.1} parent=11 // pred_region
          %s251 = ssub.s32 46080, 46080
          %252 = vsyncadd [#allocation11], %s251
          %s253 = sshll.u32 [#allocation10], 4
          %s254 = int_to_ptr.vmem [resolvable:$true] %s253
          %259 = dma.hbm_to_vmem [thread:$0]  %s5, 46080, %s254, [#allocation11], 64, 64, 4
        $region28: #{semishift_forward.1} parent=11 // pred_fallthru
          _
        // Predicated region
        $region29: #{semishift_forward.1} parent=11 // pred_check
          %p260 = pneg %p173
        $region30: #{semishift_forward.1} parent=11 // pred_check_branch
          %262 = sbr.rel (%p260) target = $region32
        $region31: #{semishift_forward.1} parent=11 // pred_region
          %s264 = ssub.s32 16, 16
          %265 = vsyncadd [#allocation11], %s264
          %s267 = sshll.u32 [#allocation12], 4
          %s268 = int_to_ptr.vmem [resolvable:$true] %s267
          %270 = dma.hbm_to_vmem [thread:$0]  %s6, 16, %s268, [#allocation11]
        $region32: #{semishift_forward.1} parent=11 // pred_fallthru
          _
      $region12: #{semishift_forward.1} parent=5 // pred_fallthru
        _
      %p271 = scmp.lt.s32.totalorder %s16, 2
      // Predicated region
      $region33: #{semishift_forward.1} parent=5 // pred_check
        %p272 = pneg %p271
      $region34: #{semishift_forward.1} parent=5 // pred_check_branch
        %274 = sbr.rel (%p272) target = $region36
      $region35: #{semishift_forward.1} parent=5 // pred_region
        // Predicated region
        $region37: #{semishift_forward.1} parent=35 // pred_check
          %p275 = pneg %p36
        $region38: #{semishift_forward.1} parent=35 // pred_check_branch
          %277 = sbr.rel (%p275) target = $region40
        $region39: #{semishift_forward.1} parent=35 // pred_region
          %p278 = scmp.lt.s32.totalorder %s16, 1
          %s279 = scalar_select %p278, %s16, 1
          %s280 = smul.addr %s279, 32
          %s281 = smul.addr %s280, 8
          %s282 = scalar_lea.vmem %s0, %s281
        $region40: #{semishift_forward.1} parent=35 // pred_fallthru
          _
        // Predicated region
        $region41: #{semishift_forward.1} parent=35 // pred_check
          %p283 = pneg %p62
        $region42: #{semishift_forward.1} parent=35 // pred_check_branch
          %285 = sbr.rel (%p283) target = $region44
        $region43: #{semishift_forward.1} parent=35 // pred_region
          %p286 = scmp.lt.s32.totalorder %s16, 1
          %s287 = scalar_select %p286, %s16, 1
          %s288 = smul.addr %s287, 8
          %s289 = smul.addr %s288, 8
          %s290 = scalar_lea.vmem %s1, %s289
        $region44: #{semishift_forward.1} parent=35 // pred_fallthru
          _
      $region36: #{semishift_forward.1} parent=5 // pred_fallthru
        _
      %p291 = scmp.le.s32.totalorder 1, %s16
      %p292 = scmp.lt.s32.totalorder %s16, 3
      %p293 = pnand %p291, %p292
      %p294 = pneg %p293
      // Predicated region
      $region45: #{semishift_forward.1} parent=5 // pred_check
        _
      $region46: #{semishift_forward.1} parent=5 // pred_check_branch
        %296 = sbr.rel (%p293) target = $region48
      $region47: #{semishift_forward.1} parent=5 // pred_region
        %s297 = ssub.s32 %s16, 1
        // Predicated region
        $region49: #{semishift_forward.1} parent=47 // pred_check
          %p298 = pneg %p89
        $region50: #{semishift_forward.1} parent=47 // pred_check_branch
          %300 = sbr.rel (%p298) target = $region52
        $region51: #{semishift_forward.1} parent=47 // pred_region
          %301 = dma.done [#allocation6], 64
        $region52: #{semishift_forward.1} parent=47 // pred_fallthru
          _
        // Predicated region
        $region53: #{semishift_forward.1} parent=47 // pred_check
          %p302 = pneg %p110
        $region54: #{semishift_forward.1} parent=47 // pred_check_branch
          %304 = sbr.rel (%p302) target = $region56
        $region55: #{semishift_forward.1} parent=47 // pred_region
          %305 = dma.done [#allocation8], 16
        $region56: #{semishift_forward.1} parent=47 // pred_fallthru
          _
        // Predicated region
        $region57: #{semishift_forward.1} parent=47 // pred_check
          %p306 = pneg %p131
        $region58: #{semishift_forward.1} parent=47 // pred_check_branch
          %308 = sbr.rel (%p306) target = $region60
        $region59: #{semishift_forward.1} parent=47 // pred_region
          %309 = dma.done [#allocation8], 32
        $region60: #{semishift_forward.1} parent=47 // pred_fallthru
          _
        // Predicated region
        $region61: #{semishift_forward.1} parent=47 // pred_check
          %p310 = pneg %p152
        $region62: #{semishift_forward.1} parent=47 // pred_check_branch
          %312 = sbr.rel (%p310) target = $region64
        $region63: #{semishift_forward.1} parent=47 // pred_region
          %313 = dma.done [#allocation11], 46080
        $region64: #{semishift_forward.1} parent=47 // pred_fallthru
          _
        // Predicated region
        $region65: #{semishift_forward.1} parent=47 // pred_check
          %p314 = pneg %p173
        $region66: #{semishift_forward.1} parent=47 // pred_check_branch
          %316 = sbr.rel (%p314) target = $region68
        $region67: #{semishift_forward.1} parent=47 // pred_region
          %317 = dma.done [#allocation11], 16
        $region68: #{semishift_forward.1} parent=47 // pred_fallthru
          _
        %p318 = scmp.lt.s32.totalorder %s21, 1
        %s319 = scalar_select %p318, %s21, 1
        %s320 = smul.addr %s319, 32
        %s321 = smul.addr %s320, 8
        %s322 = scalar_lea.vmem %s0, %s321
        %p323 = pneg %p42
        %p324 = pneg %p39
        %p325 = scmp.lt.s32.totalorder %s21, 1
        %s326 = scalar_select %p325, %s21, 1
        %s327 = smul.addr %s326, 8
        %s328 = smul.addr %s327, 8
        %s329 = scalar_lea.vmem %s1, %s328
        %p330 = pneg %p68
        %p331 = pneg %p65
        %p332 = pneg %p89
        %p333 = pneg %p86
        %p334 = pneg %p110
        %p335 = pneg %p107
        %p336 = pneg %p131
        %p337 = pneg %p128
        %p338 = pneg %p152
        %p339 = pneg %p149
        %p340 = pneg %p173
        %p341 = pneg %p170
        %p342 = pneg %p199
        %p343 = pneg %p196
        %p344 = scmp.lt.s32.totalorder %s21, 1
        %s345 = scalar_select %p344, %s21, 1
        %s346 = smul.addr %s345, 8
        %s347 = smul.addr %s346, 8
        %s348 = scalar_lea.vmem %s7, %s347
        %p349 = scmp.lt.s32.totalorder %s21, 1
        %s350 = scalar_select %p349, %s21, 1
        %s351 = smul.addr %s350, 32
        %s352 = smul.addr %s351, 8
        %s353 = scalar_lea.vmem %s0, %s352
        %p354 = scmp.lt.s32.totalorder %s21, 1
        %s355 = scalar_select %p354, %s21, 1
        %s356 = smul.addr %s355, 8
        %s357 = smul.addr %s356, 8
        %s358 = scalar_lea.vmem %s1, %s357
        %p359 = scmp.lt.s32.totalorder %s21, 1
        %s360 = scalar_select %p359, %s21, 1
        %s361 = smul.addr %s360, 8
        %s362 = smul.addr %s361, 8
        %s363 = scalar_lea.vmem %s7, %s362
        %v365 = vld [vmem:[%s353] sm:$0xff]
        %v366 = vld [vmem:[%s353 + $0x8] sm:$0xff]
        %v367 = vld [vmem:[%s353 + $0x10] sm:$0xff]
        %v368 = vld [vmem:[%s353 + $0x18] sm:$0xff]
        %v369 = vld [vmem:[%s353 + $0x20] sm:$0xff]
        %v370 = vld [vmem:[%s353 + $0x28] sm:$0xff]
        %v371 = vld [vmem:[%s353 + $0x30] sm:$0xff]
        %v372 = vld [vmem:[%s353 + $0x38] sm:$0xff]
        %v373 = vld [vmem:[%s353 + $0x40] sm:$0xff]
        %v374 = vld [vmem:[%s353 + $0x48] sm:$0xff]
        %v375 = vld [vmem:[%s353 + $0x50] sm:$0xff]
        %v376 = vld [vmem:[%s353 + $0x58] sm:$0xff]
        %v377 = vld [vmem:[%s353 + $0x60] sm:$0xff]
        %v378 = vld [vmem:[%s353 + $0x68] sm:$0xff]
        %v379 = vld [vmem:[%s353 + $0x70] sm:$0xff]
        %v380 = vld [vmem:[%s353 + $0x78] sm:$0xff]
        %v381 = vld [vmem:[%s353 + $0x80] sm:$0xff]
        %v382 = vld [vmem:[%s353 + $0x88] sm:$0xff]
        %v383 = vld [vmem:[%s353 + $0x90] sm:$0xff]
        %v384 = vld [vmem:[%s353 + $0x98] sm:$0xff]
        %v385 = vld [vmem:[%s353 + $0xa0] sm:$0xff]
        %v386 = vld [vmem:[%s353 + $0xa8] sm:$0xff]
        %v387 = vld [vmem:[%s353 + $0xb0] sm:$0xff]
        %v388 = vld [vmem:[%s353 + $0xb8] sm:$0xff]
        %v389 = vld [vmem:[%s353 + $0xc0] sm:$0xff]
        %v390 = vld [vmem:[%s353 + $0xc8] sm:$0xff]
        %v391 = vld [vmem:[%s353 + $0xd0] sm:$0xff]
        %v392 = vld [vmem:[%s353 + $0xd8] sm:$0xff]
        %v393 = vld [vmem:[%s353 + $0xe0] sm:$0xff]
        %v394 = vld [vmem:[%s353 + $0xe8] sm:$0xff]
        %v395 = vld [vmem:[%s353 + $0xf0] sm:$0xff]
        %v396 = vld [vmem:[%s353 + $0xf8] sm:$0xff]
        %v397 = vpack.c.bf16 %v366, %v365
        %v398 = vpack.c.bf16 %v368, %v367
        %v399 = vpack.c.bf16 %v370, %v369
        %v400 = vpack.c.bf16 %v372, %v371
        %v401 = vpack.c.bf16 %v374, %v373
        %v402 = vpack.c.bf16 %v376, %v375
        %v403 = vpack.c.bf16 %v378, %v377
        %v404 = vpack.c.bf16 %v380, %v379
        %v405 = vpack.c.bf16 %v382, %v381
        %v406 = vpack.c.bf16 %v384, %v383
        %v407 = vpack.c.bf16 %v386, %v385
        %v408 = vpack.c.bf16 %v388, %v387
        %v409 = vpack.c.bf16 %v390, %v389
        %v410 = vpack.c.bf16 %v392, %v391
        %v411 = vpack.c.bf16 %v394, %v393
        %v412 = vpack.c.bf16 %v396, %v395
        %v413 = vld [vmem:[#allocation5] sm:$0x7]
        %v414 = vld [vmem:[#allocation7] sm:$0x1]
        %v416 = vlaneseq
        %v417 = vshrl.u32 %v416, 7
        %v418 = vsub.s32 0, %v417
        %v419 = vrot.slane %v414, %v418
        %vm421 = vcmask 48128
        %v423 = vsel %vm421, %v397, 0
        %v426 = vsel %vm421, %v398, 0
        %v429 = vsel %vm421, %v399, 0
        %v432 = vsel %vm421, %v400, 0
        %v435 = vsel %vm421, %v401, 0
        %v438 = vsel %vm421, %v402, 0
        %v441 = vsel %vm421, %v403, 0
        %v444 = vsel %vm421, %v404, 0
        %v447 = vsel %vm421, %v405, 0
        %v450 = vsel %vm421, %v406, 0
        %v453 = vsel %vm421, %v407, 0
        %v456 = vsel %vm421, %v408, 0
        %v459 = vsel %vm421, %v409, 0
        %v462 = vsel %vm421, %v410, 0
        %v465 = vsel %vm421, %v411, 0
        %v468 = vsel %vm421, %v412, 0
        %vm470 = vcmask 1042432
        %v472 = vsel %vm470, %v413, 0
        %474 = vmatprep.subr.bf16.mxu0 0
        %475 = vmatpush1.bf16.msra.mxu0 %v472
        %476 = vmatprep.subr.bf16.mxu0 0
        %477 = vmatpush1.bf16.msra.mxu0 0
        %478 = vmatprep.subr.bf16.mxu0 0
        %479 = vmatpush1.bf16.msra.mxu0 0
        %480 = vmatprep.subr.bf16.mxu0 0
        %481 = vmatpush1.bf16.msra.mxu0 0
        %482 = vmatprep.subr.bf16.mxu0 0
        %483 = vmatpush1.bf16.msra.mxu0 0
        %484 = vmatprep.subr.bf16.mxu0 0
        %485 = vmatpush1.bf16.msra.mxu0 0
        %486 = vmatprep.subr.bf16.mxu0 0
        %487 = vmatpush1.bf16.msra.mxu0 0
        %488 = vmatprep.subr.bf16.mxu0 0
        %489 = vmatpush1.bf16.msra.mxu0 0
        %490 = vmatprep.subr.bf16.mxu0 0
        %491 = vmatpush1.bf16.msra.mxu0 0
        %492 = vmatprep.subr.bf16.mxu0 0
        %493 = vmatpush1.bf16.msra.mxu0 0
        %494 = vmatprep.subr.bf16.mxu0 0
        %495 = vmatpush1.bf16.msra.mxu0 0
        %496 = vmatprep.subr.bf16.mxu0 0
        %497 = vmatpush1.bf16.msra.mxu0 0
        %498 = vmatprep.subr.bf16.mxu0 0
        %499 = vmatpush1.bf16.msra.mxu0 0
        %500 = vmatprep.subr.bf16.mxu0 0
        %501 = vmatpush1.bf16.msra.mxu0 0
        %502 = vmatprep.subr.bf16.mxu0 0
        %503 = vmatpush1.bf16.msra.mxu0 0
        %504 = vmatprep.subr.bf16.mxu0 0
        %505 = vmatpush1.bf16.msra.mxu0 0
        %506 = vmatprep.mubr.bf16.mxu0 0
        %507 = vmatmul.mubr.bf16.gmra.mrb[0].mxu0 %v423
        %v508 = vpop.f32.mrb[0].mxu0
        %v509 = vadd.f32 %v419, %v508
        %v510 = vpop.f32.mrb[0].mxu0
        %v511 = vpop.f32.mrb[0].mxu0
        %v512 = vadd.f32 %v419, %v511
        %v513 = vpop.f32.mrb[0].mxu0
        %514 = vmatprep.mubr.bf16.mxu0 0
        %515 = vmatmul.mubr.bf16.gmra.mrb[0].mxu0 %v426
        %v516 = vpop.f32.mrb[0].mxu0
        %v517 = vadd.f32 %v419, %v516
        %v518 = vpop.f32.mrb[0].mxu0
        %v519 = vpop.f32.mrb[0].mxu0
        %v520 = vadd.f32 %v419, %v519
        %v521 = vpop.f32.mrb[0].mxu0
        %522 = vmatprep.mubr.bf16.mxu0 0
        %523 = vmatmul.mubr.bf16.gmra.mrb[0].mxu0 %v429
        %v524 = vpop.f32.mrb[0].mxu0
        %v525 = vadd.f32 %v419, %v524
        %v526 = vpop.f32.mrb[0].mxu0
        %v527 = vpop.f32.mrb[0].mxu0
        %v528 = vadd.f32 %v419, %v527
        %v529 = vpop.f32.mrb[0].mxu0
        %530 = vmatprep.mubr.bf16.mxu0 0
        %531 = vmatmul.mubr.bf16.gmra.mrb[0].mxu0 %v432
        %v532 = vpop.f32.mrb[0].mxu0
        %v533 = vadd.f32 %v419, %v532
        %v534 = vpop.f32.mrb[0].mxu0
        %v535 = vpop.f32.mrb[0].mxu0
        %v536 = vadd.f32 %v419, %v535
        %v537 = vpop.f32.mrb[0].mxu0
        %538 = vmatprep.mubr.bf16.mxu0 0
        %539 = vmatmul.mubr.bf16.gmra.mrb[0].mxu0 %v435
        %v540 = vpop.f32.mrb[0].mxu0
        %v541 = vadd.f32 %v419, %v540
        %v542 = vpop.f32.mrb[0].mxu0
        %v543 = vpop.f32.mrb[0].mxu0
        %v544 = vadd.f32 %v419, %v543
        %v545 = vpop.f32.mrb[0].mxu0
        %546 = vmatprep.mubr.bf16.mxu0 0
        %547 = vmatmul.mubr.bf16.gmra.mrb[0].mxu0 %v438
        %v548 = vpop.f32.mrb[0].mxu0
        %v549 = vadd.f32 %v419, %v548
        %v550 = vpop.f32.mrb[0].mxu0
        %v551 = vpop.f32.mrb[0].mxu0
        %v552 = vadd.f32 %v419, %v551
        %v553 = vpop.f32.mrb[0].mxu0
        %554 = vmatprep.mubr.bf16.mxu0 0
        %555 = vmatmul.mubr.bf16.gmra.mrb[0].mxu0 %v441
        %v556 = vpop.f32.mrb[0].mxu0
        %v557 = vadd.f32 %v419, %v556
        %v558 = vpop.f32.mrb[0].mxu0
        %v559 = vpop.f32.mrb[0].mxu0
        %v560 = vadd.f32 %v419, %v559
        %v561 = vpop.f32.mrb[0].mxu0
        %562 = vmatprep.mubr.bf16.mxu0 0
        %563 = vmatmul.mubr.bf16.gmra.mrb[0].mxu0 %v444
        %v564 = vpop.f32.mrb[0].mxu0
        %v565 = vadd.f32 %v419, %v564
        %v566 = vpop.f32.mrb[0].mxu0
        %v567 = vpop.f32.mrb[0].mxu0
        %v568 = vadd.f32 %v419, %v567
        %v569 = vpop.f32.mrb[0].mxu0
        %570 = vmatprep.mubr.bf16.mxu0 0
        %571 = vmatmul.mubr.bf16.gmra.mrb[0].mxu0 %v447
        %v572 = vpop.f32.mrb[0].mxu0
        %v573 = vadd.f32 %v419, %v572
        %v574 = vpop.f32.mrb[0].mxu0
        %v575 = vpop.f32.mrb[0].mxu0
        %v576 = vadd.f32 %v419, %v575
        %v577 = vpop.f32.mrb[0].mxu0
        %578 = vmatprep.mubr.bf16.mxu0 0
        %579 = vmatmul.mubr.bf16.gmra.mrb[0].mxu0 %v450
        %v580 = vpop.f32.mrb[0].mxu0
        %v581 = vadd.f32 %v419, %v580
        %v582 = vpop.f32.mrb[0].mxu0
        %v583 = vpop.f32.mrb[0].mxu0
        %v584 = vadd.f32 %v419, %v583
        %v585 = vpop.f32.mrb[0].mxu0
        %586 = vmatprep.mubr.bf16.mxu0 0
        %587 = vmatmul.mubr.bf16.gmra.mrb[0].mxu0 %v453
        %v588 = vpop.f32.mrb[0].mxu0
        %v589 = vadd.f32 %v419, %v588
        %v590 = vpop.f32.mrb[0].mxu0
        %v591 = vpop.f32.mrb[0].mxu0
        %v592 = vadd.f32 %v419, %v591
        %v593 = vpop.f32.mrb[0].mxu0
        %594 = vmatprep.mubr.bf16.mxu0 0
        %595 = vmatmul.mubr.bf16.gmra.mrb[0].mxu0 %v456
        %v596 = vpop.f32.mrb[0].mxu0
        %v597 = vadd.f32 %v419, %v596
        %v598 = vpop.f32.mrb[0].mxu0
        %v599 = vpop.f32.mrb[0].mxu0
        %v600 = vadd.f32 %v419, %v599
        %v601 = vpop.f32.mrb[0].mxu0
        %602 = vmatprep.mubr.bf16.mxu0 0
        %603 = vmatmul.mubr.bf16.gmra.mrb[0].mxu0 %v459
        %v604 = vpop.f32.mrb[0].mxu0
        %v605 = vadd.f32 %v419, %v604
        %v606 = vpop.f32.mrb[0].mxu0
        %v607 = vpop.f32.mrb[0].mxu0
        %v608 = vadd.f32 %v419, %v607
        %v609 = vpop.f32.mrb[0].mxu0
        %610 = vmatprep.mubr.bf16.mxu0 0
        %611 = vmatmul.mubr.bf16.gmra.mrb[0].mxu0 %v462
        %v612 = vpop.f32.mrb[0].mxu0
        %v613 = vadd.f32 %v419, %v612
        %v614 = vpop.f32.mrb[0].mxu0
        %v615 = vpop.f32.mrb[0].mxu0
        %v616 = vadd.f32 %v419, %v615
        %v617 = vpop.f32.mrb[0].mxu0
        %618 = vmatprep.mubr.bf16.mxu0 0
        %619 = vmatmul.mubr.bf16.gmra.mrb[0].mxu0 %v465
        %v620 = vpop.f32.mrb[0].mxu0
        %v621 = vadd.f32 %v419, %v620
        %v622 = vpop.f32.mrb[0].mxu0
        %v623 = vpop.f32.mrb[0].mxu0
        %v624 = vadd.f32 %v419, %v623
        %v625 = vpop.f32.mrb[0].mxu0
        %626 = vmatprep.mubr.bf16.mxu0 0
        %627 = vmatmul.mubr.bf16.gmra.mrb[0].mxu0 %v468
        %v628 = vpop.f32.mrb[0].mxu0
        %v629 = vadd.f32 %v419, %v628
        %v630 = vpop.f32.mrb[0].mxu0
        %v631 = vpop.f32.mrb[0].mxu0
        %v632 = vadd.f32 %v419, %v631
        %v633 = vpop.f32.mrb[0].mxu0
        %634 = vdwg.mxu0
        %v635 = vld [vmem:[%s358] sm:$0xff]
        %v636 = vld [vmem:[%s358 + $0x8] sm:$0xff]
        %v637 = vld [vmem:[%s358 + $0x10] sm:$0xff]
        %v638 = vld [vmem:[%s358 + $0x18] sm:$0xff]
        %v639 = vld [vmem:[%s358 + $0x20] sm:$0xff]
        %v640 = vld [vmem:[%s358 + $0x28] sm:$0xff]
        %v641 = vld [vmem:[%s358 + $0x30] sm:$0xff]
        %v642 = vld [vmem:[%s358 + $0x38] sm:$0xff]
        %v643 = vpack.c.bf16 %v636, %v635
        %v644 = vpack.c.bf16 %v638, %v637
        %v645 = vpack.c.bf16 %v640, %v639
        %v646 = vpack.c.bf16 %v642, %v641
        %v647 = vld [vmem:[#allocation9] sm:$0x3]
        %vm648 = vcmask 31744
        %v650 = vsel %vm648, %v643, 0
        %v653 = vsel %vm648, %v644, 0
        %v656 = vsel %vm648, %v645, 0
        %v659 = vsel %vm648, %v646, 0
        %vm661 = vcmask 1041408
        %v663 = vsel %vm661, %v647, 0
        %665 = vmatprep.subr.bf16.mxu0 0
        %666 = vmatpush1.bf16.msra.mxu0 %v663
        %667 = vmatprep.subr.bf16.mxu0 0
        %668 = vmatpush1.bf16.msra.mxu0 0
        %669 = vmatprep.subr.bf16.mxu0 0
        %670 = vmatpush1.bf16.msra.mxu0 0
        %671 = vmatprep.subr.bf16.mxu0 0
        %672 = vmatpush1.bf16.msra.mxu0 0
        %673 = vmatprep.subr.bf16.mxu0 0
        %674 = vmatpush1.bf16.msra.mxu0 0
        %675 = vmatprep.subr.bf16.mxu0 0
        %676 = vmatpush1.bf16.msra.mxu0 0
        %677 = vmatprep.subr.bf16.mxu0 0
        %678 = vmatpush1.bf16.msra.mxu0 0
        %679 = vmatprep.subr.bf16.mxu0 0
        %680 = vmatpush1.bf16.msra.mxu0 0
        %681 = vmatprep.subr.bf16.mxu0 0
        %682 = vmatpush1.bf16.msra.mxu0 0
        %683 = vmatprep.subr.bf16.mxu0 0
        %684 = vmatpush1.bf16.msra.mxu0 0
        %685 = vmatprep.subr.bf16.mxu0 0
        %686 = vmatpush1.bf16.msra.mxu0 0
        %687 = vmatprep.subr.bf16.mxu0 0
        %688 = vmatpush1.bf16.msra.mxu0 0
        %689 = vmatprep.subr.bf16.mxu0 0
        %690 = vmatpush1.bf16.msra.mxu0 0
        %691 = vmatprep.subr.bf16.mxu0 0
        %692 = vmatpush1.bf16.msra.mxu0 0
        %693 = vmatprep.subr.bf16.mxu0 0
        %694 = vmatpush1.bf16.msra.mxu0 0
        %695 = vmatprep.subr.bf16.mxu0 0
        %696 = vmatpush1.bf16.msra.mxu0 0
        %697 = vmatprep.mubr.bf16.mxu0 0
        %698 = vmatmul.mubr.bf16.gmra.mrb[0].mxu0 %v650
        %v699 = vpop.f32.mrb[0].mxu0
        %v700 = vadd.f32 0.0, %v699
        %v701 = vpop.f32.mrb[0].mxu0
        %v702 = vpop.f32.mrb[0].mxu0
        %v703 = vadd.f32 0.0, %v702
        %v704 = vpop.f32.mrb[0].mxu0
        %705 = vmatprep.mubr.bf16.mxu0 0
        %706 = vmatmul.mubr.bf16.gmra.mrb[0].mxu0 %v653
        %v707 = vpop.f32.mrb[0].mxu0
        %v708 = vadd.f32 0.0, %v707
        %v709 = vpop.f32.mrb[0].mxu0
        %v710 = vpop.f32.mrb[0].mxu0
        %v711 = vadd.f32 0.0, %v710
        %v712 = vpop.f32.mrb[0].mxu0
        %713 = vmatprep.mubr.bf16.mxu0 0
        %714 = vmatmul.mubr.bf16.gmra.mrb[0].mxu0 %v656
        %v715 = vpop.f32.mrb[0].mxu0
        %v716 = vadd.f32 0.0, %v715
        %v717 = vpop.f32.mrb[0].mxu0
        %v718 = vpop.f32.mrb[0].mxu0
        %v719 = vadd.f32 0.0, %v718
        %v720 = vpop.f32.mrb[0].mxu0
        %721 = vmatprep.mubr.bf16.mxu0 0
        %722 = vmatmul.mubr.bf16.gmra.mrb[0].mxu0 %v659
        %v723 = vpop.f32.mrb[0].mxu0
        %v724 = vadd.f32 0.0, %v723
        %v725 = vpop.f32.mrb[0].mxu0
        %v726 = vpop.f32.mrb[0].mxu0
        %v727 = vadd.f32 0.0, %v726
        %v728 = vpop.f32.mrb[0].mxu0
        %729 = vdwg.mxu0
        %730 = vst [vmem:[#allocation2] sm:$0xff] 0.0
        %731 = vst [vmem:[#allocation2 + $0x8] sm:$0xff] 0.0
        %732 = vst [vmem:[#allocation2 + $0x10] sm:$0x3] 0.0
        %s733 = scalar_lea.vmem [#allocation2], 408
        %734 = vst [vmem:[%s733] sm:$0xff] 0.0
        %735 = vst [vmem:[%s733 + $0x8] sm:$0xff] 0.0
        %736 = vst [vmem:[%s733 + $0x10] sm:$0x3] 0.0
        %737 = vst [vmem:[#allocation2] sm:$0x1] 0.0
        %738 = vst [vmem:[#allocation2 + $0x18] sm:$0x1] 0.0
        %739 = vst [vmem:[#allocation2 + $0x30] sm:$0x1] 0.0
        %740 = vst [vmem:[#allocation2 + $0x48] sm:$0x1] 0.0
        %741 = vst [vmem:[#allocation2 + $0x60] sm:$0x1] 0.0
        %742 = vst [vmem:[#allocation2 + $0x78] sm:$0x1] 0.0
        %743 = vst [vmem:[#allocation2 + $0x90] sm:$0x1] 0.0
        %744 = vst [vmem:[#allocation2 + $0xa8] sm:$0x1] 0.0
        %745 = vst [vmem:[#allocation2 + $0xc0] sm:$0x1] 0.0
        %746 = vst [vmem:[#allocation2 + $0xd8] sm:$0x1] 0.0
        %747 = vst [vmem:[#allocation2 + $0xf0] sm:$0x1] 0.0
        %748 = vst [vmem:[#allocation2 + $0x108] sm:$0x1] 0.0
        %749 = vst [vmem:[#allocation2 + $0x120] sm:$0x1] 0.0
        %750 = vst [vmem:[#allocation2 + $0x138] sm:$0x1] 0.0
        %751 = vst [vmem:[#allocation2 + $0x150] sm:$0x1] 0.0
        %752 = vst [vmem:[#allocation2 + $0x168] sm:$0x1] 0.0
        %753 = vst [vmem:[#allocation2 + $0x180] sm:$0x1] 0.0
        %754 = vst [vmem:[#allocation2 + $0x198] sm:$0x1] 0.0
        %755 = vst [vmem:[#allocation2 + $0x11] sm:$0x1] 0.0
        %756 = vst [vmem:[#allocation2 + $0x29] sm:$0x1] 0.0
        %757 = vst [vmem:[#allocation2 + $0x41] sm:$0x1] 0.0
        %758 = vst [vmem:[#allocation2 + $0x59] sm:$0x1] 0.0
        %759 = vst [vmem:[#allocation2 + $0x71] sm:$0x1] 0.0
        %760 = vst [vmem:[#allocation2 + $0x89] sm:$0x1] 0.0
        %761 = vst [vmem:[#allocation2 + $0xa1] sm:$0x1] 0.0
        %762 = vst [vmem:[#allocation2 + $0xb9] sm:$0x1] 0.0
        %763 = vst [vmem:[#allocation2 + $0xd1] sm:$0x1] 0.0
        %764 = vst [vmem:[#allocation2 + $0xe9] sm:$0x1] 0.0
        %765 = vst [vmem:[#allocation2 + $0x101] sm:$0x1] 0.0
        %766 = vst [vmem:[#allocation2 + $0x119] sm:$0x1] 0.0
        %767 = vst [vmem:[#allocation2 + $0x131] sm:$0x1] 0.0
        %768 = vst [vmem:[#allocation2 + $0x149] sm:$0x1] 0.0
        %769 = vst [vmem:[#allocation2 + $0x161] sm:$0x1] 0.0
        %770 = vst [vmem:[#allocation2 + $0x179] sm:$0x1] 0.0
        %771 = vst [vmem:[#allocation2 + $0x191] sm:$0x1] 0.0
        %772 = vst [vmem:[#allocation2 + $0x1a9] sm:$0x1] 0.0
        %773 = vst [vmem:[#allocation3] sm:$0xff] 0.0
        %774 = vst [vmem:[#allocation3 + $0x8] sm:$0x3] 0.0
        %s775 = scalar_lea.vmem [#allocation3], 144
        %776 = vst [vmem:[%s775] sm:$0xff] 0.0
        %777 = vst [vmem:[%s775 + $0x8] sm:$0x3] 0.0
        %778 = vst [vmem:[#allocation3] sm:$0x1] 0.0
        %779 = vst [vmem:[#allocation3 + $0x10] sm:$0x1] 0.0
        %780 = vst [vmem:[#allocation3 + $0x20] sm:$0x1] 0.0
        %781 = vst [vmem:[#allocation3 + $0x30] sm:$0x1] 0.0
        %782 = vst [vmem:[#allocation3 + $0x40] sm:$0x1] 0.0
        %783 = vst [vmem:[#allocation3 + $0x50] sm:$0x1] 0.0
        %784 = vst [vmem:[#allocation3 + $0x60] sm:$0x1] 0.0
        %785 = vst [vmem:[#allocation3 + $0x70] sm:$0x1] 0.0
        %786 = vst [vmem:[#allocation3 + $0x80] sm:$0x1] 0.0
        %787 = vst [vmem:[#allocation3 + $0x90] sm:$0x1] 0.0
        %788 = vst [vmem:[#allocation3 + $0x9] sm:$0x1] 0.0
        %789 = vst [vmem:[#allocation3 + $0x19] sm:$0x1] 0.0
        %790 = vst [vmem:[#allocation3 + $0x29] sm:$0x1] 0.0
        %791 = vst [vmem:[#allocation3 + $0x39] sm:$0x1] 0.0
        %792 = vst [vmem:[#allocation3 + $0x49] sm:$0x1] 0.0
        %793 = vst [vmem:[#allocation3 + $0x59] sm:$0x1] 0.0
        %794 = vst [vmem:[#allocation3 + $0x69] sm:$0x1] 0.0
        %795 = vst [vmem:[#allocation3 + $0x79] sm:$0x1] 0.0
        %796 = vst [vmem:[#allocation3 + $0x89] sm:$0x1] 0.0
        %797 = vst [vmem:[#allocation3 + $0x99] sm:$0x1] 0.0
        %s798 = scalar_lea.vmem [#allocation2], 24
        %799 = vst [vmem:[%s798 + $0x1] sm:$0xff] %v509
        %800 = vst [vmem:[%s798 + $0x9] sm:$0xff] %v512
        %801 = vst [vmem:[%s798 + $0x19] sm:$0xff] %v517
        %802 = vst [vmem:[%s798 + $0x21] sm:$0xff] %v520
        %803 = vst [vmem:[%s798 + $0x31] sm:$0xff] %v525
        %804 = vst [vmem:[%s798 + $0x39] sm:$0xff] %v528
        %805 = vst [vmem:[%s798 + $0x49] sm:$0xff] %v533
        %806 = vst [vmem:[%s798 + $0x51] sm:$0xff] %v536
        %807 = vst [vmem:[%s798 + $0x61] sm:$0xff] %v541
        %808 = vst [vmem:[%s798 + $0x69] sm:$0xff] %v544
        %809 = vst [vmem:[%s798 + $0x79] sm:$0xff] %v549
        %810 = vst [vmem:[%s798 + $0x81] sm:$0xff] %v552
        %811 = vst [vmem:[%s798 + $0x91] sm:$0xff] %v557
        %812 = vst [vmem:[%s798 + $0x99] sm:$0xff] %v560
        %813 = vst [vmem:[%s798 + $0xa9] sm:$0xff] %v565
        %814 = vst [vmem:[%s798 + $0xb1] sm:$0xff] %v568
        %815 = vst [vmem:[%s798 + $0xc1] sm:$0xff] %v573
        %816 = vst [vmem:[%s798 + $0xc9] sm:$0xff] %v576
        %817 = vst [vmem:[%s798 + $0xd9] sm:$0xff] %v581
        %818 = vst [vmem:[%s798 + $0xe1] sm:$0xff] %v584
        %819 = vst [vmem:[%s798 + $0xf1] sm:$0xff] %v589
        %820 = vst [vmem:[%s798 + $0xf9] sm:$0xff] %v592
        %821 = vst [vmem:[%s798 + $0x109] sm:$0xff] %v597
        %822 = vst [vmem:[%s798 + $0x111] sm:$0xff] %v600
        %823 = vst [vmem:[%s798 + $0x121] sm:$0xff] %v605
        %824 = vst [vmem:[%s798 + $0x129] sm:$0xff] %v608
        %825 = vst [vmem:[%s798 + $0x139] sm:$0xff] %v613
        %826 = vst [vmem:[%s798 + $0x141] sm:$0xff] %v616
        %827 = vst [vmem:[%s798 + $0x151] sm:$0xff] %v621
        %828 = vst [vmem:[%s798 + $0x159] sm:$0xff] %v624
        %829 = vst [vmem:[%s798 + $0x169] sm:$0xff] %v629
        %830 = vst [vmem:[%s798 + $0x171] sm:$0xff] %v632
        %s831 = scalar_lea.vmem [#allocation3], 16
        %832 = vst [vmem:[%s831 + $0x1] sm:$0xff] %v700
        %833 = vst [vmem:[%s831 + $0x11] sm:$0xff] %v703
        %834 = vst [vmem:[%s831 + $0x21] sm:$0xff] %v708
        %835 = vst [vmem:[%s831 + $0x31] sm:$0xff] %v711
        %836 = vst [vmem:[%s831 + $0x41] sm:$0xff] %v716
        %837 = vst [vmem:[%s831 + $0x51] sm:$0xff] %v719
        %838 = vst [vmem:[%s831 + $0x61] sm:$0xff] %v724
        %839 = vst [vmem:[%s831 + $0x71] sm:$0xff] %v727
        %v840 = vld [vmem:[#allocation2] ss:$2 sm:$0xff]
        %s841 = scalar_lea.vmem [#allocation2], 48
        %v842 = vld [vmem:[%s841] ss:$2 sm:$0xff]
        %s843 = scalar_lea.vmem [#allocation2], 96
        %v844 = vld [vmem:[%s843] ss:$2 sm:$0xff]
        %s845 = scalar_lea.vmem [#allocation2], 144
        %v846 = vld [vmem:[%s845] ss:$2 sm:$0xff]
        %s847 = scalar_lea.vmem [#allocation2], 192
        %v848 = vld [vmem:[%s847] ss:$2 sm:$0xff]
        %s849 = scalar_lea.vmem [#allocation2], 240
        %v850 = vld [vmem:[%s849] ss:$2 sm:$0xff]
        %s851 = scalar_lea.vmem [#allocation2], 288
        %v852 = vld [vmem:[%s851] ss:$2 sm:$0xff]
        %s853 = scalar_lea.vmem [#allocation2], 336
        %v854 = vld [vmem:[%s853] ss:$2 sm:$0xff]
        %v855 = vpack.c.bf16 %v842, %v840
        %v856 = vpack.c.bf16 %v846, %v844
        %v857 = vpack.c.bf16 %v850, %v848
        %v858 = vpack.c.bf16 %v854, %v852
        %859 = vst [vmem:[#allocation4] sm:$0xff] %v855
        %860 = vst [vmem:[#allocation4 + $0x168] sm:$0xff] %v856
        %861 = vst [vmem:[#allocation4 + $0x2d0] sm:$0xff] %v857
        %862 = vst [vmem:[#allocation4 + $0x438] sm:$0xff] %v858
        %s863 = scalar_lea.vmem [#allocation2], 1
        %v864 = vld [vmem:[%s863] ss:$2 sm:$0xff]
        %s865 = scalar_lea.vmem [#allocation2], 49
        %v866 = vld [vmem:[%s865] ss:$2 sm:$0xff]
        %s867 = scalar_lea.vmem [#allocation2], 97
        %v868 = vld [vmem:[%s867] ss:$2 sm:$0xff]
        %s869 = scalar_lea.vmem [#allocation2], 145
        %v870 = vld [vmem:[%s869] ss:$2 sm:$0xff]
        %s871 = scalar_lea.vmem [#allocation2], 193
        %v872 = vld [vmem:[%s871] ss:$2 sm:$0xff]
        %s873 = scalar_lea.vmem [#allocation2], 241
        %v874 = vld [vmem:[%s873] ss:$2 sm:$0xff]
        %s875 = scalar_lea.vmem [#allocation2], 289
        %v876 = vld [vmem:[%s875] ss:$2 sm:$0xff]
        %s877 = scalar_lea.vmem [#allocation2], 337
        %v878 = vld [vmem:[%s877] ss:$2 sm:$0xff]
        %v879 = vpack.c.bf16 %v866, %v864
        %v880 = vpack.c.bf16 %v870, %v868
        %v881 = vpack.c.bf16 %v874, %v872
        %v882 = vpack.c.bf16 %v878, %v876
        %883 = vst [vmem:[#allocation4 + $0x8] sm:$0xff] %v879
        %884 = vst [vmem:[#allocation4 + $0x170] sm:$0xff] %v880
        %885 = vst [vmem:[#allocation4 + $0x2d8] sm:$0xff] %v881
        %886 = vst [vmem:[#allocation4 + $0x440] sm:$0xff] %v882
        %s887 = scalar_lea.vmem [#allocation2], 2
        %v888 = vld [vmem:[%s887] ss:$2 sm:$0xff]
        %s889 = scalar_lea.vmem [#allocation2], 50
        %v890 = vld [vmem:[%s889] ss:$2 sm:$0xff]
        %s891 = scalar_lea.vmem [#allocation2], 98
        %v892 = vld [vmem:[%s891] ss:$2 sm:$0xff]
        %s893 = scalar_lea.vmem [#allocation2], 146
        %v894 = vld [vmem:[%s893] ss:$2 sm:$0xff]
        %s895 = scalar_lea.vmem [#allocation2], 194
        %v896 = vld [vmem:[%s895] ss:$2 sm:$0xff]
        %s897 = scalar_lea.vmem [#allocation2], 242
        %v898 = vld [vmem:[%s897] ss:$2 sm:$0xff]
        %s899 = scalar_lea.vmem [#allocation2], 290
        %v900 = vld [vmem:[%s899] ss:$2 sm:$0xff]
        %s901 = scalar_lea.vmem [#allocation2], 338
        %v902 = vld [vmem:[%s901] ss:$2 sm:$0xff]
        %v903 = vpack.c.bf16 %v890, %v888
        %v904 = vpack.c.bf16 %v894, %v892
        %v905 = vpack.c.bf16 %v898, %v896
        %v906 = vpack.c.bf16 %v902, %v900
        %907 = vst [vmem:[#allocation4 + $0x10] sm:$0xff] %v903
        %908 = vst [vmem:[#allocation4 + $0x178] sm:$0xff] %v904
        %909 = vst [vmem:[#allocation4 + $0x2e0] sm:$0xff] %v905
        %910 = vst [vmem:[#allocation4 + $0x448] sm:$0xff] %v906
        %v911 = vld [vmem:[%s798] ss:$2 sm:$0xff]
        %s912 = scalar_lea.vmem %s798, 48 [#allocation2]
        %v913 = vld [vmem:[%s912] ss:$2 sm:$0xff]
        %s914 = scalar_lea.vmem %s798, 96 [#allocation2]
        %v915 = vld [vmem:[%s914] ss:$2 sm:$0xff]
        %s916 = scalar_lea.vmem %s798, 144 [#allocation2]
        %v917 = vld [vmem:[%s916] ss:$2 sm:$0xff]
        %s918 = scalar_lea.vmem %s798, 192 [#allocation2]
        %v919 = vld [vmem:[%s918] ss:$2 sm:$0xff]
        %s920 = scalar_lea.vmem %s798, 240 [#allocation2]
        %v921 = vld [vmem:[%s920] ss:$2 sm:$0xff]
        %s922 = scalar_lea.vmem %s798, 288 [#allocation2]
        %v923 = vld [vmem:[%s922] ss:$2 sm:$0xff]
        %s924 = scalar_lea.vmem %s798, 336 [#allocation2]
        %v925 = vld [vmem:[%s924] ss:$2 sm:$0xff]
        %v926 = vpack.c.bf16 %v913, %v911
        %v927 = vpack.c.bf16 %v917, %v915
        %v928 = vpack.c.bf16 %v921, %v919
        %v929 = vpack.c.bf16 %v925, %v923
        %930 = vst [vmem:[#allocation4 + $0x18] sm:$0xff] %v926
        %931 = vst [vmem:[#allocation4 + $0x180] sm:$0xff] %v927
        %932 = vst [vmem:[#allocation4 + $0x2e8] sm:$0xff] %v928
        %933 = vst [vmem:[#allocation4 + $0x450] sm:$0xff] %v929
        %s934 = scalar_lea.vmem %s798, 1 [#allocation2]
        %v935 = vld [vmem:[%s934] ss:$2 sm:$0xff]
        %s936 = scalar_lea.vmem %s798, 49 [#allocation2]
        %v937 = vld [vmem:[%s936] ss:$2 sm:$0xff]
        %s938 = scalar_lea.vmem %s798, 97 [#allocation2]
        %v939 = vld [vmem:[%s938] ss:$2 sm:$0xff]
        %s940 = scalar_lea.vmem %s798, 145 [#allocation2]
        %v941 = vld [vmem:[%s940] ss:$2 sm:$0xff]
        %s942 = scalar_lea.vmem %s798, 193 [#allocation2]
        %v943 = vld [vmem:[%s942] ss:$2 sm:$0xff]
        %s944 = scalar_lea.vmem %s798, 241 [#allocation2]
        %v945 = vld [vmem:[%s944] ss:$2 sm:$0xff]
        %s946 = scalar_lea.vmem %s798, 289 [#allocation2]
        %v947 = vld [vmem:[%s946] ss:$2 sm:$0xff]
        %s948 = scalar_lea.vmem %s798, 337 [#allocation2]
        %v949 = vld [vmem:[%s948] ss:$2 sm:$0xff]
        %v950 = vpack.c.bf16 %v937, %v935
        %v951 = vpack.c.bf16 %v941, %v939
        %v952 = vpack.c.bf16 %v945, %v943
        %v953 = vpack.c.bf16 %v949, %v947
        %954 = vst [vmem:[#allocation4 + $0x20] sm:$0xff] %v950
        %955 = vst [vmem:[#allocation4 + $0x188] sm:$0xff] %v951
        %956 = vst [vmem:[#allocation4 + $0x2f0] sm:$0xff] %v952
        %957 = vst [vmem:[#allocation4 + $0x458] sm:$0xff] %v953
        %s958 = scalar_lea.vmem %s798, 2 [#allocation2]
        %v959 = vld [vmem:[%s958] ss:$2 sm:$0xff]
        %s960 = scalar_lea.vmem %s798, 50 [#allocation2]
        %v961 = vld [vmem:[%s960] ss:$2 sm:$0xff]
        %s962 = scalar_lea.vmem %s798, 98 [#allocation2]
        %v963 = vld [vmem:[%s962] ss:$2 sm:$0xff]
        %s964 = scalar_lea.vmem %s798, 146 [#allocation2]
        %v965 = vld [vmem:[%s964] ss:$2 sm:$0xff]
        %s966 = scalar_lea.vmem %s798, 194 [#allocation2]
        %v967 = vld [vmem:[%s966] ss:$2 sm:$0xff]
        %s968 = scalar_lea.vmem %s798, 242 [#allocation2]
        %v969 = vld [vmem:[%s968] ss:$2 sm:$0xff]
        %s970 = scalar_lea.vmem %s798, 290 [#allocation2]
        %v971 = vld [vmem:[%s970] ss:$2 sm:$0xff]
        %s972 = scalar_lea.vmem %s798, 338 [#allocation2]
        %v973 = vld [vmem:[%s972] ss:$2 sm:$0xff]
        %v974 = vpack.c.bf16 %v961, %v959
        %v975 = vpack.c.bf16 %v965, %v963
        %v976 = vpack.c.bf16 %v969, %v967
        %v977 = vpack.c.bf16 %v973, %v971
        %978 = vst [vmem:[#allocation4 + $0x28] sm:$0xff] %v974
        %979 = vst [vmem:[#allocation4 + $0x190] sm:$0xff] %v975
        %980 = vst [vmem:[#allocation4 + $0x2f8] sm:$0xff] %v976
        %981 = vst [vmem:[#allocation4 + $0x460] sm:$0xff] %v977
        %s982 = scalar_lea.vmem [#allocation2], 48
        %v983 = vld [vmem:[%s982] ss:$2 sm:$0xff]
        %s984 = scalar_lea.vmem %s982, 48 [#allocation2]
        %v985 = vld [vmem:[%s984] ss:$2 sm:$0xff]
        %s986 = scalar_lea.vmem %s982, 96 [#allocation2]
        %v987 = vld [vmem:[%s986] ss:$2 sm:$0xff]
        %s988 = scalar_lea.vmem %s982, 144 [#allocation2]
        %v989 = vld [vmem:[%s988] ss:$2 sm:$0xff]
        %s990 = scalar_lea.vmem %s982, 192 [#allocation2]
        %v991 = vld [vmem:[%s990] ss:$2 sm:$0xff]
        %s992 = scalar_lea.vmem %s982, 240 [#allocation2]
        %v993 = vld [vmem:[%s992] ss:$2 sm:$0xff]
        %s994 = scalar_lea.vmem %s982, 288 [#allocation2]
        %v995 = vld [vmem:[%s994] ss:$2 sm:$0xff]
        %s996 = scalar_lea.vmem %s982, 336 [#allocation2]
        %v997 = vld [vmem:[%s996] ss:$2 sm:$0xff]
        %v998 = vpack.c.bf16 %v985, %v983
        %v999 = vpack.c.bf16 %v989, %v987
        %v1000 = vpack.c.bf16 %v993, %v991
        %v1001 = vpack.c.bf16 %v997, %v995
        %1002 = vst [vmem:[#allocation4 + $0x30] sm:$0xff] %v998
        %1003 = vst [vmem:[#allocation4 + $0x198] sm:$0xff] %v999
        %1004 = vst [vmem:[#allocation4 + $0x300] sm:$0xff] %v1000
        %1005 = vst [vmem:[#allocation4 + $0x468] sm:$0xff] %v1001
        %s1006 = scalar_lea.vmem %s982, 1 [#allocation2]
        %v1007 = vld [vmem:[%s1006] ss:$2 sm:$0xff]
        %s1008 = scalar_lea.vmem %s982, 49 [#allocation2]
        %v1009 = vld [vmem:[%s1008] ss:$2 sm:$0xff]
        %s1010 = scalar_lea.vmem %s982, 97 [#allocation2]
        %v1011 = vld [vmem:[%s1010] ss:$2 sm:$0xff]
        %s1012 = scalar_lea.vmem %s982, 145 [#allocation2]
        %v1013 = vld [vmem:[%s1012] ss:$2 sm:$0xff]
        %s1014 = scalar_lea.vmem %s982, 193 [#allocation2]
        %v1015 = vld [vmem:[%s1014] ss:$2 sm:$0xff]
        %s1016 = scalar_lea.vmem %s982, 241 [#allocation2]
        %v1017 = vld [vmem:[%s1016] ss:$2 sm:$0xff]
        %s1018 = scalar_lea.vmem %s982, 289 [#allocation2]
        %v1019 = vld [vmem:[%s1018] ss:$2 sm:$0xff]
        %s1020 = scalar_lea.vmem %s982, 337 [#allocation2]
        %v1021 = vld [vmem:[%s1020] ss:$2 sm:$0xff]
        %v1022 = vpack.c.bf16 %v1009, %v1007
        %v1023 = vpack.c.bf16 %v1013, %v1011
        %v1024 = vpack.c.bf16 %v1017, %v1015
        %v1025 = vpack.c.bf16 %v1021, %v1019
        %1026 = vst [vmem:[#allocation4 + $0x38] sm:$0xff] %v1022
        %1027 = vst [vmem:[#allocation4 + $0x1a0] sm:$0xff] %v1023
        %1028 = vst [vmem:[#allocation4 + $0x308] sm:$0xff] %v1024
        %1029 = vst [vmem:[#allocation4 + $0x470] sm:$0xff] %v1025
        %s1030 = scalar_lea.vmem %s982, 2 [#allocation2]
        %v1031 = vld [vmem:[%s1030] ss:$2 sm:$0xff]
        %s1032 = scalar_lea.vmem %s982, 50 [#allocation2]
        %v1033 = vld [vmem:[%s1032] ss:$2 sm:$0xff]
        %s1034 = scalar_lea.vmem %s982, 98 [#allocation2]
        %v1035 = vld [vmem:[%s1034] ss:$2 sm:$0xff]
        %s1036 = scalar_lea.vmem %s982, 146 [#allocation2]
        %v1037 = vld [vmem:[%s1036] ss:$2 sm:$0xff]
        %s1038 = scalar_lea.vmem %s982, 194 [#allocation2]
        %v1039 = vld [vmem:[%s1038] ss:$2 sm:$0xff]
        %s1040 = scalar_lea.vmem %s982, 242 [#allocation2]
        %v1041 = vld [vmem:[%s1040] ss:$2 sm:$0xff]
        %s1042 = scalar_lea.vmem %s982, 290 [#allocation2]
        %v1043 = vld [vmem:[%s1042] ss:$2 sm:$0xff]
        %s1044 = scalar_lea.vmem %s982, 338 [#allocation2]
        %v1045 = vld [vmem:[%s1044] ss:$2 sm:$0xff]
        %v1046 = vpack.c.bf16 %v1033, %v1031
        %v1047 = vpack.c.bf16 %v1037, %v1035
        %v1048 = vpack.c.bf16 %v1041, %v1039
        %v1049 = vpack.c.bf16 %v1045, %v1043
        %1050 = vst [vmem:[#allocation4 + $0x40] sm:$0xff] %v1046
        %1051 = vst [vmem:[#allocation4 + $0x1a8] sm:$0xff] %v1047
        %1052 = vst [vmem:[#allocation4 + $0x310] sm:$0xff] %v1048
        %1053 = vst [vmem:[#allocation4 + $0x478] sm:$0xff] %v1049
        %v1054 = vld [vmem:[%s863] ss:$2 sm:$0xff]
        %v1055 = vld [vmem:[%s865] ss:$2 sm:$0xff]
        %v1056 = vld [vmem:[%s867] ss:$2 sm:$0xff]
        %v1057 = vld [vmem:[%s869] ss:$2 sm:$0xff]
        %v1058 = vld [vmem:[%s871] ss:$2 sm:$0xff]
        %v1059 = vld [vmem:[%s873] ss:$2 sm:$0xff]
        %v1060 = vld [vmem:[%s875] ss:$2 sm:$0xff]
        %v1061 = vld [vmem:[%s877] ss:$2 sm:$0xff]
        %v1062 = vpack.c.bf16 %v1055, %v1054
        %v1063 = vpack.c.bf16 %v1057, %v1056
        %v1064 = vpack.c.bf16 %v1059, %v1058
        %v1065 = vpack.c.bf16 %v1061, %v1060
        %1066 = vst [vmem:[#allocation4 + $0x48] sm:$0xff] %v1062
        %1067 = vst [vmem:[#allocation4 + $0x1b0] sm:$0xff] %v1063
        %1068 = vst [vmem:[#allocation4 + $0x318] sm:$0xff] %v1064
        %1069 = vst [vmem:[#allocation4 + $0x480] sm:$0xff] %v1065
        %v1070 = vld [vmem:[%s887] ss:$2 sm:$0xff]
        %v1071 = vld [vmem:[%s889] ss:$2 sm:$0xff]
        %v1072 = vld [vmem:[%s891] ss:$2 sm:$0xff]
        %v1073 = vld [vmem:[%s893] ss:$2 sm:$0xff]
        %v1074 = vld [vmem:[%s895] ss:$2 sm:$0xff]
        %v1075 = vld [vmem:[%s897] ss:$2 sm:$0xff]
        %v1076 = vld [vmem:[%s899] ss:$2 sm:$0xff]
        %v1077 = vld [vmem:[%s901] ss:$2 sm:$0xff]
        %v1078 = vpack.c.bf16 %v1071, %v1070
        %v1079 = vpack.c.bf16 %v1073, %v1072
        %v1080 = vpack.c.bf16 %v1075, %v1074
        %v1081 = vpack.c.bf16 %v1077, %v1076
        %1082 = vst [vmem:[#allocation4 + $0x50] sm:$0xff] %v1078
        %1083 = vst [vmem:[#allocation4 + $0x1b8] sm:$0xff] %v1079
        %1084 = vst [vmem:[#allocation4 + $0x320] sm:$0xff] %v1080
        %1085 = vst [vmem:[#allocation4 + $0x488] sm:$0xff] %v1081
        %s1086 = scalar_lea.vmem [#allocation2], 3
        %v1087 = vld [vmem:[%s1086] ss:$2 sm:$0xff]
        %s1088 = scalar_lea.vmem [#allocation2], 51
        %v1089 = vld [vmem:[%s1088] ss:$2 sm:$0xff]
        %s1090 = scalar_lea.vmem [#allocation2], 99
        %v1091 = vld [vmem:[%s1090] ss:$2 sm:$0xff]
        %s1092 = scalar_lea.vmem [#allocation2], 147
        %v1093 = vld [vmem:[%s1092] ss:$2 sm:$0xff]
        %s1094 = scalar_lea.vmem [#allocation2], 195
        %v1095 = vld [vmem:[%s1094] ss:$2 sm:$0xff]
        %s1096 = scalar_lea.vmem [#allocation2], 243
        %v1097 = vld [vmem:[%s1096] ss:$2 sm:$0xff]
        %s1098 = scalar_lea.vmem [#allocation2], 291
        %v1099 = vld [vmem:[%s1098] ss:$2 sm:$0xff]
        %s1100 = scalar_lea.vmem [#allocation2], 339
        %v1101 = vld [vmem:[%s1100] ss:$2 sm:$0xff]
        %v1102 = vpack.c.bf16 %v1089, %v1087
        %v1103 = vpack.c.bf16 %v1093, %v1091
        %v1104 = vpack.c.bf16 %v1097, %v1095
        %v1105 = vpack.c.bf16 %v1101, %v1099
        %1106 = vst [vmem:[#allocation4 + $0x58] sm:$0xff] %v1102
        %1107 = vst [vmem:[#allocation4 + $0x1c0] sm:$0xff] %v1103
        %1108 = vst [vmem:[#allocation4 + $0x328] sm:$0xff] %v1104
        %1109 = vst [vmem:[#allocation4 + $0x490] sm:$0xff] %v1105
        %v1110 = vld [vmem:[%s934] ss:$2 sm:$0xff]
        %v1111 = vld [vmem:[%s936] ss:$2 sm:$0xff]
        %v1112 = vld [vmem:[%s938] ss:$2 sm:$0xff]
        %v1113 = vld [vmem:[%s940] ss:$2 sm:$0xff]
        %v1114 = vld [vmem:[%s942] ss:$2 sm:$0xff]
        %v1115 = vld [vmem:[%s944] ss:$2 sm:$0xff]
        %v1116 = vld [vmem:[%s946] ss:$2 sm:$0xff]
        %v1117 = vld [vmem:[%s948] ss:$2 sm:$0xff]
        %v1118 = vpack.c.bf16 %v1111, %v1110
        %v1119 = vpack.c.bf16 %v1113, %v1112
        %v1120 = vpack.c.bf16 %v1115, %v1114
        %v1121 = vpack.c.bf16 %v1117, %v1116
        %1122 = vst [vmem:[#allocation4 + $0x60] sm:$0xff] %v1118
        %1123 = vst [vmem:[#allocation4 + $0x1c8] sm:$0xff] %v1119
        %1124 = vst [vmem:[#allocation4 + $0x330] sm:$0xff] %v1120
        %1125 = vst [vmem:[#allocation4 + $0x498] sm:$0xff] %v1121
        %v1126 = vld [vmem:[%s958] ss:$2 sm:$0xff]
        %v1127 = vld [vmem:[%s960] ss:$2 sm:$0xff]
        %v1128 = vld [vmem:[%s962] ss:$2 sm:$0xff]
        %v1129 = vld [vmem:[%s964] ss:$2 sm:$0xff]
        %v1130 = vld [vmem:[%s966] ss:$2 sm:$0xff]
        %v1131 = vld [vmem:[%s968] ss:$2 sm:$0xff]
        %v1132 = vld [vmem:[%s970] ss:$2 sm:$0xff]
        %v1133 = vld [vmem:[%s972] ss:$2 sm:$0xff]
        %v1134 = vpack.c.bf16 %v1127, %v1126
        %v1135 = vpack.c.bf16 %v1129, %v1128
        %v1136 = vpack.c.bf16 %v1131, %v1130
        %v1137 = vpack.c.bf16 %v1133, %v1132
        %1138 = vst [vmem:[#allocation4 + $0x68] sm:$0xff] %v1134
        %1139 = vst [vmem:[#allocation4 + $0x1d0] sm:$0xff] %v1135
        %1140 = vst [vmem:[#allocation4 + $0x338] sm:$0xff] %v1136
        %1141 = vst [vmem:[#allocation4 + $0x4a0] sm:$0xff] %v1137
        %s1142 = scalar_lea.vmem %s798, 3 [#allocation2]
        %v1143 = vld [vmem:[%s1142] ss:$2 sm:$0xff]
        %s1144 = scalar_lea.vmem %s798, 51 [#allocation2]
        %v1145 = vld [vmem:[%s1144] ss:$2 sm:$0xff]
        %s1146 = scalar_lea.vmem %s798, 99 [#allocation2]
        %v1147 = vld [vmem:[%s1146] ss:$2 sm:$0xff]
        %s1148 = scalar_lea.vmem %s798, 147 [#allocation2]
        %v1149 = vld [vmem:[%s1148] ss:$2 sm:$0xff]
        %s1150 = scalar_lea.vmem %s798, 195 [#allocation2]
        %v1151 = vld [vmem:[%s1150] ss:$2 sm:$0xff]
        %s1152 = scalar_lea.vmem %s798, 243 [#allocation2]
        %v1153 = vld [vmem:[%s1152] ss:$2 sm:$0xff]
        %s1154 = scalar_lea.vmem %s798, 291 [#allocation2]
        %v1155 = vld [vmem:[%s1154] ss:$2 sm:$0xff]
        %s1156 = scalar_lea.vmem %s798, 339 [#allocation2]
        %v1157 = vld [vmem:[%s1156] ss:$2 sm:$0xff]
        %v1158 = vpack.c.bf16 %v1145, %v1143
        %v1159 = vpack.c.bf16 %v1149, %v1147
        %v1160 = vpack.c.bf16 %v1153, %v1151
        %v1161 = vpack.c.bf16 %v1157, %v1155
        %1162 = vst [vmem:[#allocation4 + $0x70] sm:$0xff] %v1158
        %1163 = vst [vmem:[#allocation4 + $0x1d8] sm:$0xff] %v1159
        %1164 = vst [vmem:[#allocation4 + $0x340] sm:$0xff] %v1160
        %1165 = vst [vmem:[#allocation4 + $0x4a8] sm:$0xff] %v1161
        %v1166 = vld [vmem:[%s1006] ss:$2 sm:$0xff]
        %v1167 = vld [vmem:[%s1008] ss:$2 sm:$0xff]
        %v1168 = vld [vmem:[%s1010] ss:$2 sm:$0xff]
        %v1169 = vld [vmem:[%s1012] ss:$2 sm:$0xff]
        %v1170 = vld [vmem:[%s1014] ss:$2 sm:$0xff]
        %v1171 = vld [vmem:[%s1016] ss:$2 sm:$0xff]
        %v1172 = vld [vmem:[%s1018] ss:$2 sm:$0xff]
        %v1173 = vld [vmem:[%s1020] ss:$2 sm:$0xff]
        %v1174 = vpack.c.bf16 %v1167, %v1166
        %v1175 = vpack.c.bf16 %v1169, %v1168
        %v1176 = vpack.c.bf16 %v1171, %v1170
        %v1177 = vpack.c.bf16 %v1173, %v1172
        %1178 = vst [vmem:[#allocation4 + $0x78] sm:$0xff] %v1174
        %1179 = vst [vmem:[#allocation4 + $0x1e0] sm:$0xff] %v1175
        %1180 = vst [vmem:[#allocation4 + $0x348] sm:$0xff] %v1176
        %1181 = vst [vmem:[#allocation4 + $0x4b0] sm:$0xff] %v1177
        %v1182 = vld [vmem:[%s1030] ss:$2 sm:$0xff]
        %v1183 = vld [vmem:[%s1032] ss:$2 sm:$0xff]
        %v1184 = vld [vmem:[%s1034] ss:$2 sm:$0xff]
        %v1185 = vld [vmem:[%s1036] ss:$2 sm:$0xff]
        %v1186 = vld [vmem:[%s1038] ss:$2 sm:$0xff]
        %v1187 = vld [vmem:[%s1040] ss:$2 sm:$0xff]
        %v1188 = vld [vmem:[%s1042] ss:$2 sm:$0xff]
        %v1189 = vld [vmem:[%s1044] ss:$2 sm:$0xff]
        %v1190 = vpack.c.bf16 %v1183, %v1182
        %v1191 = vpack.c.bf16 %v1185, %v1184
        %v1192 = vpack.c.bf16 %v1187, %v1186
        %v1193 = vpack.c.bf16 %v1189, %v1188
        %1194 = vst [vmem:[#allocation4 + $0x80] sm:$0xff] %v1190
        %1195 = vst [vmem:[#allocation4 + $0x1e8] sm:$0xff] %v1191
        %1196 = vst [vmem:[#allocation4 + $0x350] sm:$0xff] %v1192
        %1197 = vst [vmem:[#allocation4 + $0x4b8] sm:$0xff] %v1193
        %s1198 = scalar_lea.vmem %s982, 3 [#allocation2]
        %v1199 = vld [vmem:[%s1198] ss:$2 sm:$0xff]
        %s1200 = scalar_lea.vmem %s982, 51 [#allocation2]
        %v1201 = vld [vmem:[%s1200] ss:$2 sm:$0xff]
        %s1202 = scalar_lea.vmem %s982, 99 [#allocation2]
        %v1203 = vld [vmem:[%s1202] ss:$2 sm:$0xff]
        %s1204 = scalar_lea.vmem %s982, 147 [#allocation2]
        %v1205 = vld [vmem:[%s1204] ss:$2 sm:$0xff]
        %s1206 = scalar_lea.vmem %s982, 195 [#allocation2]
        %v1207 = vld [vmem:[%s1206] ss:$2 sm:$0xff]
        %s1208 = scalar_lea.vmem %s982, 243 [#allocation2]
        %v1209 = vld [vmem:[%s1208] ss:$2 sm:$0xff]
        %s1210 = scalar_lea.vmem %s982, 291 [#allocation2]
        %v1211 = vld [vmem:[%s1210] ss:$2 sm:$0xff]
        %s1212 = scalar_lea.vmem %s982, 339 [#allocation2]
        %v1213 = vld [vmem:[%s1212] ss:$2 sm:$0xff]
        %v1214 = vpack.c.bf16 %v1201, %v1199
        %v1215 = vpack.c.bf16 %v1205, %v1203
        %v1216 = vpack.c.bf16 %v1209, %v1207
        %v1217 = vpack.c.bf16 %v1213, %v1211
        %1218 = vst [vmem:[#allocation4 + $0x88] sm:$0xff] %v1214
        %1219 = vst [vmem:[#allocation4 + $0x1f0] sm:$0xff] %v1215
        %1220 = vst [vmem:[#allocation4 + $0x358] sm:$0xff] %v1216
        %1221 = vst [vmem:[#allocation4 + $0x4c0] sm:$0xff] %v1217
        %v1222 = vld [vmem:[%s798] ss:$2 sm:$0xff]
        %v1223 = vld [vmem:[%s912] ss:$2 sm:$0xff]
        %v1224 = vld [vmem:[%s914] ss:$2 sm:$0xff]
        %v1225 = vld [vmem:[%s916] ss:$2 sm:$0xff]
        %v1226 = vld [vmem:[%s918] ss:$2 sm:$0xff]
        %v1227 = vld [vmem:[%s920] ss:$2 sm:$0xff]
        %v1228 = vld [vmem:[%s922] ss:$2 sm:$0xff]
        %v1229 = vld [vmem:[%s924] ss:$2 sm:$0xff]
        %v1230 = vpack.c.bf16 %v1223, %v1222
        %v1231 = vpack.c.bf16 %v1225, %v1224
        %v1232 = vpack.c.bf16 %v1227, %v1226
        %v1233 = vpack.c.bf16 %v1229, %v1228
        %1234 = vst [vmem:[#allocation4 + $0x90] sm:$0xff] %v1230
        %1235 = vst [vmem:[#allocation4 + $0x1f8] sm:$0xff] %v1231
        %1236 = vst [vmem:[#allocation4 + $0x360] sm:$0xff] %v1232
        %1237 = vst [vmem:[#allocation4 + $0x4c8] sm:$0xff] %v1233
        %v1238 = vld [vmem:[%s934] ss:$2 sm:$0xff]
        %v1239 = vld [vmem:[%s936] ss:$2 sm:$0xff]
        %v1240 = vld [vmem:[%s938] ss:$2 sm:$0xff]
        %v1241 = vld [vmem:[%s940] ss:$2 sm:$0xff]
        %v1242 = vld [vmem:[%s942] ss:$2 sm:$0xff]
        %v1243 = vld [vmem:[%s944] ss:$2 sm:$0xff]
        %v1244 = vld [vmem:[%s946] ss:$2 sm:$0xff]
        %v1245 = vld [vmem:[%s948] ss:$2 sm:$0xff]
        %v1246 = vpack.c.bf16 %v1239, %v1238
        %v1247 = vpack.c.bf16 %v1241, %v1240
        %v1248 = vpack.c.bf16 %v1243, %v1242
        %v1249 = vpack.c.bf16 %v1245, %v1244
        %1250 = vst [vmem:[#allocation4 + $0x98] sm:$0xff] %v1246
        %1251 = vst [vmem:[#allocation4 + $0x200] sm:$0xff] %v1247
        %1252 = vst [vmem:[#allocation4 + $0x368] sm:$0xff] %v1248
        %1253 = vst [vmem:[#allocation4 + $0x4d0] sm:$0xff] %v1249
        %v1254 = vld [vmem:[%s958] ss:$2 sm:$0xff]
        %v1255 = vld [vmem:[%s960] ss:$2 sm:$0xff]
        %v1256 = vld [vmem:[%s962] ss:$2 sm:$0xff]
        %v1257 = vld [vmem:[%s964] ss:$2 sm:$0xff]
        %v1258 = vld [vmem:[%s966] ss:$2 sm:$0xff]
        %v1259 = vld [vmem:[%s968] ss:$2 sm:$0xff]
        %v1260 = vld [vmem:[%s970] ss:$2 sm:$0xff]
        %v1261 = vld [vmem:[%s972] ss:$2 sm:$0xff]
        %v1262 = vpack.c.bf16 %v1255, %v1254
        %v1263 = vpack.c.bf16 %v1257, %v1256
        %v1264 = vpack.c.bf16 %v1259, %v1258
        %v1265 = vpack.c.bf16 %v1261, %v1260
        %1266 = vst [vmem:[#allocation4 + $0xa0] sm:$0xff] %v1262
        %1267 = vst [vmem:[#allocation4 + $0x208] sm:$0xff] %v1263
        %1268 = vst [vmem:[#allocation4 + $0x370] sm:$0xff] %v1264
        %1269 = vst [vmem:[#allocation4 + $0x4d8] sm:$0xff] %v1265
        %v1270 = vld [vmem:[%s982] ss:$2 sm:$0xff]
        %v1271 = vld [vmem:[%s984] ss:$2 sm:$0xff]
        %v1272 = vld [vmem:[%s986] ss:$2 sm:$0xff]
        %v1273 = vld [vmem:[%s988] ss:$2 sm:$0xff]
        %v1274 = vld [vmem:[%s990] ss:$2 sm:$0xff]
        %v1275 = vld [vmem:[%s992] ss:$2 sm:$0xff]
        %v1276 = vld [vmem:[%s994] ss:$2 sm:$0xff]
        %v1277 = vld [vmem:[%s996] ss:$2 sm:$0xff]
        %v1278 = vpack.c.bf16 %v1271, %v1270
        %v1279 = vpack.c.bf16 %v1273, %v1272
        %v1280 = vpack.c.bf16 %v1275, %v1274
        %v1281 = vpack.c.bf16 %v1277, %v1276
        %1282 = vst [vmem:[#allocation4 + $0xa8] sm:$0xff] %v1278
        %1283 = vst [vmem:[#allocation4 + $0x210] sm:$0xff] %v1279
        %1284 = vst [vmem:[#allocation4 + $0x378] sm:$0xff] %v1280
        %1285 = vst [vmem:[#allocation4 + $0x4e0] sm:$0xff] %v1281
        %v1286 = vld [vmem:[%s1006] ss:$2 sm:$0xff]
        %v1287 = vld [vmem:[%s1008] ss:$2 sm:$0xff]
        %v1288 = vld [vmem:[%s1010] ss:$2 sm:$0xff]
        %v1289 = vld [vmem:[%s1012] ss:$2 sm:$0xff]
        %v1290 = vld [vmem:[%s1014] ss:$2 sm:$0xff]
        %v1291 = vld [vmem:[%s1016] ss:$2 sm:$0xff]
        %v1292 = vld [vmem:[%s1018] ss:$2 sm:$0xff]
        %v1293 = vld [vmem:[%s1020] ss:$2 sm:$0xff]
        %v1294 = vpack.c.bf16 %v1287, %v1286
        %v1295 = vpack.c.bf16 %v1289, %v1288
        %v1296 = vpack.c.bf16 %v1291, %v1290
        %v1297 = vpack.c.bf16 %v1293, %v1292
        %1298 = vst [vmem:[#allocation4 + $0xb0] sm:$0xff] %v1294
        %1299 = vst [vmem:[#allocation4 + $0x218] sm:$0xff] %v1295
        %1300 = vst [vmem:[#allocation4 + $0x380] sm:$0xff] %v1296
        %1301 = vst [vmem:[#allocation4 + $0x4e8] sm:$0xff] %v1297
        %v1302 = vld [vmem:[%s1030] ss:$2 sm:$0xff]
        %v1303 = vld [vmem:[%s1032] ss:$2 sm:$0xff]
        %v1304 = vld [vmem:[%s1034] ss:$2 sm:$0xff]
        %v1305 = vld [vmem:[%s1036] ss:$2 sm:$0xff]
        %v1306 = vld [vmem:[%s1038] ss:$2 sm:$0xff]
        %v1307 = vld [vmem:[%s1040] ss:$2 sm:$0xff]
        %v1308 = vld [vmem:[%s1042] ss:$2 sm:$0xff]
        %v1309 = vld [vmem:[%s1044] ss:$2 sm:$0xff]
        %v1310 = vpack.c.bf16 %v1303, %v1302
        %v1311 = vpack.c.bf16 %v1305, %v1304
        %v1312 = vpack.c.bf16 %v1307, %v1306
        %v1313 = vpack.c.bf16 %v1309, %v1308
        %1314 = vst [vmem:[#allocation4 + $0xb8] sm:$0xff] %v1310
        %1315 = vst [vmem:[#allocation4 + $0x220] sm:$0xff] %v1311
        %1316 = vst [vmem:[#allocation4 + $0x388] sm:$0xff] %v1312
        %1317 = vst [vmem:[#allocation4 + $0x4f0] sm:$0xff] %v1313
        %s1318 = scalar_lea.vmem [#allocation2], 72
        %v1319 = vld [vmem:[%s1318] ss:$2 sm:$0xff]
        %s1320 = scalar_lea.vmem %s1318, 48 [#allocation2]
        %v1321 = vld [vmem:[%s1320] ss:$2 sm:$0xff]
        %s1322 = scalar_lea.vmem %s1318, 96 [#allocation2]
        %v1323 = vld [vmem:[%s1322] ss:$2 sm:$0xff]
        %s1324 = scalar_lea.vmem %s1318, 144 [#allocation2]
        %v1325 = vld [vmem:[%s1324] ss:$2 sm:$0xff]
        %s1326 = scalar_lea.vmem %s1318, 192 [#allocation2]
        %v1327 = vld [vmem:[%s1326] ss:$2 sm:$0xff]
        %s1328 = scalar_lea.vmem %s1318, 240 [#allocation2]
        %v1329 = vld [vmem:[%s1328] ss:$2 sm:$0xff]
        %s1330 = scalar_lea.vmem %s1318, 288 [#allocation2]
        %v1331 = vld [vmem:[%s1330] ss:$2 sm:$0xff]
        %s1332 = scalar_lea.vmem %s1318, 336 [#allocation2]
        %v1333 = vld [vmem:[%s1332] ss:$2 sm:$0xff]
        %v1334 = vpack.c.bf16 %v1321, %v1319
        %v1335 = vpack.c.bf16 %v1325, %v1323
        %v1336 = vpack.c.bf16 %v1329, %v1327
        %v1337 = vpack.c.bf16 %v1333, %v1331
        %1338 = vst [vmem:[#allocation4 + $0xc0] sm:$0xff] %v1334
        %1339 = vst [vmem:[#allocation4 + $0x228] sm:$0xff] %v1335
        %1340 = vst [vmem:[#allocation4 + $0x390] sm:$0xff] %v1336
        %1341 = vst [vmem:[#allocation4 + $0x4f8] sm:$0xff] %v1337
        %s1342 = scalar_lea.vmem %s1318, 1 [#allocation2]
        %v1343 = vld [vmem:[%s1342] ss:$2 sm:$0xff]
        %s1344 = scalar_lea.vmem %s1318, 49 [#allocation2]
        %v1345 = vld [vmem:[%s1344] ss:$2 sm:$0xff]
        %s1346 = scalar_lea.vmem %s1318, 97 [#allocation2]
        %v1347 = vld [vmem:[%s1346] ss:$2 sm:$0xff]
        %s1348 = scalar_lea.vmem %s1318, 145 [#allocation2]
        %v1349 = vld [vmem:[%s1348] ss:$2 sm:$0xff]
        %s1350 = scalar_lea.vmem %s1318, 193 [#allocation2]
        %v1351 = vld [vmem:[%s1350] ss:$2 sm:$0xff]
        %s1352 = scalar_lea.vmem %s1318, 241 [#allocation2]
        %v1353 = vld [vmem:[%s1352] ss:$2 sm:$0xff]
        %s1354 = scalar_lea.vmem %s1318, 289 [#allocation2]
        %v1355 = vld [vmem:[%s1354] ss:$2 sm:$0xff]
        %s1356 = scalar_lea.vmem %s1318, 337 [#allocation2]
        %v1357 = vld [vmem:[%s1356] ss:$2 sm:$0xff]
        %v1358 = vpack.c.bf16 %v1345, %v1343
        %v1359 = vpack.c.bf16 %v1349, %v1347
        %v1360 = vpack.c.bf16 %v1353, %v1351
        %v1361 = vpack.c.bf16 %v1357, %v1355
        %1362 = vst [vmem:[#allocation4 + $0xc8] sm:$0xff] %v1358
        %1363 = vst [vmem:[#allocation4 + $0x230] sm:$0xff] %v1359
        %1364 = vst [vmem:[#allocation4 + $0x398] sm:$0xff] %v1360
        %1365 = vst [vmem:[#allocation4 + $0x500] sm:$0xff] %v1361
        %s1366 = scalar_lea.vmem %s1318, 2 [#allocation2]
        %v1367 = vld [vmem:[%s1366] ss:$2 sm:$0xff]
        %s1368 = scalar_lea.vmem %s1318, 50 [#allocation2]
        %v1369 = vld [vmem:[%s1368] ss:$2 sm:$0xff]
        %s1370 = scalar_lea.vmem %s1318, 98 [#allocation2]
        %v1371 = vld [vmem:[%s1370] ss:$2 sm:$0xff]
        %s1372 = scalar_lea.vmem %s1318, 146 [#allocation2]
        %v1373 = vld [vmem:[%s1372] ss:$2 sm:$0xff]
        %s1374 = scalar_lea.vmem %s1318, 194 [#allocation2]
        %v1375 = vld [vmem:[%s1374] ss:$2 sm:$0xff]
        %s1376 = scalar_lea.vmem %s1318, 242 [#allocation2]
        %v1377 = vld [vmem:[%s1376] ss:$2 sm:$0xff]
        %s1378 = scalar_lea.vmem %s1318, 290 [#allocation2]
        %v1379 = vld [vmem:[%s1378] ss:$2 sm:$0xff]
        %s1380 = scalar_lea.vmem %s1318, 338 [#allocation2]
        %v1381 = vld [vmem:[%s1380] ss:$2 sm:$0xff]
        %v1382 = vpack.c.bf16 %v1369, %v1367
        %v1383 = vpack.c.bf16 %v1373, %v1371
        %v1384 = vpack.c.bf16 %v1377, %v1375
        %v1385 = vpack.c.bf16 %v1381, %v1379
        %1386 = vst [vmem:[#allocation4 + $0xd0] sm:$0xff] %v1382
        %1387 = vst [vmem:[#allocation4 + $0x238] sm:$0xff] %v1383
        %1388 = vst [vmem:[#allocation4 + $0x3a0] sm:$0xff] %v1384
        %1389 = vst [vmem:[#allocation4 + $0x508] sm:$0xff] %v1385
        %v1390 = vld [vmem:[%s934] ss:$2 sm:$0xff]
        %v1391 = vld [vmem:[%s936] ss:$2 sm:$0xff]
        %v1392 = vld [vmem:[%s938] ss:$2 sm:$0xff]
        %v1393 = vld [vmem:[%s940] ss:$2 sm:$0xff]
        %v1394 = vld [vmem:[%s942] ss:$2 sm:$0xff]
        %v1395 = vld [vmem:[%s944] ss:$2 sm:$0xff]
        %v1396 = vld [vmem:[%s946] ss:$2 sm:$0xff]
        %v1397 = vld [vmem:[%s948] ss:$2 sm:$0xff]
        %v1398 = vpack.c.bf16 %v1391, %v1390
        %v1399 = vpack.c.bf16 %v1393, %v1392
        %v1400 = vpack.c.bf16 %v1395, %v1394
        %v1401 = vpack.c.bf16 %v1397, %v1396
        %1402 = vst [vmem:[#allocation4 + $0xd8] sm:$0xff] %v1398
        %1403 = vst [vmem:[#allocation4 + $0x240] sm:$0xff] %v1399
        %1404 = vst [vmem:[#allocation4 + $0x3a8] sm:$0xff] %v1400
        %1405 = vst [vmem:[#allocation4 + $0x510] sm:$0xff] %v1401
        %v1406 = vld [vmem:[%s958] ss:$2 sm:$0xff]
        %v1407 = vld [vmem:[%s960] ss:$2 sm:$0xff]
        %v1408 = vld [vmem:[%s962] ss:$2 sm:$0xff]
        %v1409 = vld [vmem:[%s964] ss:$2 sm:$0xff]
        %v1410 = vld [vmem:[%s966] ss:$2 sm:$0xff]
        %v1411 = vld [vmem:[%s968] ss:$2 sm:$0xff]
        %v1412 = vld [vmem:[%s970] ss:$2 sm:$0xff]
        %v1413 = vld [vmem:[%s972] ss:$2 sm:$0xff]
        %v1414 = vpack.c.bf16 %v1407, %v1406
        %v1415 = vpack.c.bf16 %v1409, %v1408
        %v1416 = vpack.c.bf16 %v1411, %v1410
        %v1417 = vpack.c.bf16 %v1413, %v1412
        %1418 = vst [vmem:[#allocation4 + $0xe0] sm:$0xff] %v1414
        %1419 = vst [vmem:[#allocation4 + $0x248] sm:$0xff] %v1415
        %1420 = vst [vmem:[#allocation4 + $0x3b0] sm:$0xff] %v1416
        %1421 = vst [vmem:[#allocation4 + $0x518] sm:$0xff] %v1417
        %v1422 = vld [vmem:[%s1142] ss:$2 sm:$0xff]
        %v1423 = vld [vmem:[%s1144] ss:$2 sm:$0xff]
        %v1424 = vld [vmem:[%s1146] ss:$2 sm:$0xff]
        %v1425 = vld [vmem:[%s1148] ss:$2 sm:$0xff]
        %v1426 = vld [vmem:[%s1150] ss:$2 sm:$0xff]
        %v1427 = vld [vmem:[%s1152] ss:$2 sm:$0xff]
        %v1428 = vld [vmem:[%s1154] ss:$2 sm:$0xff]
        %v1429 = vld [vmem:[%s1156] ss:$2 sm:$0xff]
        %v1430 = vpack.c.bf16 %v1423, %v1422
        %v1431 = vpack.c.bf16 %v1425, %v1424
        %v1432 = vpack.c.bf16 %v1427, %v1426
        %v1433 = vpack.c.bf16 %v1429, %v1428
        %1434 = vst [vmem:[#allocation4 + $0xe8] sm:$0xff] %v1430
        %1435 = vst [vmem:[#allocation4 + $0x250] sm:$0xff] %v1431
        %1436 = vst [vmem:[#allocation4 + $0x3b8] sm:$0xff] %v1432
        %1437 = vst [vmem:[#allocation4 + $0x520] sm:$0xff] %v1433
        %v1438 = vld [vmem:[%s1006] ss:$2 sm:$0xff]
        %v1439 = vld [vmem:[%s1008] ss:$2 sm:$0xff]
        %v1440 = vld [vmem:[%s1010] ss:$2 sm:$0xff]
        %v1441 = vld [vmem:[%s1012] ss:$2 sm:$0xff]
        %v1442 = vld [vmem:[%s1014] ss:$2 sm:$0xff]
        %v1443 = vld [vmem:[%s1016] ss:$2 sm:$0xff]
        %v1444 = vld [vmem:[%s1018] ss:$2 sm:$0xff]
        %v1445 = vld [vmem:[%s1020] ss:$2 sm:$0xff]
        %v1446 = vpack.c.bf16 %v1439, %v1438
        %v1447 = vpack.c.bf16 %v1441, %v1440
        %v1448 = vpack.c.bf16 %v1443, %v1442
        %v1449 = vpack.c.bf16 %v1445, %v1444
        %1450 = vst [vmem:[#allocation4 + $0xf0] sm:$0xff] %v1446
        %1451 = vst [vmem:[#allocation4 + $0x258] sm:$0xff] %v1447
        %1452 = vst [vmem:[#allocation4 + $0x3c0] sm:$0xff] %v1448
        %1453 = vst [vmem:[#allocation4 + $0x528] sm:$0xff] %v1449
        %v1454 = vld [vmem:[%s1030] ss:$2 sm:$0xff]
        %v1455 = vld [vmem:[%s1032] ss:$2 sm:$0xff]
        %v1456 = vld [vmem:[%s1034] ss:$2 sm:$0xff]
        %v1457 = vld [vmem:[%s1036] ss:$2 sm:$0xff]
        %v1458 = vld [vmem:[%s1038] ss:$2 sm:$0xff]
        %v1459 = vld [vmem:[%s1040] ss:$2 sm:$0xff]
        %v1460 = vld [vmem:[%s1042] ss:$2 sm:$0xff]
        %v1461 = vld [vmem:[%s1044] ss:$2 sm:$0xff]
        %v1462 = vpack.c.bf16 %v1455, %v1454
        %v1463 = vpack.c.bf16 %v1457, %v1456
        %v1464 = vpack.c.bf16 %v1459, %v1458
        %v1465 = vpack.c.bf16 %v1461, %v1460
        %1466 = vst [vmem:[#allocation4 + $0xf8] sm:$0xff] %v1462
        %1467 = vst [vmem:[#allocation4 + $0x260] sm:$0xff] %v1463
        %1468 = vst [vmem:[#allocation4 + $0x3c8] sm:$0xff] %v1464
        %1469 = vst [vmem:[#allocation4 + $0x530] sm:$0xff] %v1465
        %v1470 = vld [vmem:[%s1198] ss:$2 sm:$0xff]
        %v1471 = vld [vmem:[%s1200] ss:$2 sm:$0xff]
        %v1472 = vld [vmem:[%s1202] ss:$2 sm:$0xff]
        %v1473 = vld [vmem:[%s1204] ss:$2 sm:$0xff]
        %v1474 = vld [vmem:[%s1206] ss:$2 sm:$0xff]
        %v1475 = vld [vmem:[%s1208] ss:$2 sm:$0xff]
        %v1476 = vld [vmem:[%s1210] ss:$2 sm:$0xff]
        %v1477 = vld [vmem:[%s1212] ss:$2 sm:$0xff]
        %v1478 = vpack.c.bf16 %v1471, %v1470
        %v1479 = vpack.c.bf16 %v1473, %v1472
        %v1480 = vpack.c.bf16 %v1475, %v1474
        %v1481 = vpack.c.bf16 %v1477, %v1476
        %1482 = vst [vmem:[#allocation4 + $0x100] sm:$0xff] %v1478
        %1483 = vst [vmem:[#allocation4 + $0x268] sm:$0xff] %v1479
        %1484 = vst [vmem:[#allocation4 + $0x3d0] sm:$0xff] %v1480
        %1485 = vst [vmem:[#allocation4 + $0x538] sm:$0xff] %v1481
        %v1486 = vld [vmem:[%s1342] ss:$2 sm:$0xff]
        %v1487 = vld [vmem:[%s1344] ss:$2 sm:$0xff]
        %v1488 = vld [vmem:[%s1346] ss:$2 sm:$0xff]
        %v1489 = vld [vmem:[%s1348] ss:$2 sm:$0xff]
        %v1490 = vld [vmem:[%s1350] ss:$2 sm:$0xff]
        %v1491 = vld [vmem:[%s1352] ss:$2 sm:$0xff]
        %v1492 = vld [vmem:[%s1354] ss:$2 sm:$0xff]
        %v1493 = vld [vmem:[%s1356] ss:$2 sm:$0xff]
        %v1494 = vpack.c.bf16 %v1487, %v1486
        %v1495 = vpack.c.bf16 %v1489, %v1488
        %v1496 = vpack.c.bf16 %v1491, %v1490
        %v1497 = vpack.c.bf16 %v1493, %v1492
        %1498 = vst [vmem:[#allocation4 + $0x108] sm:$0xff] %v1494
        %1499 = vst [vmem:[#allocation4 + $0x270] sm:$0xff] %v1495
        %1500 = vst [vmem:[#allocation4 + $0x3d8] sm:$0xff] %v1496
        %1501 = vst [vmem:[#allocation4 + $0x540] sm:$0xff] %v1497
        %v1502 = vld [vmem:[%s1366] ss:$2 sm:$0xff]
        %v1503 = vld [vmem:[%s1368] ss:$2 sm:$0xff]
        %v1504 = vld [vmem:[%s1370] ss:$2 sm:$0xff]
        %v1505 = vld [vmem:[%s1372] ss:$2 sm:$0xff]
        %v1506 = vld [vmem:[%s1374] ss:$2 sm:$0xff]
        %v1507 = vld [vmem:[%s1376] ss:$2 sm:$0xff]
        %v1508 = vld [vmem:[%s1378] ss:$2 sm:$0xff]
        %v1509 = vld [vmem:[%s1380] ss:$2 sm:$0xff]
        %v1510 = vpack.c.bf16 %v1503, %v1502
        %v1511 = vpack.c.bf16 %v1505, %v1504
        %v1512 = vpack.c.bf16 %v1507, %v1506
        %v1513 = vpack.c.bf16 %v1509, %v1508
        %1514 = vst [vmem:[#allocation4 + $0x110] sm:$0xff] %v1510
        %1515 = vst [vmem:[#allocation4 + $0x278] sm:$0xff] %v1511
        %1516 = vst [vmem:[#allocation4 + $0x3e0] sm:$0xff] %v1512
        %1517 = vst [vmem:[#allocation4 + $0x548] sm:$0xff] %v1513
        %s1518 = scalar_lea.vmem %s1318, 3 [#allocation2]
        %v1519 = vld [vmem:[%s1518] ss:$2 sm:$0xff]
        %s1520 = scalar_lea.vmem %s1318, 51 [#allocation2]
        %v1521 = vld [vmem:[%s1520] ss:$2 sm:$0xff]
        %s1522 = scalar_lea.vmem %s1318, 99 [#allocation2]
        %v1523 = vld [vmem:[%s1522] ss:$2 sm:$0xff]
        %s1524 = scalar_lea.vmem %s1318, 147 [#allocation2]
        %v1525 = vld [vmem:[%s1524] ss:$2 sm:$0xff]
        %s1526 = scalar_lea.vmem %s1318, 195 [#allocation2]
        %v1527 = vld [vmem:[%s1526] ss:$2 sm:$0xff]
        %s1528 = scalar_lea.vmem %s1318, 243 [#allocation2]
        %v1529 = vld [vmem:[%s1528] ss:$2 sm:$0xff]
        %s1530 = scalar_lea.vmem %s1318, 291 [#allocation2]
        %v1531 = vld [vmem:[%s1530] ss:$2 sm:$0xff]
        %s1532 = scalar_lea.vmem %s1318, 339 [#allocation2]
        %v1533 = vld [vmem:[%s1532] ss:$2 sm:$0xff]
        %v1534 = vpack.c.bf16 %v1521, %v1519
        %v1535 = vpack.c.bf16 %v1525, %v1523
        %v1536 = vpack.c.bf16 %v1529, %v1527
        %v1537 = vpack.c.bf16 %v1533, %v1531
        %1538 = vst [vmem:[#allocation4 + $0x118] sm:$0xff] %v1534
        %1539 = vst [vmem:[#allocation4 + $0x280] sm:$0xff] %v1535
        %1540 = vst [vmem:[#allocation4 + $0x3e8] sm:$0xff] %v1536
        %1541 = vst [vmem:[#allocation4 + $0x550] sm:$0xff] %v1537
        %v1542 = vld [vmem:[#allocation3] sm:$0xff]
        %v1543 = vld [vmem:[#allocation3 + $0x10] sm:$0xff]
        %v1544 = vld [vmem:[#allocation3 + $0x20] sm:$0xff]
        %v1545 = vld [vmem:[#allocation3 + $0x30] sm:$0xff]
        %v1546 = vld [vmem:[#allocation3 + $0x40] sm:$0xff]
        %v1547 = vld [vmem:[#allocation3 + $0x50] sm:$0xff]
        %v1548 = vld [vmem:[#allocation3 + $0x60] sm:$0xff]
        %v1549 = vld [vmem:[#allocation3 + $0x70] sm:$0xff]
        %v1550 = vpack.c.bf16 %v1543, %v1542
        %v1551 = vpack.c.bf16 %v1545, %v1544
        %v1552 = vpack.c.bf16 %v1547, %v1546
        %v1553 = vpack.c.bf16 %v1549, %v1548
        %1554 = vst [vmem:[#allocation4 + $0x120] sm:$0xff] %v1550
        %1555 = vst [vmem:[#allocation4 + $0x288] sm:$0xff] %v1551
        %1556 = vst [vmem:[#allocation4 + $0x3f0] sm:$0xff] %v1552
        %1557 = vst [vmem:[#allocation4 + $0x558] sm:$0xff] %v1553
        %v1558 = vld [vmem:[#allocation3 + $0x1] sm:$0xff]
        %v1559 = vld [vmem:[#allocation3 + $0x11] sm:$0xff]
        %v1560 = vld [vmem:[#allocation3 + $0x21] sm:$0xff]
        %v1561 = vld [vmem:[#allocation3 + $0x31] sm:$0xff]
        %v1562 = vld [vmem:[#allocation3 + $0x41] sm:$0xff]
        %v1563 = vld [vmem:[#allocation3 + $0x51] sm:$0xff]
        %v1564 = vld [vmem:[#allocation3 + $0x61] sm:$0xff]
        %v1565 = vld [vmem:[#allocation3 + $0x71] sm:$0xff]
        %v1566 = vpack.c.bf16 %v1559, %v1558
        %v1567 = vpack.c.bf16 %v1561, %v1560
        %v1568 = vpack.c.bf16 %v1563, %v1562
        %v1569 = vpack.c.bf16 %v1565, %v1564
        %1570 = vst [vmem:[#allocation4 + $0x128] sm:$0xff] %v1566
        %1571 = vst [vmem:[#allocation4 + $0x290] sm:$0xff] %v1567
        %1572 = vst [vmem:[#allocation4 + $0x3f8] sm:$0xff] %v1568
        %1573 = vst [vmem:[#allocation4 + $0x560] sm:$0xff] %v1569
        %v1574 = vld [vmem:[#allocation3 + $0x2] sm:$0xff]
        %v1575 = vld [vmem:[#allocation3 + $0x12] sm:$0xff]
        %v1576 = vld [vmem:[#allocation3 + $0x22] sm:$0xff]
        %v1577 = vld [vmem:[#allocation3 + $0x32] sm:$0xff]
        %v1578 = vld [vmem:[#allocation3 + $0x42] sm:$0xff]
        %v1579 = vld [vmem:[#allocation3 + $0x52] sm:$0xff]
        %v1580 = vld [vmem:[#allocation3 + $0x62] sm:$0xff]
        %v1581 = vld [vmem:[#allocation3 + $0x72] sm:$0xff]
        %v1582 = vpack.c.bf16 %v1575, %v1574
        %v1583 = vpack.c.bf16 %v1577, %v1576
        %v1584 = vpack.c.bf16 %v1579, %v1578
        %v1585 = vpack.c.bf16 %v1581, %v1580
        %1586 = vst [vmem:[#allocation4 + $0x130] sm:$0xff] %v1582
        %1587 = vst [vmem:[#allocation4 + $0x298] sm:$0xff] %v1583
        %1588 = vst [vmem:[#allocation4 + $0x400] sm:$0xff] %v1584
        %1589 = vst [vmem:[#allocation4 + $0x568] sm:$0xff] %v1585
        %v1590 = vld [vmem:[%s831] sm:$0xff]
        %v1591 = vld [vmem:[%s831 + $0x10] sm:$0xff]
        %v1592 = vld [vmem:[%s831 + $0x20] sm:$0xff]
        %v1593 = vld [vmem:[%s831 + $0x30] sm:$0xff]
        %v1594 = vld [vmem:[%s831 + $0x40] sm:$0xff]
        %v1595 = vld [vmem:[%s831 + $0x50] sm:$0xff]
        %v1596 = vld [vmem:[%s831 + $0x60] sm:$0xff]
        %v1597 = vld [vmem:[%s831 + $0x70] sm:$0xff]
        %v1598 = vpack.c.bf16 %v1591, %v1590
        %v1599 = vpack.c.bf16 %v1593, %v1592
        %v1600 = vpack.c.bf16 %v1595, %v1594
        %v1601 = vpack.c.bf16 %v1597, %v1596
        %1602 = vst [vmem:[#allocation4 + $0x138] sm:$0xff] %v1598
        %1603 = vst [vmem:[#allocation4 + $0x2a0] sm:$0xff] %v1599
        %1604 = vst [vmem:[#allocation4 + $0x408] sm:$0xff] %v1600
        %1605 = vst [vmem:[#allocation4 + $0x570] sm:$0xff] %v1601
        %v1606 = vld [vmem:[%s831 + $0x1] sm:$0xff]
        %v1607 = vld [vmem:[%s831 + $0x11] sm:$0xff]
        %v1608 = vld [vmem:[%s831 + $0x21] sm:$0xff]
        %v1609 = vld [vmem:[%s831 + $0x31] sm:$0xff]
        %v1610 = vld [vmem:[%s831 + $0x41] sm:$0xff]
        %v1611 = vld [vmem:[%s831 + $0x51] sm:$0xff]
        %v1612 = vld [vmem:[%s831 + $0x61] sm:$0xff]
        %v1613 = vld [vmem:[%s831 + $0x71] sm:$0xff]
        %v1614 = vpack.c.bf16 %v1607, %v1606
        %v1615 = vpack.c.bf16 %v1609, %v1608
        %v1616 = vpack.c.bf16 %v1611, %v1610
        %v1617 = vpack.c.bf16 %v1613, %v1612
        %1618 = vst [vmem:[#allocation4 + $0x140] sm:$0xff] %v1614
        %1619 = vst [vmem:[#allocation4 + $0x2a8] sm:$0xff] %v1615
        %1620 = vst [vmem:[#allocation4 + $0x410] sm:$0xff] %v1616
        %1621 = vst [vmem:[#allocation4 + $0x578] sm:$0xff] %v1617
        %v1622 = vld [vmem:[%s831 + $0x2] sm:$0xff]
        %v1623 = vld [vmem:[%s831 + $0x12] sm:$0xff]
        %v1624 = vld [vmem:[%s831 + $0x22] sm:$0xff]
        %v1625 = vld [vmem:[%s831 + $0x32] sm:$0xff]
        %v1626 = vld [vmem:[%s831 + $0x42] sm:$0xff]
        %v1627 = vld [vmem:[%s831 + $0x52] sm:$0xff]
        %v1628 = vld [vmem:[%s831 + $0x62] sm:$0xff]
        %v1629 = vld [vmem:[%s831 + $0x72] sm:$0xff]
        %v1630 = vpack.c.bf16 %v1623, %v1622
        %v1631 = vpack.c.bf16 %v1625, %v1624
        %v1632 = vpack.c.bf16 %v1627, %v1626
        %v1633 = vpack.c.bf16 %v1629, %v1628
        %1634 = vst [vmem:[#allocation4 + $0x148] sm:$0xff] %v1630
        %1635 = vst [vmem:[#allocation4 + $0x2b0] sm:$0xff] %v1631
        %1636 = vst [vmem:[#allocation4 + $0x418] sm:$0xff] %v1632
        %1637 = vst [vmem:[#allocation4 + $0x580] sm:$0xff] %v1633
        %s1638 = scalar_lea.vmem [#allocation3], 32
        %v1639 = vld [vmem:[%s1638] sm:$0xff]
        %v1640 = vld [vmem:[%s1638 + $0x10] sm:$0xff]
        %v1641 = vld [vmem:[%s1638 + $0x20] sm:$0xff]
        %v1642 = vld [vmem:[%s1638 + $0x30] sm:$0xff]
        %v1643 = vld [vmem:[%s1638 + $0x40] sm:$0xff]
        %v1644 = vld [vmem:[%s1638 + $0x50] sm:$0xff]
        %v1645 = vld [vmem:[%s1638 + $0x60] sm:$0xff]
        %v1646 = vld [vmem:[%s1638 + $0x70] sm:$0xff]
        %v1647 = vpack.c.bf16 %v1640, %v1639
        %v1648 = vpack.c.bf16 %v1642, %v1641
        %v1649 = vpack.c.bf16 %v1644, %v1643
        %v1650 = vpack.c.bf16 %v1646, %v1645
        %1651 = vst [vmem:[#allocation4 + $0x150] sm:$0xff] %v1647
        %1652 = vst [vmem:[#allocation4 + $0x2b8] sm:$0xff] %v1648
        %1653 = vst [vmem:[#allocation4 + $0x420] sm:$0xff] %v1649
        %1654 = vst [vmem:[#allocation4 + $0x588] sm:$0xff] %v1650
        %v1655 = vld [vmem:[%s1638 + $0x1] sm:$0xff]
        %v1656 = vld [vmem:[%s1638 + $0x11] sm:$0xff]
        %v1657 = vld [vmem:[%s1638 + $0x21] sm:$0xff]
        %v1658 = vld [vmem:[%s1638 + $0x31] sm:$0xff]
        %v1659 = vld [vmem:[%s1638 + $0x41] sm:$0xff]
        %v1660 = vld [vmem:[%s1638 + $0x51] sm:$0xff]
        %v1661 = vld [vmem:[%s1638 + $0x61] sm:$0xff]
        %v1662 = vld [vmem:[%s1638 + $0x71] sm:$0xff]
        %v1663 = vpack.c.bf16 %v1656, %v1655
        %v1664 = vpack.c.bf16 %v1658, %v1657
        %v1665 = vpack.c.bf16 %v1660, %v1659
        %v1666 = vpack.c.bf16 %v1662, %v1661
        %1667 = vst [vmem:[#allocation4 + $0x158] sm:$0xff] %v1663
        %1668 = vst [vmem:[#allocation4 + $0x2c0] sm:$0xff] %v1664
        %1669 = vst [vmem:[#allocation4 + $0x428] sm:$0xff] %v1665
        %1670 = vst [vmem:[#allocation4 + $0x590] sm:$0xff] %v1666
        %v1671 = vld [vmem:[%s1638 + $0x2] sm:$0xff]
        %v1672 = vld [vmem:[%s1638 + $0x12] sm:$0xff]
        %v1673 = vld [vmem:[%s1638 + $0x22] sm:$0xff]
        %v1674 = vld [vmem:[%s1638 + $0x32] sm:$0xff]
        %v1675 = vld [vmem:[%s1638 + $0x42] sm:$0xff]
        %v1676 = vld [vmem:[%s1638 + $0x52] sm:$0xff]
        %v1677 = vld [vmem:[%s1638 + $0x62] sm:$0xff]
        %v1678 = vld [vmem:[%s1638 + $0x72] sm:$0xff]
        %v1679 = vpack.c.bf16 %v1672, %v1671
        %v1680 = vpack.c.bf16 %v1674, %v1673
        %v1681 = vpack.c.bf16 %v1676, %v1675
        %v1682 = vpack.c.bf16 %v1678, %v1677
        %1683 = vst [vmem:[#allocation4 + $0x160] sm:$0xff] %v1679
        %1684 = vst [vmem:[#allocation4 + $0x2c8] sm:$0xff] %v1680
        %1685 = vst [vmem:[#allocation4 + $0x430] sm:$0xff] %v1681
        %1686 = vst [vmem:[#allocation4 + $0x598] sm:$0xff] %v1682
        %v1687 = vld [vmem:[#allocation4] sm:$0xff]
        %v1688 = vld [vmem:[#allocation4 + $0x8] sm:$0xff]
        %v1689 = vld [vmem:[#allocation4 + $0x10] sm:$0xff]
        %v1690 = vld [vmem:[#allocation4 + $0x18] sm:$0xff]
        %v1691 = vld [vmem:[#allocation4 + $0x20] sm:$0xff]
        %v1692 = vld [vmem:[#allocation4 + $0x28] sm:$0xff]
        %v1693 = vld [vmem:[#allocation4 + $0x30] sm:$0xff]
        %v1694 = vld [vmem:[#allocation4 + $0x38] sm:$0xff]
        %v1695 = vld [vmem:[#allocation4 + $0x40] sm:$0xff]
        %v1696 = vld [vmem:[#allocation4 + $0x48] sm:$0xff]
        %v1697 = vld [vmem:[#allocation4 + $0x50] sm:$0xff]
        %v1698 = vld [vmem:[#allocation4 + $0x58] sm:$0xff]
        %v1699 = vld [vmem:[#allocation4 + $0x60] sm:$0xff]
        %v1700 = vld [vmem:[#allocation4 + $0x68] sm:$0xff]
        %v1701 = vld [vmem:[#allocation4 + $0x70] sm:$0xff]
        %v1702 = vld [vmem:[#allocation4 + $0x78] sm:$0xff]
        %v1703 = vld [vmem:[#allocation4 + $0x80] sm:$0xff]
        %v1704 = vld [vmem:[#allocation4 + $0x88] sm:$0xff]
        %v1705 = vld [vmem:[#allocation4 + $0x90] sm:$0xff]
        %v1706 = vld [vmem:[#allocation4 + $0x98] sm:$0xff]
        %v1707 = vld [vmem:[#allocation4 + $0xa0] sm:$0xff]
        %v1708 = vld [vmem:[#allocation4 + $0xa8] sm:$0xff]
        %v1709 = vld [vmem:[#allocation4 + $0xb0] sm:$0xff]
        %v1710 = vld [vmem:[#allocation4 + $0xb8] sm:$0xff]
        %v1711 = vld [vmem:[#allocation4 + $0xc0] sm:$0xff]
        %v1712 = vld [vmem:[#allocation4 + $0xc8] sm:$0xff]
        %v1713 = vld [vmem:[#allocation4 + $0xd0] sm:$0xff]
        %v1714 = vld [vmem:[#allocation4 + $0xd8] sm:$0xff]
        %v1715 = vld [vmem:[#allocation4 + $0xe0] sm:$0xff]
        %v1716 = vld [vmem:[#allocation4 + $0xe8] sm:$0xff]
        %v1717 = vld [vmem:[#allocation4 + $0xf0] sm:$0xff]
        %v1718 = vld [vmem:[#allocation4 + $0xf8] sm:$0xff]
        %v1719 = vld [vmem:[#allocation4 + $0x100] sm:$0xff]
        %v1720 = vld [vmem:[#allocation4 + $0x108] sm:$0xff]
        %v1721 = vld [vmem:[#allocation4 + $0x110] sm:$0xff]
        %v1722 = vld [vmem:[#allocation4 + $0x118] sm:$0xff]
        %v1723 = vld [vmem:[#allocation4 + $0x120] sm:$0xff]
        %v1724 = vld [vmem:[#allocation4 + $0x128] sm:$0xff]
        %v1725 = vld [vmem:[#allocation4 + $0x130] sm:$0xff]
        %v1726 = vld [vmem:[#allocation4 + $0x138] sm:$0xff]
        %v1727 = vld [vmem:[#allocation4 + $0x140] sm:$0xff]
        %v1728 = vld [vmem:[#allocation4 + $0x148] sm:$0xff]
        %v1729 = vld [vmem:[#allocation4 + $0x150] sm:$0xff]
        %v1730 = vld [vmem:[#allocation4 + $0x158] sm:$0xff]
        %v1731 = vld [vmem:[#allocation4 + $0x160] sm:$0xff]
        %v1732 = vld [vmem:[#allocation4 + $0x168] sm:$0xff]
        %v1733 = vld [vmem:[#allocation4 + $0x170] sm:$0xff]
        %v1734 = vld [vmem:[#allocation4 + $0x178] sm:$0xff]
        %v1735 = vld [vmem:[#allocation4 + $0x180] sm:$0xff]
        %v1736 = vld [vmem:[#allocation4 + $0x188] sm:$0xff]
        %v1737 = vld [vmem:[#allocation4 + $0x190] sm:$0xff]
        %v1738 = vld [vmem:[#allocation4 + $0x198] sm:$0xff]
        %v1739 = vld [vmem:[#allocation4 + $0x1a0] sm:$0xff]
        %v1740 = vld [vmem:[#allocation4 + $0x1a8] sm:$0xff]
        %v1741 = vld [vmem:[#allocation4 + $0x1b0] sm:$0xff]
        %v1742 = vld [vmem:[#allocation4 + $0x1b8] sm:$0xff]
        %v1743 = vld [vmem:[#allocation4 + $0x1c0] sm:$0xff]
        %v1744 = vld [vmem:[#allocation4 + $0x1c8] sm:$0xff]
        %v1745 = vld [vmem:[#allocation4 + $0x1d0] sm:$0xff]
        %v1746 = vld [vmem:[#allocation4 + $0x1d8] sm:$0xff]
        %v1747 = vld [vmem:[#allocation4 + $0x1e0] sm:$0xff]
        %v1748 = vld [vmem:[#allocation4 + $0x1e8] sm:$0xff]
        %v1749 = vld [vmem:[#allocation4 + $0x1f0] sm:$0xff]
        %v1750 = vld [vmem:[#allocation4 + $0x1f8] sm:$0xff]
        %v1751 = vld [vmem:[#allocation4 + $0x200] sm:$0xff]
        %v1752 = vld [vmem:[#allocation4 + $0x208] sm:$0xff]
        %v1753 = vld [vmem:[#allocation4 + $0x210] sm:$0xff]
        %v1754 = vld [vmem:[#allocation4 + $0x218] sm:$0xff]
        %v1755 = vld [vmem:[#allocation4 + $0x220] sm:$0xff]
        %v1756 = vld [vmem:[#allocation4 + $0x228] sm:$0xff]
        %v1757 = vld [vmem:[#allocation4 + $0x230] sm:$0xff]
        %v1758 = vld [vmem:[#allocation4 + $0x238] sm:$0xff]
        %v1759 = vld [vmem:[#allocation4 + $0x240] sm:$0xff]
        %v1760 = vld [vmem:[#allocation4 + $0x248] sm:$0xff]
        %v1761 = vld [vmem:[#allocation4 + $0x250] sm:$0xff]
        %v1762 = vld [vmem:[#allocation4 + $0x258] sm:$0xff]
        %v1763 = vld [vmem:[#allocation4 + $0x260] sm:$0xff]
        %v1764 = vld [vmem:[#allocation4 + $0x268] sm:$0xff]
        %v1765 = vld [vmem:[#allocation4 + $0x270] sm:$0xff]
        %v1766 = vld [vmem:[#allocation4 + $0x278] sm:$0xff]
        %v1767 = vld [vmem:[#allocation4 + $0x280] sm:$0xff]
        %v1768 = vld [vmem:[#allocation4 + $0x288] sm:$0xff]
        %v1769 = vld [vmem:[#allocation4 + $0x290] sm:$0xff]
        %v1770 = vld [vmem:[#allocation4 + $0x298] sm:$0xff]
        %v1771 = vld [vmem:[#allocation4 + $0x2a0] sm:$0xff]
        %v1772 = vld [vmem:[#allocation4 + $0x2a8] sm:$0xff]
        %v1773 = vld [vmem:[#allocation4 + $0x2b0] sm:$0xff]
        %v1774 = vld [vmem:[#allocation4 + $0x2b8] sm:$0xff]
        %v1775 = vld [vmem:[#allocation4 + $0x2c0] sm:$0xff]
        %v1776 = vld [vmem:[#allocation4 + $0x2c8] sm:$0xff]
        %v1777 = vld [vmem:[#allocation4 + $0x2d0] sm:$0xff]
        %v1778 = vld [vmem:[#allocation4 + $0x2d8] sm:$0xff]
        %v1779 = vld [vmem:[#allocation4 + $0x2e0] sm:$0xff]
        %v1780 = vld [vmem:[#allocation4 + $0x2e8] sm:$0xff]
        %v1781 = vld [vmem:[#allocation4 + $0x2f0] sm:$0xff]
        %v1782 = vld [vmem:[#allocation4 + $0x2f8] sm:$0xff]
        %v1783 = vld [vmem:[#allocation4 + $0x300] sm:$0xff]
        %v1784 = vld [vmem:[#allocation4 + $0x308] sm:$0xff]
        %v1785 = vld [vmem:[#allocation4 + $0x310] sm:$0xff]
        %v1786 = vld [vmem:[#allocation4 + $0x318] sm:$0xff]
        %v1787 = vld [vmem:[#allocation4 + $0x320] sm:$0xff]
        %v1788 = vld [vmem:[#allocation4 + $0x328] sm:$0xff]
        %v1789 = vld [vmem:[#allocation4 + $0x330] sm:$0xff]
        %v1790 = vld [vmem:[#allocation4 + $0x338] sm:$0xff]
        %v1791 = vld [vmem:[#allocation4 + $0x340] sm:$0xff]
        %v1792 = vld [vmem:[#allocation4 + $0x348] sm:$0xff]
        %v1793 = vld [vmem:[#allocation4 + $0x350] sm:$0xff]
        %v1794 = vld [vmem:[#allocation4 + $0x358] sm:$0xff]
        %v1795 = vld [vmem:[#allocation4 + $0x360] sm:$0xff]
        %v1796 = vld [vmem:[#allocation4 + $0x368] sm:$0xff]
        %v1797 = vld [vmem:[#allocation4 + $0x370] sm:$0xff]
        %v1798 = vld [vmem:[#allocation4 + $0x378] sm:$0xff]
        %v1799 = vld [vmem:[#allocation4 + $0x380] sm:$0xff]
        %v1800 = vld [vmem:[#allocation4 + $0x388] sm:$0xff]
        %v1801 = vld [vmem:[#allocation4 + $0x390] sm:$0xff]
        %v1802 = vld [vmem:[#allocation4 + $0x398] sm:$0xff]
        %v1803 = vld [vmem:[#allocation4 + $0x3a0] sm:$0xff]
        %v1804 = vld [vmem:[#allocation4 + $0x3a8] sm:$0xff]
        %v1805 = vld [vmem:[#allocation4 + $0x3b0] sm:$0xff]
        %v1806 = vld [vmem:[#allocation4 + $0x3b8] sm:$0xff]
        %v1807 = vld [vmem:[#allocation4 + $0x3c0] sm:$0xff]
        %v1808 = vld [vmem:[#allocation4 + $0x3c8] sm:$0xff]
        %v1809 = vld [vmem:[#allocation4 + $0x3d0] sm:$0xff]
        %v1810 = vld [vmem:[#allocation4 + $0x3d8] sm:$0xff]
        %v1811 = vld [vmem:[#allocation4 + $0x3e0] sm:$0xff]
        %v1812 = vld [vmem:[#allocation4 + $0x3e8] sm:$0xff]
        %v1813 = vld [vmem:[#allocation4 + $0x3f0] sm:$0xff]
        %v1814 = vld [vmem:[#allocation4 + $0x3f8] sm:$0xff]
        %v1815 = vld [vmem:[#allocation4 + $0x400] sm:$0xff]
        %v1816 = vld [vmem:[#allocation4 + $0x408] sm:$0xff]
        %v1817 = vld [vmem:[#allocation4 + $0x410] sm:$0xff]
        %v1818 = vld [vmem:[#allocation4 + $0x418] sm:$0xff]
        %v1819 = vld [vmem:[#allocation4 + $0x420] sm:$0xff]
        %v1820 = vld [vmem:[#allocation4 + $0x428] sm:$0xff]
        %v1821 = vld [vmem:[#allocation4 + $0x430] sm:$0xff]
        %v1822 = vld [vmem:[#allocation4 + $0x438] sm:$0xff]
        %v1823 = vld [vmem:[#allocation4 + $0x440] sm:$0xff]
        %v1824 = vld [vmem:[#allocation4 + $0x448] sm:$0xff]
        %v1825 = vld [vmem:[#allocation4 + $0x450] sm:$0xff]
        %v1826 = vld [vmem:[#allocation4 + $0x458] sm:$0xff]
        %v1827 = vld [vmem:[#allocation4 + $0x460] sm:$0xff]
        %v1828 = vld [vmem:[#allocation4 + $0x468] sm:$0xff]
        %v1829 = vld [vmem:[#allocation4 + $0x470] sm:$0xff]
        %v1830 = vld [vmem:[#allocation4 + $0x478] sm:$0xff]
        %v1831 = vld [vmem:[#allocation4 + $0x480] sm:$0xff]
        %v1832 = vld [vmem:[#allocation4 + $0x488] sm:$0xff]
        %v1833 = vld [vmem:[#allocation4 + $0x490] sm:$0xff]
        %v1834 = vld [vmem:[#allocation4 + $0x498] sm:$0xff]
        %v1835 = vld [vmem:[#allocation4 + $0x4a0] sm:$0xff]
        %v1836 = vld [vmem:[#allocation4 + $0x4a8] sm:$0xff]
        %v1837 = vld [vmem:[#allocation4 + $0x4b0] sm:$0xff]
        %v1838 = vld [vmem:[#allocation4 + $0x4b8] sm:$0xff]
        %v1839 = vld [vmem:[#allocation4 + $0x4c0] sm:$0xff]
        %v1840 = vld [vmem:[#allocation4 + $0x4c8] sm:$0xff]
        %v1841 = vld [vmem:[#allocation4 + $0x4d0] sm:$0xff]
        %v1842 = vld [vmem:[#allocation4 + $0x4d8] sm:$0xff]
        %v1843 = vld [vmem:[#allocation4 + $0x4e0] sm:$0xff]
        %v1844 = vld [vmem:[#allocation4 + $0x4e8] sm:$0xff]
        %v1845 = vld [vmem:[#allocation4 + $0x4f0] sm:$0xff]
        %v1846 = vld [vmem:[#allocation4 + $0x4f8] sm:$0xff]
        %v1847 = vld [vmem:[#allocation4 + $0x500] sm:$0xff]
        %v1848 = vld [vmem:[#allocation4 + $0x508] sm:$0xff]
        %v1849 = vld [vmem:[#allocation4 + $0x510] sm:$0xff]
        %v1850 = vld [vmem:[#allocation4 + $0x518] sm:$0xff]
        %v1851 = vld [vmem:[#allocation4 + $0x520] sm:$0xff]
        %v1852 = vld [vmem:[#allocation4 + $0x528] sm:$0xff]
        %v1853 = vld [vmem:[#allocation4 + $0x530] sm:$0xff]
        %v1854 = vld [vmem:[#allocation4 + $0x538] sm:$0xff]
        %v1855 = vld [vmem:[#allocation4 + $0x540] sm:$0xff]
        %v1856 = vld [vmem:[#allocation4 + $0x548] sm:$0xff]
        %v1857 = vld [vmem:[#allocation4 + $0x550] sm:$0xff]
        %v1858 = vld [vmem:[#allocation4 + $0x558] sm:$0xff]
        %v1859 = vld [vmem:[#allocation4 + $0x560] sm:$0xff]
        %v1860 = vld [vmem:[#allocation4 + $0x568] sm:$0xff]
        %v1861 = vld [vmem:[#allocation4 + $0x570] sm:$0xff]
        %v1862 = vld [vmem:[#allocation4 + $0x578] sm:$0xff]
        %v1863 = vld [vmem:[#allocation4 + $0x580] sm:$0xff]
        %v1864 = vld [vmem:[#allocation4 + $0x588] sm:$0xff]
        %v1865 = vld [vmem:[#allocation4 + $0x590] sm:$0xff]
        %v1866 = vld [vmem:[#allocation4 + $0x598] sm:$0xff]
        %v1867 = vld [vmem:[#allocation10] sm:$0xf]
        %v1868 = vld [vmem:[#allocation10 + $0x4] sm:$0xf]
        %v1869 = vld [vmem:[#allocation10 + $0x8] sm:$0xf]
        %v1870 = vld [vmem:[#allocation10 + $0xc] sm:$0xf]
        %v1871 = vld [vmem:[#allocation10 + $0x10] sm:$0xf]
        %v1872 = vld [vmem:[#allocation10 + $0x14] sm:$0xf]
        %v1873 = vld [vmem:[#allocation10 + $0x18] sm:$0xf]
        %v1874 = vld [vmem:[#allocation10 + $0x1c] sm:$0xf]
        %v1875 = vld [vmem:[#allocation10 + $0x20] sm:$0xf]
        %v1876 = vld [vmem:[#allocation10 + $0x24] sm:$0xf]
        %v1877 = vld [vmem:[#allocation10 + $0x28] sm:$0xf]
        %v1878 = vld [vmem:[#allocation10 + $0x2c] sm:$0xf]
        %v1879 = vld [vmem:[#allocation10 + $0x30] sm:$0xf]
        %v1880 = vld [vmem:[#allocation10 + $0x34] sm:$0xf]
        %v1881 = vld [vmem:[#allocation10 + $0x38] sm:$0xf]
        %v1882 = vld [vmem:[#allocation10 + $0x3c] sm:$0xf]
        %v1883 = vld [vmem:[#allocation10 + $0x40] sm:$0xf]
        %v1884 = vld [vmem:[#allocation10 + $0x44] sm:$0xf]
        %v1885 = vld [vmem:[#allocation10 + $0x48] sm:$0xf]
        %v1886 = vld [vmem:[#allocation10 + $0x4c] sm:$0xf]
        %v1887 = vld [vmem:[#allocation10 + $0x50] sm:$0xf]
        %v1888 = vld [vmem:[#allocation10 + $0x54] sm:$0xf]
        %v1889 = vld [vmem:[#allocation10 + $0x58] sm:$0xf]
        %v1890 = vld [vmem:[#allocation10 + $0x5c] sm:$0xf]
        %v1891 = vld [vmem:[#allocation10 + $0x60] sm:$0xf]
        %v1892 = vld [vmem:[#allocation10 + $0x64] sm:$0xf]
        %v1893 = vld [vmem:[#allocation10 + $0x68] sm:$0xf]
        %v1894 = vld [vmem:[#allocation10 + $0x6c] sm:$0xf]
        %v1895 = vld [vmem:[#allocation10 + $0x70] sm:$0xf]
        %v1896 = vld [vmem:[#allocation10 + $0x74] sm:$0xf]
        %v1897 = vld [vmem:[#allocation10 + $0x78] sm:$0xf]
        %v1898 = vld [vmem:[#allocation10 + $0x7c] sm:$0xf]
        %v1899 = vld [vmem:[#allocation10 + $0x80] sm:$0xf]
        %v1900 = vld [vmem:[#allocation10 + $0x84] sm:$0xf]
        %v1901 = vld [vmem:[#allocation10 + $0x88] sm:$0xf]
        %v1902 = vld [vmem:[#allocation10 + $0x8c] sm:$0xf]
        %v1903 = vld [vmem:[#allocation10 + $0x90] sm:$0xf]
        %v1904 = vld [vmem:[#allocation10 + $0x94] sm:$0xf]
        %v1905 = vld [vmem:[#allocation10 + $0x98] sm:$0xf]
        %v1906 = vld [vmem:[#allocation10 + $0x9c] sm:$0xf]
        %v1907 = vld [vmem:[#allocation10 + $0xa0] sm:$0xf]
        %v1908 = vld [vmem:[#allocation10 + $0xa4] sm:$0xf]
        %v1909 = vld [vmem:[#allocation10 + $0xa8] sm:$0xf]
        %v1910 = vld [vmem:[#allocation10 + $0xac] sm:$0xf]
        %v1911 = vld [vmem:[#allocation10 + $0xb0] sm:$0xf]
        %v1912 = vld [vmem:[#allocation10 + $0xb4] sm:$0xf]
        %v1913 = vld [vmem:[#allocation10 + $0xb8] sm:$0xf]
        %v1914 = vld [vmem:[#allocation10 + $0xbc] sm:$0xf]
        %v1915 = vld [vmem:[#allocation10 + $0xc0] sm:$0xf]
        %v1916 = vld [vmem:[#allocation10 + $0xc4] sm:$0xf]
        %v1917 = vld [vmem:[#allocation10 + $0xc8] sm:$0xf]
        %v1918 = vld [vmem:[#allocation10 + $0xcc] sm:$0xf]
        %v1919 = vld [vmem:[#allocation10 + $0xd0] sm:$0xf]
        %v1920 = vld [vmem:[#allocation10 + $0xd4] sm:$0xf]
        %v1921 = vld [vmem:[#allocation10 + $0xd8] sm:$0xf]
        %v1922 = vld [vmem:[#allocation10 + $0xdc] sm:$0xf]
        %v1923 = vld [vmem:[#allocation10 + $0xe0] sm:$0xf]
        %v1924 = vld [vmem:[#allocation10 + $0xe4] sm:$0xf]
        %v1925 = vld [vmem:[#allocation10 + $0xe8] sm:$0xf]
        %v1926 = vld [vmem:[#allocation10 + $0xec] sm:$0xf]
        %v1927 = vld [vmem:[#allocation10 + $0xf0] sm:$0xf]
        %v1928 = vld [vmem:[#allocation10 + $0xf4] sm:$0xf]
        %v1929 = vld [vmem:[#allocation10 + $0xf8] sm:$0xf]
        %v1930 = vld [vmem:[#allocation10 + $0xfc] sm:$0xf]
        %v1931 = vld [vmem:[#allocation10 + $0x100] sm:$0xf]
        %v1932 = vld [vmem:[#allocation10 + $0x104] sm:$0xf]
        %v1933 = vld [vmem:[#allocation10 + $0x108] sm:$0xf]
        %v1934 = vld [vmem:[#allocation10 + $0x10c] sm:$0xf]
        %v1935 = vld [vmem:[#allocation10 + $0x110] sm:$0xf]
        %v1936 = vld [vmem:[#allocation10 + $0x114] sm:$0xf]
        %v1937 = vld [vmem:[#allocation10 + $0x118] sm:$0xf]
        %v1938 = vld [vmem:[#allocation10 + $0x11c] sm:$0xf]
        %v1939 = vld [vmem:[#allocation10 + $0x120] sm:$0xf]
        %v1940 = vld [vmem:[#allocation10 + $0x124] sm:$0xf]
        %v1941 = vld [vmem:[#allocation10 + $0x128] sm:$0xf]
        %v1942 = vld [vmem:[#allocation10 + $0x12c] sm:$0xf]
        %v1943 = vld [vmem:[#allocation10 + $0x130] sm:$0xf]
        %v1944 = vld [vmem:[#allocation10 + $0x134] sm:$0xf]
        %v1945 = vld [vmem:[#allocation10 + $0x138] sm:$0xf]
        %v1946 = vld [vmem:[#allocation10 + $0x13c] sm:$0xf]
        %v1947 = vld [vmem:[#allocation10 + $0x140] sm:$0xf]
        %v1948 = vld [vmem:[#allocation10 + $0x144] sm:$0xf]
        %v1949 = vld [vmem:[#allocation10 + $0x148] sm:$0xf]
        %v1950 = vld [vmem:[#allocation10 + $0x14c] sm:$0xf]
        %v1951 = vld [vmem:[#allocation10 + $0x150] sm:$0xf]
        %v1952 = vld [vmem:[#allocation10 + $0x154] sm:$0xf]
        %v1953 = vld [vmem:[#allocation10 + $0x158] sm:$0xf]
        %v1954 = vld [vmem:[#allocation10 + $0x15c] sm:$0xf]
        %v1955 = vld [vmem:[#allocation10 + $0x160] sm:$0xf]
        %v1956 = vld [vmem:[#allocation10 + $0x164] sm:$0xf]
        %v1957 = vld [vmem:[#allocation10 + $0x168] sm:$0xf]
        %v1958 = vld [vmem:[#allocation10 + $0x16c] sm:$0xf]
        %v1959 = vld [vmem:[#allocation10 + $0x170] sm:$0xf]
        %v1960 = vld [vmem:[#allocation10 + $0x174] sm:$0xf]
        %v1961 = vld [vmem:[#allocation10 + $0x178] sm:$0xf]
        %v1962 = vld [vmem:[#allocation10 + $0x17c] sm:$0xf]
        %v1963 = vld [vmem:[#allocation10 + $0x180] sm:$0xf]
        %v1964 = vld [vmem:[#allocation10 + $0x184] sm:$0xf]
        %v1965 = vld [vmem:[#allocation10 + $0x188] sm:$0xf]
        %v1966 = vld [vmem:[#allocation10 + $0x18c] sm:$0xf]
        %v1967 = vld [vmem:[#allocation10 + $0x190] sm:$0xf]
        %v1968 = vld [vmem:[#allocation10 + $0x194] sm:$0xf]
        %v1969 = vld [vmem:[#allocation10 + $0x198] sm:$0xf]
        %v1970 = vld [vmem:[#allocation10 + $0x19c] sm:$0xf]
        %v1971 = vld [vmem:[#allocation10 + $0x1a0] sm:$0xf]
        %v1972 = vld [vmem:[#allocation10 + $0x1a4] sm:$0xf]
        %v1973 = vld [vmem:[#allocation10 + $0x1a8] sm:$0xf]
        %v1974 = vld [vmem:[#allocation10 + $0x1ac] sm:$0xf]
        %v1975 = vld [vmem:[#allocation10 + $0x1b0] sm:$0xf]
        %v1976 = vld [vmem:[#allocation10 + $0x1b4] sm:$0xf]
        %v1977 = vld [vmem:[#allocation10 + $0x1b8] sm:$0xf]
        %v1978 = vld [vmem:[#allocation10 + $0x1bc] sm:$0xf]
        %v1979 = vld [vmem:[#allocation10 + $0x1c0] sm:$0xf]
        %v1980 = vld [vmem:[#allocation10 + $0x1c4] sm:$0xf]
        %v1981 = vld [vmem:[#allocation10 + $0x1c8] sm:$0xf]
        %v1982 = vld [vmem:[#allocation10 + $0x1cc] sm:$0xf]
        %v1983 = vld [vmem:[#allocation10 + $0x1d0] sm:$0xf]
        %v1984 = vld [vmem:[#allocation10 + $0x1d4] sm:$0xf]
        %v1985 = vld [vmem:[#allocation10 + $0x1d8] sm:$0xf]
        %v1986 = vld [vmem:[#allocation10 + $0x1dc] sm:$0xf]
        %v1987 = vld [vmem:[#allocation10 + $0x1e0] sm:$0xf]
        %v1988 = vld [vmem:[#allocation10 + $0x1e4] sm:$0xf]
        %v1989 = vld [vmem:[#allocation10 + $0x1e8] sm:$0xf]
        %v1990 = vld [vmem:[#allocation10 + $0x1ec] sm:$0xf]
        %v1991 = vld [vmem:[#allocation10 + $0x1f0] sm:$0xf]
        %v1992 = vld [vmem:[#allocation10 + $0x1f4] sm:$0xf]
        %v1993 = vld [vmem:[#allocation10 + $0x1f8] sm:$0xf]
        %v1994 = vld [vmem:[#allocation10 + $0x1fc] sm:$0xf]
        %v1995 = vld [vmem:[#allocation10 + $0x200] sm:$0xf]
        %v1996 = vld [vmem:[#allocation10 + $0x204] sm:$0xf]
        %v1997 = vld [vmem:[#allocation10 + $0x208] sm:$0xf]
        %v1998 = vld [vmem:[#allocation10 + $0x20c] sm:$0xf]
        %v1999 = vld [vmem:[#allocation10 + $0x210] sm:$0xf]
        %v2000 = vld [vmem:[#allocation10 + $0x214] sm:$0xf]
        %v2001 = vld [vmem:[#allocation10 + $0x218] sm:$0xf]
        %v2002 = vld [vmem:[#allocation10 + $0x21c] sm:$0xf]
        %v2003 = vld [vmem:[#allocation10 + $0x220] sm:$0xf]
        %v2004 = vld [vmem:[#allocation10 + $0x224] sm:$0xf]
        %v2005 = vld [vmem:[#allocation10 + $0x228] sm:$0xf]
        %v2006 = vld [vmem:[#allocation10 + $0x22c] sm:$0xf]
        %v2007 = vld [vmem:[#allocation10 + $0x230] sm:$0xf]
        %v2008 = vld [vmem:[#allocation10 + $0x234] sm:$0xf]
        %v2009 = vld [vmem:[#allocation10 + $0x238] sm:$0xf]
        %v2010 = vld [vmem:[#allocation10 + $0x23c] sm:$0xf]
        %v2011 = vld [vmem:[#allocation10 + $0x240] sm:$0xf]
        %v2012 = vld [vmem:[#allocation10 + $0x244] sm:$0xf]
        %v2013 = vld [vmem:[#allocation10 + $0x248] sm:$0xf]
        %v2014 = vld [vmem:[#allocation10 + $0x24c] sm:$0xf]
        %v2015 = vld [vmem:[#allocation10 + $0x250] sm:$0xf]
        %v2016 = vld [vmem:[#allocation10 + $0x254] sm:$0xf]
        %v2017 = vld [vmem:[#allocation10 + $0x258] sm:$0xf]
        %v2018 = vld [vmem:[#allocation10 + $0x25c] sm:$0xf]
        %v2019 = vld [vmem:[#allocation10 + $0x260] sm:$0xf]
        %v2020 = vld [vmem:[#allocation10 + $0x264] sm:$0xf]
        %v2021 = vld [vmem:[#allocation10 + $0x268] sm:$0xf]
        %v2022 = vld [vmem:[#allocation10 + $0x26c] sm:$0xf]
        %v2023 = vld [vmem:[#allocation10 + $0x270] sm:$0xf]
        %v2024 = vld [vmem:[#allocation10 + $0x274] sm:$0xf]
        %v2025 = vld [vmem:[#allocation10 + $0x278] sm:$0xf]
        %v2026 = vld [vmem:[#allocation10 + $0x27c] sm:$0xf]
        %v2027 = vld [vmem:[#allocation10 + $0x280] sm:$0xf]
        %v2028 = vld [vmem:[#allocation10 + $0x284] sm:$0xf]
        %v2029 = vld [vmem:[#allocation10 + $0x288] sm:$0xf]
        %v2030 = vld [vmem:[#allocation10 + $0x28c] sm:$0xf]
        %v2031 = vld [vmem:[#allocation10 + $0x290] sm:$0xf]
        %v2032 = vld [vmem:[#allocation10 + $0x294] sm:$0xf]
        %v2033 = vld [vmem:[#allocation10 + $0x298] sm:$0xf]
        %v2034 = vld [vmem:[#allocation10 + $0x29c] sm:$0xf]
        %v2035 = vld [vmem:[#allocation10 + $0x2a0] sm:$0xf]
        %v2036 = vld [vmem:[#allocation10 + $0x2a4] sm:$0xf]
        %v2037 = vld [vmem:[#allocation10 + $0x2a8] sm:$0xf]
        %v2038 = vld [vmem:[#allocation10 + $0x2ac] sm:$0xf]
        %v2039 = vld [vmem:[#allocation10 + $0x2b0] sm:$0xf]
        %v2040 = vld [vmem:[#allocation10 + $0x2b4] sm:$0xf]
        %v2041 = vld [vmem:[#allocation10 + $0x2b8] sm:$0xf]
        %v2042 = vld [vmem:[#allocation10 + $0x2bc] sm:$0xf]
        %v2043 = vld [vmem:[#allocation10 + $0x2c0] sm:$0xf]
        %v2044 = vld [vmem:[#allocation10 + $0x2c4] sm:$0xf]
        %v2045 = vld [vmem:[#allocation10 + $0x2c8] sm:$0xf]
        %v2046 = vld [vmem:[#allocation10 + $0x2cc] sm:$0xf]
        %v2047 = vld [vmem:[#allocation10 + $0x2d0] sm:$0xf]
        %v2048 = vld [vmem:[#allocation10 + $0x2d4] sm:$0xf]
        %v2049 = vld [vmem:[#allocation10 + $0x2d8] sm:$0xf]
        %v2050 = vld [vmem:[#allocation10 + $0x2dc] sm:$0xf]
        %v2051 = vld [vmem:[#allocation10 + $0x2e0] sm:$0xf]
        %v2052 = vld [vmem:[#allocation10 + $0x2e4] sm:$0xf]
        %v2053 = vld [vmem:[#allocation10 + $0x2e8] sm:$0xf]
        %v2054 = vld [vmem:[#allocation10 + $0x2ec] sm:$0xf]
        %v2055 = vld [vmem:[#allocation10 + $0x2f0] sm:$0xf]
        %v2056 = vld [vmem:[#allocation10 + $0x2f4] sm:$0xf]
        %v2057 = vld [vmem:[#allocation10 + $0x2f8] sm:$0xf]
        %v2058 = vld [vmem:[#allocation10 + $0x2fc] sm:$0xf]
        %v2059 = vld [vmem:[#allocation10 + $0x300] sm:$0xf]
        %v2060 = vld [vmem:[#allocation10 + $0x304] sm:$0xf]
        %v2061 = vld [vmem:[#allocation10 + $0x308] sm:$0xf]
        %v2062 = vld [vmem:[#allocation10 + $0x30c] sm:$0xf]
        %v2063 = vld [vmem:[#allocation10 + $0x310] sm:$0xf]
        %v2064 = vld [vmem:[#allocation10 + $0x314] sm:$0xf]
        %v2065 = vld [vmem:[#allocation10 + $0x318] sm:$0xf]
        %v2066 = vld [vmem:[#allocation10 + $0x31c] sm:$0xf]
        %v2067 = vld [vmem:[#allocation10 + $0x320] sm:$0xf]
        %v2068 = vld [vmem:[#allocation10 + $0x324] sm:$0xf]
        %v2069 = vld [vmem:[#allocation10 + $0x328] sm:$0xf]
        %v2070 = vld [vmem:[#allocation10 + $0x32c] sm:$0xf]
        %v2071 = vld [vmem:[#allocation10 + $0x330] sm:$0xf]
        %v2072 = vld [vmem:[#allocation10 + $0x334] sm:$0xf]
        %v2073 = vld [vmem:[#allocation10 + $0x338] sm:$0xf]
        %v2074 = vld [vmem:[#allocation10 + $0x33c] sm:$0xf]
        %v2075 = vld [vmem:[#allocation10 + $0x340] sm:$0xf]
        %v2076 = vld [vmem:[#allocation10 + $0x344] sm:$0xf]
        %v2077 = vld [vmem:[#allocation10 + $0x348] sm:$0xf]
        %v2078 = vld [vmem:[#allocation10 + $0x34c] sm:$0xf]
        %v2079 = vld [vmem:[#allocation10 + $0x350] sm:$0xf]
        %v2080 = vld [vmem:[#allocation10 + $0x354] sm:$0xf]
        %v2081 = vld [vmem:[#allocation10 + $0x358] sm:$0xf]
        %v2082 = vld [vmem:[#allocation10 + $0x35c] sm:$0xf]
        %v2083 = vld [vmem:[#allocation10 + $0x360] sm:$0xf]
        %v2084 = vld [vmem:[#allocation10 + $0x364] sm:$0xf]
        %v2085 = vld [vmem:[#allocation10 + $0x368] sm:$0xf]
        %v2086 = vld [vmem:[#allocation10 + $0x36c] sm:$0xf]
        %v2087 = vld [vmem:[#allocation10 + $0x370] sm:$0xf]
        %v2088 = vld [vmem:[#allocation10 + $0x374] sm:$0xf]
        %v2089 = vld [vmem:[#allocation10 + $0x378] sm:$0xf]
        %v2090 = vld [vmem:[#allocation10 + $0x37c] sm:$0xf]
        %v2091 = vld [vmem:[#allocation10 + $0x380] sm:$0xf]
        %v2092 = vld [vmem:[#allocation10 + $0x384] sm:$0xf]
        %v2093 = vld [vmem:[#allocation10 + $0x388] sm:$0xf]
        %v2094 = vld [vmem:[#allocation10 + $0x38c] sm:$0xf]
        %v2095 = vld [vmem:[#allocation10 + $0x390] sm:$0xf]
        %v2096 = vld [vmem:[#allocation10 + $0x394] sm:$0xf]
        %v2097 = vld [vmem:[#allocation10 + $0x398] sm:$0xf]
        %v2098 = vld [vmem:[#allocation10 + $0x39c] sm:$0xf]
        %v2099 = vld [vmem:[#allocation10 + $0x3a0] sm:$0xf]
        %v2100 = vld [vmem:[#allocation10 + $0x3a4] sm:$0xf]
        %v2101 = vld [vmem:[#allocation10 + $0x3a8] sm:$0xf]
        %v2102 = vld [vmem:[#allocation10 + $0x3ac] sm:$0xf]
        %v2103 = vld [vmem:[#allocation10 + $0x3b0] sm:$0xf]
        %v2104 = vld [vmem:[#allocation10 + $0x3b4] sm:$0xf]
        %v2105 = vld [vmem:[#allocation10 + $0x3b8] sm:$0xf]
        %v2106 = vld [vmem:[#allocation10 + $0x3bc] sm:$0xf]
        %v2107 = vld [vmem:[#allocation10 + $0x3c0] sm:$0xf]
        %v2108 = vld [vmem:[#allocation10 + $0x3c4] sm:$0xf]
        %v2109 = vld [vmem:[#allocation10 + $0x3c8] sm:$0xf]
        %v2110 = vld [vmem:[#allocation10 + $0x3cc] sm:$0xf]
        %v2111 = vld [vmem:[#allocation10 + $0x3d0] sm:$0xf]
        %v2112 = vld [vmem:[#allocation10 + $0x3d4] sm:$0xf]
        %v2113 = vld [vmem:[#allocation10 + $0x3d8] sm:$0xf]
        %v2114 = vld [vmem:[#allocation10 + $0x3dc] sm:$0xf]
        %v2115 = vld [vmem:[#allocation10 + $0x3e0] sm:$0xf]
        %v2116 = vld [vmem:[#allocation10 + $0x3e4] sm:$0xf]
        %v2117 = vld [vmem:[#allocation10 + $0x3e8] sm:$0xf]
        %v2118 = vld [vmem:[#allocation10 + $0x3ec] sm:$0xf]
        %v2119 = vld [vmem:[#allocation10 + $0x3f0] sm:$0xf]
        %v2120 = vld [vmem:[#allocation10 + $0x3f4] sm:$0xf]
        %v2121 = vld [vmem:[#allocation10 + $0x3f8] sm:$0xf]
        %v2122 = vld [vmem:[#allocation10 + $0x3fc] sm:$0xf]
        %v2123 = vld [vmem:[#allocation10 + $0x400] sm:$0xf]
        %v2124 = vld [vmem:[#allocation10 + $0x404] sm:$0xf]
        %v2125 = vld [vmem:[#allocation10 + $0x408] sm:$0xf]
        %v2126 = vld [vmem:[#allocation10 + $0x40c] sm:$0xf]
        %v2127 = vld [vmem:[#allocation10 + $0x410] sm:$0xf]
        %v2128 = vld [vmem:[#allocation10 + $0x414] sm:$0xf]
        %v2129 = vld [vmem:[#allocation10 + $0x418] sm:$0xf]
        %v2130 = vld [vmem:[#allocation10 + $0x41c] sm:$0xf]
        %v2131 = vld [vmem:[#allocation10 + $0x420] sm:$0xf]
        %v2132 = vld [vmem:[#allocation10 + $0x424] sm:$0xf]
        %v2133 = vld [vmem:[#allocation10 + $0x428] sm:$0xf]
        %v2134 = vld [vmem:[#allocation10 + $0x42c] sm:$0xf]
        %v2135 = vld [vmem:[#allocation10 + $0x430] sm:$0xf]
        %v2136 = vld [vmem:[#allocation10 + $0x434] sm:$0xf]
        %v2137 = vld [vmem:[#allocation10 + $0x438] sm:$0xf]
        %v2138 = vld [vmem:[#allocation10 + $0x43c] sm:$0xf]
        %v2139 = vld [vmem:[#allocation10 + $0x440] sm:$0xf]
        %v2140 = vld [vmem:[#allocation10 + $0x444] sm:$0xf]
        %v2141 = vld [vmem:[#allocation10 + $0x448] sm:$0xf]
        %v2142 = vld [vmem:[#allocation10 + $0x44c] sm:$0xf]
        %v2143 = vld [vmem:[#allocation10 + $0x450] sm:$0xf]
        %v2144 = vld [vmem:[#allocation10 + $0x454] sm:$0xf]
        %v2145 = vld [vmem:[#allocation10 + $0x458] sm:$0xf]
        %v2146 = vld [vmem:[#allocation10 + $0x45c] sm:$0xf]
        %v2147 = vld [vmem:[#allocation10 + $0x460] sm:$0xf]
        %v2148 = vld [vmem:[#allocation10 + $0x464] sm:$0xf]
        %v2149 = vld [vmem:[#allocation10 + $0x468] sm:$0xf]
        %v2150 = vld [vmem:[#allocation10 + $0x46c] sm:$0xf]
        %v2151 = vld [vmem:[#allocation10 + $0x470] sm:$0xf]
        %v2152 = vld [vmem:[#allocation10 + $0x474] sm:$0xf]
        %v2153 = vld [vmem:[#allocation10 + $0x478] sm:$0xf]
        %v2154 = vld [vmem:[#allocation10 + $0x47c] sm:$0xf]
        %v2155 = vld [vmem:[#allocation10 + $0x480] sm:$0xf]
        %v2156 = vld [vmem:[#allocation10 + $0x484] sm:$0xf]
        %v2157 = vld [vmem:[#allocation10 + $0x488] sm:$0xf]
        %v2158 = vld [vmem:[#allocation10 + $0x48c] sm:$0xf]
        %v2159 = vld [vmem:[#allocation10 + $0x490] sm:$0xf]
        %v2160 = vld [vmem:[#allocation10 + $0x494] sm:$0xf]
        %v2161 = vld [vmem:[#allocation10 + $0x498] sm:$0xf]
        %v2162 = vld [vmem:[#allocation10 + $0x49c] sm:$0xf]
        %v2163 = vld [vmem:[#allocation10 + $0x4a0] sm:$0xf]
        %v2164 = vld [vmem:[#allocation10 + $0x4a4] sm:$0xf]
        %v2165 = vld [vmem:[#allocation10 + $0x4a8] sm:$0xf]
        %v2166 = vld [vmem:[#allocation10 + $0x4ac] sm:$0xf]
        %v2167 = vld [vmem:[#allocation10 + $0x4b0] sm:$0xf]
        %v2168 = vld [vmem:[#allocation10 + $0x4b4] sm:$0xf]
        %v2169 = vld [vmem:[#allocation10 + $0x4b8] sm:$0xf]
        %v2170 = vld [vmem:[#allocation10 + $0x4bc] sm:$0xf]
        %v2171 = vld [vmem:[#allocation10 + $0x4c0] sm:$0xf]
        %v2172 = vld [vmem:[#allocation10 + $0x4c4] sm:$0xf]
        %v2173 = vld [vmem:[#allocation10 + $0x4c8] sm:$0xf]
        %v2174 = vld [vmem:[#allocation10 + $0x4cc] sm:$0xf]
        %v2175 = vld [vmem:[#allocation10 + $0x4d0] sm:$0xf]
        %v2176 = vld [vmem:[#allocation10 + $0x4d4] sm:$0xf]
        %v2177 = vld [vmem:[#allocation10 + $0x4d8] sm:$0xf]
        %v2178 = vld [vmem:[#allocation10 + $0x4dc] sm:$0xf]
        %v2179 = vld [vmem:[#allocation10 + $0x4e0] sm:$0xf]
        %v2180 = vld [vmem:[#allocation10 + $0x4e4] sm:$0xf]
        %v2181 = vld [vmem:[#allocation10 + $0x4e8] sm:$0xf]
        %v2182 = vld [vmem:[#allocation10 + $0x4ec] sm:$0xf]
        %v2183 = vld [vmem:[#allocation10 + $0x4f0] sm:$0xf]
        %v2184 = vld [vmem:[#allocation10 + $0x4f4] sm:$0xf]
        %v2185 = vld [vmem:[#allocation10 + $0x4f8] sm:$0xf]
        %v2186 = vld [vmem:[#allocation10 + $0x4fc] sm:$0xf]
        %v2187 = vld [vmem:[#allocation10 + $0x500] sm:$0xf]
        %v2188 = vld [vmem:[#allocation10 + $0x504] sm:$0xf]
        %v2189 = vld [vmem:[#allocation10 + $0x508] sm:$0xf]
        %v2190 = vld [vmem:[#allocation10 + $0x50c] sm:$0xf]
        %v2191 = vld [vmem:[#allocation10 + $0x510] sm:$0xf]
        %v2192 = vld [vmem:[#allocation10 + $0x514] sm:$0xf]
        %v2193 = vld [vmem:[#allocation10 + $0x518] sm:$0xf]
        %v2194 = vld [vmem:[#allocation10 + $0x51c] sm:$0xf]
        %v2195 = vld [vmem:[#allocation10 + $0x520] sm:$0xf]
        %v2196 = vld [vmem:[#allocation10 + $0x524] sm:$0xf]
        %v2197 = vld [vmem:[#allocation10 + $0x528] sm:$0xf]
        %v2198 = vld [vmem:[#allocation10 + $0x52c] sm:$0xf]
        %v2199 = vld [vmem:[#allocation10 + $0x530] sm:$0xf]
        %v2200 = vld [vmem:[#allocation10 + $0x534] sm:$0xf]
        %v2201 = vld [vmem:[#allocation10 + $0x538] sm:$0xf]
        %v2202 = vld [vmem:[#allocation10 + $0x53c] sm:$0xf]
        %v2203 = vld [vmem:[#allocation10 + $0x540] sm:$0xf]
        %v2204 = vld [vmem:[#allocation10 + $0x544] sm:$0xf]
        %v2205 = vld [vmem:[#allocation10 + $0x548] sm:$0xf]
        %v2206 = vld [vmem:[#allocation10 + $0x54c] sm:$0xf]
        %v2207 = vld [vmem:[#allocation10 + $0x550] sm:$0xf]
        %v2208 = vld [vmem:[#allocation10 + $0x554] sm:$0xf]
        %v2209 = vld [vmem:[#allocation10 + $0x558] sm:$0xf]
        %v2210 = vld [vmem:[#allocation10 + $0x55c] sm:$0xf]
        %v2211 = vld [vmem:[#allocation10 + $0x560] sm:$0xf]
        %v2212 = vld [vmem:[#allocation10 + $0x564] sm:$0xf]
        %v2213 = vld [vmem:[#allocation10 + $0x568] sm:$0xf]
        %v2214 = vld [vmem:[#allocation10 + $0x56c] sm:$0xf]
        %v2215 = vld [vmem:[#allocation10 + $0x570] sm:$0xf]
        %v2216 = vld [vmem:[#allocation10 + $0x574] sm:$0xf]
        %v2217 = vld [vmem:[#allocation10 + $0x578] sm:$0xf]
        %v2218 = vld [vmem:[#allocation10 + $0x57c] sm:$0xf]
        %v2219 = vld [vmem:[#allocation10 + $0x580] sm:$0xf]
        %v2220 = vld [vmem:[#allocation10 + $0x584] sm:$0xf]
        %v2221 = vld [vmem:[#allocation10 + $0x588] sm:$0xf]
        %v2222 = vld [vmem:[#allocation10 + $0x58c] sm:$0xf]
        %v2223 = vld [vmem:[#allocation10 + $0x590] sm:$0xf]
        %v2224 = vld [vmem:[#allocation10 + $0x594] sm:$0xf]
        %v2225 = vld [vmem:[#allocation10 + $0x598] sm:$0xf]
        %v2226 = vld [vmem:[#allocation10 + $0x59c] sm:$0xf]
        %v2227 = vld [vmem:[#allocation10 + $0x5a0] sm:$0xf]
        %v2228 = vld [vmem:[#allocation10 + $0x5a4] sm:$0xf]
        %v2229 = vld [vmem:[#allocation10 + $0x5a8] sm:$0xf]
        %v2230 = vld [vmem:[#allocation10 + $0x5ac] sm:$0xf]
        %v2231 = vld [vmem:[#allocation10 + $0x5b0] sm:$0xf]
        %v2232 = vld [vmem:[#allocation10 + $0x5b4] sm:$0xf]
        %v2233 = vld [vmem:[#allocation10 + $0x5b8] sm:$0xf]
        %v2234 = vld [vmem:[#allocation10 + $0x5bc] sm:$0xf]
        %v2235 = vld [vmem:[#allocation10 + $0x5c0] sm:$0xf]
        %v2236 = vld [vmem:[#allocation10 + $0x5c4] sm:$0xf]
        %v2237 = vld [vmem:[#allocation10 + $0x5c8] sm:$0xf]
        %v2238 = vld [vmem:[#allocation10 + $0x5cc] sm:$0xf]
        %v2239 = vld [vmem:[#allocation10 + $0x5d0] sm:$0xf]
        %v2240 = vld [vmem:[#allocation10 + $0x5d4] sm:$0xf]
        %v2241 = vld [vmem:[#allocation10 + $0x5d8] sm:$0xf]
        %v2242 = vld [vmem:[#allocation10 + $0x5dc] sm:$0xf]
        %v2243 = vld [vmem:[#allocation10 + $0x5e0] sm:$0xf]
        %v2244 = vld [vmem:[#allocation10 + $0x5e4] sm:$0xf]
        %v2245 = vld [vmem:[#allocation10 + $0x5e8] sm:$0xf]
        %v2246 = vld [vmem:[#allocation10 + $0x5ec] sm:$0xf]
        %v2247 = vld [vmem:[#allocation10 + $0x5f0] sm:$0xf]
        %v2248 = vld [vmem:[#allocation10 + $0x5f4] sm:$0xf]
        %v2249 = vld [vmem:[#allocation10 + $0x5f8] sm:$0xf]
        %v2250 = vld [vmem:[#allocation10 + $0x5fc] sm:$0xf]
        %v2251 = vld [vmem:[#allocation10 + $0x600] sm:$0xf]
        %v2252 = vld [vmem:[#allocation10 + $0x604] sm:$0xf]
        %v2253 = vld [vmem:[#allocation10 + $0x608] sm:$0xf]
        %v2254 = vld [vmem:[#allocation10 + $0x60c] sm:$0xf]
        %v2255 = vld [vmem:[#allocation10 + $0x610] sm:$0xf]
        %v2256 = vld [vmem:[#allocation10 + $0x614] sm:$0xf]
        %v2257 = vld [vmem:[#allocation10 + $0x618] sm:$0xf]
        %v2258 = vld [vmem:[#allocation10 + $0x61c] sm:$0xf]
        %v2259 = vld [vmem:[#allocation10 + $0x620] sm:$0xf]
        %v2260 = vld [vmem:[#allocation10 + $0x624] sm:$0xf]
        %v2261 = vld [vmem:[#allocation10 + $0x628] sm:$0xf]
        %v2262 = vld [vmem:[#allocation10 + $0x62c] sm:$0xf]
        %v2263 = vld [vmem:[#allocation10 + $0x630] sm:$0xf]
        %v2264 = vld [vmem:[#allocation10 + $0x634] sm:$0xf]
        %v2265 = vld [vmem:[#allocation10 + $0x638] sm:$0xf]
        %v2266 = vld [vmem:[#allocation10 + $0x63c] sm:$0xf]
        %v2267 = vld [vmem:[#allocation10 + $0x640] sm:$0xf]
        %v2268 = vld [vmem:[#allocation10 + $0x644] sm:$0xf]
        %v2269 = vld [vmem:[#allocation10 + $0x648] sm:$0xf]
        %v2270 = vld [vmem:[#allocation10 + $0x64c] sm:$0xf]
        %v2271 = vld [vmem:[#allocation10 + $0x650] sm:$0xf]
        %v2272 = vld [vmem:[#allocation10 + $0x654] sm:$0xf]
        %v2273 = vld [vmem:[#allocation10 + $0x658] sm:$0xf]
        %v2274 = vld [vmem:[#allocation10 + $0x65c] sm:$0xf]
        %v2275 = vld [vmem:[#allocation10 + $0x660] sm:$0xf]
        %v2276 = vld [vmem:[#allocation10 + $0x664] sm:$0xf]
        %v2277 = vld [vmem:[#allocation10 + $0x668] sm:$0xf]
        %v2278 = vld [vmem:[#allocation10 + $0x66c] sm:$0xf]
        %v2279 = vld [vmem:[#allocation10 + $0x670] sm:$0xf]
        %v2280 = vld [vmem:[#allocation10 + $0x674] sm:$0xf]
        %v2281 = vld [vmem:[#allocation10 + $0x678] sm:$0xf]
        %v2282 = vld [vmem:[#allocation10 + $0x67c] sm:$0xf]
        %v2283 = vld [vmem:[#allocation10 + $0x680] sm:$0xf]
        %v2284 = vld [vmem:[#allocation10 + $0x684] sm:$0xf]
        %v2285 = vld [vmem:[#allocation10 + $0x688] sm:$0xf]
        %v2286 = vld [vmem:[#allocation10 + $0x68c] sm:$0xf]
        %v2287 = vld [vmem:[#allocation10 + $0x690] sm:$0xf]
        %v2288 = vld [vmem:[#allocation10 + $0x694] sm:$0xf]
        %v2289 = vld [vmem:[#allocation10 + $0x698] sm:$0xf]
        %v2290 = vld [vmem:[#allocation10 + $0x69c] sm:$0xf]
        %v2291 = vld [vmem:[#allocation10 + $0x6a0] sm:$0xf]
        %v2292 = vld [vmem:[#allocation10 + $0x6a4] sm:$0xf]
        %v2293 = vld [vmem:[#allocation10 + $0x6a8] sm:$0xf]
        %v2294 = vld [vmem:[#allocation10 + $0x6ac] sm:$0xf]
        %v2295 = vld [vmem:[#allocation10 + $0x6b0] sm:$0xf]
        %v2296 = vld [vmem:[#allocation10 + $0x6b4] sm:$0xf]
        %v2297 = vld [vmem:[#allocation10 + $0x6b8] sm:$0xf]
        %v2298 = vld [vmem:[#allocation10 + $0x6bc] sm:$0xf]
        %v2299 = vld [vmem:[#allocation10 + $0x6c0] sm:$0xf]
        %v2300 = vld [vmem:[#allocation10 + $0x6c4] sm:$0xf]
        %v2301 = vld [vmem:[#allocation10 + $0x6c8] sm:$0xf]
        %v2302 = vld [vmem:[#allocation10 + $0x6cc] sm:$0xf]
        %v2303 = vld [vmem:[#allocation10 + $0x6d0] sm:$0xf]
        %v2304 = vld [vmem:[#allocation10 + $0x6d4] sm:$0xf]
        %v2305 = vld [vmem:[#allocation10 + $0x6d8] sm:$0xf]
        %v2306 = vld [vmem:[#allocation10 + $0x6dc] sm:$0xf]
        %v2307 = vld [vmem:[#allocation10 + $0x6e0] sm:$0xf]
        %v2308 = vld [vmem:[#allocation10 + $0x6e4] sm:$0xf]
        %v2309 = vld [vmem:[#allocation10 + $0x6e8] sm:$0xf]
        %v2310 = vld [vmem:[#allocation10 + $0x6ec] sm:$0xf]
        %v2311 = vld [vmem:[#allocation10 + $0x6f0] sm:$0xf]
        %v2312 = vld [vmem:[#allocation10 + $0x6f4] sm:$0xf]
        %v2313 = vld [vmem:[#allocation10 + $0x6f8] sm:$0xf]
        %v2314 = vld [vmem:[#allocation10 + $0x6fc] sm:$0xf]
        %v2315 = vld [vmem:[#allocation10 + $0x700] sm:$0xf]
        %v2316 = vld [vmem:[#allocation10 + $0x704] sm:$0xf]
        %v2317 = vld [vmem:[#allocation10 + $0x708] sm:$0xf]
        %v2318 = vld [vmem:[#allocation10 + $0x70c] sm:$0xf]
        %v2319 = vld [vmem:[#allocation10 + $0x710] sm:$0xf]
        %v2320 = vld [vmem:[#allocation10 + $0x714] sm:$0xf]
        %v2321 = vld [vmem:[#allocation10 + $0x718] sm:$0xf]
        %v2322 = vld [vmem:[#allocation10 + $0x71c] sm:$0xf]
        %v2323 = vld [vmem:[#allocation10 + $0x720] sm:$0xf]
        %v2324 = vld [vmem:[#allocation10 + $0x724] sm:$0xf]
        %v2325 = vld [vmem:[#allocation10 + $0x728] sm:$0xf]
        %v2326 = vld [vmem:[#allocation10 + $0x72c] sm:$0xf]
        %v2327 = vld [vmem:[#allocation10 + $0x730] sm:$0xf]
        %v2328 = vld [vmem:[#allocation10 + $0x734] sm:$0xf]
        %v2329 = vld [vmem:[#allocation10 + $0x738] sm:$0xf]
        %v2330 = vld [vmem:[#allocation10 + $0x73c] sm:$0xf]
        %v2331 = vld [vmem:[#allocation10 + $0x740] sm:$0xf]
        %v2332 = vld [vmem:[#allocation10 + $0x744] sm:$0xf]
        %v2333 = vld [vmem:[#allocation10 + $0x748] sm:$0xf]
        %v2334 = vld [vmem:[#allocation10 + $0x74c] sm:$0xf]
        %v2335 = vld [vmem:[#allocation10 + $0x750] sm:$0xf]
        %v2336 = vld [vmem:[#allocation10 + $0x754] sm:$0xf]
        %v2337 = vld [vmem:[#allocation10 + $0x758] sm:$0xf]
        %v2338 = vld [vmem:[#allocation10 + $0x75c] sm:$0xf]
        %v2339 = vld [vmem:[#allocation10 + $0x760] sm:$0xf]
        %v2340 = vld [vmem:[#allocation10 + $0x764] sm:$0xf]
        %v2341 = vld [vmem:[#allocation10 + $0x768] sm:$0xf]
        %v2342 = vld [vmem:[#allocation10 + $0x76c] sm:$0xf]
        %v2343 = vld [vmem:[#allocation10 + $0x770] sm:$0xf]
        %v2344 = vld [vmem:[#allocation10 + $0x774] sm:$0xf]
        %v2345 = vld [vmem:[#allocation10 + $0x778] sm:$0xf]
        %v2346 = vld [vmem:[#allocation10 + $0x77c] sm:$0xf]
        %v2347 = vld [vmem:[#allocation10 + $0x780] sm:$0xf]
        %v2348 = vld [vmem:[#allocation10 + $0x784] sm:$0xf]
        %v2349 = vld [vmem:[#allocation10 + $0x788] sm:$0xf]
        %v2350 = vld [vmem:[#allocation10 + $0x78c] sm:$0xf]
        %v2351 = vld [vmem:[#allocation10 + $0x790] sm:$0xf]
        %v2352 = vld [vmem:[#allocation10 + $0x794] sm:$0xf]
        %v2353 = vld [vmem:[#allocation10 + $0x798] sm:$0xf]
        %v2354 = vld [vmem:[#allocation10 + $0x79c] sm:$0xf]
        %v2355 = vld [vmem:[#allocation10 + $0x7a0] sm:$0xf]
        %v2356 = vld [vmem:[#allocation10 + $0x7a4] sm:$0xf]
        %v2357 = vld [vmem:[#allocation10 + $0x7a8] sm:$0xf]
        %v2358 = vld [vmem:[#allocation10 + $0x7ac] sm:$0xf]
        %v2359 = vld [vmem:[#allocation10 + $0x7b0] sm:$0xf]
        %v2360 = vld [vmem:[#allocation10 + $0x7b4] sm:$0xf]
        %v2361 = vld [vmem:[#allocation10 + $0x7b8] sm:$0xf]
        %v2362 = vld [vmem:[#allocation10 + $0x7bc] sm:$0xf]
        %v2363 = vld [vmem:[#allocation10 + $0x7c0] sm:$0xf]
        %v2364 = vld [vmem:[#allocation10 + $0x7c4] sm:$0xf]
        %v2365 = vld [vmem:[#allocation10 + $0x7c8] sm:$0xf]
        %v2366 = vld [vmem:[#allocation10 + $0x7cc] sm:$0xf]
        %v2367 = vld [vmem:[#allocation10 + $0x7d0] sm:$0xf]
        %v2368 = vld [vmem:[#allocation10 + $0x7d4] sm:$0xf]
        %v2369 = vld [vmem:[#allocation10 + $0x7d8] sm:$0xf]
        %v2370 = vld [vmem:[#allocation10 + $0x7dc] sm:$0xf]
        %v2371 = vld [vmem:[#allocation10 + $0x7e0] sm:$0xf]
        %v2372 = vld [vmem:[#allocation10 + $0x7e4] sm:$0xf]
        %v2373 = vld [vmem:[#allocation10 + $0x7e8] sm:$0xf]
        %v2374 = vld [vmem:[#allocation10 + $0x7ec] sm:$0xf]
        %v2375 = vld [vmem:[#allocation10 + $0x7f0] sm:$0xf]
        %v2376 = vld [vmem:[#allocation10 + $0x7f4] sm:$0xf]
        %v2377 = vld [vmem:[#allocation10 + $0x7f8] sm:$0xf]
        %v2378 = vld [vmem:[#allocation10 + $0x7fc] sm:$0xf]
        %v2379 = vld [vmem:[#allocation10 + $0x800] sm:$0xf]
        %v2380 = vld [vmem:[#allocation10 + $0x804] sm:$0xf]
        %v2381 = vld [vmem:[#allocation10 + $0x808] sm:$0xf]
        %v2382 = vld [vmem:[#allocation10 + $0x80c] sm:$0xf]
        %v2383 = vld [vmem:[#allocation10 + $0x810] sm:$0xf]
        %v2384 = vld [vmem:[#allocation10 + $0x814] sm:$0xf]
        %v2385 = vld [vmem:[#allocation10 + $0x818] sm:$0xf]
        %v2386 = vld [vmem:[#allocation10 + $0x81c] sm:$0xf]
        %v2387 = vld [vmem:[#allocation10 + $0x820] sm:$0xf]
        %v2388 = vld [vmem:[#allocation10 + $0x824] sm:$0xf]
        %v2389 = vld [vmem:[#allocation10 + $0x828] sm:$0xf]
        %v2390 = vld [vmem:[#allocation10 + $0x82c] sm:$0xf]
        %v2391 = vld [vmem:[#allocation10 + $0x830] sm:$0xf]
        %v2392 = vld [vmem:[#allocation10 + $0x834] sm:$0xf]
        %v2393 = vld [vmem:[#allocation10 + $0x838] sm:$0xf]
        %v2394 = vld [vmem:[#allocation10 + $0x83c] sm:$0xf]
        %v2395 = vld [vmem:[#allocation10 + $0x840] sm:$0xf]
        %v2396 = vld [vmem:[#allocation10 + $0x844] sm:$0xf]
        %v2397 = vld [vmem:[#allocation10 + $0x848] sm:$0xf]
        %v2398 = vld [vmem:[#allocation10 + $0x84c] sm:$0xf]
        %v2399 = vld [vmem:[#allocation10 + $0x850] sm:$0xf]
        %v2400 = vld [vmem:[#allocation10 + $0x854] sm:$0xf]
        %v2401 = vld [vmem:[#allocation10 + $0x858] sm:$0xf]
        %v2402 = vld [vmem:[#allocation10 + $0x85c] sm:$0xf]
        %v2403 = vld [vmem:[#allocation10 + $0x860] sm:$0xf]
        %v2404 = vld [vmem:[#allocation10 + $0x864] sm:$0xf]
        %v2405 = vld [vmem:[#allocation10 + $0x868] sm:$0xf]
        %v2406 = vld [vmem:[#allocation10 + $0x86c] sm:$0xf]
        %v2407 = vld [vmem:[#allocation10 + $0x870] sm:$0xf]
        %v2408 = vld [vmem:[#allocation10 + $0x874] sm:$0xf]
        %v2409 = vld [vmem:[#allocation10 + $0x878] sm:$0xf]
        %v2410 = vld [vmem:[#allocation10 + $0x87c] sm:$0xf]
        %v2411 = vld [vmem:[#allocation10 + $0x880] sm:$0xf]
        %v2412 = vld [vmem:[#allocation10 + $0x884] sm:$0xf]
        %v2413 = vld [vmem:[#allocation10 + $0x888] sm:$0xf]
        %v2414 = vld [vmem:[#allocation10 + $0x88c] sm:$0xf]
        %v2415 = vld [vmem:[#allocation10 + $0x890] sm:$0xf]
        %v2416 = vld [vmem:[#allocation10 + $0x894] sm:$0xf]
        %v2417 = vld [vmem:[#allocation10 + $0x898] sm:$0xf]
        %v2418 = vld [vmem:[#allocation10 + $0x89c] sm:$0xf]
        %v2419 = vld [vmem:[#allocation10 + $0x8a0] sm:$0xf]
        %v2420 = vld [vmem:[#allocation10 + $0x8a4] sm:$0xf]
        %v2421 = vld [vmem:[#allocation10 + $0x8a8] sm:$0xf]
        %v2422 = vld [vmem:[#allocation10 + $0x8ac] sm:$0xf]
        %v2423 = vld [vmem:[#allocation10 + $0x8b0] sm:$0xf]
        %v2424 = vld [vmem:[#allocation10 + $0x8b4] sm:$0xf]
        %v2425 = vld [vmem:[#allocation10 + $0x8b8] sm:$0xf]
        %v2426 = vld [vmem:[#allocation10 + $0x8bc] sm:$0xf]
        %v2427 = vld [vmem:[#allocation10 + $0x8c0] sm:$0xf]
        %v2428 = vld [vmem:[#allocation10 + $0x8c4] sm:$0xf]
        %v2429 = vld [vmem:[#allocation10 + $0x8c8] sm:$0xf]
        %v2430 = vld [vmem:[#allocation10 + $0x8cc] sm:$0xf]
        %v2431 = vld [vmem:[#allocation10 + $0x8d0] sm:$0xf]
        %v2432 = vld [vmem:[#allocation10 + $0x8d4] sm:$0xf]
        %v2433 = vld [vmem:[#allocation10 + $0x8d8] sm:$0xf]
        %v2434 = vld [vmem:[#allocation10 + $0x8dc] sm:$0xf]
        %v2435 = vld [vmem:[#allocation10 + $0x8e0] sm:$0xf]
        %v2436 = vld [vmem:[#allocation10 + $0x8e4] sm:$0xf]
        %v2437 = vld [vmem:[#allocation10 + $0x8e8] sm:$0xf]
        %v2438 = vld [vmem:[#allocation10 + $0x8ec] sm:$0xf]
        %v2439 = vld [vmem:[#allocation10 + $0x8f0] sm:$0xf]
        %v2440 = vld [vmem:[#allocation10 + $0x8f4] sm:$0xf]
        %v2441 = vld [vmem:[#allocation10 + $0x8f8] sm:$0xf]
        %v2442 = vld [vmem:[#allocation10 + $0x8fc] sm:$0xf]
        %v2443 = vld [vmem:[#allocation10 + $0x900] sm:$0xf]
        %v2444 = vld [vmem:[#allocation10 + $0x904] sm:$0xf]
        %v2445 = vld [vmem:[#allocation10 + $0x908] sm:$0xf]
        %v2446 = vld [vmem:[#allocation10 + $0x90c] sm:$0xf]
        %v2447 = vld [vmem:[#allocation10 + $0x910] sm:$0xf]
        %v2448 = vld [vmem:[#allocation10 + $0x914] sm:$0xf]
        %v2449 = vld [vmem:[#allocation10 + $0x918] sm:$0xf]
        %v2450 = vld [vmem:[#allocation10 + $0x91c] sm:$0xf]
        %v2451 = vld [vmem:[#allocation10 + $0x920] sm:$0xf]
        %v2452 = vld [vmem:[#allocation10 + $0x924] sm:$0xf]
        %v2453 = vld [vmem:[#allocation10 + $0x928] sm:$0xf]
        %v2454 = vld [vmem:[#allocation10 + $0x92c] sm:$0xf]
        %v2455 = vld [vmem:[#allocation10 + $0x930] sm:$0xf]
        %v2456 = vld [vmem:[#allocation10 + $0x934] sm:$0xf]
        %v2457 = vld [vmem:[#allocation10 + $0x938] sm:$0xf]
        %v2458 = vld [vmem:[#allocation10 + $0x93c] sm:$0xf]
        %v2459 = vld [vmem:[#allocation10 + $0x940] sm:$0xf]
        %v2460 = vld [vmem:[#allocation10 + $0x944] sm:$0xf]
        %v2461 = vld [vmem:[#allocation10 + $0x948] sm:$0xf]
        %v2462 = vld [vmem:[#allocation10 + $0x94c] sm:$0xf]
        %v2463 = vld [vmem:[#allocation10 + $0x950] sm:$0xf]
        %v2464 = vld [vmem:[#allocation10 + $0x954] sm:$0xf]
        %v2465 = vld [vmem:[#allocation10 + $0x958] sm:$0xf]
        %v2466 = vld [vmem:[#allocation10 + $0x95c] sm:$0xf]
        %v2467 = vld [vmem:[#allocation10 + $0x960] sm:$0xf]
        %v2468 = vld [vmem:[#allocation10 + $0x964] sm:$0xf]
        %v2469 = vld [vmem:[#allocation10 + $0x968] sm:$0xf]
        %v2470 = vld [vmem:[#allocation10 + $0x96c] sm:$0xf]
        %v2471 = vld [vmem:[#allocation10 + $0x970] sm:$0xf]
        %v2472 = vld [vmem:[#allocation10 + $0x974] sm:$0xf]
        %v2473 = vld [vmem:[#allocation10 + $0x978] sm:$0xf]
        %v2474 = vld [vmem:[#allocation10 + $0x97c] sm:$0xf]
        %v2475 = vld [vmem:[#allocation10 + $0x980] sm:$0xf]
        %v2476 = vld [vmem:[#allocation10 + $0x984] sm:$0xf]
        %v2477 = vld [vmem:[#allocation10 + $0x988] sm:$0xf]
        %v2478 = vld [vmem:[#allocation10 + $0x98c] sm:$0xf]
        %v2479 = vld [vmem:[#allocation10 + $0x990] sm:$0xf]
        %v2480 = vld [vmem:[#allocation10 + $0x994] sm:$0xf]
        %v2481 = vld [vmem:[#allocation10 + $0x998] sm:$0xf]
        %v2482 = vld [vmem:[#allocation10 + $0x99c] sm:$0xf]
        %v2483 = vld [vmem:[#allocation10 + $0x9a0] sm:$0xf]
        %v2484 = vld [vmem:[#allocation10 + $0x9a4] sm:$0xf]
        %v2485 = vld [vmem:[#allocation10 + $0x9a8] sm:$0xf]
        %v2486 = vld [vmem:[#allocation10 + $0x9ac] sm:$0xf]
        %v2487 = vld [vmem:[#allocation10 + $0x9b0] sm:$0xf]
        %v2488 = vld [vmem:[#allocation10 + $0x9b4] sm:$0xf]
        %v2489 = vld [vmem:[#allocation10 + $0x9b8] sm:$0xf]
        %v2490 = vld [vmem:[#allocation10 + $0x9bc] sm:$0xf]
        %v2491 = vld [vmem:[#allocation10 + $0x9c0] sm:$0xf]
        %v2492 = vld [vmem:[#allocation10 + $0x9c4] sm:$0xf]
        %v2493 = vld [vmem:[#allocation10 + $0x9c8] sm:$0xf]
        %v2494 = vld [vmem:[#allocation10 + $0x9cc] sm:$0xf]
        %v2495 = vld [vmem:[#allocation10 + $0x9d0] sm:$0xf]
        %v2496 = vld [vmem:[#allocation10 + $0x9d4] sm:$0xf]
        %v2497 = vld [vmem:[#allocation10 + $0x9d8] sm:$0xf]
        %v2498 = vld [vmem:[#allocation10 + $0x9dc] sm:$0xf]
        %v2499 = vld [vmem:[#allocation10 + $0x9e0] sm:$0xf]
        %v2500 = vld [vmem:[#allocation10 + $0x9e4] sm:$0xf]
        %v2501 = vld [vmem:[#allocation10 + $0x9e8] sm:$0xf]
        %v2502 = vld [vmem:[#allocation10 + $0x9ec] sm:$0xf]
        %v2503 = vld [vmem:[#allocation10 + $0x9f0] sm:$0xf]
        %v2504 = vld [vmem:[#allocation10 + $0x9f4] sm:$0xf]
        %v2505 = vld [vmem:[#allocation10 + $0x9f8] sm:$0xf]
        %v2506 = vld [vmem:[#allocation10 + $0x9fc] sm:$0xf]
        %v2507 = vld [vmem:[#allocation10 + $0xa00] sm:$0xf]
        %v2508 = vld [vmem:[#allocation10 + $0xa04] sm:$0xf]
        %v2509 = vld [vmem:[#allocation10 + $0xa08] sm:$0xf]
        %v2510 = vld [vmem:[#allocation10 + $0xa0c] sm:$0xf]
        %v2511 = vld [vmem:[#allocation10 + $0xa10] sm:$0xf]
        %v2512 = vld [vmem:[#allocation10 + $0xa14] sm:$0xf]
        %v2513 = vld [vmem:[#allocation10 + $0xa18] sm:$0xf]
        %v2514 = vld [vmem:[#allocation10 + $0xa1c] sm:$0xf]
        %v2515 = vld [vmem:[#allocation10 + $0xa20] sm:$0xf]
        %v2516 = vld [vmem:[#allocation10 + $0xa24] sm:$0xf]
        %v2517 = vld [vmem:[#allocation10 + $0xa28] sm:$0xf]
        %v2518 = vld [vmem:[#allocation10 + $0xa2c] sm:$0xf]
        %v2519 = vld [vmem:[#allocation10 + $0xa30] sm:$0xf]
        %v2520 = vld [vmem:[#allocation10 + $0xa34] sm:$0xf]
        %v2521 = vld [vmem:[#allocation10 + $0xa38] sm:$0xf]
        %v2522 = vld [vmem:[#allocation10 + $0xa3c] sm:$0xf]
        %v2523 = vld [vmem:[#allocation10 + $0xa40] sm:$0xf]
        %v2524 = vld [vmem:[#allocation10 + $0xa44] sm:$0xf]
        %v2525 = vld [vmem:[#allocation10 + $0xa48] sm:$0xf]
        %v2526 = vld [vmem:[#allocation10 + $0xa4c] sm:$0xf]
        %v2527 = vld [vmem:[#allocation10 + $0xa50] sm:$0xf]
        %v2528 = vld [vmem:[#allocation10 + $0xa54] sm:$0xf]
        %v2529 = vld [vmem:[#allocation10 + $0xa58] sm:$0xf]
        %v2530 = vld [vmem:[#allocation10 + $0xa5c] sm:$0xf]
        %v2531 = vld [vmem:[#allocation10 + $0xa60] sm:$0xf]
        %v2532 = vld [vmem:[#allocation10 + $0xa64] sm:$0xf]
        %v2533 = vld [vmem:[#allocation10 + $0xa68] sm:$0xf]
        %v2534 = vld [vmem:[#allocation10 + $0xa6c] sm:$0xf]
        %v2535 = vld [vmem:[#allocation10 + $0xa70] sm:$0xf]
        %v2536 = vld [vmem:[#allocation10 + $0xa74] sm:$0xf]
        %v2537 = vld [vmem:[#allocation10 + $0xa78] sm:$0xf]
        %v2538 = vld [vmem:[#allocation10 + $0xa7c] sm:$0xf]
        %v2539 = vld [vmem:[#allocation10 + $0xa80] sm:$0xf]
        %v2540 = vld [vmem:[#allocation10 + $0xa84] sm:$0xf]
        %v2541 = vld [vmem:[#allocation10 + $0xa88] sm:$0xf]
        %v2542 = vld [vmem:[#allocation10 + $0xa8c] sm:$0xf]
        %v2543 = vld [vmem:[#allocation10 + $0xa90] sm:$0xf]
        %v2544 = vld [vmem:[#allocation10 + $0xa94] sm:$0xf]
        %v2545 = vld [vmem:[#allocation10 + $0xa98] sm:$0xf]
        %v2546 = vld [vmem:[#allocation10 + $0xa9c] sm:$0xf]
        %v2547 = vld [vmem:[#allocation10 + $0xaa0] sm:$0xf]
        %v2548 = vld [vmem:[#allocation10 + $0xaa4] sm:$0xf]
        %v2549 = vld [vmem:[#allocation10 + $0xaa8] sm:$0xf]
        %v2550 = vld [vmem:[#allocation10 + $0xaac] sm:$0xf]
        %v2551 = vld [vmem:[#allocation10 + $0xab0] sm:$0xf]
        %v2552 = vld [vmem:[#allocation10 + $0xab4] sm:$0xf]
        %v2553 = vld [vmem:[#allocation10 + $0xab8] sm:$0xf]
        %v2554 = vld [vmem:[#allocation10 + $0xabc] sm:$0xf]
        %v2555 = vld [vmem:[#allocation10 + $0xac0] sm:$0xf]
        %v2556 = vld [vmem:[#allocation10 + $0xac4] sm:$0xf]
        %v2557 = vld [vmem:[#allocation10 + $0xac8] sm:$0xf]
        %v2558 = vld [vmem:[#allocation10 + $0xacc] sm:$0xf]
        %v2559 = vld [vmem:[#allocation10 + $0xad0] sm:$0xf]
        %v2560 = vld [vmem:[#allocation10 + $0xad4] sm:$0xf]
        %v2561 = vld [vmem:[#allocation10 + $0xad8] sm:$0xf]
        %v2562 = vld [vmem:[#allocation10 + $0xadc] sm:$0xf]
        %v2563 = vld [vmem:[#allocation10 + $0xae0] sm:$0xf]
        %v2564 = vld [vmem:[#allocation10 + $0xae4] sm:$0xf]
        %v2565 = vld [vmem:[#allocation10 + $0xae8] sm:$0xf]
        %v2566 = vld [vmem:[#allocation10 + $0xaec] sm:$0xf]
        %v2567 = vld [vmem:[#allocation10 + $0xaf0] sm:$0xf]
        %v2568 = vld [vmem:[#allocation10 + $0xaf4] sm:$0xf]
        %v2569 = vld [vmem:[#allocation10 + $0xaf8] sm:$0xf]
        %v2570 = vld [vmem:[#allocation10 + $0xafc] sm:$0xf]
        %v2571 = vld [vmem:[#allocation10 + $0xb00] sm:$0xf]
        %v2572 = vld [vmem:[#allocation10 + $0xb04] sm:$0xf]
        %v2573 = vld [vmem:[#allocation10 + $0xb08] sm:$0xf]
        %v2574 = vld [vmem:[#allocation10 + $0xb0c] sm:$0xf]
        %v2575 = vld [vmem:[#allocation10 + $0xb10] sm:$0xf]
        %v2576 = vld [vmem:[#allocation10 + $0xb14] sm:$0xf]
        %v2577 = vld [vmem:[#allocation10 + $0xb18] sm:$0xf]
        %v2578 = vld [vmem:[#allocation10 + $0xb1c] sm:$0xf]
        %v2579 = vld [vmem:[#allocation10 + $0xb20] sm:$0xf]
        %v2580 = vld [vmem:[#allocation10 + $0xb24] sm:$0xf]
        %v2581 = vld [vmem:[#allocation10 + $0xb28] sm:$0xf]
        %v2582 = vld [vmem:[#allocation10 + $0xb2c] sm:$0xf]
        %v2583 = vld [vmem:[#allocation10 + $0xb30] sm:$0xf]
        %v2584 = vld [vmem:[#allocation10 + $0xb34] sm:$0xf]
        %v2585 = vld [vmem:[#allocation10 + $0xb38] sm:$0xf]
        %v2586 = vld [vmem:[#allocation10 + $0xb3c] sm:$0xf]
        %v2587 = vld [vmem:[#allocation12] sm:$0x1]
        %v2588 = vmul.f32 %v2587, 2.0
        %v2590 = vlaneseq
        %v2591 = vshrl.u32 %v2590, 7
        %v2592 = vsub.s32 0, %v2591
        %v2593 = vrot.slane %v2588, %v2592
        %v3315 = vunpack.c.l.b16 %v1867
        %v3316 = vunpack.c.l.b16 %v1868
        %v3317 = vunpack.c.l.b16 %v1869
        %v3318 = vunpack.c.l.b16 %v1870
        %v3319 = vunpack.c.l.b16 %v1871
        %v3320 = vunpack.c.l.b16 %v1872
        %v3321 = vunpack.c.l.b16 %v1873
        %v3322 = vunpack.c.l.b16 %v1874
        %v3323 = vunpack.c.l.b16 %v1875
        %v3324 = vunpack.c.l.b16 %v1876
        %v3325 = vunpack.c.l.b16 %v1877
        %v3326 = vunpack.c.l.b16 %v1878
        %v3327 = vunpack.c.l.b16 %v1879
        %v3328 = vunpack.c.l.b16 %v1880
        %v3329 = vunpack.c.l.b16 %v1881
        %v3330 = vunpack.c.l.b16 %v1882
        %v3331 = vunpack.c.l.b16 %v1883
        %v3332 = vunpack.c.l.b16 %v1884
        %v3333 = vunpack.c.l.b16 %v1885
        %v3334 = vunpack.c.l.b16 %v1886
        %v3335 = vunpack.c.l.b16 %v1887
        %v3336 = vunpack.c.l.b16 %v1888
        %v3337 = vunpack.c.l.b16 %v1889
        %v3338 = vunpack.c.l.b16 %v1890
        %v3339 = vunpack.c.l.b16 %v1891
        %v3340 = vunpack.c.l.b16 %v1892
        %v3341 = vunpack.c.l.b16 %v1893
        %v3342 = vunpack.c.l.b16 %v1894
        %v3343 = vunpack.c.l.b16 %v1895
        %v3344 = vunpack.c.l.b16 %v1896
        %v3345 = vunpack.c.l.b16 %v1897
        %v3346 = vunpack.c.l.b16 %v1898
        %v3347 = vunpack.c.l.b16 %v1899
        %v3348 = vunpack.c.l.b16 %v1900
        %v3349 = vunpack.c.l.b16 %v1901
        %v3350 = vunpack.c.l.b16 %v1902
        %v3351 = vunpack.c.l.b16 %v1903
        %v3352 = vunpack.c.l.b16 %v1904
        %v3353 = vunpack.c.l.b16 %v1905
        %v3354 = vunpack.c.l.b16 %v1906
        %v3355 = vunpack.c.l.b16 %v1907
        %v3356 = vunpack.c.l.b16 %v1908
        %v3357 = vunpack.c.l.b16 %v1909
        %v3358 = vunpack.c.l.b16 %v1910
        %v3359 = vunpack.c.l.b16 %v1911
        %v3360 = vunpack.c.l.b16 %v1912
        %v3361 = vunpack.c.l.b16 %v1913
        %v3362 = vunpack.c.l.b16 %v1914
        %v3363 = vunpack.c.l.b16 %v1915
        %v3364 = vunpack.c.l.b16 %v1916
        %v3365 = vunpack.c.l.b16 %v1917
        %v3366 = vunpack.c.l.b16 %v1918
        %v3367 = vunpack.c.l.b16 %v1919
        %v3368 = vunpack.c.l.b16 %v1920
        %v3369 = vunpack.c.l.b16 %v1921
        %v3370 = vunpack.c.l.b16 %v1922
        %v3371 = vunpack.c.l.b16 %v1923
        %v3372 = vunpack.c.l.b16 %v1924
        %v3373 = vunpack.c.l.b16 %v1925
        %v3374 = vunpack.c.l.b16 %v1926
        %v3375 = vunpack.c.l.b16 %v1927
        %v3376 = vunpack.c.l.b16 %v1928
        %v3377 = vunpack.c.l.b16 %v1929
        %v3378 = vunpack.c.l.b16 %v1930
        %v3379 = vunpack.c.l.b16 %v1931
        %v3380 = vunpack.c.l.b16 %v1932
        %v3381 = vunpack.c.l.b16 %v1933
        %v3382 = vunpack.c.l.b16 %v1934
        %v3383 = vunpack.c.l.b16 %v1935
        %v3384 = vunpack.c.l.b16 %v1936
        %v3385 = vunpack.c.l.b16 %v1937
        %v3386 = vunpack.c.l.b16 %v1938
        %v3387 = vunpack.c.l.b16 %v1939
        %v3388 = vunpack.c.l.b16 %v1940
        %v3389 = vunpack.c.l.b16 %v1941
        %v3390 = vunpack.c.l.b16 %v1942
        %v3391 = vunpack.c.l.b16 %v1943
        %v3392 = vunpack.c.l.b16 %v1944
        %v3393 = vunpack.c.l.b16 %v1945
        %v3394 = vunpack.c.l.b16 %v1946
        %v3395 = vunpack.c.l.b16 %v1947
        %v3396 = vunpack.c.l.b16 %v1948
        %v3397 = vunpack.c.l.b16 %v1949
        %v3398 = vunpack.c.l.b16 %v1950
        %v3399 = vunpack.c.l.b16 %v1951
        %v3400 = vunpack.c.l.b16 %v1952
        %v3401 = vunpack.c.l.b16 %v1953
        %v3402 = vunpack.c.l.b16 %v1954
        %v3403 = vunpack.c.l.b16 %v1955
        %v3404 = vunpack.c.l.b16 %v1956
        %v3405 = vunpack.c.l.b16 %v1957
        %v3406 = vunpack.c.l.b16 %v1958
        %v3407 = vunpack.c.l.b16 %v1959
        %v3408 = vunpack.c.l.b16 %v1960
        %v3409 = vunpack.c.l.b16 %v1961
        %v3410 = vunpack.c.l.b16 %v1962
        %v3411 = vunpack.c.l.b16 %v1963
        %v3412 = vunpack.c.l.b16 %v1964
        %v3413 = vunpack.c.l.b16 %v1965
        %v3414 = vunpack.c.l.b16 %v1966
        %v3415 = vunpack.c.l.b16 %v1967
        %v3416 = vunpack.c.l.b16 %v1968
        %v3417 = vunpack.c.l.b16 %v1969
        %v3418 = vunpack.c.l.b16 %v1970
        %v3419 = vunpack.c.l.b16 %v1971
        %v3420 = vunpack.c.l.b16 %v1972
        %v3421 = vunpack.c.l.b16 %v1973
        %v3422 = vunpack.c.l.b16 %v1974
        %v3423 = vunpack.c.l.b16 %v1975
        %v3424 = vunpack.c.l.b16 %v1976
        %v3425 = vunpack.c.l.b16 %v1977
        %v3426 = vunpack.c.l.b16 %v1978
        %v3427 = vunpack.c.l.b16 %v1979
        %v3428 = vunpack.c.l.b16 %v1980
        %v3429 = vunpack.c.l.b16 %v1981
        %v3430 = vunpack.c.l.b16 %v1982
        %v3431 = vunpack.c.l.b16 %v1983
        %v3432 = vunpack.c.l.b16 %v1984
        %v3433 = vunpack.c.l.b16 %v1985
        %v3434 = vunpack.c.l.b16 %v1986
        %v3435 = vunpack.c.l.b16 %v1987
        %v3436 = vunpack.c.l.b16 %v1988
        %v3437 = vunpack.c.l.b16 %v1989
        %v3438 = vunpack.c.l.b16 %v1990
        %v3439 = vunpack.c.l.b16 %v1991
        %v3440 = vunpack.c.l.b16 %v1992
        %v3441 = vunpack.c.l.b16 %v1993
        %v3442 = vunpack.c.l.b16 %v1994
        %v3443 = vunpack.c.l.b16 %v1995
        %v3444 = vunpack.c.l.b16 %v1996
        %v3445 = vunpack.c.l.b16 %v1997
        %v3446 = vunpack.c.l.b16 %v1998
        %v3447 = vunpack.c.l.b16 %v1999
        %v3448 = vunpack.c.l.b16 %v2000
        %v3449 = vunpack.c.l.b16 %v2001
        %v3450 = vunpack.c.l.b16 %v2002
        %v3451 = vunpack.c.l.b16 %v2003
        %v3452 = vunpack.c.l.b16 %v2004
        %v3453 = vunpack.c.l.b16 %v2005
        %v3454 = vunpack.c.l.b16 %v2006
        %v3455 = vunpack.c.l.b16 %v2007
        %v3456 = vunpack.c.l.b16 %v2008
        %v3457 = vunpack.c.l.b16 %v2009
        %v3458 = vunpack.c.l.b16 %v2010
        %v3459 = vunpack.c.l.b16 %v2011
        %v3460 = vunpack.c.l.b16 %v2012
        %v3461 = vunpack.c.l.b16 %v2013
        %v3462 = vunpack.c.l.b16 %v2014
        %v3463 = vunpack.c.l.b16 %v2015
        %v3464 = vunpack.c.l.b16 %v2016
        %v3465 = vunpack.c.l.b16 %v2017
        %v3466 = vunpack.c.l.b16 %v2018
        %v3467 = vunpack.c.l.b16 %v2019
        %v3468 = vunpack.c.l.b16 %v2020
        %v3469 = vunpack.c.l.b16 %v2021
        %v3470 = vunpack.c.l.b16 %v2022
        %v3471 = vunpack.c.l.b16 %v2023
        %v3472 = vunpack.c.l.b16 %v2024
        %v3473 = vunpack.c.l.b16 %v2025
        %v3474 = vunpack.c.l.b16 %v2026
        %v3475 = vunpack.c.l.b16 %v2027
        %v3476 = vunpack.c.l.b16 %v2028
        %v3477 = vunpack.c.l.b16 %v2029
        %v3478 = vunpack.c.l.b16 %v2030
        %v3479 = vunpack.c.l.b16 %v2031
        %v3480 = vunpack.c.l.b16 %v2032
        %v3481 = vunpack.c.l.b16 %v2033
        %v3482 = vunpack.c.l.b16 %v2034
        %v3483 = vunpack.c.l.b16 %v2035
        %v3484 = vunpack.c.l.b16 %v2036
        %v3485 = vunpack.c.l.b16 %v2037
        %v3486 = vunpack.c.l.b16 %v2038
        %v3487 = vunpack.c.l.b16 %v2039
        %v3488 = vunpack.c.l.b16 %v2040
        %v3489 = vunpack.c.l.b16 %v2041
        %v3490 = vunpack.c.l.b16 %v2042
        %v3491 = vunpack.c.l.b16 %v2043
        %v3492 = vunpack.c.l.b16 %v2044
        %v3493 = vunpack.c.l.b16 %v2045
        %v3494 = vunpack.c.l.b16 %v2046
        %v3495 = vunpack.c.l.b16 %v2047
        %v3496 = vunpack.c.l.b16 %v2048
        %v3497 = vunpack.c.l.b16 %v2049
        %v3498 = vunpack.c.l.b16 %v2050
        %v3499 = vunpack.c.l.b16 %v2051
        %v3500 = vunpack.c.l.b16 %v2052
        %v3501 = vunpack.c.l.b16 %v2053
        %v3502 = vunpack.c.l.b16 %v2054
        %v3503 = vunpack.c.l.b16 %v2055
        %v3504 = vunpack.c.l.b16 %v2056
        %v3505 = vunpack.c.l.b16 %v2057
        %v3506 = vunpack.c.l.b16 %v2058
        %v3507 = vunpack.c.l.b16 %v2059
        %v3508 = vunpack.c.l.b16 %v2060
        %v3509 = vunpack.c.l.b16 %v2061
        %v3510 = vunpack.c.l.b16 %v2062
        %v3511 = vunpack.c.l.b16 %v2063
        %v3512 = vunpack.c.l.b16 %v2064
        %v3513 = vunpack.c.l.b16 %v2065
        %v3514 = vunpack.c.l.b16 %v2066
        %v3515 = vunpack.c.l.b16 %v2067
        %v3516 = vunpack.c.l.b16 %v2068
        %v3517 = vunpack.c.l.b16 %v2069
        %v3518 = vunpack.c.l.b16 %v2070
        %v3519 = vunpack.c.l.b16 %v2071
        %v3520 = vunpack.c.l.b16 %v2072
        %v3521 = vunpack.c.l.b16 %v2073
        %v3522 = vunpack.c.l.b16 %v2074
        %v3523 = vunpack.c.l.b16 %v2075
        %v3524 = vunpack.c.l.b16 %v2076
        %v3525 = vunpack.c.l.b16 %v2077
        %v3526 = vunpack.c.l.b16 %v2078
        %v3527 = vunpack.c.l.b16 %v2079
        %v3528 = vunpack.c.l.b16 %v2080
        %v3529 = vunpack.c.l.b16 %v2081
        %v3530 = vunpack.c.l.b16 %v2082
        %v3531 = vunpack.c.l.b16 %v2083
        %v3532 = vunpack.c.l.b16 %v2084
        %v3533 = vunpack.c.l.b16 %v2085
        %v3534 = vunpack.c.l.b16 %v2086
        %v3535 = vunpack.c.l.b16 %v2087
        %v3536 = vunpack.c.l.b16 %v2088
        %v3537 = vunpack.c.l.b16 %v2089
        %v3538 = vunpack.c.l.b16 %v2090
        %v3539 = vunpack.c.l.b16 %v2091
        %v3540 = vunpack.c.l.b16 %v2092
        %v3541 = vunpack.c.l.b16 %v2093
        %v3542 = vunpack.c.l.b16 %v2094
        %v3543 = vunpack.c.l.b16 %v2095
        %v3544 = vunpack.c.l.b16 %v2096
        %v3545 = vunpack.c.l.b16 %v2097
        %v3546 = vunpack.c.l.b16 %v2098
        %v3547 = vunpack.c.l.b16 %v2099
        %v3548 = vunpack.c.l.b16 %v2100
        %v3549 = vunpack.c.l.b16 %v2101
        %v3550 = vunpack.c.l.b16 %v2102
        %v3551 = vunpack.c.l.b16 %v2103
        %v3552 = vunpack.c.l.b16 %v2104
        %v3553 = vunpack.c.l.b16 %v2105
        %v3554 = vunpack.c.l.b16 %v2106
        %v3555 = vunpack.c.l.b16 %v2107
        %v3556 = vunpack.c.l.b16 %v2108
        %v3557 = vunpack.c.l.b16 %v2109
        %v3558 = vunpack.c.l.b16 %v2110
        %v3559 = vunpack.c.l.b16 %v2111
        %v3560 = vunpack.c.l.b16 %v2112
        %v3561 = vunpack.c.l.b16 %v2113
        %v3562 = vunpack.c.l.b16 %v2114
        %v3563 = vunpack.c.l.b16 %v2115
        %v3564 = vunpack.c.l.b16 %v2116
        %v3565 = vunpack.c.l.b16 %v2117
        %v3566 = vunpack.c.l.b16 %v2118
        %v3567 = vunpack.c.l.b16 %v2119
        %v3568 = vunpack.c.l.b16 %v2120
        %v3569 = vunpack.c.l.b16 %v2121
        %v3570 = vunpack.c.l.b16 %v2122
        %v3571 = vunpack.c.l.b16 %v2123
        %v3572 = vunpack.c.l.b16 %v2124
        %v3573 = vunpack.c.l.b16 %v2125
        %v3574 = vunpack.c.l.b16 %v2126
        %v3575 = vunpack.c.l.b16 %v2127
        %v3576 = vunpack.c.l.b16 %v2128
        %v3577 = vunpack.c.l.b16 %v2129
        %v3578 = vunpack.c.l.b16 %v2130
        %v3579 = vunpack.c.l.b16 %v2131
        %v3580 = vunpack.c.l.b16 %v2132
        %v3581 = vunpack.c.l.b16 %v2133
        %v3582 = vunpack.c.l.b16 %v2134
        %v3583 = vunpack.c.l.b16 %v2135
        %v3584 = vunpack.c.l.b16 %v2136
        %v3585 = vunpack.c.l.b16 %v2137
        %v3586 = vunpack.c.l.b16 %v2138
        %v3587 = vunpack.c.l.b16 %v2139
        %v3588 = vunpack.c.l.b16 %v2140
        %v3589 = vunpack.c.l.b16 %v2141
        %v3590 = vunpack.c.l.b16 %v2142
        %v3591 = vunpack.c.l.b16 %v2143
        %v3592 = vunpack.c.l.b16 %v2144
        %v3593 = vunpack.c.l.b16 %v2145
        %v3594 = vunpack.c.l.b16 %v2146
        %v3595 = vunpack.c.l.b16 %v2147
        %v3596 = vunpack.c.l.b16 %v2148
        %v3597 = vunpack.c.l.b16 %v2149
        %v3598 = vunpack.c.l.b16 %v2150
        %v3599 = vunpack.c.l.b16 %v2151
        %v3600 = vunpack.c.l.b16 %v2152
        %v3601 = vunpack.c.l.b16 %v2153
        %v3602 = vunpack.c.l.b16 %v2154
        %v3603 = vunpack.c.l.b16 %v2155
        %v3604 = vunpack.c.l.b16 %v2156
        %v3605 = vunpack.c.l.b16 %v2157
        %v3606 = vunpack.c.l.b16 %v2158
        %v3607 = vunpack.c.l.b16 %v2159
        %v3608 = vunpack.c.l.b16 %v2160
        %v3609 = vunpack.c.l.b16 %v2161
        %v3610 = vunpack.c.l.b16 %v2162
        %v3611 = vunpack.c.l.b16 %v2163
        %v3612 = vunpack.c.l.b16 %v2164
        %v3613 = vunpack.c.l.b16 %v2165
        %v3614 = vunpack.c.l.b16 %v2166
        %v3615 = vunpack.c.l.b16 %v2167
        %v3616 = vunpack.c.l.b16 %v2168
        %v3617 = vunpack.c.l.b16 %v2169
        %v3618 = vunpack.c.l.b16 %v2170
        %v3619 = vunpack.c.l.b16 %v2171
        %v3620 = vunpack.c.l.b16 %v2172
        %v3621 = vunpack.c.l.b16 %v2173
        %v3622 = vunpack.c.l.b16 %v2174
        %v3623 = vunpack.c.l.b16 %v2175
        %v3624 = vunpack.c.l.b16 %v2176
        %v3625 = vunpack.c.l.b16 %v2177
        %v3626 = vunpack.c.l.b16 %v2178
        %v3627 = vunpack.c.l.b16 %v2179
        %v3628 = vunpack.c.l.b16 %v2180
        %v3629 = vunpack.c.l.b16 %v2181
        %v3630 = vunpack.c.l.b16 %v2182
        %v3631 = vunpack.c.l.b16 %v2183
        %v3632 = vunpack.c.l.b16 %v2184
        %v3633 = vunpack.c.l.b16 %v2185
        %v3634 = vunpack.c.l.b16 %v2186
        %v3635 = vunpack.c.l.b16 %v2187
        %v3636 = vunpack.c.l.b16 %v2188
        %v3637 = vunpack.c.l.b16 %v2189
        %v3638 = vunpack.c.l.b16 %v2190
        %v3639 = vunpack.c.l.b16 %v2191
        %v3640 = vunpack.c.l.b16 %v2192
        %v3641 = vunpack.c.l.b16 %v2193
        %v3642 = vunpack.c.l.b16 %v2194
        %v3643 = vunpack.c.l.b16 %v2195
        %v3644 = vunpack.c.l.b16 %v2196
        %v3645 = vunpack.c.l.b16 %v2197
        %v3646 = vunpack.c.l.b16 %v2198
        %v3647 = vunpack.c.l.b16 %v2199
        %v3648 = vunpack.c.l.b16 %v2200
        %v3649 = vunpack.c.l.b16 %v2201
        %v3650 = vunpack.c.l.b16 %v2202
        %v3651 = vunpack.c.l.b16 %v2203
        %v3652 = vunpack.c.l.b16 %v2204
        %v3653 = vunpack.c.l.b16 %v2205
        %v3654 = vunpack.c.l.b16 %v2206
        %v3655 = vunpack.c.l.b16 %v2207
        %v3656 = vunpack.c.l.b16 %v2208
        %v3657 = vunpack.c.l.b16 %v2209
        %v3658 = vunpack.c.l.b16 %v2210
        %v3659 = vunpack.c.l.b16 %v2211
        %v3660 = vunpack.c.l.b16 %v2212
        %v3661 = vunpack.c.l.b16 %v2213
        %v3662 = vunpack.c.l.b16 %v2214
        %v3663 = vunpack.c.l.b16 %v2215
        %v3664 = vunpack.c.l.b16 %v2216
        %v3665 = vunpack.c.l.b16 %v2217
        %v3666 = vunpack.c.l.b16 %v2218
        %v3667 = vunpack.c.l.b16 %v2219
        %v3668 = vunpack.c.l.b16 %v2220
        %v3669 = vunpack.c.l.b16 %v2221
        %v3670 = vunpack.c.l.b16 %v2222
        %v3671 = vunpack.c.l.b16 %v2223
        %v3672 = vunpack.c.l.b16 %v2224
        %v3673 = vunpack.c.l.b16 %v2225
        %v3674 = vunpack.c.l.b16 %v2226
        %v3675 = vunpack.c.l.b16 %v2227
        %v3676 = vunpack.c.l.b16 %v2228
        %v3677 = vunpack.c.l.b16 %v2229
        %v3678 = vunpack.c.l.b16 %v2230
        %v3679 = vunpack.c.l.b16 %v2231
        %v3680 = vunpack.c.l.b16 %v2232
        %v3681 = vunpack.c.l.b16 %v2233
        %v3682 = vunpack.c.l.b16 %v2234
        %v3683 = vunpack.c.l.b16 %v2235
        %v3684 = vunpack.c.l.b16 %v2236
        %v3685 = vunpack.c.l.b16 %v2237
        %v3686 = vunpack.c.l.b16 %v2238
        %v3687 = vunpack.c.l.b16 %v2239
        %v3688 = vunpack.c.l.b16 %v2240
        %v3689 = vunpack.c.l.b16 %v2241
        %v3690 = vunpack.c.l.b16 %v2242
        %v3691 = vunpack.c.l.b16 %v2243
        %v3692 = vunpack.c.l.b16 %v2244
        %v3693 = vunpack.c.l.b16 %v2245
        %v3694 = vunpack.c.l.b16 %v2246
        %v3695 = vunpack.c.l.b16 %v2247
        %v3696 = vunpack.c.l.b16 %v2248
        %v3697 = vunpack.c.l.b16 %v2249
        %v3698 = vunpack.c.l.b16 %v2250
        %v3699 = vunpack.c.l.b16 %v2251
        %v3700 = vunpack.c.l.b16 %v2252
        %v3701 = vunpack.c.l.b16 %v2253
        %v3702 = vunpack.c.l.b16 %v2254
        %v3703 = vunpack.c.l.b16 %v2255
        %v3704 = vunpack.c.l.b16 %v2256
        %v3705 = vunpack.c.l.b16 %v2257
        %v3706 = vunpack.c.l.b16 %v2258
        %v3707 = vunpack.c.l.b16 %v2259
        %v3708 = vunpack.c.l.b16 %v2260
        %v3709 = vunpack.c.l.b16 %v2261
        %v3710 = vunpack.c.l.b16 %v2262
        %v3711 = vunpack.c.l.b16 %v2263
        %v3712 = vunpack.c.l.b16 %v2264
        %v3713 = vunpack.c.l.b16 %v2265
        %v3714 = vunpack.c.l.b16 %v2266
        %v3715 = vunpack.c.l.b16 %v2267
        %v3716 = vunpack.c.l.b16 %v2268
        %v3717 = vunpack.c.l.b16 %v2269
        %v3718 = vunpack.c.l.b16 %v2270
        %v3719 = vunpack.c.l.b16 %v2271
        %v3720 = vunpack.c.l.b16 %v2272
        %v3721 = vunpack.c.l.b16 %v2273
        %v3722 = vunpack.c.l.b16 %v2274
        %v3723 = vunpack.c.l.b16 %v2275
        %v3724 = vunpack.c.l.b16 %v2276
        %v3725 = vunpack.c.l.b16 %v2277
        %v3726 = vunpack.c.l.b16 %v2278
        %v3727 = vunpack.c.l.b16 %v2279
        %v3728 = vunpack.c.l.b16 %v2280
        %v3729 = vunpack.c.l.b16 %v2281
        %v3730 = vunpack.c.l.b16 %v2282
        %v3731 = vunpack.c.l.b16 %v2283
        %v3732 = vunpack.c.l.b16 %v2284
        %v3733 = vunpack.c.l.b16 %v2285
        %v3734 = vunpack.c.l.b16 %v2286
        %v3735 = vunpack.c.l.b16 %v2287
        %v3736 = vunpack.c.l.b16 %v2288
        %v3737 = vunpack.c.l.b16 %v2289
        %v3738 = vunpack.c.l.b16 %v2290
        %v3739 = vunpack.c.l.b16 %v2291
        %v3740 = vunpack.c.l.b16 %v2292
        %v3741 = vunpack.c.l.b16 %v2293
        %v3742 = vunpack.c.l.b16 %v2294
        %v3743 = vunpack.c.l.b16 %v2295
        %v3744 = vunpack.c.l.b16 %v2296
        %v3745 = vunpack.c.l.b16 %v2297
        %v3746 = vunpack.c.l.b16 %v2298
        %v3747 = vunpack.c.l.b16 %v2299
        %v3748 = vunpack.c.l.b16 %v2300
        %v3749 = vunpack.c.l.b16 %v2301
        %v3750 = vunpack.c.l.b16 %v2302
        %v3751 = vunpack.c.l.b16 %v2303
        %v3752 = vunpack.c.l.b16 %v2304
        %v3753 = vunpack.c.l.b16 %v2305
        %v3754 = vunpack.c.l.b16 %v2306
        %v3755 = vunpack.c.l.b16 %v2307
        %v3756 = vunpack.c.l.b16 %v2308
        %v3757 = vunpack.c.l.b16 %v2309
        %v3758 = vunpack.c.l.b16 %v2310
        %v3759 = vunpack.c.l.b16 %v2311
        %v3760 = vunpack.c.l.b16 %v2312
        %v3761 = vunpack.c.l.b16 %v2313
        %v3762 = vunpack.c.l.b16 %v2314
        %v3763 = vunpack.c.l.b16 %v2315
        %v3764 = vunpack.c.l.b16 %v2316
        %v3765 = vunpack.c.l.b16 %v2317
        %v3766 = vunpack.c.l.b16 %v2318
        %v3767 = vunpack.c.l.b16 %v2319
        %v3768 = vunpack.c.l.b16 %v2320
        %v3769 = vunpack.c.l.b16 %v2321
        %v3770 = vunpack.c.l.b16 %v2322
        %v3771 = vunpack.c.l.b16 %v2323
        %v3772 = vunpack.c.l.b16 %v2324
        %v3773 = vunpack.c.l.b16 %v2325
        %v3774 = vunpack.c.l.b16 %v2326
        %v3775 = vunpack.c.l.b16 %v2327
        %v3776 = vunpack.c.l.b16 %v2328
        %v3777 = vunpack.c.l.b16 %v2329
        %v3778 = vunpack.c.l.b16 %v2330
        %v3779 = vunpack.c.l.b16 %v2331
        %v3780 = vunpack.c.l.b16 %v2332
        %v3781 = vunpack.c.l.b16 %v2333
        %v3782 = vunpack.c.l.b16 %v2334
        %v3783 = vunpack.c.l.b16 %v2335
        %v3784 = vunpack.c.l.b16 %v2336
        %v3785 = vunpack.c.l.b16 %v2337
        %v3786 = vunpack.c.l.b16 %v2338
        %v3787 = vunpack.c.l.b16 %v2339
        %v3788 = vunpack.c.l.b16 %v2340
        %v3789 = vunpack.c.l.b16 %v2341
        %v3790 = vunpack.c.l.b16 %v2342
        %v3791 = vunpack.c.l.b16 %v2343
        %v3792 = vunpack.c.l.b16 %v2344
        %v3793 = vunpack.c.l.b16 %v2345
        %v3794 = vunpack.c.l.b16 %v2346
        %v3795 = vunpack.c.l.b16 %v2347
        %v3796 = vunpack.c.l.b16 %v2348
        %v3797 = vunpack.c.l.b16 %v2349
        %v3798 = vunpack.c.l.b16 %v2350
        %v3799 = vunpack.c.l.b16 %v2351
        %v3800 = vunpack.c.l.b16 %v2352
        %v3801 = vunpack.c.l.b16 %v2353
        %v3802 = vunpack.c.l.b16 %v2354
        %v3803 = vunpack.c.l.b16 %v2355
        %v3804 = vunpack.c.l.b16 %v2356
        %v3805 = vunpack.c.l.b16 %v2357
        %v3806 = vunpack.c.l.b16 %v2358
        %v3807 = vunpack.c.l.b16 %v2359
        %v3808 = vunpack.c.l.b16 %v2360
        %v3809 = vunpack.c.l.b16 %v2361
        %v3810 = vunpack.c.l.b16 %v2362
        %v3811 = vunpack.c.l.b16 %v2363
        %v3812 = vunpack.c.l.b16 %v2364
        %v3813 = vunpack.c.l.b16 %v2365
        %v3814 = vunpack.c.l.b16 %v2366
        %v3815 = vunpack.c.l.b16 %v2367
        %v3816 = vunpack.c.l.b16 %v2368
        %v3817 = vunpack.c.l.b16 %v2369
        %v3818 = vunpack.c.l.b16 %v2370
        %v3819 = vunpack.c.l.b16 %v2371
        %v3820 = vunpack.c.l.b16 %v2372
        %v3821 = vunpack.c.l.b16 %v2373
        %v3822 = vunpack.c.l.b16 %v2374
        %v3823 = vunpack.c.l.b16 %v2375
        %v3824 = vunpack.c.l.b16 %v2376
        %v3825 = vunpack.c.l.b16 %v2377
        %v3826 = vunpack.c.l.b16 %v2378
        %v3827 = vunpack.c.l.b16 %v2379
        %v3828 = vunpack.c.l.b16 %v2380
        %v3829 = vunpack.c.l.b16 %v2381
        %v3830 = vunpack.c.l.b16 %v2382
        %v3831 = vunpack.c.l.b16 %v2383
        %v3832 = vunpack.c.l.b16 %v2384
        %v3833 = vunpack.c.l.b16 %v2385
        %v3834 = vunpack.c.l.b16 %v2386
        %v3835 = vunpack.c.l.b16 %v2387
        %v3836 = vunpack.c.l.b16 %v2388
        %v3837 = vunpack.c.l.b16 %v2389
        %v3838 = vunpack.c.l.b16 %v2390
        %v3839 = vunpack.c.l.b16 %v2391
        %v3840 = vunpack.c.l.b16 %v2392
        %v3841 = vunpack.c.l.b16 %v2393
        %v3842 = vunpack.c.l.b16 %v2394
        %v3843 = vunpack.c.l.b16 %v2395
        %v3844 = vunpack.c.l.b16 %v2396
        %v3845 = vunpack.c.l.b16 %v2397
        %v3846 = vunpack.c.l.b16 %v2398
        %v3847 = vunpack.c.l.b16 %v2399
        %v3848 = vunpack.c.l.b16 %v2400
        %v3849 = vunpack.c.l.b16 %v2401
        %v3850 = vunpack.c.l.b16 %v2402
        %v3851 = vunpack.c.l.b16 %v2403
        %v3852 = vunpack.c.l.b16 %v2404
        %v3853 = vunpack.c.l.b16 %v2405
        %v3854 = vunpack.c.l.b16 %v2406
        %v3855 = vunpack.c.l.b16 %v2407
        %v3856 = vunpack.c.l.b16 %v2408
        %v3857 = vunpack.c.l.b16 %v2409
        %v3858 = vunpack.c.l.b16 %v2410
        %v3859 = vunpack.c.l.b16 %v2411
        %v3860 = vunpack.c.l.b16 %v2412
        %v3861 = vunpack.c.l.b16 %v2413
        %v3862 = vunpack.c.l.b16 %v2414
        %v3863 = vunpack.c.l.b16 %v2415
        %v3864 = vunpack.c.l.b16 %v2416
        %v3865 = vunpack.c.l.b16 %v2417
        %v3866 = vunpack.c.l.b16 %v2418
        %v3867 = vunpack.c.l.b16 %v2419
        %v3868 = vunpack.c.l.b16 %v2420
        %v3869 = vunpack.c.l.b16 %v2421
        %v3870 = vunpack.c.l.b16 %v2422
        %v3871 = vunpack.c.l.b16 %v2423
        %v3872 = vunpack.c.l.b16 %v2424
        %v3873 = vunpack.c.l.b16 %v2425
        %v3874 = vunpack.c.l.b16 %v2426
        %v3875 = vunpack.c.l.b16 %v2427
        %v3876 = vunpack.c.l.b16 %v2428
        %v3877 = vunpack.c.l.b16 %v2429
        %v3878 = vunpack.c.l.b16 %v2430
        %v3879 = vunpack.c.l.b16 %v2431
        %v3880 = vunpack.c.l.b16 %v2432
        %v3881 = vunpack.c.l.b16 %v2433
        %v3882 = vunpack.c.l.b16 %v2434
        %v3883 = vunpack.c.l.b16 %v2435
        %v3884 = vunpack.c.l.b16 %v2436
        %v3885 = vunpack.c.l.b16 %v2437
        %v3886 = vunpack.c.l.b16 %v2438
        %v3887 = vunpack.c.l.b16 %v2439
        %v3888 = vunpack.c.l.b16 %v2440
        %v3889 = vunpack.c.l.b16 %v2441
        %v3890 = vunpack.c.l.b16 %v2442
        %v3891 = vunpack.c.l.b16 %v2443
        %v3892 = vunpack.c.l.b16 %v2444
        %v3893 = vunpack.c.l.b16 %v2445
        %v3894 = vunpack.c.l.b16 %v2446
        %v3895 = vunpack.c.l.b16 %v2447
        %v3896 = vunpack.c.l.b16 %v2448
        %v3897 = vunpack.c.l.b16 %v2449
        %v3898 = vunpack.c.l.b16 %v2450
        %v3899 = vunpack.c.l.b16 %v2451
        %v3900 = vunpack.c.l.b16 %v2452
        %v3901 = vunpack.c.l.b16 %v2453
        %v3902 = vunpack.c.l.b16 %v2454
        %v3903 = vunpack.c.l.b16 %v2455
        %v3904 = vunpack.c.l.b16 %v2456
        %v3905 = vunpack.c.l.b16 %v2457
        %v3906 = vunpack.c.l.b16 %v2458
        %v3907 = vunpack.c.l.b16 %v2459
        %v3908 = vunpack.c.l.b16 %v2460
        %v3909 = vunpack.c.l.b16 %v2461
        %v3910 = vunpack.c.l.b16 %v2462
        %v3911 = vunpack.c.l.b16 %v2463
        %v3912 = vunpack.c.l.b16 %v2464
        %v3913 = vunpack.c.l.b16 %v2465
        %v3914 = vunpack.c.l.b16 %v2466
        %v3915 = vunpack.c.l.b16 %v2467
        %v3916 = vunpack.c.l.b16 %v2468
        %v3917 = vunpack.c.l.b16 %v2469
        %v3918 = vunpack.c.l.b16 %v2470
        %v3919 = vunpack.c.l.b16 %v2471
        %v3920 = vunpack.c.l.b16 %v2472
        %v3921 = vunpack.c.l.b16 %v2473
        %v3922 = vunpack.c.l.b16 %v2474
        %v3923 = vunpack.c.l.b16 %v2475
        %v3924 = vunpack.c.l.b16 %v2476
        %v3925 = vunpack.c.l.b16 %v2477
        %v3926 = vunpack.c.l.b16 %v2478
        %v3927 = vunpack.c.l.b16 %v2479
        %v3928 = vunpack.c.l.b16 %v2480
        %v3929 = vunpack.c.l.b16 %v2481
        %v3930 = vunpack.c.l.b16 %v2482
        %v3931 = vunpack.c.l.b16 %v2483
        %v3932 = vunpack.c.l.b16 %v2484
        %v3933 = vunpack.c.l.b16 %v2485
        %v3934 = vunpack.c.l.b16 %v2486
        %v3935 = vunpack.c.l.b16 %v2487
        %v3936 = vunpack.c.l.b16 %v2488
        %v3937 = vunpack.c.l.b16 %v2489
        %v3938 = vunpack.c.l.b16 %v2490
        %v3939 = vunpack.c.l.b16 %v2491
        %v3940 = vunpack.c.l.b16 %v2492
        %v3941 = vunpack.c.l.b16 %v2493
        %v3942 = vunpack.c.l.b16 %v2494
        %v3943 = vunpack.c.l.b16 %v2495
        %v3944 = vunpack.c.l.b16 %v2496
        %v3945 = vunpack.c.l.b16 %v2497
        %v3946 = vunpack.c.l.b16 %v2498
        %v3947 = vunpack.c.l.b16 %v2499
        %v3948 = vunpack.c.l.b16 %v2500
        %v3949 = vunpack.c.l.b16 %v2501
        %v3950 = vunpack.c.l.b16 %v2502
        %v3951 = vunpack.c.l.b16 %v2503
        %v3952 = vunpack.c.l.b16 %v2504
        %v3953 = vunpack.c.l.b16 %v2505
        %v3954 = vunpack.c.l.b16 %v2506
        %v3955 = vunpack.c.l.b16 %v2507
        %v3956 = vunpack.c.l.b16 %v2508
        %v3957 = vunpack.c.l.b16 %v2509
        %v3958 = vunpack.c.l.b16 %v2510
        %v3959 = vunpack.c.l.b16 %v2511
        %v3960 = vunpack.c.l.b16 %v2512
        %v3961 = vunpack.c.l.b16 %v2513
        %v3962 = vunpack.c.l.b16 %v2514
        %v3963 = vunpack.c.l.b16 %v2515
        %v3964 = vunpack.c.l.b16 %v2516
        %v3965 = vunpack.c.l.b16 %v2517
        %v3966 = vunpack.c.l.b16 %v2518
        %v3967 = vunpack.c.l.b16 %v2519
        %v3968 = vunpack.c.l.b16 %v2520
        %v3969 = vunpack.c.l.b16 %v2521
        %v3970 = vunpack.c.l.b16 %v2522
        %v3971 = vunpack.c.l.b16 %v2523
        %v3972 = vunpack.c.l.b16 %v2524
        %v3973 = vunpack.c.l.b16 %v2525
        %v3974 = vunpack.c.l.b16 %v2526
        %v3975 = vunpack.c.l.b16 %v2527
        %v3976 = vunpack.c.l.b16 %v2528
        %v3977 = vunpack.c.l.b16 %v2529
        %v3978 = vunpack.c.l.b16 %v2530
        %v3979 = vunpack.c.l.b16 %v2531
        %v3980 = vunpack.c.l.b16 %v2532
        %v3981 = vunpack.c.l.b16 %v2533
        %v3982 = vunpack.c.l.b16 %v2534
        %v3983 = vunpack.c.l.b16 %v2535
        %v3984 = vunpack.c.l.b16 %v2536
        %v3985 = vunpack.c.l.b16 %v2537
        %v3986 = vunpack.c.l.b16 %v2538
        %v3987 = vunpack.c.l.b16 %v2539
        %v3988 = vunpack.c.l.b16 %v2540
        %v3989 = vunpack.c.l.b16 %v2541
        %v3990 = vunpack.c.l.b16 %v2542
        %v3991 = vunpack.c.l.b16 %v2543
        %v3992 = vunpack.c.l.b16 %v2544
        %v3993 = vunpack.c.l.b16 %v2545
        %v3994 = vunpack.c.l.b16 %v2546
        %v3995 = vunpack.c.l.b16 %v2547
        %v3996 = vunpack.c.l.b16 %v2548
        %v3997 = vunpack.c.l.b16 %v2549
        %v3998 = vunpack.c.l.b16 %v2550
        %v3999 = vunpack.c.l.b16 %v2551
        %v4000 = vunpack.c.l.b16 %v2552
        %v4001 = vunpack.c.l.b16 %v2553
        %v4002 = vunpack.c.l.b16 %v2554
        %v4003 = vunpack.c.l.b16 %v2555
        %v4004 = vunpack.c.l.b16 %v2556
        %v4005 = vunpack.c.l.b16 %v2557
        %v4006 = vunpack.c.l.b16 %v2558
        %v4007 = vunpack.c.l.b16 %v2559
        %v4008 = vunpack.c.l.b16 %v2560
        %v4009 = vunpack.c.l.b16 %v2561
        %v4010 = vunpack.c.l.b16 %v2562
        %v4011 = vunpack.c.l.b16 %v2563
        %v4012 = vunpack.c.l.b16 %v2564
        %v4013 = vunpack.c.l.b16 %v2565
        %v4014 = vunpack.c.l.b16 %v2566
        %v4015 = vunpack.c.l.b16 %v2567
        %v4016 = vunpack.c.l.b16 %v2568
        %v4017 = vunpack.c.l.b16 %v2569
        %v4018 = vunpack.c.l.b16 %v2570
        %v4019 = vunpack.c.l.b16 %v2571
        %v4020 = vunpack.c.l.b16 %v2572
        %v4021 = vunpack.c.l.b16 %v2573
        %v4022 = vunpack.c.l.b16 %v2574
        %v4023 = vunpack.c.l.b16 %v2575
        %v4024 = vunpack.c.l.b16 %v2576
        %v4025 = vunpack.c.l.b16 %v2577
        %v4026 = vunpack.c.l.b16 %v2578
        %v4027 = vunpack.c.l.b16 %v2579
        %v4028 = vunpack.c.l.b16 %v2580
        %v4029 = vunpack.c.l.b16 %v2581
        %v4030 = vunpack.c.l.b16 %v2582
        %v4031 = vunpack.c.l.b16 %v2583
        %v4032 = vunpack.c.l.b16 %v2584
        %v4033 = vunpack.c.l.b16 %v2585
        %v4034 = vunpack.c.l.b16 %v2586
        %v4035 = vpack.c.b16 %v3316, %v3315
        %v4036 = vpack.c.b16 %v3318, %v3317
        %v4037 = vpack.c.b16 %v3320, %v3319
        %v4038 = vpack.c.b16 %v3322, %v3321
        %v4039 = vpack.c.b16 %v3324, %v3323
        %v4040 = vpack.c.b16 %v3326, %v3325
        %v4041 = vpack.c.b16 %v3328, %v3327
        %v4042 = vpack.c.b16 %v3330, %v3329
        %v4043 = vpack.c.b16 %v3332, %v3331
        %v4044 = vpack.c.b16 %v3334, %v3333
        %v4045 = vpack.c.b16 %v3336, %v3335
        %v4046 = vpack.c.b16 %v3338, %v3337
        %v4047 = vpack.c.b16 %v3340, %v3339
        %v4048 = vpack.c.b16 %v3342, %v3341
        %v4049 = vpack.c.b16 %v3344, %v3343
        %v4050 = vpack.c.b16 %v3346, %v3345
        %v4051 = vpack.c.b16 %v3348, %v3347
        %v4052 = vpack.c.b16 %v3350, %v3349
        %v4053 = vpack.c.b16 %v3352, %v3351
        %v4054 = vpack.c.b16 %v3354, %v3353
        %v4055 = vpack.c.b16 %v3356, %v3355
        %v4056 = vpack.c.b16 %v3358, %v3357
        %v4057 = vpack.c.b16 %v3360, %v3359
        %v4058 = vpack.c.b16 %v3362, %v3361
        %v4059 = vpack.c.b16 %v3364, %v3363
        %v4060 = vpack.c.b16 %v3366, %v3365
        %v4061 = vpack.c.b16 %v3368, %v3367
        %v4062 = vpack.c.b16 %v3370, %v3369
        %v4063 = vpack.c.b16 %v3372, %v3371
        %v4064 = vpack.c.b16 %v3374, %v3373
        %v4065 = vpack.c.b16 %v3376, %v3375
        %v4066 = vpack.c.b16 %v3378, %v3377
        %v4067 = vpack.c.b16 %v3380, %v3379
        %v4068 = vpack.c.b16 %v3382, %v3381
        %v4069 = vpack.c.b16 %v3384, %v3383
        %v4070 = vpack.c.b16 %v3386, %v3385
        %v4071 = vpack.c.b16 %v3388, %v3387
        %v4072 = vpack.c.b16 %v3390, %v3389
        %v4073 = vpack.c.b16 %v3392, %v3391
        %v4074 = vpack.c.b16 %v3394, %v3393
        %v4075 = vpack.c.b16 %v3396, %v3395
        %v4076 = vpack.c.b16 %v3398, %v3397
        %v4077 = vpack.c.b16 %v3400, %v3399
        %v4078 = vpack.c.b16 %v3402, %v3401
        %v4079 = vpack.c.b16 %v3404, %v3403
        %v4080 = vpack.c.b16 %v3406, %v3405
        %v4081 = vpack.c.b16 %v3408, %v3407
        %v4082 = vpack.c.b16 %v3410, %v3409
        %v4083 = vpack.c.b16 %v3412, %v3411
        %v4084 = vpack.c.b16 %v3414, %v3413
        %v4085 = vpack.c.b16 %v3416, %v3415
        %v4086 = vpack.c.b16 %v3418, %v3417
        %v4087 = vpack.c.b16 %v3420, %v3419
        %v4088 = vpack.c.b16 %v3422, %v3421
        %v4089 = vpack.c.b16 %v3424, %v3423
        %v4090 = vpack.c.b16 %v3426, %v3425
        %v4091 = vpack.c.b16 %v3428, %v3427
        %v4092 = vpack.c.b16 %v3430, %v3429
        %v4093 = vpack.c.b16 %v3432, %v3431
        %v4094 = vpack.c.b16 %v3434, %v3433
        %v4095 = vpack.c.b16 %v3436, %v3435
        %v4096 = vpack.c.b16 %v3438, %v3437
        %v4097 = vpack.c.b16 %v3440, %v3439
        %v4098 = vpack.c.b16 %v3442, %v3441
        %v4099 = vpack.c.b16 %v3444, %v3443
        %v4100 = vpack.c.b16 %v3446, %v3445
        %v4101 = vpack.c.b16 %v3448, %v3447
        %v4102 = vpack.c.b16 %v3450, %v3449
        %v4103 = vpack.c.b16 %v3452, %v3451
        %v4104 = vpack.c.b16 %v3454, %v3453
        %v4105 = vpack.c.b16 %v3456, %v3455
        %v4106 = vpack.c.b16 %v3458, %v3457
        %v4107 = vpack.c.b16 %v3460, %v3459
        %v4108 = vpack.c.b16 %v3462, %v3461
        %v4109 = vpack.c.b16 %v3464, %v3463
        %v4110 = vpack.c.b16 %v3466, %v3465
        %v4111 = vpack.c.b16 %v3468, %v3467
        %v4112 = vpack.c.b16 %v3470, %v3469
        %v4113 = vpack.c.b16 %v3472, %v3471
        %v4114 = vpack.c.b16 %v3474, %v3473
        %v4115 = vpack.c.b16 %v3476, %v3475
        %v4116 = vpack.c.b16 %v3478, %v3477
        %v4117 = vpack.c.b16 %v3480, %v3479
        %v4118 = vpack.c.b16 %v3482, %v3481
        %v4119 = vpack.c.b16 %v3484, %v3483
        %v4120 = vpack.c.b16 %v3486, %v3485
        %v4121 = vpack.c.b16 %v3488, %v3487
        %v4122 = vpack.c.b16 %v3490, %v3489
        %v4123 = vpack.c.b16 %v3492, %v3491
        %v4124 = vpack.c.b16 %v3494, %v3493
        %v4125 = vpack.c.b16 %v3496, %v3495
        %v4126 = vpack.c.b16 %v3498, %v3497
        %v4127 = vpack.c.b16 %v3500, %v3499
        %v4128 = vpack.c.b16 %v3502, %v3501
        %v4129 = vpack.c.b16 %v3504, %v3503
        %v4130 = vpack.c.b16 %v3506, %v3505
        %v4131 = vpack.c.b16 %v3508, %v3507
        %v4132 = vpack.c.b16 %v3510, %v3509
        %v4133 = vpack.c.b16 %v3512, %v3511
        %v4134 = vpack.c.b16 %v3514, %v3513
        %v4135 = vpack.c.b16 %v3516, %v3515
        %v4136 = vpack.c.b16 %v3518, %v3517
        %v4137 = vpack.c.b16 %v3520, %v3519
        %v4138 = vpack.c.b16 %v3522, %v3521
        %v4139 = vpack.c.b16 %v3524, %v3523
        %v4140 = vpack.c.b16 %v3526, %v3525
        %v4141 = vpack.c.b16 %v3528, %v3527
        %v4142 = vpack.c.b16 %v3530, %v3529
        %v4143 = vpack.c.b16 %v3532, %v3531
        %v4144 = vpack.c.b16 %v3534, %v3533
        %v4145 = vpack.c.b16 %v3536, %v3535
        %v4146 = vpack.c.b16 %v3538, %v3537
        %v4147 = vpack.c.b16 %v3540, %v3539
        %v4148 = vpack.c.b16 %v3542, %v3541
        %v4149 = vpack.c.b16 %v3544, %v3543
        %v4150 = vpack.c.b16 %v3546, %v3545
        %v4151 = vpack.c.b16 %v3548, %v3547
        %v4152 = vpack.c.b16 %v3550, %v3549
        %v4153 = vpack.c.b16 %v3552, %v3551
        %v4154 = vpack.c.b16 %v3554, %v3553
        %v4155 = vpack.c.b16 %v3556, %v3555
        %v4156 = vpack.c.b16 %v3558, %v3557
        %v4157 = vpack.c.b16 %v3560, %v3559
        %v4158 = vpack.c.b16 %v3562, %v3561
        %v4159 = vpack.c.b16 %v3564, %v3563
        %v4160 = vpack.c.b16 %v3566, %v3565
        %v4161 = vpack.c.b16 %v3568, %v3567
        %v4162 = vpack.c.b16 %v3570, %v3569
        %v4163 = vpack.c.b16 %v3572, %v3571
        %v4164 = vpack.c.b16 %v3574, %v3573
        %v4165 = vpack.c.b16 %v3576, %v3575
        %v4166 = vpack.c.b16 %v3578, %v3577
        %v4167 = vpack.c.b16 %v3580, %v3579
        %v4168 = vpack.c.b16 %v3582, %v3581
        %v4169 = vpack.c.b16 %v3584, %v3583
        %v4170 = vpack.c.b16 %v3586, %v3585
        %v4171 = vpack.c.b16 %v3588, %v3587
        %v4172 = vpack.c.b16 %v3590, %v3589
        %v4173 = vpack.c.b16 %v3592, %v3591
        %v4174 = vpack.c.b16 %v3594, %v3593
        %v4175 = vpack.c.b16 %v3596, %v3595
        %v4176 = vpack.c.b16 %v3598, %v3597
        %v4177 = vpack.c.b16 %v3600, %v3599
        %v4178 = vpack.c.b16 %v3602, %v3601
        %v4179 = vpack.c.b16 %v3604, %v3603
        %v4180 = vpack.c.b16 %v3606, %v3605
        %v4181 = vpack.c.b16 %v3608, %v3607
        %v4182 = vpack.c.b16 %v3610, %v3609
        %v4183 = vpack.c.b16 %v3612, %v3611
        %v4184 = vpack.c.b16 %v3614, %v3613
        %v4185 = vpack.c.b16 %v3616, %v3615
        %v4186 = vpack.c.b16 %v3618, %v3617
        %v4187 = vpack.c.b16 %v3620, %v3619
        %v4188 = vpack.c.b16 %v3622, %v3621
        %v4189 = vpack.c.b16 %v3624, %v3623
        %v4190 = vpack.c.b16 %v3626, %v3625
        %v4191 = vpack.c.b16 %v3628, %v3627
        %v4192 = vpack.c.b16 %v3630, %v3629
        %v4193 = vpack.c.b16 %v3632, %v3631
        %v4194 = vpack.c.b16 %v3634, %v3633
        %v4195 = vpack.c.b16 %v3636, %v3635
        %v4196 = vpack.c.b16 %v3638, %v3637
        %v4197 = vpack.c.b16 %v3640, %v3639
        %v4198 = vpack.c.b16 %v3642, %v3641
        %v4199 = vpack.c.b16 %v3644, %v3643
        %v4200 = vpack.c.b16 %v3646, %v3645
        %v4201 = vpack.c.b16 %v3648, %v3647
        %v4202 = vpack.c.b16 %v3650, %v3649
        %v4203 = vpack.c.b16 %v3652, %v3651
        %v4204 = vpack.c.b16 %v3654, %v3653
        %v4205 = vpack.c.b16 %v3656, %v3655
        %v4206 = vpack.c.b16 %v3658, %v3657
        %v4207 = vpack.c.b16 %v3660, %v3659
        %v4208 = vpack.c.b16 %v3662, %v3661
        %v4209 = vpack.c.b16 %v3664, %v3663
        %v4210 = vpack.c.b16 %v3666, %v3665
        %v4211 = vpack.c.b16 %v3668, %v3667
        %v4212 = vpack.c.b16 %v3670, %v3669
        %v4213 = vpack.c.b16 %v3672, %v3671
        %v4214 = vpack.c.b16 %v3674, %v3673
        %v4215 = vpack.c.b16 %v3676, %v3675
        %v4216 = vpack.c.b16 %v3678, %v3677
        %v4217 = vpack.c.b16 %v3680, %v3679
        %v4218 = vpack.c.b16 %v3682, %v3681
        %v4219 = vpack.c.b16 %v3684, %v3683
        %v4220 = vpack.c.b16 %v3686, %v3685
        %v4221 = vpack.c.b16 %v3688, %v3687
        %v4222 = vpack.c.b16 %v3690, %v3689
        %v4223 = vpack.c.b16 %v3692, %v3691
        %v4224 = vpack.c.b16 %v3694, %v3693
        %v4225 = vpack.c.b16 %v3696, %v3695
        %v4226 = vpack.c.b16 %v3698, %v3697
        %v4227 = vpack.c.b16 %v3700, %v3699
        %v4228 = vpack.c.b16 %v3702, %v3701
        %v4229 = vpack.c.b16 %v3704, %v3703
        %v4230 = vpack.c.b16 %v3706, %v3705
        %v4231 = vpack.c.b16 %v3708, %v3707
        %v4232 = vpack.c.b16 %v3710, %v3709
        %v4233 = vpack.c.b16 %v3712, %v3711
        %v4234 = vpack.c.b16 %v3714, %v3713
        %v4235 = vpack.c.b16 %v3716, %v3715
        %v4236 = vpack.c.b16 %v3718, %v3717
        %v4237 = vpack.c.b16 %v3720, %v3719
        %v4238 = vpack.c.b16 %v3722, %v3721
        %v4239 = vpack.c.b16 %v3724, %v3723
        %v4240 = vpack.c.b16 %v3726, %v3725
        %v4241 = vpack.c.b16 %v3728, %v3727
        %v4242 = vpack.c.b16 %v3730, %v3729
        %v4243 = vpack.c.b16 %v3732, %v3731
        %v4244 = vpack.c.b16 %v3734, %v3733
        %v4245 = vpack.c.b16 %v3736, %v3735
        %v4246 = vpack.c.b16 %v3738, %v3737
        %v4247 = vpack.c.b16 %v3740, %v3739
        %v4248 = vpack.c.b16 %v3742, %v3741
        %v4249 = vpack.c.b16 %v3744, %v3743
        %v4250 = vpack.c.b16 %v3746, %v3745
        %v4251 = vpack.c.b16 %v3748, %v3747
        %v4252 = vpack.c.b16 %v3750, %v3749
        %v4253 = vpack.c.b16 %v3752, %v3751
        %v4254 = vpack.c.b16 %v3754, %v3753
        %v4255 = vpack.c.b16 %v3756, %v3755
        %v4256 = vpack.c.b16 %v3758, %v3757
        %v4257 = vpack.c.b16 %v3760, %v3759
        %v4258 = vpack.c.b16 %v3762, %v3761
        %v4259 = vpack.c.b16 %v3764, %v3763
        %v4260 = vpack.c.b16 %v3766, %v3765
        %v4261 = vpack.c.b16 %v3768, %v3767
        %v4262 = vpack.c.b16 %v3770, %v3769
        %v4263 = vpack.c.b16 %v3772, %v3771
        %v4264 = vpack.c.b16 %v3774, %v3773
        %v4265 = vpack.c.b16 %v3776, %v3775
        %v4266 = vpack.c.b16 %v3778, %v3777
        %v4267 = vpack.c.b16 %v3780, %v3779
        %v4268 = vpack.c.b16 %v3782, %v3781
        %v4269 = vpack.c.b16 %v3784, %v3783
        %v4270 = vpack.c.b16 %v3786, %v3785
        %v4271 = vpack.c.b16 %v3788, %v3787
        %v4272 = vpack.c.b16 %v3790, %v3789
        %v4273 = vpack.c.b16 %v3792, %v3791
        %v4274 = vpack.c.b16 %v3794, %v3793
        %v4275 = vpack.c.b16 %v3796, %v3795
        %v4276 = vpack.c.b16 %v3798, %v3797
        %v4277 = vpack.c.b16 %v3800, %v3799
        %v4278 = vpack.c.b16 %v3802, %v3801
        %v4279 = vpack.c.b16 %v3804, %v3803
        %v4280 = vpack.c.b16 %v3806, %v3805
        %v4281 = vpack.c.b16 %v3808, %v3807
        %v4282 = vpack.c.b16 %v3810, %v3809
        %v4283 = vpack.c.b16 %v3812, %v3811
        %v4284 = vpack.c.b16 %v3814, %v3813
        %v4285 = vpack.c.b16 %v3816, %v3815
        %v4286 = vpack.c.b16 %v3818, %v3817
        %v4287 = vpack.c.b16 %v3820, %v3819
        %v4288 = vpack.c.b16 %v3822, %v3821
        %v4289 = vpack.c.b16 %v3824, %v3823
        %v4290 = vpack.c.b16 %v3826, %v3825
        %v4291 = vpack.c.b16 %v3828, %v3827
        %v4292 = vpack.c.b16 %v3830, %v3829
        %v4293 = vpack.c.b16 %v3832, %v3831
        %v4294 = vpack.c.b16 %v3834, %v3833
        %v4295 = vpack.c.b16 %v3836, %v3835
        %v4296 = vpack.c.b16 %v3838, %v3837
        %v4297 = vpack.c.b16 %v3840, %v3839
        %v4298 = vpack.c.b16 %v3842, %v3841
        %v4299 = vpack.c.b16 %v3844, %v3843
        %v4300 = vpack.c.b16 %v3846, %v3845
        %v4301 = vpack.c.b16 %v3848, %v3847
        %v4302 = vpack.c.b16 %v3850, %v3849
        %v4303 = vpack.c.b16 %v3852, %v3851
        %v4304 = vpack.c.b16 %v3854, %v3853
        %v4305 = vpack.c.b16 %v3856, %v3855
        %v4306 = vpack.c.b16 %v3858, %v3857
        %v4307 = vpack.c.b16 %v3860, %v3859
        %v4308 = vpack.c.b16 %v3862, %v3861
        %v4309 = vpack.c.b16 %v3864, %v3863
        %v4310 = vpack.c.b16 %v3866, %v3865
        %v4311 = vpack.c.b16 %v3868, %v3867
        %v4312 = vpack.c.b16 %v3870, %v3869
        %v4313 = vpack.c.b16 %v3872, %v3871
        %v4314 = vpack.c.b16 %v3874, %v3873
        %v4315 = vpack.c.b16 %v3876, %v3875
        %v4316 = vpack.c.b16 %v3878, %v3877
        %v4317 = vpack.c.b16 %v3880, %v3879
        %v4318 = vpack.c.b16 %v3882, %v3881
        %v4319 = vpack.c.b16 %v3884, %v3883
        %v4320 = vpack.c.b16 %v3886, %v3885
        %v4321 = vpack.c.b16 %v3888, %v3887
        %v4322 = vpack.c.b16 %v3890, %v3889
        %v4323 = vpack.c.b16 %v3892, %v3891
        %v4324 = vpack.c.b16 %v3894, %v3893
        %v4325 = vpack.c.b16 %v3896, %v3895
        %v4326 = vpack.c.b16 %v3898, %v3897
        %v4327 = vpack.c.b16 %v3900, %v3899
        %v4328 = vpack.c.b16 %v3902, %v3901
        %v4329 = vpack.c.b16 %v3904, %v3903
        %v4330 = vpack.c.b16 %v3906, %v3905
        %v4331 = vpack.c.b16 %v3908, %v3907
        %v4332 = vpack.c.b16 %v3910, %v3909
        %v4333 = vpack.c.b16 %v3912, %v3911
        %v4334 = vpack.c.b16 %v3914, %v3913
        %v4335 = vpack.c.b16 %v3916, %v3915
        %v4336 = vpack.c.b16 %v3918, %v3917
        %v4337 = vpack.c.b16 %v3920, %v3919
        %v4338 = vpack.c.b16 %v3922, %v3921
        %v4339 = vpack.c.b16 %v3924, %v3923
        %v4340 = vpack.c.b16 %v3926, %v3925
        %v4341 = vpack.c.b16 %v3928, %v3927
        %v4342 = vpack.c.b16 %v3930, %v3929
        %v4343 = vpack.c.b16 %v3932, %v3931
        %v4344 = vpack.c.b16 %v3934, %v3933
        %v4345 = vpack.c.b16 %v3936, %v3935
        %v4346 = vpack.c.b16 %v3938, %v3937
        %v4347 = vpack.c.b16 %v3940, %v3939
        %v4348 = vpack.c.b16 %v3942, %v3941
        %v4349 = vpack.c.b16 %v3944, %v3943
        %v4350 = vpack.c.b16 %v3946, %v3945
        %v4351 = vpack.c.b16 %v3948, %v3947
        %v4352 = vpack.c.b16 %v3950, %v3949
        %v4353 = vpack.c.b16 %v3952, %v3951
        %v4354 = vpack.c.b16 %v3954, %v3953
        %v4355 = vpack.c.b16 %v3956, %v3955
        %v4356 = vpack.c.b16 %v3958, %v3957
        %v4357 = vpack.c.b16 %v3960, %v3959
        %v4358 = vpack.c.b16 %v3962, %v3961
        %v4359 = vpack.c.b16 %v3964, %v3963
        %v4360 = vpack.c.b16 %v3966, %v3965
        %v4361 = vpack.c.b16 %v3968, %v3967
        %v4362 = vpack.c.b16 %v3970, %v3969
        %v4363 = vpack.c.b16 %v3972, %v3971
        %v4364 = vpack.c.b16 %v3974, %v3973
        %v4365 = vpack.c.b16 %v3976, %v3975
        %v4366 = vpack.c.b16 %v3978, %v3977
        %v4367 = vpack.c.b16 %v3980, %v3979
        %v4368 = vpack.c.b16 %v3982, %v3981
        %v4369 = vpack.c.b16 %v3984, %v3983
        %v4370 = vpack.c.b16 %v3986, %v3985
        %v4371 = vpack.c.b16 %v3988, %v3987
        %v4372 = vpack.c.b16 %v3990, %v3989
        %v4373 = vpack.c.b16 %v3992, %v3991
        %v4374 = vpack.c.b16 %v3994, %v3993
        %v4375 = vpack.c.b16 %v3996, %v3995
        %v4376 = vpack.c.b16 %v3998, %v3997
        %v4377 = vpack.c.b16 %v4000, %v3999
        %v4378 = vpack.c.b16 %v4002, %v4001
        %v4379 = vpack.c.b16 %v4004, %v4003
        %v4380 = vpack.c.b16 %v4006, %v4005
        %v4381 = vpack.c.b16 %v4008, %v4007
        %v4382 = vpack.c.b16 %v4010, %v4009
        %v4383 = vpack.c.b16 %v4012, %v4011
        %v4384 = vpack.c.b16 %v4014, %v4013
        %v4385 = vpack.c.b16 %v4016, %v4015
        %v4386 = vpack.c.b16 %v4018, %v4017
        %v4387 = vpack.c.b16 %v4020, %v4019
        %v4388 = vpack.c.b16 %v4022, %v4021
        %v4389 = vpack.c.b16 %v4024, %v4023
        %v4390 = vpack.c.b16 %v4026, %v4025
        %v4391 = vpack.c.b16 %v4028, %v4027
        %v4392 = vpack.c.b16 %v4030, %v4029
        %v4393 = vpack.c.b16 %v4032, %v4031
        %v4394 = vpack.c.b16 %v4034, %v4033
        %4755 = vmatprep.subr.bf16.mxu0 0
        %4756 = vmatpush1.bf16.msra.mxu0 %v4035
        %4757 = vmatprep.subr.bf16.mxu0 0
        %4758 = vmatpush1.bf16.msra.mxu0 %v4036
        %4759 = vmatprep.subr.bf16.mxu0 0
        %4760 = vmatpush1.bf16.msra.mxu0 %v4037
        %4761 = vmatprep.subr.bf16.mxu0 0
        %4762 = vmatpush1.bf16.msra.mxu0 %v4038
        %4763 = vmatprep.subr.bf16.mxu0 0
        %4764 = vmatpush1.bf16.msra.mxu0 %v4039
        %4765 = vmatprep.subr.bf16.mxu0 0
        %4766 = vmatpush1.bf16.msra.mxu0 %v4040
        %4767 = vmatprep.subr.bf16.mxu0 0
        %4768 = vmatpush1.bf16.msra.mxu0 %v4041
        %4769 = vmatprep.subr.bf16.mxu0 0
        %4770 = vmatpush1.bf16.msra.mxu0 %v4042
        %4771 = vmatprep.subr.bf16.mxu0 0
        %4772 = vmatpush1.bf16.msra.mxu0 %v4043
        %4773 = vmatprep.subr.bf16.mxu0 0
        %4774 = vmatpush1.bf16.msra.mxu0 %v4044
        %4775 = vmatprep.subr.bf16.mxu0 0
        %4776 = vmatpush1.bf16.msra.mxu0 %v4045
        %4777 = vmatprep.subr.bf16.mxu0 0
        %4778 = vmatpush1.bf16.msra.mxu0 %v4046
        %4779 = vmatprep.subr.bf16.mxu0 0
        %4780 = vmatpush1.bf16.msra.mxu0 %v4047
        %4781 = vmatprep.subr.bf16.mxu0 0
        %4782 = vmatpush1.bf16.msra.mxu0 %v4048
        %4783 = vmatprep.subr.bf16.mxu0 0
        %4784 = vmatpush1.bf16.msra.mxu0 %v4049
        %4785 = vmatprep.subr.bf16.mxu0 0
        %4786 = vmatpush1.bf16.msra.mxu0 %v4050
        %4787 = vmatprep.mubr.bf16.mxu0 %v1688
        %4788 = vmatmul.mubr.bf16.gmra.mrb[0].mxu0 %v1687
        %v4789 = vpop.f32.mrb[0].mxu0
        %v4790 = vadd.f32 %v2593, %v4789
        %v4791 = vpop.f32.mrb[0].mxu0
        %v4792 = vpop.f32.mrb[0].mxu0
        %v4793 = vadd.f32 %v2593, %v4792
        %v4794 = vpop.f32.mrb[0].mxu0
        %4795 = vmatprep.mubr.bf16.mxu0 %v1733
        %4796 = vmatmul.mubr.bf16.gmra.mrb[0].mxu0 %v1732
        %v4797 = vpop.f32.mrb[0].mxu0
        %v4798 = vadd.f32 %v2593, %v4797
        %v4799 = vpop.f32.mrb[0].mxu0
        %v4800 = vpop.f32.mrb[0].mxu0
        %v4801 = vadd.f32 %v2593, %v4800
        %v4802 = vpop.f32.mrb[0].mxu0
        %4803 = vmatprep.mubr.bf16.mxu0 %v1778
        %4804 = vmatmul.mubr.bf16.gmra.mrb[0].mxu0 %v1777
        %v4805 = vpop.f32.mrb[0].mxu0
        %v4806 = vadd.f32 %v2593, %v4805
        %v4807 = vpop.f32.mrb[0].mxu0
        %v4808 = vpop.f32.mrb[0].mxu0
        %v4809 = vadd.f32 %v2593, %v4808
        %v4810 = vpop.f32.mrb[0].mxu0
        %4811 = vmatprep.mubr.bf16.mxu0 %v1823
        %4812 = vmatmul.mubr.bf16.gmra.mrb[0].mxu0 %v1822
        %v4813 = vpop.f32.mrb[0].mxu0
        %v4814 = vadd.f32 %v2593, %v4813
        %v4815 = vpop.f32.mrb[0].mxu0
        %v4816 = vpop.f32.mrb[0].mxu0
        %v4817 = vadd.f32 %v2593, %v4816
        %v4818 = vpop.f32.mrb[0].mxu0
        %4819 = vdwg.mxu0
        %4820 = vmatprep.subr.bf16.mxu0 0
        %4821 = vmatpush1.bf16.msra.mxu0 %v4051
        %4822 = vmatprep.subr.bf16.mxu0 0
        %4823 = vmatpush1.bf16.msra.mxu0 %v4052
        %4824 = vmatprep.subr.bf16.mxu0 0
        %4825 = vmatpush1.bf16.msra.mxu0 %v4053
        %4826 = vmatprep.subr.bf16.mxu0 0
        %4827 = vmatpush1.bf16.msra.mxu0 %v4054
        %4828 = vmatprep.subr.bf16.mxu0 0
        %4829 = vmatpush1.bf16.msra.mxu0 %v4055
        %4830 = vmatprep.subr.bf16.mxu0 0
        %4831 = vmatpush1.bf16.msra.mxu0 %v4056
        %4832 = vmatprep.subr.bf16.mxu0 0
        %4833 = vmatpush1.bf16.msra.mxu0 %v4057
        %4834 = vmatprep.subr.bf16.mxu0 0
        %4835 = vmatpush1.bf16.msra.mxu0 %v4058
        %4836 = vmatprep.subr.bf16.mxu0 0
        %4837 = vmatpush1.bf16.msra.mxu0 %v4059
        %4838 = vmatprep.subr.bf16.mxu0 0
        %4839 = vmatpush1.bf16.msra.mxu0 %v4060
        %4840 = vmatprep.subr.bf16.mxu0 0
        %4841 = vmatpush1.bf16.msra.mxu0 %v4061
        %4842 = vmatprep.subr.bf16.mxu0 0
        %4843 = vmatpush1.bf16.msra.mxu0 %v4062
        %4844 = vmatprep.subr.bf16.mxu0 0
        %4845 = vmatpush1.bf16.msra.mxu0 %v4063
        %4846 = vmatprep.subr.bf16.mxu0 0
        %4847 = vmatpush1.bf16.msra.mxu0 %v4064
        %4848 = vmatprep.subr.bf16.mxu0 0
        %4849 = vmatpush1.bf16.msra.mxu0 %v4065
        %4850 = vmatprep.subr.bf16.mxu0 0
        %4851 = vmatpush1.bf16.msra.mxu0 %v4066
        %4852 = vmatprep.mubr.bf16.mxu0 %v1690
        %4853 = vmatmul.mubr.bf16.gmra.mrb[0].mxu0 %v1689
        %v4854 = vpop.f32.mrb[0].mxu0
        %v4855 = vadd.f32 %v4790, %v4854
        %v4856 = vpop.f32.mrb[0].mxu0
        %v4857 = vpop.f32.mrb[0].mxu0
        %v4858 = vadd.f32 %v4793, %v4857
        %v4859 = vpop.f32.mrb[0].mxu0
        %4860 = vmatprep.mubr.bf16.mxu0 %v1735
        %4861 = vmatmul.mubr.bf16.gmra.mrb[0].mxu0 %v1734
        %v4862 = vpop.f32.mrb[0].mxu0
        %v4863 = vadd.f32 %v4798, %v4862
        %v4864 = vpop.f32.mrb[0].mxu0
        %v4865 = vpop.f32.mrb[0].mxu0
        %v4866 = vadd.f32 %v4801, %v4865
        %v4867 = vpop.f32.mrb[0].mxu0
        %4868 = vmatprep.mubr.bf16.mxu0 %v1780
        %4869 = vmatmul.mubr.bf16.gmra.mrb[0].mxu0 %v1779
        %v4870 = vpop.f32.mrb[0].mxu0
        %v4871 = vadd.f32 %v4806, %v4870
        %v4872 = vpop.f32.mrb[0].mxu0
        %v4873 = vpop.f32.mrb[0].mxu0
        %v4874 = vadd.f32 %v4809, %v4873
        %v4875 = vpop.f32.mrb[0].mxu0
        %4876 = vmatprep.mubr.bf16.mxu0 %v1825
        %4877 = vmatmul.mubr.bf16.gmra.mrb[0].mxu0 %v1824
        %v4878 = vpop.f32.mrb[0].mxu0
        %v4879 = vadd.f32 %v4814, %v4878
        %v4880 = vpop.f32.mrb[0].mxu0
        %v4881 = vpop.f32.mrb[0].mxu0
        %v4882 = vadd.f32 %v4817, %v4881
        %v4883 = vpop.f32.mrb[0].mxu0
        %4884 = vdwg.mxu0
        %4885 = vmatprep.subr.bf16.mxu0 0
        %4886 = vmatpush1.bf16.msra.mxu0 %v4067
        %4887 = vmatprep.subr.bf16.mxu0 0
        %4888 = vmatpush1.bf16.msra.mxu0 %v4068
        %4889 = vmatprep.subr.bf16.mxu0 0
        %4890 = vmatpush1.bf16.msra.mxu0 %v4069
        %4891 = vmatprep.subr.bf16.mxu0 0
        %4892 = vmatpush1.bf16.msra.mxu0 %v4070
        %4893 = vmatprep.subr.bf16.mxu0 0
        %4894 = vmatpush1.bf16.msra.mxu0 %v4071
        %4895 = vmatprep.subr.bf16.mxu0 0
        %4896 = vmatpush1.bf16.msra.mxu0 %v4072
        %4897 = vmatprep.subr.bf16.mxu0 0
        %4898 = vmatpush1.bf16.msra.mxu0 %v4073
        %4899 = vmatprep.subr.bf16.mxu0 0
        %4900 = vmatpush1.bf16.msra.mxu0 %v4074
        %4901 = vmatprep.subr.bf16.mxu0 0
        %4902 = vmatpush1.bf16.msra.mxu0 %v4075
        %4903 = vmatprep.subr.bf16.mxu0 0
        %4904 = vmatpush1.bf16.msra.mxu0 %v4076
        %4905 = vmatprep.subr.bf16.mxu0 0
        %4906 = vmatpush1.bf16.msra.mxu0 %v4077
        %4907 = vmatprep.subr.bf16.mxu0 0
        %4908 = vmatpush1.bf16.msra.mxu0 %v4078
        %4909 = vmatprep.subr.bf16.mxu0 0
        %4910 = vmatpush1.bf16.msra.mxu0 %v4079
        %4911 = vmatprep.subr.bf16.mxu0 0
        %4912 = vmatpush1.bf16.msra.mxu0 %v4080
        %4913 = vmatprep.subr.bf16.mxu0 0
        %4914 = vmatpush1.bf16.msra.mxu0 %v4081
        %4915 = vmatprep.subr.bf16.mxu0 0
        %4916 = vmatpush1.bf16.msra.mxu0 %v4082
        %4917 = vmatprep.mubr.bf16.mxu0 %v1692
        %4918 = vmatmul.mubr.bf16.gmra.mrb[0].mxu0 %v1691
        %v4919 = vpop.f32.mrb[0].mxu0
        %v4920 = vadd.f32 %v4855, %v4919
        %v4921 = vpop.f32.mrb[0].mxu0
        %v4922 = vpop.f32.mrb[0].mxu0
        %v4923 = vadd.f32 %v4858, %v4922
        %v4924 = vpop.f32.mrb[0].mxu0
        %4925 = vmatprep.mubr.bf16.mxu0 %v1737
        %4926 = vmatmul.mubr.bf16.gmra.mrb[0].mxu0 %v1736
        %v4927 = vpop.f32.mrb[0].mxu0
        %v4928 = vadd.f32 %v4863, %v4927
        %v4929 = vpop.f32.mrb[0].mxu0
        %v4930 = vpop.f32.mrb[0].mxu0
        %v4931 = vadd.f32 %v4866, %v4930
        %v4932 = vpop.f32.mrb[0].mxu0
        %4933 = vmatprep.mubr.bf16.mxu0 %v1782
        %4934 = vmatmul.mubr.bf16.gmra.mrb[0].mxu0 %v1781
        %v4935 = vpop.f32.mrb[0].mxu0
        %v4936 = vadd.f32 %v4871, %v4935
        %v4937 = vpop.f32.mrb[0].mxu0
        %v4938 = vpop.f32.mrb[0].mxu0
        %v4939 = vadd.f32 %v4874, %v4938
        %v4940 = vpop.f32.mrb[0].mxu0
        %4941 = vmatprep.mubr.bf16.mxu0 %v1827
        %4942 = vmatmul.mubr.bf16.gmra.mrb[0].mxu0 %v1826
        %v4943 = vpop.f32.mrb[0].mxu0
        %v4944 = vadd.f32 %v4879, %v4943
        %v4945 = vpop.f32.mrb[0].mxu0
        %v4946 = vpop.f32.mrb[0].mxu0
        %v4947 = vadd.f32 %v4882, %v4946
        %v4948 = vpop.f32.mrb[0].mxu0
        %4949 = vdwg.mxu0
        %4950 = vmatprep.subr.bf16.mxu0 0
        %4951 = vmatpush1.bf16.msra.mxu0 %v4083
        %4952 = vmatprep.subr.bf16.mxu0 0
        %4953 = vmatpush1.bf16.msra.mxu0 %v4084
        %4954 = vmatprep.subr.bf16.mxu0 0
        %4955 = vmatpush1.bf16.msra.mxu0 %v4085
        %4956 = vmatprep.subr.bf16.mxu0 0
        %4957 = vmatpush1.bf16.msra.mxu0 %v4086
        %4958 = vmatprep.subr.bf16.mxu0 0
        %4959 = vmatpush1.bf16.msra.mxu0 %v4087
        %4960 = vmatprep.subr.bf16.mxu0 0
        %4961 = vmatpush1.bf16.msra.mxu0 %v4088
        %4962 = vmatprep.subr.bf16.mxu0 0
        %4963 = vmatpush1.bf16.msra.mxu0 %v4089
        %4964 = vmatprep.subr.bf16.mxu0 0
        %4965 = vmatpush1.bf16.msra.mxu0 %v4090
        %4966 = vmatprep.subr.bf16.mxu0 0
        %4967 = vmatpush1.bf16.msra.mxu0 %v4091
        %4968 = vmatprep.subr.bf16.mxu0 0
        %4969 = vmatpush1.bf16.msra.mxu0 %v4092
        %4970 = vmatprep.subr.bf16.mxu0 0
        %4971 = vmatpush1.bf16.msra.mxu0 %v4093
        %4972 = vmatprep.subr.bf16.mxu0 0
        %4973 = vmatpush1.bf16.msra.mxu0 %v4094
        %4974 = vmatprep.subr.bf16.mxu0 0
        %4975 = vmatpush1.bf16.msra.mxu0 %v4095
        %4976 = vmatprep.subr.bf16.mxu0 0
        %4977 = vmatpush1.bf16.msra.mxu0 %v4096
        %4978 = vmatprep.subr.bf16.mxu0 0
        %4979 = vmatpush1.bf16.msra.mxu0 %v4097
        %4980 = vmatprep.subr.bf16.mxu0 0
        %4981 = vmatpush1.bf16.msra.mxu0 %v4098
        %4982 = vmatprep.mubr.bf16.mxu0 %v1694
        %4983 = vmatmul.mubr.bf16.gmra.mrb[0].mxu0 %v1693
        %v4984 = vpop.f32.mrb[0].mxu0
        %v4985 = vadd.f32 %v4920, %v4984
        %v4986 = vpop.f32.mrb[0].mxu0
        %v4987 = vpop.f32.mrb[0].mxu0
        %v4988 = vadd.f32 %v4923, %v4987
        %v4989 = vpop.f32.mrb[0].mxu0
        %4990 = vmatprep.mubr.bf16.mxu0 %v1739
        %4991 = vmatmul.mubr.bf16.gmra.mrb[0].mxu0 %v1738
        %v4992 = vpop.f32.mrb[0].mxu0
        %v4993 = vadd.f32 %v4928, %v4992
        %v4994 = vpop.f32.mrb[0].mxu0
        %v4995 = vpop.f32.mrb[0].mxu0
        %v4996 = vadd.f32 %v4931, %v4995
        %v4997 = vpop.f32.mrb[0].mxu0
        %4998 = vmatprep.mubr.bf16.mxu0 %v1784
        %4999 = vmatmul.mubr.bf16.gmra.mrb[0].mxu0 %v1783
        %v5000 = vpop.f32.mrb[0].mxu0
        %v5001 = vadd.f32 %v4936, %v5000
        %v5002 = vpop.f32.mrb[0].mxu0
        %v5003 = vpop.f32.mrb[0].mxu0
        %v5004 = vadd.f32 %v4939, %v5003
        %v5005 = vpop.f32.mrb[0].mxu0
        %5006 = vmatprep.mubr.bf16.mxu0 %v1829
        %5007 = vmatmul.mubr.bf16.gmra.mrb[0].mxu0 %v1828
        %v5008 = vpop.f32.mrb[0].mxu0
        %v5009 = vadd.f32 %v4944, %v5008
        %v5010 = vpop.f32.mrb[0].mxu0
        %v5011 = vpop.f32.mrb[0].mxu0
        %v5012 = vadd.f32 %v4947, %v5011
        %v5013 = vpop.f32.mrb[0].mxu0
        %5014 = vdwg.mxu0
        %5015 = vmatprep.subr.bf16.mxu0 0
        %5016 = vmatpush1.bf16.msra.mxu0 %v4099
        %5017 = vmatprep.subr.bf16.mxu0 0
        %5018 = vmatpush1.bf16.msra.mxu0 %v4100
        %5019 = vmatprep.subr.bf16.mxu0 0
        %5020 = vmatpush1.bf16.msra.mxu0 %v4101
        %5021 = vmatprep.subr.bf16.mxu0 0
        %5022 = vmatpush1.bf16.msra.mxu0 %v4102
        %5023 = vmatprep.subr.bf16.mxu0 0
        %5024 = vmatpush1.bf16.msra.mxu0 %v4103
        %5025 = vmatprep.subr.bf16.mxu0 0
        %5026 = vmatpush1.bf16.msra.mxu0 %v4104
        %5027 = vmatprep.subr.bf16.mxu0 0
        %5028 = vmatpush1.bf16.msra.mxu0 %v4105
        %5029 = vmatprep.subr.bf16.mxu0 0
        %5030 = vmatpush1.bf16.msra.mxu0 %v4106
        %5031 = vmatprep.subr.bf16.mxu0 0
        %5032 = vmatpush1.bf16.msra.mxu0 %v4107
        %5033 = vmatprep.subr.bf16.mxu0 0
        %5034 = vmatpush1.bf16.msra.mxu0 %v4108
        %5035 = vmatprep.subr.bf16.mxu0 0
        %5036 = vmatpush1.bf16.msra.mxu0 %v4109
        %5037 = vmatprep.subr.bf16.mxu0 0
        %5038 = vmatpush1.bf16.msra.mxu0 %v4110
        %5039 = vmatprep.subr.bf16.mxu0 0
        %5040 = vmatpush1.bf16.msra.mxu0 %v4111
        %5041 = vmatprep.subr.bf16.mxu0 0
        %5042 = vmatpush1.bf16.msra.mxu0 %v4112
        %5043 = vmatprep.subr.bf16.mxu0 0
        %5044 = vmatpush1.bf16.msra.mxu0 %v4113
        %5045 = vmatprep.subr.bf16.mxu0 0
        %5046 = vmatpush1.bf16.msra.mxu0 %v4114
        %5047 = vmatprep.mubr.bf16.mxu0 %v1696
        %5048 = vmatmul.mubr.bf16.gmra.mrb[0].mxu0 %v1695
        %v5049 = vpop.f32.mrb[0].mxu0
        %v5050 = vadd.f32 %v4985, %v5049
        %v5051 = vpop.f32.mrb[0].mxu0
        %v5052 = vpop.f32.mrb[0].mxu0
        %v5053 = vadd.f32 %v4988, %v5052
        %v5054 = vpop.f32.mrb[0].mxu0
        %5055 = vmatprep.mubr.bf16.mxu0 %v1741
        %5056 = vmatmul.mubr.bf16.gmra.mrb[0].mxu0 %v1740
        %v5057 = vpop.f32.mrb[0].mxu0
        %v5058 = vadd.f32 %v4993, %v5057
        %v5059 = vpop.f32.mrb[0].mxu0
        %v5060 = vpop.f32.mrb[0].mxu0
        %v5061 = vadd.f32 %v4996, %v5060
        %v5062 = vpop.f32.mrb[0].mxu0
        %5063 = vmatprep.mubr.bf16.mxu0 %v1786
        %5064 = vmatmul.mubr.bf16.gmra.mrb[0].mxu0 %v1785
        %v5065 = vpop.f32.mrb[0].mxu0
        %v5066 = vadd.f32 %v5001, %v5065
        %v5067 = vpop.f32.mrb[0].mxu0
        %v5068 = vpop.f32.mrb[0].mxu0
        %v5069 = vadd.f32 %v5004, %v5068
        %v5070 = vpop.f32.mrb[0].mxu0
        %5071 = vmatprep.mubr.bf16.mxu0 %v1831
        %5072 = vmatmul.mubr.bf16.gmra.mrb[0].mxu0 %v1830
        %v5073 = vpop.f32.mrb[0].mxu0
        %v5074 = vadd.f32 %v5009, %v5073
        %v5075 = vpop.f32.mrb[0].mxu0
        %v5076 = vpop.f32.mrb[0].mxu0
        %v5077 = vadd.f32 %v5012, %v5076
        %v5078 = vpop.f32.mrb[0].mxu0
        %5079 = vdwg.mxu0
        %5080 = vmatprep.subr.bf16.mxu0 0
        %5081 = vmatpush1.bf16.msra.mxu0 %v4115
        %5082 = vmatprep.subr.bf16.mxu0 0
        %5083 = vmatpush1.bf16.msra.mxu0 %v4116
        %5084 = vmatprep.subr.bf16.mxu0 0
        %5085 = vmatpush1.bf16.msra.mxu0 %v4117
        %5086 = vmatprep.subr.bf16.mxu0 0
        %5087 = vmatpush1.bf16.msra.mxu0 %v4118
        %5088 = vmatprep.subr.bf16.mxu0 0
        %5089 = vmatpush1.bf16.msra.mxu0 %v4119
        %5090 = vmatprep.subr.bf16.mxu0 0
        %5091 = vmatpush1.bf16.msra.mxu0 %v4120
        %5092 = vmatprep.subr.bf16.mxu0 0
        %5093 = vmatpush1.bf16.msra.mxu0 %v4121
        %5094 = vmatprep.subr.bf16.mxu0 0
        %5095 = vmatpush1.bf16.msra.mxu0 %v4122
        %5096 = vmatprep.subr.bf16.mxu0 0
        %5097 = vmatpush1.bf16.msra.mxu0 %v4123
        %5098 = vmatprep.subr.bf16.mxu0 0
        %5099 = vmatpush1.bf16.msra.mxu0 %v4124
        %5100 = vmatprep.subr.bf16.mxu0 0
        %5101 = vmatpush1.bf16.msra.mxu0 %v4125
        %5102 = vmatprep.subr.bf16.mxu0 0
        %5103 = vmatpush1.bf16.msra.mxu0 %v4126
        %5104 = vmatprep.subr.bf16.mxu0 0
        %5105 = vmatpush1.bf16.msra.mxu0 %v4127
        %5106 = vmatprep.subr.bf16.mxu0 0
        %5107 = vmatpush1.bf16.msra.mxu0 %v4128
        %5108 = vmatprep.subr.bf16.mxu0 0
        %5109 = vmatpush1.bf16.msra.mxu0 %v4129
        %5110 = vmatprep.subr.bf16.mxu0 0
        %5111 = vmatpush1.bf16.msra.mxu0 %v4130
        %5112 = vmatprep.mubr.bf16.mxu0 %v1698
        %5113 = vmatmul.mubr.bf16.gmra.mrb[0].mxu0 %v1697
        %v5114 = vpop.f32.mrb[0].mxu0
        %v5115 = vadd.f32 %v5050, %v5114
        %v5116 = vpop.f32.mrb[0].mxu0
        %v5117 = vpop.f32.mrb[0].mxu0
        %v5118 = vadd.f32 %v5053, %v5117
        %v5119 = vpop.f32.mrb[0].mxu0
        %5120 = vmatprep.mubr.bf16.mxu0 %v1743
        %5121 = vmatmul.mubr.bf16.gmra.mrb[0].mxu0 %v1742
        %v5122 = vpop.f32.mrb[0].mxu0
        %v5123 = vadd.f32 %v5058, %v5122
        %v5124 = vpop.f32.mrb[0].mxu0
        %v5125 = vpop.f32.mrb[0].mxu0
        %v5126 = vadd.f32 %v5061, %v5125
        %v5127 = vpop.f32.mrb[0].mxu0
        %5128 = vmatprep.mubr.bf16.mxu0 %v1788
        %5129 = vmatmul.mubr.bf16.gmra.mrb[0].mxu0 %v1787
        %v5130 = vpop.f32.mrb[0].mxu0
        %v5131 = vadd.f32 %v5066, %v5130
        %v5132 = vpop.f32.mrb[0].mxu0
        %v5133 = vpop.f32.mrb[0].mxu0
        %v5134 = vadd.f32 %v5069, %v5133
        %v5135 = vpop.f32.mrb[0].mxu0
        %5136 = vmatprep.mubr.bf16.mxu0 %v1833
        %5137 = vmatmul.mubr.bf16.gmra.mrb[0].mxu0 %v1832
        %v5138 = vpop.f32.mrb[0].mxu0
        %v5139 = vadd.f32 %v5074, %v5138
        %v5140 = vpop.f32.mrb[0].mxu0
        %v5141 = vpop.f32.mrb[0].mxu0
        %v5142 = vadd.f32 %v5077, %v5141
        %v5143 = vpop.f32.mrb[0].mxu0
        %5144 = vdwg.mxu0
        %5145 = vmatprep.subr.bf16.mxu0 0
        %5146 = vmatpush1.bf16.msra.mxu0 %v4131
        %5147 = vmatprep.subr.bf16.mxu0 0
        %5148 = vmatpush1.bf16.msra.mxu0 %v4132
        %5149 = vmatprep.subr.bf16.mxu0 0
        %5150 = vmatpush1.bf16.msra.mxu0 %v4133
        %5151 = vmatprep.subr.bf16.mxu0 0
        %5152 = vmatpush1.bf16.msra.mxu0 %v4134
        %5153 = vmatprep.subr.bf16.mxu0 0
        %5154 = vmatpush1.bf16.msra.mxu0 %v4135
        %5155 = vmatprep.subr.bf16.mxu0 0
        %5156 = vmatpush1.bf16.msra.mxu0 %v4136
        %5157 = vmatprep.subr.bf16.mxu0 0
        %5158 = vmatpush1.bf16.msra.mxu0 %v4137
        %5159 = vmatprep.subr.bf16.mxu0 0
        %5160 = vmatpush1.bf16.msra.mxu0 %v4138
        %5161 = vmatprep.subr.bf16.mxu0 0
        %5162 = vmatpush1.bf16.msra.mxu0 %v4139
        %5163 = vmatprep.subr.bf16.mxu0 0
        %5164 = vmatpush1.bf16.msra.mxu0 %v4140
        %5165 = vmatprep.subr.bf16.mxu0 0
        %5166 = vmatpush1.bf16.msra.mxu0 %v4141
        %5167 = vmatprep.subr.bf16.mxu0 0
        %5168 = vmatpush1.bf16.msra.mxu0 %v4142
        %5169 = vmatprep.subr.bf16.mxu0 0
        %5170 = vmatpush1.bf16.msra.mxu0 %v4143
        %5171 = vmatprep.subr.bf16.mxu0 0
        %5172 = vmatpush1.bf16.msra.mxu0 %v4144
        %5173 = vmatprep.subr.bf16.mxu0 0
        %5174 = vmatpush1.bf16.msra.mxu0 %v4145
        %5175 = vmatprep.subr.bf16.mxu0 0
        %5176 = vmatpush1.bf16.msra.mxu0 %v4146
        %5177 = vmatprep.mubr.bf16.mxu0 %v1700
        %5178 = vmatmul.mubr.bf16.gmra.mrb[0].mxu0 %v1699
        %v5179 = vpop.f32.mrb[0].mxu0
        %v5180 = vadd.f32 %v5115, %v5179
        %v5181 = vpop.f32.mrb[0].mxu0
        %v5182 = vpop.f32.mrb[0].mxu0
        %v5183 = vadd.f32 %v5118, %v5182
        %v5184 = vpop.f32.mrb[0].mxu0
        %5185 = vmatprep.mubr.bf16.mxu0 %v1745
        %5186 = vmatmul.mubr.bf16.gmra.mrb[0].mxu0 %v1744
        %v5187 = vpop.f32.mrb[0].mxu0
        %v5188 = vadd.f32 %v5123, %v5187
        %v5189 = vpop.f32.mrb[0].mxu0
        %v5190 = vpop.f32.mrb[0].mxu0
        %v5191 = vadd.f32 %v5126, %v5190
        %v5192 = vpop.f32.mrb[0].mxu0
        %5193 = vmatprep.mubr.bf16.mxu0 %v1790
        %5194 = vmatmul.mubr.bf16.gmra.mrb[0].mxu0 %v1789
        %v5195 = vpop.f32.mrb[0].mxu0
        %v5196 = vadd.f32 %v5131, %v5195
        %v5197 = vpop.f32.mrb[0].mxu0
        %v5198 = vpop.f32.mrb[0].mxu0
        %v5199 = vadd.f32 %v5134, %v5198
        %v5200 = vpop.f32.mrb[0].mxu0
        %5201 = vmatprep.mubr.bf16.mxu0 %v1835
        %5202 = vmatmul.mubr.bf16.gmra.mrb[0].mxu0 %v1834
        %v5203 = vpop.f32.mrb[0].mxu0
        %v5204 = vadd.f32 %v5139, %v5203
        %v5205 = vpop.f32.mrb[0].mxu0
        %v5206 = vpop.f32.mrb[0].mxu0
        %v5207 = vadd.f32 %v5142, %v5206
        %v5208 = vpop.f32.mrb[0].mxu0
        %5209 = vdwg.mxu0
        %5210 = vmatprep.subr.bf16.mxu0 0
        %5211 = vmatpush1.bf16.msra.mxu0 %v4147
        %5212 = vmatprep.subr.bf16.mxu0 0
        %5213 = vmatpush1.bf16.msra.mxu0 %v4148
        %5214 = vmatprep.subr.bf16.mxu0 0
        %5215 = vmatpush1.bf16.msra.mxu0 %v4149
        %5216 = vmatprep.subr.bf16.mxu0 0
        %5217 = vmatpush1.bf16.msra.mxu0 %v4150
        %5218 = vmatprep.subr.bf16.mxu0 0
        %5219 = vmatpush1.bf16.msra.mxu0 %v4151
        %5220 = vmatprep.subr.bf16.mxu0 0
        %5221 = vmatpush1.bf16.msra.mxu0 %v4152
        %5222 = vmatprep.subr.bf16.mxu0 0
        %5223 = vmatpush1.bf16.msra.mxu0 %v4153
        %5224 = vmatprep.subr.bf16.mxu0 0
        %5225 = vmatpush1.bf16.msra.mxu0 %v4154
        %5226 = vmatprep.subr.bf16.mxu0 0
        %5227 = vmatpush1.bf16.msra.mxu0 %v4155
        %5228 = vmatprep.subr.bf16.mxu0 0
        %5229 = vmatpush1.bf16.msra.mxu0 %v4156
        %5230 = vmatprep.subr.bf16.mxu0 0
        %5231 = vmatpush1.bf16.msra.mxu0 %v4157
        %5232 = vmatprep.subr.bf16.mxu0 0
        %5233 = vmatpush1.bf16.msra.mxu0 %v4158
        %5234 = vmatprep.subr.bf16.mxu0 0
        %5235 = vmatpush1.bf16.msra.mxu0 %v4159
        %5236 = vmatprep.subr.bf16.mxu0 0
        %5237 = vmatpush1.bf16.msra.mxu0 %v4160
        %5238 = vmatprep.subr.bf16.mxu0 0
        %5239 = vmatpush1.bf16.msra.mxu0 %v4161
        %5240 = vmatprep.subr.bf16.mxu0 0
        %5241 = vmatpush1.bf16.msra.mxu0 %v4162
        %5242 = vmatprep.mubr.bf16.mxu0 %v1702
        %5243 = vmatmul.mubr.bf16.gmra.mrb[0].mxu0 %v1701
        %v5244 = vpop.f32.mrb[0].mxu0
        %v5245 = vadd.f32 %v5180, %v5244
        %v5246 = vpop.f32.mrb[0].mxu0
        %v5247 = vpop.f32.mrb[0].mxu0
        %v5248 = vadd.f32 %v5183, %v5247
        %v5249 = vpop.f32.mrb[0].mxu0
        %5250 = vmatprep.mubr.bf16.mxu0 %v1747
        %5251 = vmatmul.mubr.bf16.gmra.mrb[0].mxu0 %v1746
        %v5252 = vpop.f32.mrb[0].mxu0
        %v5253 = vadd.f32 %v5188, %v5252
        %v5254 = vpop.f32.mrb[0].mxu0
        %v5255 = vpop.f32.mrb[0].mxu0
        %v5256 = vadd.f32 %v5191, %v5255
        %v5257 = vpop.f32.mrb[0].mxu0
        %5258 = vmatprep.mubr.bf16.mxu0 %v1792
        %5259 = vmatmul.mubr.bf16.gmra.mrb[0].mxu0 %v1791
        %v5260 = vpop.f32.mrb[0].mxu0
        %v5261 = vadd.f32 %v5196, %v5260
        %v5262 = vpop.f32.mrb[0].mxu0
        %v5263 = vpop.f32.mrb[0].mxu0
        %v5264 = vadd.f32 %v5199, %v5263
        %v5265 = vpop.f32.mrb[0].mxu0
        %5266 = vmatprep.mubr.bf16.mxu0 %v1837
        %5267 = vmatmul.mubr.bf16.gmra.mrb[0].mxu0 %v1836
        %v5268 = vpop.f32.mrb[0].mxu0
        %v5269 = vadd.f32 %v5204, %v5268
        %v5270 = vpop.f32.mrb[0].mxu0
        %v5271 = vpop.f32.mrb[0].mxu0
        %v5272 = vadd.f32 %v5207, %v5271
        %v5273 = vpop.f32.mrb[0].mxu0
        %5274 = vdwg.mxu0
        %5275 = vmatprep.subr.bf16.mxu0 0
        %5276 = vmatpush1.bf16.msra.mxu0 %v4163
        %5277 = vmatprep.subr.bf16.mxu0 0
        %5278 = vmatpush1.bf16.msra.mxu0 %v4164
        %5279 = vmatprep.subr.bf16.mxu0 0
        %5280 = vmatpush1.bf16.msra.mxu0 %v4165
        %5281 = vmatprep.subr.bf16.mxu0 0
        %5282 = vmatpush1.bf16.msra.mxu0 %v4166
        %5283 = vmatprep.subr.bf16.mxu0 0
        %5284 = vmatpush1.bf16.msra.mxu0 %v4167
        %5285 = vmatprep.subr.bf16.mxu0 0
        %5286 = vmatpush1.bf16.msra.mxu0 %v4168
        %5287 = vmatprep.subr.bf16.mxu0 0
        %5288 = vmatpush1.bf16.msra.mxu0 %v4169
        %5289 = vmatprep.subr.bf16.mxu0 0
        %5290 = vmatpush1.bf16.msra.mxu0 %v4170
        %5291 = vmatprep.subr.bf16.mxu0 0
        %5292 = vmatpush1.bf16.msra.mxu0 %v4171
        %5293 = vmatprep.subr.bf16.mxu0 0
        %5294 = vmatpush1.bf16.msra.mxu0 %v4172
        %5295 = vmatprep.subr.bf16.mxu0 0
        %5296 = vmatpush1.bf16.msra.mxu0 %v4173
        %5297 = vmatprep.subr.bf16.mxu0 0
        %5298 = vmatpush1.bf16.msra.mxu0 %v4174
        %5299 = vmatprep.subr.bf16.mxu0 0
        %5300 = vmatpush1.bf16.msra.mxu0 %v4175
        %5301 = vmatprep.subr.bf16.mxu0 0
        %5302 = vmatpush1.bf16.msra.mxu0 %v4176
        %5303 = vmatprep.subr.bf16.mxu0 0
        %5304 = vmatpush1.bf16.msra.mxu0 %v4177
        %5305 = vmatprep.subr.bf16.mxu0 0
        %5306 = vmatpush1.bf16.msra.mxu0 %v4178
        %5307 = vmatprep.mubr.bf16.mxu0 %v1704
        %5308 = vmatmul.mubr.bf16.gmra.mrb[0].mxu0 %v1703
        %v5309 = vpop.f32.mrb[0].mxu0
        %v5310 = vadd.f32 %v5245, %v5309
        %v5311 = vpop.f32.mrb[0].mxu0
        %v5312 = vpop.f32.mrb[0].mxu0
        %v5313 = vadd.f32 %v5248, %v5312
        %v5314 = vpop.f32.mrb[0].mxu0
        %5315 = vmatprep.mubr.bf16.mxu0 %v1749
        %5316 = vmatmul.mubr.bf16.gmra.mrb[0].mxu0 %v1748
        %v5317 = vpop.f32.mrb[0].mxu0
        %v5318 = vadd.f32 %v5253, %v5317
        %v5319 = vpop.f32.mrb[0].mxu0
        %v5320 = vpop.f32.mrb[0].mxu0
        %v5321 = vadd.f32 %v5256, %v5320
        %v5322 = vpop.f32.mrb[0].mxu0
        %5323 = vmatprep.mubr.bf16.mxu0 %v1794
        %5324 = vmatmul.mubr.bf16.gmra.mrb[0].mxu0 %v1793
        %v5325 = vpop.f32.mrb[0].mxu0
        %v5326 = vadd.f32 %v5261, %v5325
        %v5327 = vpop.f32.mrb[0].mxu0
        %v5328 = vpop.f32.mrb[0].mxu0
        %v5329 = vadd.f32 %v5264, %v5328
        %v5330 = vpop.f32.mrb[0].mxu0
        %5331 = vmatprep.mubr.bf16.mxu0 %v1839
        %5332 = vmatmul.mubr.bf16.gmra.mrb[0].mxu0 %v1838
        %v5333 = vpop.f32.mrb[0].mxu0
        %v5334 = vadd.f32 %v5269, %v5333
        %v5335 = vpop.f32.mrb[0].mxu0
        %v5336 = vpop.f32.mrb[0].mxu0
        %v5337 = vadd.f32 %v5272, %v5336
        %v5338 = vpop.f32.mrb[0].mxu0
        %5339 = vdwg.mxu0
        %5340 = vmatprep.subr.bf16.mxu0 0
        %5341 = vmatpush1.bf16.msra.mxu0 %v4179
        %5342 = vmatprep.subr.bf16.mxu0 0
        %5343 = vmatpush1.bf16.msra.mxu0 %v4180
        %5344 = vmatprep.subr.bf16.mxu0 0
        %5345 = vmatpush1.bf16.msra.mxu0 %v4181
        %5346 = vmatprep.subr.bf16.mxu0 0
        %5347 = vmatpush1.bf16.msra.mxu0 %v4182
        %5348 = vmatprep.subr.bf16.mxu0 0
        %5349 = vmatpush1.bf16.msra.mxu0 %v4183
        %5350 = vmatprep.subr.bf16.mxu0 0
        %5351 = vmatpush1.bf16.msra.mxu0 %v4184
        %5352 = vmatprep.subr.bf16.mxu0 0
        %5353 = vmatpush1.bf16.msra.mxu0 %v4185
        %5354 = vmatprep.subr.bf16.mxu0 0
        %5355 = vmatpush1.bf16.msra.mxu0 %v4186
        %5356 = vmatprep.subr.bf16.mxu0 0
        %5357 = vmatpush1.bf16.msra.mxu0 %v4187
        %5358 = vmatprep.subr.bf16.mxu0 0
        %5359 = vmatpush1.bf16.msra.mxu0 %v4188
        %5360 = vmatprep.subr.bf16.mxu0 0
        %5361 = vmatpush1.bf16.msra.mxu0 %v4189
        %5362 = vmatprep.subr.bf16.mxu0 0
        %5363 = vmatpush1.bf16.msra.mxu0 %v4190
        %5364 = vmatprep.subr.bf16.mxu0 0
        %5365 = vmatpush1.bf16.msra.mxu0 %v4191
        %5366 = vmatprep.subr.bf16.mxu0 0
        %5367 = vmatpush1.bf16.msra.mxu0 %v4192
        %5368 = vmatprep.subr.bf16.mxu0 0
        %5369 = vmatpush1.bf16.msra.mxu0 %v4193
        %5370 = vmatprep.subr.bf16.mxu0 0
        %5371 = vmatpush1.bf16.msra.mxu0 %v4194
        %5372 = vmatprep.mubr.bf16.mxu0 %v1706
        %5373 = vmatmul.mubr.bf16.gmra.mrb[0].mxu0 %v1705
        %v5374 = vpop.f32.mrb[0].mxu0
        %v5375 = vadd.f32 %v5310, %v5374
        %v5376 = vpop.f32.mrb[0].mxu0
        %v5377 = vpop.f32.mrb[0].mxu0
        %v5378 = vadd.f32 %v5313, %v5377
        %v5379 = vpop.f32.mrb[0].mxu0
        %5380 = vmatprep.mubr.bf16.mxu0 %v1751
        %5381 = vmatmul.mubr.bf16.gmra.mrb[0].mxu0 %v1750
        %v5382 = vpop.f32.mrb[0].mxu0
        %v5383 = vadd.f32 %v5318, %v5382
        %v5384 = vpop.f32.mrb[0].mxu0
        %v5385 = vpop.f32.mrb[0].mxu0
        %v5386 = vadd.f32 %v5321, %v5385
        %v5387 = vpop.f32.mrb[0].mxu0
        %5388 = vmatprep.mubr.bf16.mxu0 %v1796
        %5389 = vmatmul.mubr.bf16.gmra.mrb[0].mxu0 %v1795
        %v5390 = vpop.f32.mrb[0].mxu0
        %v5391 = vadd.f32 %v5326, %v5390
        %v5392 = vpop.f32.mrb[0].mxu0
        %v5393 = vpop.f32.mrb[0].mxu0
        %v5394 = vadd.f32 %v5329, %v5393
        %v5395 = vpop.f32.mrb[0].mxu0
        %5396 = vmatprep.mubr.bf16.mxu0 %v1841
        %5397 = vmatmul.mubr.bf16.gmra.mrb[0].mxu0 %v1840
        %v5398 = vpop.f32.mrb[0].mxu0
        %v5399 = vadd.f32 %v5334, %v5398
        %v5400 = vpop.f32.mrb[0].mxu0
        %v5401 = vpop.f32.mrb[0].mxu0
        %v5402 = vadd.f32 %v5337, %v5401
        %v5403 = vpop.f32.mrb[0].mxu0
        %5404 = vdwg.mxu0
        %5405 = vmatprep.subr.bf16.mxu0 0
        %5406 = vmatpush1.bf16.msra.mxu0 %v4195
        %5407 = vmatprep.subr.bf16.mxu0 0
        %5408 = vmatpush1.bf16.msra.mxu0 %v4196
        %5409 = vmatprep.subr.bf16.mxu0 0
        %5410 = vmatpush1.bf16.msra.mxu0 %v4197
        %5411 = vmatprep.subr.bf16.mxu0 0
        %5412 = vmatpush1.bf16.msra.mxu0 %v4198
        %5413 = vmatprep.subr.bf16.mxu0 0
        %5414 = vmatpush1.bf16.msra.mxu0 %v4199
        %5415 = vmatprep.subr.bf16.mxu0 0
        %5416 = vmatpush1.bf16.msra.mxu0 %v4200
        %5417 = vmatprep.subr.bf16.mxu0 0
        %5418 = vmatpush1.bf16.msra.mxu0 %v4201
        %5419 = vmatprep.subr.bf16.mxu0 0
        %5420 = vmatpush1.bf16.msra.mxu0 %v4202
        %5421 = vmatprep.subr.bf16.mxu0 0
        %5422 = vmatpush1.bf16.msra.mxu0 %v4203
        %5423 = vmatprep.subr.bf16.mxu0 0
        %5424 = vmatpush1.bf16.msra.mxu0 %v4204
        %5425 = vmatprep.subr.bf16.mxu0 0
        %5426 = vmatpush1.bf16.msra.mxu0 %v4205
        %5427 = vmatprep.subr.bf16.mxu0 0
        %5428 = vmatpush1.bf16.msra.mxu0 %v4206
        %5429 = vmatprep.subr.bf16.mxu0 0
        %5430 = vmatpush1.bf16.msra.mxu0 %v4207
        %5431 = vmatprep.subr.bf16.mxu0 0
        %5432 = vmatpush1.bf16.msra.mxu0 %v4208
        %5433 = vmatprep.subr.bf16.mxu0 0
        %5434 = vmatpush1.bf16.msra.mxu0 %v4209
        %5435 = vmatprep.subr.bf16.mxu0 0
        %5436 = vmatpush1.bf16.msra.mxu0 %v4210
        %5437 = vmatprep.mubr.bf16.mxu0 %v1708
        %5438 = vmatmul.mubr.bf16.gmra.mrb[0].mxu0 %v1707
        %v5439 = vpop.f32.mrb[0].mxu0
        %v5440 = vadd.f32 %v5375, %v5439
        %v5441 = vpop.f32.mrb[0].mxu0
        %v5442 = vpop.f32.mrb[0].mxu0
        %v5443 = vadd.f32 %v5378, %v5442
        %v5444 = vpop.f32.mrb[0].mxu0
        %5445 = vmatprep.mubr.bf16.mxu0 %v1753
        %5446 = vmatmul.mubr.bf16.gmra.mrb[0].mxu0 %v1752
        %v5447 = vpop.f32.mrb[0].mxu0
        %v5448 = vadd.f32 %v5383, %v5447
        %v5449 = vpop.f32.mrb[0].mxu0
        %v5450 = vpop.f32.mrb[0].mxu0
        %v5451 = vadd.f32 %v5386, %v5450
        %v5452 = vpop.f32.mrb[0].mxu0
        %5453 = vmatprep.mubr.bf16.mxu0 %v1798
        %5454 = vmatmul.mubr.bf16.gmra.mrb[0].mxu0 %v1797
        %v5455 = vpop.f32.mrb[0].mxu0
        %v5456 = vadd.f32 %v5391, %v5455
        %v5457 = vpop.f32.mrb[0].mxu0
        %v5458 = vpop.f32.mrb[0].mxu0
        %v5459 = vadd.f32 %v5394, %v5458
        %v5460 = vpop.f32.mrb[0].mxu0
        %5461 = vmatprep.mubr.bf16.mxu0 %v1843
        %5462 = vmatmul.mubr.bf16.gmra.mrb[0].mxu0 %v1842
        %v5463 = vpop.f32.mrb[0].mxu0
        %v5464 = vadd.f32 %v5399, %v5463
        %v5465 = vpop.f32.mrb[0].mxu0
        %v5466 = vpop.f32.mrb[0].mxu0
        %v5467 = vadd.f32 %v5402, %v5466
        %v5468 = vpop.f32.mrb[0].mxu0
        %5469 = vdwg.mxu0
        %5470 = vmatprep.subr.bf16.mxu0 0
        %5471 = vmatpush1.bf16.msra.mxu0 %v4211
        %5472 = vmatprep.subr.bf16.mxu0 0
        %5473 = vmatpush1.bf16.msra.mxu0 %v4212
        %5474 = vmatprep.subr.bf16.mxu0 0
        %5475 = vmatpush1.bf16.msra.mxu0 %v4213
        %5476 = vmatprep.subr.bf16.mxu0 0
        %5477 = vmatpush1.bf16.msra.mxu0 %v4214
        %5478 = vmatprep.subr.bf16.mxu0 0
        %5479 = vmatpush1.bf16.msra.mxu0 %v4215
        %5480 = vmatprep.subr.bf16.mxu0 0
        %5481 = vmatpush1.bf16.msra.mxu0 %v4216
        %5482 = vmatprep.subr.bf16.mxu0 0
        %5483 = vmatpush1.bf16.msra.mxu0 %v4217
        %5484 = vmatprep.subr.bf16.mxu0 0
        %5485 = vmatpush1.bf16.msra.mxu0 %v4218
        %5486 = vmatprep.subr.bf16.mxu0 0
        %5487 = vmatpush1.bf16.msra.mxu0 %v4219
        %5488 = vmatprep.subr.bf16.mxu0 0
        %5489 = vmatpush1.bf16.msra.mxu0 %v4220
        %5490 = vmatprep.subr.bf16.mxu0 0
        %5491 = vmatpush1.bf16.msra.mxu0 %v4221
        %5492 = vmatprep.subr.bf16.mxu0 0
        %5493 = vmatpush1.bf16.msra.mxu0 %v4222
        %5494 = vmatprep.subr.bf16.mxu0 0
        %5495 = vmatpush1.bf16.msra.mxu0 %v4223
        %5496 = vmatprep.subr.bf16.mxu0 0
        %5497 = vmatpush1.bf16.msra.mxu0 %v4224
        %5498 = vmatprep.subr.bf16.mxu0 0
        %5499 = vmatpush1.bf16.msra.mxu0 %v4225
        %5500 = vmatprep.subr.bf16.mxu0 0
        %5501 = vmatpush1.bf16.msra.mxu0 %v4226
        %5502 = vmatprep.mubr.bf16.mxu0 %v1710
        %5503 = vmatmul.mubr.bf16.gmra.mrb[0].mxu0 %v1709
        %v5504 = vpop.f32.mrb[0].mxu0
        %v5505 = vadd.f32 %v5440, %v5504
        %v5506 = vpop.f32.mrb[0].mxu0
        %v5507 = vpop.f32.mrb[0].mxu0
        %v5508 = vadd.f32 %v5443, %v5507
        %v5509 = vpop.f32.mrb[0].mxu0
        %5510 = vmatprep.mubr.bf16.mxu0 %v1755
        %5511 = vmatmul.mubr.bf16.gmra.mrb[0].mxu0 %v1754
        %v5512 = vpop.f32.mrb[0].mxu0
        %v5513 = vadd.f32 %v5448, %v5512
        %v5514 = vpop.f32.mrb[0].mxu0
        %v5515 = vpop.f32.mrb[0].mxu0
        %v5516 = vadd.f32 %v5451, %v5515
        %v5517 = vpop.f32.mrb[0].mxu0
        %5518 = vmatprep.mubr.bf16.mxu0 %v1800
        %5519 = vmatmul.mubr.bf16.gmra.mrb[0].mxu0 %v1799
        %v5520 = vpop.f32.mrb[0].mxu0
        %v5521 = vadd.f32 %v5456, %v5520
        %v5522 = vpop.f32.mrb[0].mxu0
        %v5523 = vpop.f32.mrb[0].mxu0
        %v5524 = vadd.f32 %v5459, %v5523
        %v5525 = vpop.f32.mrb[0].mxu0
        %5526 = vmatprep.mubr.bf16.mxu0 %v1845
        %5527 = vmatmul.mubr.bf16.gmra.mrb[0].mxu0 %v1844
        %v5528 = vpop.f32.mrb[0].mxu0
        %v5529 = vadd.f32 %v5464, %v5528
        %v5530 = vpop.f32.mrb[0].mxu0
        %v5531 = vpop.f32.mrb[0].mxu0
        %v5532 = vadd.f32 %v5467, %v5531
        %v5533 = vpop.f32.mrb[0].mxu0
        %5534 = vdwg.mxu0
        %5535 = vmatprep.subr.bf16.mxu0 0
        %5536 = vmatpush1.bf16.msra.mxu0 %v4227
        %5537 = vmatprep.subr.bf16.mxu0 0
        %5538 = vmatpush1.bf16.msra.mxu0 %v4228
        %5539 = vmatprep.subr.bf16.mxu0 0
        %5540 = vmatpush1.bf16.msra.mxu0 %v4229
        %5541 = vmatprep.subr.bf16.mxu0 0
        %5542 = vmatpush1.bf16.msra.mxu0 %v4230
        %5543 = vmatprep.subr.bf16.mxu0 0
        %5544 = vmatpush1.bf16.msra.mxu0 %v4231
        %5545 = vmatprep.subr.bf16.mxu0 0
        %5546 = vmatpush1.bf16.msra.mxu0 %v4232
        %5547 = vmatprep.subr.bf16.mxu0 0
        %5548 = vmatpush1.bf16.msra.mxu0 %v4233
        %5549 = vmatprep.subr.bf16.mxu0 0
        %5550 = vmatpush1.bf16.msra.mxu0 %v4234
        %5551 = vmatprep.subr.bf16.mxu0 0
        %5552 = vmatpush1.bf16.msra.mxu0 %v4235
        %5553 = vmatprep.subr.bf16.mxu0 0
        %5554 = vmatpush1.bf16.msra.mxu0 %v4236
        %5555 = vmatprep.subr.bf16.mxu0 0
        %5556 = vmatpush1.bf16.msra.mxu0 %v4237
        %5557 = vmatprep.subr.bf16.mxu0 0
        %5558 = vmatpush1.bf16.msra.mxu0 %v4238
        %5559 = vmatprep.subr.bf16.mxu0 0
        %5560 = vmatpush1.bf16.msra.mxu0 %v4239
        %5561 = vmatprep.subr.bf16.mxu0 0
        %5562 = vmatpush1.bf16.msra.mxu0 %v4240
        %5563 = vmatprep.subr.bf16.mxu0 0
        %5564 = vmatpush1.bf16.msra.mxu0 %v4241
        %5565 = vmatprep.subr.bf16.mxu0 0
        %5566 = vmatpush1.bf16.msra.mxu0 %v4242
        %5567 = vmatprep.mubr.bf16.mxu0 %v1712
        %5568 = vmatmul.mubr.bf16.gmra.mrb[0].mxu0 %v1711
        %v5569 = vpop.f32.mrb[0].mxu0
        %v5570 = vadd.f32 %v5505, %v5569
        %v5571 = vpop.f32.mrb[0].mxu0
        %v5572 = vpop.f32.mrb[0].mxu0
        %v5573 = vadd.f32 %v5508, %v5572
        %v5574 = vpop.f32.mrb[0].mxu0
        %5575 = vmatprep.mubr.bf16.mxu0 %v1757
        %5576 = vmatmul.mubr.bf16.gmra.mrb[0].mxu0 %v1756
        %v5577 = vpop.f32.mrb[0].mxu0
        %v5578 = vadd.f32 %v5513, %v5577
        %v5579 = vpop.f32.mrb[0].mxu0
        %v5580 = vpop.f32.mrb[0].mxu0
        %v5581 = vadd.f32 %v5516, %v5580
        %v5582 = vpop.f32.mrb[0].mxu0
        %5583 = vmatprep.mubr.bf16.mxu0 %v1802
        %5584 = vmatmul.mubr.bf16.gmra.mrb[0].mxu0 %v1801
        %v5585 = vpop.f32.mrb[0].mxu0
        %v5586 = vadd.f32 %v5521, %v5585
        %v5587 = vpop.f32.mrb[0].mxu0
        %v5588 = vpop.f32.mrb[0].mxu0
        %v5589 = vadd.f32 %v5524, %v5588
        %v5590 = vpop.f32.mrb[0].mxu0
        %5591 = vmatprep.mubr.bf16.mxu0 %v1847
        %5592 = vmatmul.mubr.bf16.gmra.mrb[0].mxu0 %v1846
        %v5593 = vpop.f32.mrb[0].mxu0
        %v5594 = vadd.f32 %v5529, %v5593
        %v5595 = vpop.f32.mrb[0].mxu0
        %v5596 = vpop.f32.mrb[0].mxu0
        %v5597 = vadd.f32 %v5532, %v5596
        %v5598 = vpop.f32.mrb[0].mxu0
        %5599 = vdwg.mxu0
        %5600 = vmatprep.subr.bf16.mxu0 0
        %5601 = vmatpush1.bf16.msra.mxu0 %v4243
        %5602 = vmatprep.subr.bf16.mxu0 0
        %5603 = vmatpush1.bf16.msra.mxu0 %v4244
        %5604 = vmatprep.subr.bf16.mxu0 0
        %5605 = vmatpush1.bf16.msra.mxu0 %v4245
        %5606 = vmatprep.subr.bf16.mxu0 0
        %5607 = vmatpush1.bf16.msra.mxu0 %v4246
        %5608 = vmatprep.subr.bf16.mxu0 0
        %5609 = vmatpush1.bf16.msra.mxu0 %v4247
        %5610 = vmatprep.subr.bf16.mxu0 0
        %5611 = vmatpush1.bf16.msra.mxu0 %v4248
        %5612 = vmatprep.subr.bf16.mxu0 0
        %5613 = vmatpush1.bf16.msra.mxu0 %v4249
        %5614 = vmatprep.subr.bf16.mxu0 0
        %5615 = vmatpush1.bf16.msra.mxu0 %v4250
        %5616 = vmatprep.subr.bf16.mxu0 0
        %5617 = vmatpush1.bf16.msra.mxu0 %v4251
        %5618 = vmatprep.subr.bf16.mxu0 0
        %5619 = vmatpush1.bf16.msra.mxu0 %v4252
        %5620 = vmatprep.subr.bf16.mxu0 0
        %5621 = vmatpush1.bf16.msra.mxu0 %v4253
        %5622 = vmatprep.subr.bf16.mxu0 0
        %5623 = vmatpush1.bf16.msra.mxu0 %v4254
        %5624 = vmatprep.subr.bf16.mxu0 0
        %5625 = vmatpush1.bf16.msra.mxu0 %v4255
        %5626 = vmatprep.subr.bf16.mxu0 0
        %5627 = vmatpush1.bf16.msra.mxu0 %v4256
        %5628 = vmatprep.subr.bf16.mxu0 0
        %5629 = vmatpush1.bf16.msra.mxu0 %v4257
        %5630 = vmatprep.subr.bf16.mxu0 0
        %5631 = vmatpush1.bf16.msra.mxu0 %v4258
        %5632 = vmatprep.mubr.bf16.mxu0 %v1714
        %5633 = vmatmul.mubr.bf16.gmra.mrb[0].mxu0 %v1713
        %v5634 = vpop.f32.mrb[0].mxu0
        %v5635 = vadd.f32 %v5570, %v5634
        %v5636 = vpop.f32.mrb[0].mxu0
        %v5637 = vpop.f32.mrb[0].mxu0
        %v5638 = vadd.f32 %v5573, %v5637
        %v5639 = vpop.f32.mrb[0].mxu0
        %5640 = vmatprep.mubr.bf16.mxu0 %v1759
        %5641 = vmatmul.mubr.bf16.gmra.mrb[0].mxu0 %v1758
        %v5642 = vpop.f32.mrb[0].mxu0
        %v5643 = vadd.f32 %v5578, %v5642
        %v5644 = vpop.f32.mrb[0].mxu0
        %v5645 = vpop.f32.mrb[0].mxu0
        %v5646 = vadd.f32 %v5581, %v5645
        %v5647 = vpop.f32.mrb[0].mxu0
        %5648 = vmatprep.mubr.bf16.mxu0 %v1804
        %5649 = vmatmul.mubr.bf16.gmra.mrb[0].mxu0 %v1803
        %v5650 = vpop.f32.mrb[0].mxu0
        %v5651 = vadd.f32 %v5586, %v5650
        %v5652 = vpop.f32.mrb[0].mxu0
        %v5653 = vpop.f32.mrb[0].mxu0
        %v5654 = vadd.f32 %v5589, %v5653
        %v5655 = vpop.f32.mrb[0].mxu0
        %5656 = vmatprep.mubr.bf16.mxu0 %v1849
        %5657 = vmatmul.mubr.bf16.gmra.mrb[0].mxu0 %v1848
        %v5658 = vpop.f32.mrb[0].mxu0
        %v5659 = vadd.f32 %v5594, %v5658
        %v5660 = vpop.f32.mrb[0].mxu0
        %v5661 = vpop.f32.mrb[0].mxu0
        %v5662 = vadd.f32 %v5597, %v5661
        %v5663 = vpop.f32.mrb[0].mxu0
        %5664 = vdwg.mxu0
        %5665 = vmatprep.subr.bf16.mxu0 0
        %5666 = vmatpush1.bf16.msra.mxu0 %v4259
        %5667 = vmatprep.subr.bf16.mxu0 0
        %5668 = vmatpush1.bf16.msra.mxu0 %v4260
        %5669 = vmatprep.subr.bf16.mxu0 0
        %5670 = vmatpush1.bf16.msra.mxu0 %v4261
        %5671 = vmatprep.subr.bf16.mxu0 0
        %5672 = vmatpush1.bf16.msra.mxu0 %v4262
        %5673 = vmatprep.subr.bf16.mxu0 0
        %5674 = vmatpush1.bf16.msra.mxu0 %v4263
        %5675 = vmatprep.subr.bf16.mxu0 0
        %5676 = vmatpush1.bf16.msra.mxu0 %v4264
        %5677 = vmatprep.subr.bf16.mxu0 0
        %5678 = vmatpush1.bf16.msra.mxu0 %v4265
        %5679 = vmatprep.subr.bf16.mxu0 0
        %5680 = vmatpush1.bf16.msra.mxu0 %v4266
        %5681 = vmatprep.subr.bf16.mxu0 0
        %5682 = vmatpush1.bf16.msra.mxu0 %v4267
        %5683 = vmatprep.subr.bf16.mxu0 0
        %5684 = vmatpush1.bf16.msra.mxu0 %v4268
        %5685 = vmatprep.subr.bf16.mxu0 0
        %5686 = vmatpush1.bf16.msra.mxu0 %v4269
        %5687 = vmatprep.subr.bf16.mxu0 0
        %5688 = vmatpush1.bf16.msra.mxu0 %v4270
        %5689 = vmatprep.subr.bf16.mxu0 0
        %5690 = vmatpush1.bf16.msra.mxu0 %v4271
        %5691 = vmatprep.subr.bf16.mxu0 0
        %5692 = vmatpush1.bf16.msra.mxu0 %v4272
        %5693 = vmatprep.subr.bf16.mxu0 0
        %5694 = vmatpush1.bf16.msra.mxu0 %v4273
        %5695 = vmatprep.subr.bf16.mxu0 0
        %5696 = vmatpush1.bf16.msra.mxu0 %v4274
        %5697 = vmatprep.mubr.bf16.mxu0 %v1716
        %5698 = vmatmul.mubr.bf16.gmra.mrb[0].mxu0 %v1715
        %v5699 = vpop.f32.mrb[0].mxu0
        %v5700 = vadd.f32 %v5635, %v5699
        %v5701 = vpop.f32.mrb[0].mxu0
        %v5702 = vpop.f32.mrb[0].mxu0
        %v5703 = vadd.f32 %v5638, %v5702
        %v5704 = vpop.f32.mrb[0].mxu0
        %5705 = vmatprep.mubr.bf16.mxu0 %v1761
        %5706 = vmatmul.mubr.bf16.gmra.mrb[0].mxu0 %v1760
        %v5707 = vpop.f32.mrb[0].mxu0
        %v5708 = vadd.f32 %v5643, %v5707
        %v5709 = vpop.f32.mrb[0].mxu0
        %v5710 = vpop.f32.mrb[0].mxu0
        %v5711 = vadd.f32 %v5646, %v5710
        %v5712 = vpop.f32.mrb[0].mxu0
        %5713 = vmatprep.mubr.bf16.mxu0 %v1806
        %5714 = vmatmul.mubr.bf16.gmra.mrb[0].mxu0 %v1805
        %v5715 = vpop.f32.mrb[0].mxu0
        %v5716 = vadd.f32 %v5651, %v5715
        %v5717 = vpop.f32.mrb[0].mxu0
        %v5718 = vpop.f32.mrb[0].mxu0
        %v5719 = vadd.f32 %v5654, %v5718
        %v5720 = vpop.f32.mrb[0].mxu0
        %5721 = vmatprep.mubr.bf16.mxu0 %v1851
        %5722 = vmatmul.mubr.bf16.gmra.mrb[0].mxu0 %v1850
        %v5723 = vpop.f32.mrb[0].mxu0
        %v5724 = vadd.f32 %v5659, %v5723
        %v5725 = vpop.f32.mrb[0].mxu0
        %v5726 = vpop.f32.mrb[0].mxu0
        %v5727 = vadd.f32 %v5662, %v5726
        %v5728 = vpop.f32.mrb[0].mxu0
        %5729 = vdwg.mxu0
        %5730 = vmatprep.subr.bf16.mxu0 0
        %5731 = vmatpush1.bf16.msra.mxu0 %v4275
        %5732 = vmatprep.subr.bf16.mxu0 0
        %5733 = vmatpush1.bf16.msra.mxu0 %v4276
        %5734 = vmatprep.subr.bf16.mxu0 0
        %5735 = vmatpush1.bf16.msra.mxu0 %v4277
        %5736 = vmatprep.subr.bf16.mxu0 0
        %5737 = vmatpush1.bf16.msra.mxu0 %v4278
        %5738 = vmatprep.subr.bf16.mxu0 0
        %5739 = vmatpush1.bf16.msra.mxu0 %v4279
        %5740 = vmatprep.subr.bf16.mxu0 0
        %5741 = vmatpush1.bf16.msra.mxu0 %v4280
        %5742 = vmatprep.subr.bf16.mxu0 0
        %5743 = vmatpush1.bf16.msra.mxu0 %v4281
        %5744 = vmatprep.subr.bf16.mxu0 0
        %5745 = vmatpush1.bf16.msra.mxu0 %v4282
        %5746 = vmatprep.subr.bf16.mxu0 0
        %5747 = vmatpush1.bf16.msra.mxu0 %v4283
        %5748 = vmatprep.subr.bf16.mxu0 0
        %5749 = vmatpush1.bf16.msra.mxu0 %v4284
        %5750 = vmatprep.subr.bf16.mxu0 0
        %5751 = vmatpush1.bf16.msra.mxu0 %v4285
        %5752 = vmatprep.subr.bf16.mxu0 0
        %5753 = vmatpush1.bf16.msra.mxu0 %v4286
        %5754 = vmatprep.subr.bf16.mxu0 0
        %5755 = vmatpush1.bf16.msra.mxu0 %v4287
        %5756 = vmatprep.subr.bf16.mxu0 0
        %5757 = vmatpush1.bf16.msra.mxu0 %v4288
        %5758 = vmatprep.subr.bf16.mxu0 0
        %5759 = vmatpush1.bf16.msra.mxu0 %v4289
        %5760 = vmatprep.subr.bf16.mxu0 0
        %5761 = vmatpush1.bf16.msra.mxu0 %v4290
        %5762 = vmatprep.mubr.bf16.mxu0 %v1718
        %5763 = vmatmul.mubr.bf16.gmra.mrb[0].mxu0 %v1717
        %v5764 = vpop.f32.mrb[0].mxu0
        %v5765 = vadd.f32 %v5700, %v5764
        %v5766 = vpop.f32.mrb[0].mxu0
        %v5767 = vpop.f32.mrb[0].mxu0
        %v5768 = vadd.f32 %v5703, %v5767
        %v5769 = vpop.f32.mrb[0].mxu0
        %5770 = vmatprep.mubr.bf16.mxu0 %v1763
        %5771 = vmatmul.mubr.bf16.gmra.mrb[0].mxu0 %v1762
        %v5772 = vpop.f32.mrb[0].mxu0
        %v5773 = vadd.f32 %v5708, %v5772
        %v5774 = vpop.f32.mrb[0].mxu0
        %v5775 = vpop.f32.mrb[0].mxu0
        %v5776 = vadd.f32 %v5711, %v5775
        %v5777 = vpop.f32.mrb[0].mxu0
        %5778 = vmatprep.mubr.bf16.mxu0 %v1808
        %5779 = vmatmul.mubr.bf16.gmra.mrb[0].mxu0 %v1807
        %v5780 = vpop.f32.mrb[0].mxu0
        %v5781 = vadd.f32 %v5716, %v5780
        %v5782 = vpop.f32.mrb[0].mxu0
        %v5783 = vpop.f32.mrb[0].mxu0
        %v5784 = vadd.f32 %v5719, %v5783
        %v5785 = vpop.f32.mrb[0].mxu0
        %5786 = vmatprep.mubr.bf16.mxu0 %v1853
        %5787 = vmatmul.mubr.bf16.gmra.mrb[0].mxu0 %v1852
        %v5788 = vpop.f32.mrb[0].mxu0
        %v5789 = vadd.f32 %v5724, %v5788
        %v5790 = vpop.f32.mrb[0].mxu0
        %v5791 = vpop.f32.mrb[0].mxu0
        %v5792 = vadd.f32 %v5727, %v5791
        %v5793 = vpop.f32.mrb[0].mxu0
        %5794 = vdwg.mxu0
        %5795 = vmatprep.subr.bf16.mxu0 0
        %5796 = vmatpush1.bf16.msra.mxu0 %v4291
        %5797 = vmatprep.subr.bf16.mxu0 0
        %5798 = vmatpush1.bf16.msra.mxu0 %v4292
        %5799 = vmatprep.subr.bf16.mxu0 0
        %5800 = vmatpush1.bf16.msra.mxu0 %v4293
        %5801 = vmatprep.subr.bf16.mxu0 0
        %5802 = vmatpush1.bf16.msra.mxu0 %v4294
        %5803 = vmatprep.subr.bf16.mxu0 0
        %5804 = vmatpush1.bf16.msra.mxu0 %v4295
        %5805 = vmatprep.subr.bf16.mxu0 0
        %5806 = vmatpush1.bf16.msra.mxu0 %v4296
        %5807 = vmatprep.subr.bf16.mxu0 0
        %5808 = vmatpush1.bf16.msra.mxu0 %v4297
        %5809 = vmatprep.subr.bf16.mxu0 0
        %5810 = vmatpush1.bf16.msra.mxu0 %v4298
        %5811 = vmatprep.subr.bf16.mxu0 0
        %5812 = vmatpush1.bf16.msra.mxu0 %v4299
        %5813 = vmatprep.subr.bf16.mxu0 0
        %5814 = vmatpush1.bf16.msra.mxu0 %v4300
        %5815 = vmatprep.subr.bf16.mxu0 0
        %5816 = vmatpush1.bf16.msra.mxu0 %v4301
        %5817 = vmatprep.subr.bf16.mxu0 0
        %5818 = vmatpush1.bf16.msra.mxu0 %v4302
        %5819 = vmatprep.subr.bf16.mxu0 0
        %5820 = vmatpush1.bf16.msra.mxu0 %v4303
        %5821 = vmatprep.subr.bf16.mxu0 0
        %5822 = vmatpush1.bf16.msra.mxu0 %v4304
        %5823 = vmatprep.subr.bf16.mxu0 0
        %5824 = vmatpush1.bf16.msra.mxu0 %v4305
        %5825 = vmatprep.subr.bf16.mxu0 0
        %5826 = vmatpush1.bf16.msra.mxu0 %v4306
        %5827 = vmatprep.mubr.bf16.mxu0 %v1720
        %5828 = vmatmul.mubr.bf16.gmra.mrb[0].mxu0 %v1719
        %v5829 = vpop.f32.mrb[0].mxu0
        %v5830 = vadd.f32 %v5765, %v5829
        %v5831 = vpop.f32.mrb[0].mxu0
        %v5832 = vpop.f32.mrb[0].mxu0
        %v5833 = vadd.f32 %v5768, %v5832
        %v5834 = vpop.f32.mrb[0].mxu0
        %5835 = vmatprep.mubr.bf16.mxu0 %v1765
        %5836 = vmatmul.mubr.bf16.gmra.mrb[0].mxu0 %v1764
        %v5837 = vpop.f32.mrb[0].mxu0
        %v5838 = vadd.f32 %v5773, %v5837
        %v5839 = vpop.f32.mrb[0].mxu0
        %v5840 = vpop.f32.mrb[0].mxu0
        %v5841 = vadd.f32 %v5776, %v5840
        %v5842 = vpop.f32.mrb[0].mxu0
        %5843 = vmatprep.mubr.bf16.mxu0 %v1810
        %5844 = vmatmul.mubr.bf16.gmra.mrb[0].mxu0 %v1809
        %v5845 = vpop.f32.mrb[0].mxu0
        %v5846 = vadd.f32 %v5781, %v5845
        %v5847 = vpop.f32.mrb[0].mxu0
        %v5848 = vpop.f32.mrb[0].mxu0
        %v5849 = vadd.f32 %v5784, %v5848
        %v5850 = vpop.f32.mrb[0].mxu0
        %5851 = vmatprep.mubr.bf16.mxu0 %v1855
        %5852 = vmatmul.mubr.bf16.gmra.mrb[0].mxu0 %v1854
        %v5853 = vpop.f32.mrb[0].mxu0
        %v5854 = vadd.f32 %v5789, %v5853
        %v5855 = vpop.f32.mrb[0].mxu0
        %v5856 = vpop.f32.mrb[0].mxu0
        %v5857 = vadd.f32 %v5792, %v5856
        %v5858 = vpop.f32.mrb[0].mxu0
        %5859 = vdwg.mxu0
        %5860 = vmatprep.subr.bf16.mxu0 0
        %5861 = vmatpush1.bf16.msra.mxu0 %v4307
        %5862 = vmatprep.subr.bf16.mxu0 0
        %5863 = vmatpush1.bf16.msra.mxu0 %v4308
        %5864 = vmatprep.subr.bf16.mxu0 0
        %5865 = vmatpush1.bf16.msra.mxu0 %v4309
        %5866 = vmatprep.subr.bf16.mxu0 0
        %5867 = vmatpush1.bf16.msra.mxu0 %v4310
        %5868 = vmatprep.subr.bf16.mxu0 0
        %5869 = vmatpush1.bf16.msra.mxu0 %v4311
        %5870 = vmatprep.subr.bf16.mxu0 0
        %5871 = vmatpush1.bf16.msra.mxu0 %v4312
        %5872 = vmatprep.subr.bf16.mxu0 0
        %5873 = vmatpush1.bf16.msra.mxu0 %v4313
        %5874 = vmatprep.subr.bf16.mxu0 0
        %5875 = vmatpush1.bf16.msra.mxu0 %v4314
        %5876 = vmatprep.subr.bf16.mxu0 0
        %5877 = vmatpush1.bf16.msra.mxu0 %v4315
        %5878 = vmatprep.subr.bf16.mxu0 0
        %5879 = vmatpush1.bf16.msra.mxu0 %v4316
        %5880 = vmatprep.subr.bf16.mxu0 0
        %5881 = vmatpush1.bf16.msra.mxu0 %v4317
        %5882 = vmatprep.subr.bf16.mxu0 0
        %5883 = vmatpush1.bf16.msra.mxu0 %v4318
        %5884 = vmatprep.subr.bf16.mxu0 0
        %5885 = vmatpush1.bf16.msra.mxu0 %v4319
        %5886 = vmatprep.subr.bf16.mxu0 0
        %5887 = vmatpush1.bf16.msra.mxu0 %v4320
        %5888 = vmatprep.subr.bf16.mxu0 0
        %5889 = vmatpush1.bf16.msra.mxu0 %v4321
        %5890 = vmatprep.subr.bf16.mxu0 0
        %5891 = vmatpush1.bf16.msra.mxu0 %v4322
        %5892 = vmatprep.mubr.bf16.mxu0 %v1722
        %5893 = vmatmul.mubr.bf16.gmra.mrb[0].mxu0 %v1721
        %v5894 = vpop.f32.mrb[0].mxu0
        %v5895 = vadd.f32 %v5830, %v5894
        %v5896 = vpop.f32.mrb[0].mxu0
        %v5897 = vpop.f32.mrb[0].mxu0
        %v5898 = vadd.f32 %v5833, %v5897
        %v5899 = vpop.f32.mrb[0].mxu0
        %5900 = vmatprep.mubr.bf16.mxu0 %v1767
        %5901 = vmatmul.mubr.bf16.gmra.mrb[0].mxu0 %v1766
        %v5902 = vpop.f32.mrb[0].mxu0
        %v5903 = vadd.f32 %v5838, %v5902
        %v5904 = vpop.f32.mrb[0].mxu0
        %v5905 = vpop.f32.mrb[0].mxu0
        %v5906 = vadd.f32 %v5841, %v5905
        %v5907 = vpop.f32.mrb[0].mxu0
        %5908 = vmatprep.mubr.bf16.mxu0 %v1812
        %5909 = vmatmul.mubr.bf16.gmra.mrb[0].mxu0 %v1811
        %v5910 = vpop.f32.mrb[0].mxu0
        %v5911 = vadd.f32 %v5846, %v5910
        %v5912 = vpop.f32.mrb[0].mxu0
        %v5913 = vpop.f32.mrb[0].mxu0
        %v5914 = vadd.f32 %v5849, %v5913
        %v5915 = vpop.f32.mrb[0].mxu0
        %5916 = vmatprep.mubr.bf16.mxu0 %v1857
        %5917 = vmatmul.mubr.bf16.gmra.mrb[0].mxu0 %v1856
        %v5918 = vpop.f32.mrb[0].mxu0
        %v5919 = vadd.f32 %v5854, %v5918
        %v5920 = vpop.f32.mrb[0].mxu0
        %v5921 = vpop.f32.mrb[0].mxu0
        %v5922 = vadd.f32 %v5857, %v5921
        %v5923 = vpop.f32.mrb[0].mxu0
        %5924 = vdwg.mxu0
        %5925 = vmatprep.subr.bf16.mxu0 0
        %5926 = vmatpush1.bf16.msra.mxu0 %v4323
        %5927 = vmatprep.subr.bf16.mxu0 0
        %5928 = vmatpush1.bf16.msra.mxu0 %v4324
        %5929 = vmatprep.subr.bf16.mxu0 0
        %5930 = vmatpush1.bf16.msra.mxu0 %v4325
        %5931 = vmatprep.subr.bf16.mxu0 0
        %5932 = vmatpush1.bf16.msra.mxu0 %v4326
        %5933 = vmatprep.subr.bf16.mxu0 0
        %5934 = vmatpush1.bf16.msra.mxu0 %v4327
        %5935 = vmatprep.subr.bf16.mxu0 0
        %5936 = vmatpush1.bf16.msra.mxu0 %v4328
        %5937 = vmatprep.subr.bf16.mxu0 0
        %5938 = vmatpush1.bf16.msra.mxu0 %v4329
        %5939 = vmatprep.subr.bf16.mxu0 0
        %5940 = vmatpush1.bf16.msra.mxu0 %v4330
        %5941 = vmatprep.subr.bf16.mxu0 0
        %5942 = vmatpush1.bf16.msra.mxu0 %v4331
        %5943 = vmatprep.subr.bf16.mxu0 0
        %5944 = vmatpush1.bf16.msra.mxu0 %v4332
        %5945 = vmatprep.subr.bf16.mxu0 0
        %5946 = vmatpush1.bf16.msra.mxu0 %v4333
        %5947 = vmatprep.subr.bf16.mxu0 0
        %5948 = vmatpush1.bf16.msra.mxu0 %v4334
        %5949 = vmatprep.subr.bf16.mxu0 0
        %5950 = vmatpush1.bf16.msra.mxu0 %v4335
        %5951 = vmatprep.subr.bf16.mxu0 0
        %5952 = vmatpush1.bf16.msra.mxu0 %v4336
        %5953 = vmatprep.subr.bf16.mxu0 0
        %5954 = vmatpush1.bf16.msra.mxu0 %v4337
        %5955 = vmatprep.subr.bf16.mxu0 0
        %5956 = vmatpush1.bf16.msra.mxu0 %v4338
        %5957 = vmatprep.mubr.bf16.mxu0 %v1724
        %5958 = vmatmul.mubr.bf16.gmra.mrb[0].mxu0 %v1723
        %v5959 = vpop.f32.mrb[0].mxu0
        %v5960 = vadd.f32 %v5895, %v5959
        %v5961 = vpop.f32.mrb[0].mxu0
        %v5962 = vpop.f32.mrb[0].mxu0
        %v5963 = vadd.f32 %v5898, %v5962
        %v5964 = vpop.f32.mrb[0].mxu0
        %5965 = vmatprep.mubr.bf16.mxu0 %v1769
        %5966 = vmatmul.mubr.bf16.gmra.mrb[0].mxu0 %v1768
        %v5967 = vpop.f32.mrb[0].mxu0
        %v5968 = vadd.f32 %v5903, %v5967
        %v5969 = vpop.f32.mrb[0].mxu0
        %v5970 = vpop.f32.mrb[0].mxu0
        %v5971 = vadd.f32 %v5906, %v5970
        %v5972 = vpop.f32.mrb[0].mxu0
        %5973 = vmatprep.mubr.bf16.mxu0 %v1814
        %5974 = vmatmul.mubr.bf16.gmra.mrb[0].mxu0 %v1813
        %v5975 = vpop.f32.mrb[0].mxu0
        %v5976 = vadd.f32 %v5911, %v5975
        %v5977 = vpop.f32.mrb[0].mxu0
        %v5978 = vpop.f32.mrb[0].mxu0
        %v5979 = vadd.f32 %v5914, %v5978
        %v5980 = vpop.f32.mrb[0].mxu0
        %5981 = vmatprep.mubr.bf16.mxu0 %v1859
        %5982 = vmatmul.mubr.bf16.gmra.mrb[0].mxu0 %v1858
        %v5983 = vpop.f32.mrb[0].mxu0
        %v5984 = vadd.f32 %v5919, %v5983
        %v5985 = vpop.f32.mrb[0].mxu0
        %v5986 = vpop.f32.mrb[0].mxu0
        %v5987 = vadd.f32 %v5922, %v5986
        %v5988 = vpop.f32.mrb[0].mxu0
        %5989 = vdwg.mxu0
        %5990 = vmatprep.subr.bf16.mxu0 0
        %5991 = vmatpush1.bf16.msra.mxu0 %v4339
        %5992 = vmatprep.subr.bf16.mxu0 0
        %5993 = vmatpush1.bf16.msra.mxu0 %v4340
        %5994 = vmatprep.subr.bf16.mxu0 0
        %5995 = vmatpush1.bf16.msra.mxu0 %v4341
        %5996 = vmatprep.subr.bf16.mxu0 0
        %5997 = vmatpush1.bf16.msra.mxu0 %v4342
        %5998 = vmatprep.subr.bf16.mxu0 0
        %5999 = vmatpush1.bf16.msra.mxu0 %v4343
        %6000 = vmatprep.subr.bf16.mxu0 0
        %6001 = vmatpush1.bf16.msra.mxu0 %v4344
        %6002 = vmatprep.subr.bf16.mxu0 0
        %6003 = vmatpush1.bf16.msra.mxu0 %v4345
        %6004 = vmatprep.subr.bf16.mxu0 0
        %6005 = vmatpush1.bf16.msra.mxu0 %v4346
        %6006 = vmatprep.subr.bf16.mxu0 0
        %6007 = vmatpush1.bf16.msra.mxu0 %v4347
        %6008 = vmatprep.subr.bf16.mxu0 0
        %6009 = vmatpush1.bf16.msra.mxu0 %v4348
        %6010 = vmatprep.subr.bf16.mxu0 0
        %6011 = vmatpush1.bf16.msra.mxu0 %v4349
        %6012 = vmatprep.subr.bf16.mxu0 0
        %6013 = vmatpush1.bf16.msra.mxu0 %v4350
        %6014 = vmatprep.subr.bf16.mxu0 0
        %6015 = vmatpush1.bf16.msra.mxu0 %v4351
        %6016 = vmatprep.subr.bf16.mxu0 0
        %6017 = vmatpush1.bf16.msra.mxu0 %v4352
        %6018 = vmatprep.subr.bf16.mxu0 0
        %6019 = vmatpush1.bf16.msra.mxu0 %v4353
        %6020 = vmatprep.subr.bf16.mxu0 0
        %6021 = vmatpush1.bf16.msra.mxu0 %v4354
        %6022 = vmatprep.mubr.bf16.mxu0 %v1726
        %6023 = vmatmul.mubr.bf16.gmra.mrb[0].mxu0 %v1725
        %v6024 = vpop.f32.mrb[0].mxu0
        %v6025 = vadd.f32 %v5960, %v6024
        %v6026 = vpop.f32.mrb[0].mxu0
        %v6027 = vpop.f32.mrb[0].mxu0
        %v6028 = vadd.f32 %v5963, %v6027
        %v6029 = vpop.f32.mrb[0].mxu0
        %6030 = vmatprep.mubr.bf16.mxu0 %v1771
        %6031 = vmatmul.mubr.bf16.gmra.mrb[0].mxu0 %v1770
        %v6032 = vpop.f32.mrb[0].mxu0
        %v6033 = vadd.f32 %v5968, %v6032
        %v6034 = vpop.f32.mrb[0].mxu0
        %v6035 = vpop.f32.mrb[0].mxu0
        %v6036 = vadd.f32 %v5971, %v6035
        %v6037 = vpop.f32.mrb[0].mxu0
        %6038 = vmatprep.mubr.bf16.mxu0 %v1816
        %6039 = vmatmul.mubr.bf16.gmra.mrb[0].mxu0 %v1815
        %v6040 = vpop.f32.mrb[0].mxu0
        %v6041 = vadd.f32 %v5976, %v6040
        %v6042 = vpop.f32.mrb[0].mxu0
        %v6043 = vpop.f32.mrb[0].mxu0
        %v6044 = vadd.f32 %v5979, %v6043
        %v6045 = vpop.f32.mrb[0].mxu0
        %6046 = vmatprep.mubr.bf16.mxu0 %v1861
        %6047 = vmatmul.mubr.bf16.gmra.mrb[0].mxu0 %v1860
        %v6048 = vpop.f32.mrb[0].mxu0
        %v6049 = vadd.f32 %v5984, %v6048
        %v6050 = vpop.f32.mrb[0].mxu0
        %v6051 = vpop.f32.mrb[0].mxu0
        %v6052 = vadd.f32 %v5987, %v6051
        %v6053 = vpop.f32.mrb[0].mxu0
        %6054 = vdwg.mxu0
        %6055 = vmatprep.subr.bf16.mxu0 0
        %6056 = vmatpush1.bf16.msra.mxu0 %v4355
        %6057 = vmatprep.subr.bf16.mxu0 0
        %6058 = vmatpush1.bf16.msra.mxu0 %v4356
        %6059 = vmatprep.subr.bf16.mxu0 0
        %6060 = vmatpush1.bf16.msra.mxu0 %v4357
        %6061 = vmatprep.subr.bf16.mxu0 0
        %6062 = vmatpush1.bf16.msra.mxu0 %v4358
        %6063 = vmatprep.subr.bf16.mxu0 0
        %6064 = vmatpush1.bf16.msra.mxu0 %v4359
        %6065 = vmatprep.subr.bf16.mxu0 0
        %6066 = vmatpush1.bf16.msra.mxu0 %v4360
        %6067 = vmatprep.subr.bf16.mxu0 0
        %6068 = vmatpush1.bf16.msra.mxu0 %v4361
        %6069 = vmatprep.subr.bf16.mxu0 0
        %6070 = vmatpush1.bf16.msra.mxu0 %v4362
        %6071 = vmatprep.subr.bf16.mxu0 0
        %6072 = vmatpush1.bf16.msra.mxu0 %v4363
        %6073 = vmatprep.subr.bf16.mxu0 0
        %6074 = vmatpush1.bf16.msra.mxu0 %v4364
        %6075 = vmatprep.subr.bf16.mxu0 0
        %6076 = vmatpush1.bf16.msra.mxu0 %v4365
        %6077 = vmatprep.subr.bf16.mxu0 0
        %6078 = vmatpush1.bf16.msra.mxu0 %v4366
        %6079 = vmatprep.subr.bf16.mxu0 0
        %6080 = vmatpush1.bf16.msra.mxu0 %v4367
        %6081 = vmatprep.subr.bf16.mxu0 0
        %6082 = vmatpush1.bf16.msra.mxu0 %v4368
        %6083 = vmatprep.subr.bf16.mxu0 0
        %6084 = vmatpush1.bf16.msra.mxu0 %v4369
        %6085 = vmatprep.subr.bf16.mxu0 0
        %6086 = vmatpush1.bf16.msra.mxu0 %v4370
        %6087 = vmatprep.mubr.bf16.mxu0 %v1728
        %6088 = vmatmul.mubr.bf16.gmra.mrb[0].mxu0 %v1727
        %v6089 = vpop.f32.mrb[0].mxu0
        %v6090 = vadd.f32 %v6025, %v6089
        %v6091 = vpop.f32.mrb[0].mxu0
        %v6092 = vpop.f32.mrb[0].mxu0
        %v6093 = vadd.f32 %v6028, %v6092
        %v6094 = vpop.f32.mrb[0].mxu0
        %6095 = vmatprep.mubr.bf16.mxu0 %v1773
        %6096 = vmatmul.mubr.bf16.gmra.mrb[0].mxu0 %v1772
        %v6097 = vpop.f32.mrb[0].mxu0
        %v6098 = vadd.f32 %v6033, %v6097
        %v6099 = vpop.f32.mrb[0].mxu0
        %v6100 = vpop.f32.mrb[0].mxu0
        %v6101 = vadd.f32 %v6036, %v6100
        %v6102 = vpop.f32.mrb[0].mxu0
        %6103 = vmatprep.mubr.bf16.mxu0 %v1818
        %6104 = vmatmul.mubr.bf16.gmra.mrb[0].mxu0 %v1817
        %v6105 = vpop.f32.mrb[0].mxu0
        %v6106 = vadd.f32 %v6041, %v6105
        %v6107 = vpop.f32.mrb[0].mxu0
        %v6108 = vpop.f32.mrb[0].mxu0
        %v6109 = vadd.f32 %v6044, %v6108
        %v6110 = vpop.f32.mrb[0].mxu0
        %6111 = vmatprep.mubr.bf16.mxu0 %v1863
        %6112 = vmatmul.mubr.bf16.gmra.mrb[0].mxu0 %v1862
        %v6113 = vpop.f32.mrb[0].mxu0
        %v6114 = vadd.f32 %v6049, %v6113
        %v6115 = vpop.f32.mrb[0].mxu0
        %v6116 = vpop.f32.mrb[0].mxu0
        %v6117 = vadd.f32 %v6052, %v6116
        %v6118 = vpop.f32.mrb[0].mxu0
        %6119 = vdwg.mxu0
        %6120 = vmatprep.subr.bf16.mxu0 0
        %6121 = vmatpush1.bf16.msra.mxu0 %v4371
        %6122 = vmatprep.subr.bf16.mxu0 0
        %6123 = vmatpush1.bf16.msra.mxu0 %v4372
        %6124 = vmatprep.subr.bf16.mxu0 0
        %6125 = vmatpush1.bf16.msra.mxu0 %v4373
        %6126 = vmatprep.subr.bf16.mxu0 0
        %6127 = vmatpush1.bf16.msra.mxu0 %v4374
        %6128 = vmatprep.subr.bf16.mxu0 0
        %6129 = vmatpush1.bf16.msra.mxu0 %v4375
        %6130 = vmatprep.subr.bf16.mxu0 0
        %6131 = vmatpush1.bf16.msra.mxu0 %v4376
        %6132 = vmatprep.subr.bf16.mxu0 0
        %6133 = vmatpush1.bf16.msra.mxu0 %v4377
        %6134 = vmatprep.subr.bf16.mxu0 0
        %6135 = vmatpush1.bf16.msra.mxu0 %v4378
        %6136 = vmatprep.subr.bf16.mxu0 0
        %6137 = vmatpush1.bf16.msra.mxu0 %v4379
        %6138 = vmatprep.subr.bf16.mxu0 0
        %6139 = vmatpush1.bf16.msra.mxu0 %v4380
        %6140 = vmatprep.subr.bf16.mxu0 0
        %6141 = vmatpush1.bf16.msra.mxu0 %v4381
        %6142 = vmatprep.subr.bf16.mxu0 0
        %6143 = vmatpush1.bf16.msra.mxu0 %v4382
        %6144 = vmatprep.subr.bf16.mxu0 0
        %6145 = vmatpush1.bf16.msra.mxu0 %v4383
        %6146 = vmatprep.subr.bf16.mxu0 0
        %6147 = vmatpush1.bf16.msra.mxu0 %v4384
        %6148 = vmatprep.subr.bf16.mxu0 0
        %6149 = vmatpush1.bf16.msra.mxu0 %v4385
        %6150 = vmatprep.subr.bf16.mxu0 0
        %6151 = vmatpush1.bf16.msra.mxu0 %v4386
        %6152 = vmatprep.mubr.bf16.mxu0 %v1730
        %6153 = vmatmul.mubr.bf16.gmra.mrb[0].mxu0 %v1729
        %v6154 = vpop.f32.mrb[0].mxu0
        %v6155 = vadd.f32 %v6090, %v6154
        %v6156 = vpop.f32.mrb[0].mxu0
        %v6157 = vpop.f32.mrb[0].mxu0
        %v6158 = vadd.f32 %v6093, %v6157
        %v6159 = vpop.f32.mrb[0].mxu0
        %6160 = vmatprep.mubr.bf16.mxu0 %v1775
        %6161 = vmatmul.mubr.bf16.gmra.mrb[0].mxu0 %v1774
        %v6162 = vpop.f32.mrb[0].mxu0
        %v6163 = vadd.f32 %v6098, %v6162
        %v6164 = vpop.f32.mrb[0].mxu0
        %v6165 = vpop.f32.mrb[0].mxu0
        %v6166 = vadd.f32 %v6101, %v6165
        %v6167 = vpop.f32.mrb[0].mxu0
        %6168 = vmatprep.mubr.bf16.mxu0 %v1820
        %6169 = vmatmul.mubr.bf16.gmra.mrb[0].mxu0 %v1819
        %v6170 = vpop.f32.mrb[0].mxu0
        %v6171 = vadd.f32 %v6106, %v6170
        %v6172 = vpop.f32.mrb[0].mxu0
        %v6173 = vpop.f32.mrb[0].mxu0
        %v6174 = vadd.f32 %v6109, %v6173
        %v6175 = vpop.f32.mrb[0].mxu0
        %6176 = vmatprep.mubr.bf16.mxu0 %v1865
        %6177 = vmatmul.mubr.bf16.gmra.mrb[0].mxu0 %v1864
        %v6178 = vpop.f32.mrb[0].mxu0
        %v6179 = vadd.f32 %v6114, %v6178
        %v6180 = vpop.f32.mrb[0].mxu0
        %v6181 = vpop.f32.mrb[0].mxu0
        %v6182 = vadd.f32 %v6117, %v6181
        %v6183 = vpop.f32.mrb[0].mxu0
        %6184 = vdwg.mxu0
        %6185 = vmatprep.subr.bf16.mxu0 0
        %6186 = vmatpush1.bf16.msra.mxu0 %v4387
        %6187 = vmatprep.subr.bf16.mxu0 0
        %6188 = vmatpush1.bf16.msra.mxu0 %v4388
        %6189 = vmatprep.subr.bf16.mxu0 0
        %6190 = vmatpush1.bf16.msra.mxu0 %v4389
        %6191 = vmatprep.subr.bf16.mxu0 0
        %6192 = vmatpush1.bf16.msra.mxu0 %v4390
        %6193 = vmatprep.subr.bf16.mxu0 0
        %6194 = vmatpush1.bf16.msra.mxu0 %v4391
        %6195 = vmatprep.subr.bf16.mxu0 0
        %6196 = vmatpush1.bf16.msra.mxu0 %v4392
        %6197 = vmatprep.subr.bf16.mxu0 0
        %6198 = vmatpush1.bf16.msra.mxu0 %v4393
        %6199 = vmatprep.subr.bf16.mxu0 0
        %6200 = vmatpush1.bf16.msra.mxu0 %v4394
        %6201 = vmatprep.subr.bf16.mxu0 0
        %6202 = vmatpush1.bf16.msra.mxu0 0
        %6203 = vmatprep.subr.bf16.mxu0 0
        %6204 = vmatpush1.bf16.msra.mxu0 0
        %6205 = vmatprep.subr.bf16.mxu0 0
        %6206 = vmatpush1.bf16.msra.mxu0 0
        %6207 = vmatprep.subr.bf16.mxu0 0
        %6208 = vmatpush1.bf16.msra.mxu0 0
        %6209 = vmatprep.subr.bf16.mxu0 0
        %6210 = vmatpush1.bf16.msra.mxu0 0
        %6211 = vmatprep.subr.bf16.mxu0 0
        %6212 = vmatpush1.bf16.msra.mxu0 0
        %6213 = vmatprep.subr.bf16.mxu0 0
        %6214 = vmatpush1.bf16.msra.mxu0 0
        %6215 = vmatprep.subr.bf16.mxu0 0
        %6216 = vmatpush1.bf16.msra.mxu0 0
        %6217 = vmatprep.mubr.bf16.mxu0 0
        %6218 = vmatmul.mubr.bf16.gmra.mrb[0].mxu0 %v1731
        %v6219 = vpop.f32.mrb[0].mxu0
        %v6220 = vadd.f32 %v6155, %v6219
        %v6221 = vpop.f32.mrb[0].mxu0
        %v6222 = vpop.f32.mrb[0].mxu0
        %v6223 = vadd.f32 %v6158, %v6222
        %v6224 = vpop.f32.mrb[0].mxu0
        %6225 = vmatprep.mubr.bf16.mxu0 0
        %6226 = vmatmul.mubr.bf16.gmra.mrb[0].mxu0 %v1776
        %v6227 = vpop.f32.mrb[0].mxu0
        %v6228 = vadd.f32 %v6163, %v6227
        %v6229 = vpop.f32.mrb[0].mxu0
        %v6230 = vpop.f32.mrb[0].mxu0
        %v6231 = vadd.f32 %v6166, %v6230
        %v6232 = vpop.f32.mrb[0].mxu0
        %6233 = vmatprep.mubr.bf16.mxu0 0
        %6234 = vmatmul.mubr.bf16.gmra.mrb[0].mxu0 %v1821
        %v6235 = vpop.f32.mrb[0].mxu0
        %v6236 = vadd.f32 %v6171, %v6235
        %v6237 = vpop.f32.mrb[0].mxu0
        %v6238 = vpop.f32.mrb[0].mxu0
        %v6239 = vadd.f32 %v6174, %v6238
        %v6240 = vpop.f32.mrb[0].mxu0
        %6241 = vmatprep.mubr.bf16.mxu0 0
        %6242 = vmatmul.mubr.bf16.gmra.mrb[0].mxu0 %v1866
        %v6243 = vpop.f32.mrb[0].mxu0
        %v6244 = vadd.f32 %v6179, %v6243
        %v6245 = vpop.f32.mrb[0].mxu0
        %v6246 = vpop.f32.mrb[0].mxu0
        %v6247 = vadd.f32 %v6182, %v6246
        %v6248 = vpop.f32.mrb[0].mxu0
        %6249 = vdwg.mxu0
        %6250 = vst [vmem:[%s363] sm:$0xff] %v6220
        %6251 = vst [vmem:[%s363 + $0x8] sm:$0xff] %v6223
        %6252 = vst [vmem:[%s363 + $0x10] sm:$0xff] %v6228
        %6253 = vst [vmem:[%s363 + $0x18] sm:$0xff] %v6231
        %6254 = vst [vmem:[%s363 + $0x20] sm:$0xff] %v6236
        %6255 = vst [vmem:[%s363 + $0x28] sm:$0xff] %v6239
        %6256 = vst [vmem:[%s363 + $0x30] sm:$0xff] %v6244
        %6257 = vst [vmem:[%s363 + $0x38] sm:$0xff] %v6247
        %p6258 = scmp.lt.s32.totalorder %s21, 1
        %s6259 = scalar_select %p6258, %s21, 1
        %s6260 = smul.addr %s6259, 8
        %s6261 = smul.addr %s6260, 8
        %s6262 = scalar_lea.vmem %s7, %s6261
        // Predicated region
        $region69: #{semishift_forward.1} parent=47 // pred_check
          %p6263 = pneg %p196
        $region70: #{semishift_forward.1} parent=47 // pred_check_branch
          %6265 = sbr.rel (%p6263) target = $region72
        $region71: #{semishift_forward.1} parent=47 // pred_region
          _
        $region72: #{semishift_forward.1} parent=47 // pred_fallthru
          _
      $region48: #{semishift_forward.1} parent=5 // pred_fallthru
        _
      %p6266 = scmp.le.s32.totalorder 2, %s16
      // Predicated region
      $region73: #{semishift_forward.1} parent=5 // pred_check
        %p6267 = pneg %p6266
      $region74: #{semishift_forward.1} parent=5 // pred_check_branch
        %6269 = sbr.rel (%p6267) target = $region76
      $region75: #{semishift_forward.1} parent=5 // pred_region
        %s6270 = ssub.s32 %s16, 2
        // Predicated region
        $region77: #{semishift_forward.1} parent=75 // pred_check
          %p6271 = pneg %p202
        $region78: #{semishift_forward.1} parent=75 // pred_check_branch
          %6273 = sbr.rel (%p6271) target = $region80
        $region79: #{semishift_forward.1} parent=75 // pred_region
          %p6274 = scmp.lt.s32.totalorder %s22, 1
          %s6275 = scalar_select %p6274, %s22, 1
          %s6276 = smul.addr %s6275, 8
          %s6277 = smul.addr %s6276, 8
          %s6278 = scalar_lea.vmem %s7, %s6277
        $region80: #{semishift_forward.1} parent=75 // pred_fallthru
          _
      $region76: #{semishift_forward.1} parent=5 // pred_fallthru
        _
    $region6: #{semishift_forward.1} parent=1 // loop_footer
      %s20 = sadd.s32 1, %s16
    $region7: #{semishift_forward.1} parent=1 // loop_footer_branch
      %15 = sbr.rel target = $region3
    $region8: #{semishift_forward.1} parent=1 // loop_exit
      _
    %6279 = vsyncpa [#allocation6], 1
    %s6280 = scalar_lea.sflag [#allocation6], 1
    %6281 = vsyncpa %s6280, 1
    %6282 = vsyncpa [#allocation8], 1
    %6283 = vsyncpa [#allocation11], 1

</llo_original>
